<compile_context>
chip_gen: v6e
topology: v6e:2x2x1
jax: 0.10.0
libtpu: 0.0.40
codegen_flags: <defaults>
</compile_context>

<pallas_src>
import functools
import math

import jax
import jax.numpy as jnp
from jax.experimental import pallas as pl
from jax.experimental.pallas import tpu as pltpu


# ----------------------------------------------------------------------------
# Pallas kernel: (M, K) @ (K, N) + bias, optional fused ReLU.
# Operands are cast to bf16 for the MXU; accumulate / bias / ReLU in f32.
# ----------------------------------------------------------------------------
def _matmul_bias_kernel(a_ref, w_ref, b_ref, o_ref, *, relu):
    a = a_ref[...].astype(jnp.bfloat16)
    w = w_ref[...].astype(jnp.bfloat16)
    acc = jnp.dot(a, w, preferred_element_type=jnp.float32)
    acc = acc + b_ref[...]
    if relu:
        acc = jnp.maximum(acc, 0.0)
    o_ref[...] = acc.astype(o_ref.dtype)


def _pick_tile_m(m, cap=256):
    if m <= cap:
        return m
    for t in range(cap, 7, -8):          # largest multiple-of-8 divisor <= cap
        if m % t == 0:
            return t
    return m                              # fall back to a single full-M block


def _pick_tile_n(n, cap=512):
    if n <= cap:
        return n
    for t in range(cap, 127, -128):      # largest multiple-of-128 divisor <= cap
        if n % t == 0:
            return t
    return n


def matmul_bias(a, w, b, *, relu=False, out_dtype=jnp.float32):
    """Tiled (M,K) @ (K,N) + b with fused ReLU.  2-D parallel grid over (M, N)."""
    M, K = a.shape
    K2, N = w.shape
    assert K == K2, (K, K2)
    tm = _pick_tile_m(M)
    tn = _pick_tile_n(N)
    kernel = functools.partial(_matmul_bias_kernel, relu=relu)
    return pl.pallas_call(
        kernel,
        out_shape=jax.ShapeDtypeStruct((M, N), out_dtype),
        grid=(pl.cdiv(M, tm), pl.cdiv(N, tn)),
        in_specs=[
            pl.BlockSpec((tm, K), lambda i, j: (i, 0)),
            pl.BlockSpec((K, tn), lambda i, j: (0, j)),
            pl.BlockSpec((1, tn), lambda i, j: (0, j)),
        ],
        out_specs=pl.BlockSpec((tm, tn), lambda i, j: (i, j)),
        compiler_params=pltpu.CompilerParams(
            dimension_semantics=("parallel", "parallel")),
    )(a, w, b.reshape(1, N).astype(jnp.float32))


# ----------------------------------------------------------------------------
# Glue: im2col patch extraction (data rearrangement only; compute is in Pallas)
# ----------------------------------------------------------------------------
def im2col(x_nhwc, k, stride):
    N, H, W, C = x_nhwc.shape
    Ho = (H - k) // stride + 1
    Wo = (W - k) // stride + 1
    cols = []
    for i in range(k):
        for j in range(k):
            cols.append(x_nhwc[:, i:i + stride * Ho:stride, j:j + stride * Wo:stride, :])
    # (N, Ho, Wo, k*k, C) flattened as (kh, kw, cin) -> matches weight layout below.
    patches = jnp.stack(cols, axis=3).reshape(N * Ho * Wo, k * k * C)
    return patches, (N, Ho, Wo)


# ----------------------------------------------------------------------------
# Forward passes
# ----------------------------------------------------------------------------
def conv_net_forward(x_nchw, cp):
    # x.float()/255 is folded into cp["w1"]; pixels 0..255 are exact in bf16.
    x = jnp.transpose(x_nchw, (0, 2, 3, 1)).astype(jnp.bfloat16)          # NCHW -> NHWC

    p, (N, Ho, Wo) = im2col(x, 8, 4)                                       # conv1: 84 -> 20
    x = matmul_bias(p, cp["w1"], cp["b1"], relu=True,
                    out_dtype=jnp.bfloat16).reshape(N, Ho, Wo, 32)

    p, (N, Ho, Wo) = im2col(x, 4, 2)                                       # conv2: 20 -> 9
    x = matmul_bias(p, cp["w2"], cp["b2"], relu=True,
                    out_dtype=jnp.bfloat16).reshape(N, Ho, Wo, 64)

    p, (N, Ho, Wo) = im2col(x, 3, 1)                                       # conv3: 9 -> 7
    x = matmul_bias(p, cp["w3"], cp["b3"], relu=True,
                    out_dtype=jnp.bfloat16).reshape(N, Ho, Wo, 64)

    # Natural NHWC flatten (H, W, C); the head fc1 weights are stored for this
    # order (permute rows once when importing a PyTorch (C, H, W) checkpoint).
    return x.reshape(N, Ho * Wo * 64)


def boot_net_forward(x, params, head_index=None):
    """Matches BootNet.forward: list of per-head (N, 4) Q-values, or one head."""
    feat = conv_net_forward(x, params["conv"])                              # (N, 3136) bf16
    hidden = matmul_bias(feat, params["head_fc1_w"], params["head_fc1_b"],
                         relu=True, out_dtype=jnp.bfloat16)                 # (N, D*H)
    q_all = matmul_bias(hidden, params["head_fc2_w"], params["head_fc2_b"],
                        relu=False, out_dtype=jnp.float32)                  # (N, pad128)
    A = params["n_actions"]
    if head_index is not None:
        return q_all[:, head_index * A:(head_index + 1) * A]
    return [q_all[:, h * A:(h + 1) * A] for h in range(params["n_heads"])]


# ----------------------------------------------------------------------------
# Parameter init (PyTorch-default uniform(-1/sqrt(fan_in), +)) and packing into
# the merged / block-diagonal layout consumed by the kernels above.
# ----------------------------------------------------------------------------
def init_params(key, n_heads, duel=False):
    keys = iter(jax.random.split(key, 3 + 3 * n_heads))

    def lin_init(k, fan_in, fan_out):
        kw, kb = jax.random.split(k)
        bound = 1.0 / math.sqrt(fan_in)
        w = jax.random.uniform(kw, (fan_in, fan_out), jnp.float32, -bound, bound)
        b = jax.random.uniform(kb, (fan_out,), jnp.float32, -bound, bound)
        return w, b

    # Conv weights stored directly in im2col layout (kh*kw*Cin, Cout).
    w1, b1 = lin_init(next(keys), 4 * 8 * 8, 32)
    w2, b2 = lin_init(next(keys), 32 * 4 * 4, 64)
    w3, b3 = lin_init(next(keys), 64 * 3 * 3, 64)
    conv = dict(
        # Fold the 1/255 input scaling into w1 (x/255 @ w == x @ (w/255)).
        w1=(w1 / 255.0).astype(jnp.bfloat16), b1=b1,
        w2=w2.astype(jnp.bfloat16), b2=b2,
        w3=w3.astype(jnp.bfloat16), b3=b3,
    )

    n_actions = 4
    fc1_ws, fc1_bs, fc2_blocks, fc2_bias_blocks = [], [], [], []
    for _ in range(n_heads):
        if duel:
            fc_w, fc_b = lin_init(next(keys), 64 * 7 * 7, 1024)
            val_w, val_b = lin_init(next(keys), 512, 1)
            adv_w, adv_b = lin_init(next(keys), 512, 4)
            # val + adv - mean(adv) is linear in the 1024-d hidden: fold it into
            # one (1024, 4) weight and (4,) bias (exact reformulation).
            w_q = jnp.concatenate(
                [jnp.tile(val_w, (1, n_actions)),
                 adv_w - jnp.mean(adv_w, axis=1, keepdims=True)], axis=0)
            b_q = val_b + adv_b - jnp.mean(adv_b)
            fc1_ws.append(fc_w); fc1_bs.append(fc_b)
            fc2_blocks.append(w_q); fc2_bias_blocks.append(b_q)
        else:
            fc1_w, fc1_b = lin_init(next(keys), 64 * 7 * 7, 512)
            fc2_w, fc2_b = lin_init(next(keys), 512, 4)
            fc1_ws.append(fc1_w); fc1_bs.append(fc1_b)
            fc2_blocks.append(fc2_w); fc2_bias_blocks.append(fc2_b)

    D = fc1_ws[0].shape[1]                         # 512 (LinNet) or 1024 (DuelNet)
    # Merge every head: one wide fc1, one block-diagonal second layer whose
    # output dim is zero-padded to a multiple of 128 lanes (sliced off outside).
    fc1_w = jnp.concatenate(fc1_ws, axis=1)                         # (3136, D*H)
    fc1_b = jnp.concatenate(fc1_bs, axis=0)                         # (D*H,)
    out_pad = max(128, ((n_actions * n_heads + 127) // 128) * 128)
    fc2_w = jnp.zeros((D * n_heads, out_pad), jnp.float32)
    fc2_b = jnp.zeros((out_pad,), jnp.float32)
    for h, (blk, bb) in enumerate(zip(fc2_blocks, fc2_bias_blocks)):
        fc2_w = fc2_w.at[h * D:(h + 1) * D, h * n_actions:(h + 1) * n_actions].set(blk)
        fc2_b = fc2_b.at[h * n_actions:(h + 1) * n_actions].set(bb)

    return dict(
        conv=conv,
        head_fc1_w=fc1_w.astype(jnp.bfloat16), head_fc1_b=fc1_b,
        head_fc2_w=fc2_w.astype(jnp.bfloat16), head_fc2_b=fc2_b,
        n_heads=n_heads, n_actions=n_actions, duel=duel,
    )


# ----------------------------------------------------------------------------
if __name__ == "__main__":
    key = jax.random.PRNGKey(0)
    k_x, k_p = jax.random.split(key)

    # Atari-style frame stack: the trunk's view(-1, 64*7*7) forces 84x84 input.
    x = jax.random.randint(k_x, (2, 4, 84, 84), 0, 256, dtype=jnp.int32).astype(jnp.uint8)

    n_heads = 3
    params = init_params(k_p, n_heads, duel=False)     # duel=False -> LinNet heads

    fwd_all = jax.jit(lambda xx: boot_net_forward(xx, params))
    fwd_one = jax.jit(lambda xx: boot_net_forward(xx, params, head_index=1))

    outs = jax.block_until_ready(fwd_all(x))            # list of (2, 4)
    single = jax.block_until_ready(fwd_one(x))          # (2, 4)

    assert len(outs) == n_heads
    assert all(o.shape == (2, 4) and o.dtype == jnp.float32 for o in outs)
    assert single.shape == (2, 4)
    assert jnp.allclose(single, outs[1])

    # Also exercise the DuelNet head path (folded dueling combine).
    duel_params = init_params(k_p, 2, duel=True)
    duel_out = jax.block_until_ready(
        jax.jit(lambda xx: boot_net_forward(xx, duel_params, head_index=0))(x))
    assert duel_out.shape == (2, 4) and duel_out.dtype == jnp.float32

    print("KERNEL_OK")
</pallas_src>

<mosaic_0001>
module attributes {stable_mosaic.version = 11 : i64} {
  func.func @_matmul_bias_kernel(%arg0: i32, %arg1: i32, %arg2: memref<200x256xbf16, #tpu.memory_space<vmem>>, %arg3: memref<256x32xbf16, #tpu.memory_space<vmem>>, %arg4: memref<1x32xf32, #tpu.memory_space<vmem>>, %arg5: memref<200x32xbf16, #tpu.memory_space<vmem>>) attributes {dimension_semantics = [#tpu.dimension_semantics<parallel>, #tpu.dimension_semantics<parallel>], iteration_bounds = array<i64: 4, 1>, scalar_prefetch = 0 : i64, scratch_operands = 0 : i64, tpu.core_type = #tpu.core_type<tc>, window_params = [{transform_indices = @transform_0, window_bounds = array<i64: 200, 256>}, {transform_indices = @transform_1, window_bounds = array<i64: 256, 32>}, {transform_indices = @transform_2, window_bounds = array<i64: 1, 32>}, {transform_indices = @transform_3, window_bounds = array<i64: 200, 32>}]} {
    %c0 = arith.constant 0 : index
    %c0_0 = arith.constant 0 : index
    %0 = vector.load %arg2[%c0, %c0_0] : memref<200x256xbf16, #tpu.memory_space<vmem>>, vector<200x256xbf16>
    %c0_1 = arith.constant 0 : index
    %c0_2 = arith.constant 0 : index
    %1 = vector.load %arg3[%c0_1, %c0_2] : memref<256x32xbf16, #tpu.memory_space<vmem>>, vector<256x32xbf16>
    %cst = arith.constant dense<0.000000e+00> : vector<200x32xf32>
    %2 = tpu.matmul %0, %1, %cst {dimension_numbers = #tpu.dot_dimension_numbers<[1], [0], [0], [1], [0, 0, 1, 1], [], []>} : vector<200x256xbf16>, vector<256x32xbf16>, vector<200x32xf32> -> vector<200x32xf32>
    %c0_3 = arith.constant 0 : index
    %c0_4 = arith.constant 0 : index
    %3 = vector.load %arg4[%c0_3, %c0_4] : memref<1x32xf32, #tpu.memory_space<vmem>>, vector<1x32xf32>
    %4 = vector.broadcast %3 : vector<1x32xf32> to vector<200x32xf32>
    %5 = arith.addf %2, %4 : vector<200x32xf32>
    %cst_5 = arith.constant 0.000000e+00 : f32
    %6 = vector.broadcast %cst_5 : f32 to vector<200x32xf32>
    %7 = arith.maximumf %5, %6 : vector<200x32xf32>
    %8 = arith.truncf %7 : vector<200x32xf32> to vector<200x32xbf16>
    %c0_6 = arith.constant 0 : index
    %c0_7 = arith.constant 0 : index
    %9 = vector.load %arg5[%c0_6, %c0_7] : memref<200x32xbf16, #tpu.memory_space<vmem>>, vector<200x32xbf16>
    tpu.vector_store %arg5[%c0_6, %c0_7], %8 {strides = array<i32>} : memref<200x32xbf16, #tpu.memory_space<vmem>>, vector<200x32xbf16>,
    return
  }
  func.func @transform_0(%arg0: i32, %arg1: i32) -> (i32, i32) {
    %c0_i32 = arith.constant 0 : i32
    %c0_i32_0 = arith.constant 0 : i32
    return %arg0, %c0_i32 : i32, i32
  }
  func.func @transform_1(%arg0: i32, %arg1: i32) -> (i32, i32) {
    %c0_i32 = arith.constant 0 : i32
    %c0_i32_0 = arith.constant 0 : i32
    return %c0_i32, %arg1 : i32, i32
  }
  func.func @transform_2(%arg0: i32, %arg1: i32) -> (i32, i32) {
    %c0_i32 = arith.constant 0 : i32
    %c0_i32_0 = arith.constant 0 : i32
    return %c0_i32, %arg1 : i32, i32
  }
  func.func @transform_3(%arg0: i32, %arg1: i32) -> (i32, i32) {
    %c0_i32 = arith.constant 0 : i32
    return %arg0, %arg1 : i32, i32
  }
}

module attributes {stable_mosaic.version = 11 : i64} {
  func.func @_matmul_bias_kernel(%arg0: i32, %arg1: i32, %arg2: memref<162x512xbf16, #tpu.memory_space<vmem>>, %arg3: memref<512x64xbf16, #tpu.memory_space<vmem>>, %arg4: memref<1x64xf32, #tpu.memory_space<vmem>>, %arg5: memref<162x64xbf16, #tpu.memory_space<vmem>>) attributes {dimension_semantics = [#tpu.dimension_semantics<parallel>, #tpu.dimension_semantics<parallel>], iteration_bounds = array<i64: 1, 1>, scalar_prefetch = 0 : i64, scratch_operands = 0 : i64, tpu.core_type = #tpu.core_type<tc>, window_params = [{transform_indices = @transform_0, window_bounds = array<i64: 162, 512>}, {transform_indices = @transform_1, window_bounds = array<i64: 512, 64>}, {transform_indices = @transform_2, window_bounds = array<i64: 1, 64>}, {transform_indices = @transform_3, window_bounds = array<i64: 162, 64>}]} {
    %c0 = arith.constant 0 : index
    %c0_0 = arith.constant 0 : index
    %0 = vector.load %arg2[%c0, %c0_0] : memref<162x512xbf16, #tpu.memory_space<vmem>>, vector<162x512xbf16>
    %c0_1 = arith.constant 0 : index
    %c0_2 = arith.constant 0 : index
    %1 = vector.load %arg3[%c0_1, %c0_2] : memref<512x64xbf16, #tpu.memory_space<vmem>>, vector<512x64xbf16>
    %cst = arith.constant dense<0.000000e+00> : vector<162x64xf32>
    %2 = tpu.matmul %0, %1, %cst {dimension_numbers = #tpu.dot_dimension_numbers<[1], [0], [0], [1], [0, 0, 1, 1], [], []>} : vector<162x512xbf16>, vector<512x64xbf16>, vector<162x64xf32> -> vector<162x64xf32>
    %c0_3 = arith.constant 0 : index
    %c0_4 = arith.constant 0 : index
    %3 = vector.load %arg4[%c0_3, %c0_4] : memref<1x64xf32, #tpu.memory_space<vmem>>, vector<1x64xf32>
    %4 = vector.broadcast %3 : vector<1x64xf32> to vector<162x64xf32>
    %5 = arith.addf %2, %4 : vector<162x64xf32>
    %cst_5 = arith.constant 0.000000e+00 : f32
    %6 = vector.broadcast %cst_5 : f32 to vector<162x64xf32>
    %7 = arith.maximumf %5, %6 : vector<162x64xf32>
    %8 = arith.truncf %7 : vector<162x64xf32> to vector<162x64xbf16>
    %c0_6 = arith.constant 0 : index
    %c0_7 = arith.constant 0 : index
    %9 = vector.load %arg5[%c0_6, %c0_7] : memref<162x64xbf16, #tpu.memory_space<vmem>>, vector<162x64xbf16>
    tpu.vector_store %arg5[%c0_6, %c0_7], %8 {strides = array<i32>} : memref<162x64xbf16, #tpu.memory_space<vmem>>, vector<162x64xbf16>,
    return
  }
  func.func @transform_0(%arg0: i32, %arg1: i32) -> (i32, i32) {
    %c0_i32 = arith.constant 0 : i32
    %c0_i32_0 = arith.constant 0 : i32
    return %arg0, %c0_i32 : i32, i32
  }
  func.func @transform_1(%arg0: i32, %arg1: i32) -> (i32, i32) {
    %c0_i32 = arith.constant 0 : i32
    %c0_i32_0 = arith.constant 0 : i32
    return %c0_i32, %arg1 : i32, i32
  }
  func.func @transform_2(%arg0: i32, %arg1: i32) -> (i32, i32) {
    %c0_i32 = arith.constant 0 : i32
    %c0_i32_0 = arith.constant 0 : i32
    return %c0_i32, %arg1 : i32, i32
  }
  func.func @transform_3(%arg0: i32, %arg1: i32) -> (i32, i32) {
    %c0_i32 = arith.constant 0 : i32
    return %arg0, %arg1 : i32, i32
  }
}

module attributes {stable_mosaic.version = 11 : i64} {
  func.func @_matmul_bias_kernel(%arg0: i32, %arg1: i32, %arg2: memref<98x576xbf16, #tpu.memory_space<vmem>>, %arg3: memref<576x64xbf16, #tpu.memory_space<vmem>>, %arg4: memref<1x64xf32, #tpu.memory_space<vmem>>, %arg5: memref<98x64xbf16, #tpu.memory_space<vmem>>) attributes {dimension_semantics = [#tpu.dimension_semantics<parallel>, #tpu.dimension_semantics<parallel>], iteration_bounds = array<i64: 1, 1>, scalar_prefetch = 0 : i64, scratch_operands = 0 : i64, tpu.core_type = #tpu.core_type<tc>, window_params = [{transform_indices = @transform_0, window_bounds = array<i64: 98, 576>}, {transform_indices = @transform_1, window_bounds = array<i64: 576, 64>}, {transform_indices = @transform_2, window_bounds = array<i64: 1, 64>}, {transform_indices = @transform_3, window_bounds = array<i64: 98, 64>}]} {
    %c0 = arith.constant 0 : index
    %c0_0 = arith.constant 0 : index
    %0 = vector.load %arg2[%c0, %c0_0] : memref<98x576xbf16, #tpu.memory_space<vmem>>, vector<98x576xbf16>
    %c0_1 = arith.constant 0 : index
    %c0_2 = arith.constant 0 : index
    %1 = vector.load %arg3[%c0_1, %c0_2] : memref<576x64xbf16, #tpu.memory_space<vmem>>, vector<576x64xbf16>
    %cst = arith.constant dense<0.000000e+00> : vector<98x64xf32>
    %2 = tpu.matmul %0, %1, %cst {dimension_numbers = #tpu.dot_dimension_numbers<[1], [0], [0], [1], [0, 0, 1, 1], [], []>} : vector<98x576xbf16>, vector<576x64xbf16>, vector<98x64xf32> -> vector<98x64xf32>
    %c0_3 = arith.constant 0 : index
    %c0_4 = arith.constant 0 : index
    %3 = vector.load %arg4[%c0_3, %c0_4] : memref<1x64xf32, #tpu.memory_space<vmem>>, vector<1x64xf32>
    %4 = vector.broadcast %3 : vector<1x64xf32> to vector<98x64xf32>
    %5 = arith.addf %2, %4 : vector<98x64xf32>
    %cst_5 = arith.constant 0.000000e+00 : f32
    %6 = vector.broadcast %cst_5 : f32 to vector<98x64xf32>
    %7 = arith.maximumf %5, %6 : vector<98x64xf32>
    %8 = arith.truncf %7 : vector<98x64xf32> to vector<98x64xbf16>
    %c0_6 = arith.constant 0 : index
    %c0_7 = arith.constant 0 : index
    %9 = vector.load %arg5[%c0_6, %c0_7] : memref<98x64xbf16, #tpu.memory_space<vmem>>, vector<98x64xbf16>
    tpu.vector_store %arg5[%c0_6, %c0_7], %8 {strides = array<i32>} : memref<98x64xbf16, #tpu.memory_space<vmem>>, vector<98x64xbf16>,
    return
  }
  func.func @transform_0(%arg0: i32, %arg1: i32) -> (i32, i32) {
    %c0_i32 = arith.constant 0 : i32
    %c0_i32_0 = arith.constant 0 : i32
    return %arg0, %c0_i32 : i32, i32
  }
  func.func @transform_1(%arg0: i32, %arg1: i32) -> (i32, i32) {
    %c0_i32 = arith.constant 0 : i32
    %c0_i32_0 = arith.constant 0 : i32
    return %c0_i32, %arg1 : i32, i32
  }
  func.func @transform_2(%arg0: i32, %arg1: i32) -> (i32, i32) {
    %c0_i32 = arith.constant 0 : i32
    %c0_i32_0 = arith.constant 0 : i32
    return %c0_i32, %arg1 : i32, i32
  }
  func.func @transform_3(%arg0: i32, %arg1: i32) -> (i32, i32) {
    %c0_i32 = arith.constant 0 : i32
    return %arg0, %arg1 : i32, i32
  }
}

module attributes {stable_mosaic.version = 11 : i64} {
  func.func @_matmul_bias_kernel(%arg0: i32, %arg1: i32, %arg2: memref<2x3136xbf16, #tpu.memory_space<vmem>>, %arg3: memref<3136x512xbf16, #tpu.memory_space<vmem>>, %arg4: memref<1x512xf32, #tpu.memory_space<vmem>>, %arg5: memref<2x512xbf16, #tpu.memory_space<vmem>>) attributes {dimension_semantics = [#tpu.dimension_semantics<parallel>, #tpu.dimension_semantics<parallel>], iteration_bounds = array<i64: 1, 3>, scalar_prefetch = 0 : i64, scratch_operands = 0 : i64, tpu.core_type = #tpu.core_type<tc>, window_params = [{transform_indices = @transform_0, window_bounds = array<i64: 2, 3136>}, {transform_indices = @transform_1, window_bounds = array<i64: 3136, 512>}, {transform_indices = @transform_2, window_bounds = array<i64: 1, 512>}, {transform_indices = @transform_3, window_bounds = array<i64: 2, 512>}]} {
    %c0 = arith.constant 0 : index
    %c0_0 = arith.constant 0 : index
    %0 = vector.load %arg2[%c0, %c0_0] : memref<2x3136xbf16, #tpu.memory_space<vmem>>, vector<2x3136xbf16>
    %c0_1 = arith.constant 0 : index
    %c0_2 = arith.constant 0 : index
    %1 = vector.load %arg3[%c0_1, %c0_2] : memref<3136x512xbf16, #tpu.memory_space<vmem>>, vector<3136x512xbf16>
    %cst = arith.constant dense<0.000000e+00> : vector<2x512xf32>
    %2 = tpu.matmul %0, %1, %cst {dimension_numbers = #tpu.dot_dimension_numbers<[1], [0], [0], [1], [0, 0, 1, 1], [], []>} : vector<2x3136xbf16>, vector<3136x512xbf16>, vector<2x512xf32> -> vector<2x512xf32>
    %c0_3 = arith.constant 0 : index
    %c0_4 = arith.constant 0 : index
    %3 = vector.load %arg4[%c0_3, %c0_4] : memref<1x512xf32, #tpu.memory_space<vmem>>, vector<1x512xf32>
    %4 = vector.broadcast %3 : vector<1x512xf32> to vector<2x512xf32>
    %5 = arith.addf %2, %4 : vector<2x512xf32>
    %cst_5 = arith.constant 0.000000e+00 : f32
    %6 = vector.broadcast %cst_5 : f32 to vector<2x512xf32>
    %7 = arith.maximumf %5, %6 : vector<2x512xf32>
    %8 = arith.truncf %7 : vector<2x512xf32> to vector<2x512xbf16>
    %c0_6 = arith.constant 0 : index
    %c0_7 = arith.constant 0 : index
    %9 = vector.load %arg5[%c0_6, %c0_7] : memref<2x512xbf16, #tpu.memory_space<vmem>>, vector<2x512xbf16>
    tpu.vector_store %arg5[%c0_6, %c0_7], %8 {strides = array<i32>} : memref<2x512xbf16, #tpu.memory_space<vmem>>, vector<2x512xbf16>,
    return
  }
  func.func @transform_0(%arg0: i32, %arg1: i32) -> (i32, i32) {
    %c0_i32 = arith.constant 0 : i32
    %c0_i32_0 = arith.constant 0 : i32
    return %arg0, %c0_i32 : i32, i32
  }
  func.func @transform_1(%arg0: i32, %arg1: i32) -> (i32, i32) {
    %c0_i32 = arith.constant 0 : i32
    %c0_i32_0 = arith.constant 0 : i32
    return %c0_i32, %arg1 : i32, i32
  }
  func.func @transform_2(%arg0: i32, %arg1: i32) -> (i32, i32) {
    %c0_i32 = arith.constant 0 : i32
    %c0_i32_0 = arith.constant 0 : i32
    return %c0_i32, %arg1 : i32, i32
  }
  func.func @transform_3(%arg0: i32, %arg1: i32) -> (i32, i32) {
    %c0_i32 = arith.constant 0 : i32
    return %arg0, %arg1 : i32, i32
  }
}

module attributes {stable_mosaic.version = 11 : i64} {
  func.func @_matmul_bias_kernel(%arg0: i32, %arg1: i32, %arg2: memref<2x1536xbf16, #tpu.memory_space<vmem>>, %arg3: memref<1536x128xbf16, #tpu.memory_space<vmem>>, %arg4: memref<1x128xf32, #tpu.memory_space<vmem>>, %arg5: memref<2x128xf32, #tpu.memory_space<vmem>>) attributes {dimension_semantics = [#tpu.dimension_semantics<parallel>, #tpu.dimension_semantics<parallel>], iteration_bounds = array<i64: 1, 1>, scalar_prefetch = 0 : i64, scratch_operands = 0 : i64, tpu.core_type = #tpu.core_type<tc>, window_params = [{transform_indices = @transform_0, window_bounds = array<i64: 2, 1536>}, {transform_indices = @transform_1, window_bounds = array<i64: 1536, 128>}, {transform_indices = @transform_2, window_bounds = array<i64: 1, 128>}, {transform_indices = @transform_3, window_bounds = array<i64: 2, 128>}]} {
    %c0 = arith.constant 0 : index
    %c0_0 = arith.constant 0 : index
    %0 = vector.load %arg2[%c0, %c0_0] : memref<2x1536xbf16, #tpu.memory_space<vmem>>, vector<2x1536xbf16>
    %c0_1 = arith.constant 0 : index
    %c0_2 = arith.constant 0 : index
    %1 = vector.load %arg3[%c0_1, %c0_2] : memref<1536x128xbf16, #tpu.memory_space<vmem>>, vector<1536x128xbf16>
    %cst = arith.constant dense<0.000000e+00> : vector<2x128xf32>
    %2 = tpu.matmul %0, %1, %cst {dimension_numbers = #tpu.dot_dimension_numbers<[1], [0], [0], [1], [0, 0, 1, 1], [], []>} : vector<2x1536xbf16>, vector<1536x128xbf16>, vector<2x128xf32> -> vector<2x128xf32>
    %c0_3 = arith.constant 0 : index
    %c0_4 = arith.constant 0 : index
    %3 = vector.load %arg4[%c0_3, %c0_4] : memref<1x128xf32, #tpu.memory_space<vmem>>, vector<1x128xf32>
    %4 = vector.broadcast %3 : vector<1x128xf32> to vector<2x128xf32>
    %5 = arith.addf %2, %4 : vector<2x128xf32>
    %c0_5 = arith.constant 0 : index
    %c0_6 = arith.constant 0 : index
    %6 = vector.load %arg5[%c0_5, %c0_6] : memref<2x128xf32, #tpu.memory_space<vmem>>, vector<2x128xf32>
    tpu.vector_store %arg5[%c0_5, %c0_6], %5 {strides = array<i32>} : memref<2x128xf32, #tpu.memory_space<vmem>>, vector<2x128xf32>,
    return
  }
  func.func @transform_0(%arg0: i32, %arg1: i32) -> (i32, i32) {
    %c0_i32 = arith.constant 0 : i32
    %c0_i32_0 = arith.constant 0 : i32
    return %arg0, %c0_i32 : i32, i32
  }
  func.func @transform_1(%arg0: i32, %arg1: i32) -> (i32, i32) {
    %c0_i32 = arith.constant 0 : i32
    %c0_i32_0 = arith.constant 0 : i32
    return %c0_i32, %arg1 : i32, i32
  }
  func.func @transform_2(%arg0: i32, %arg1: i32) -> (i32, i32) {
    %c0_i32 = arith.constant 0 : i32
    %c0_i32_0 = arith.constant 0 : i32
    return %c0_i32, %arg1 : i32, i32
  }
  func.func @transform_3(%arg0: i32, %arg1: i32) -> (i32, i32) {
    %c0_i32 = arith.constant 0 : i32
    return %arg0, %arg1 : i32, i32
  }
}

</mosaic_0001>

<llo_original>
// kernel: _lambda_.5
$region0: #{_lambda_.5}
  #allocation0 [shape = 'u32[]', space=smem, size = 0x4, offset = 0x4, fixed_abs, tag = 'smem constant byte address 0x4 - core index']
  #allocation1 [shape = 'u32[144,128]{1,0:T(1,128)}', space=vmem, size = 0x12000, scoped, tag = 'internal scratch']
  %s0 = inlined_call_operand.vmem [shape: bf16[800,256], index: 0, kind: input, shape index: {}]
  %s1 = inlined_call_operand.vmem [shape: bf16[256,32], index: 1, kind: input, shape index: {}]
  %s2 = inlined_call_operand.vmem [shape: f32[1,32], index: 2, kind: input, shape index: {}]
  %s3 = inlined_call_operand.vmem [shape: bf16[800,32], index: 3, kind: output, shape index: {}]
  %s4 = sld [smem:[#allocation0]]
  $region45: #{_lambda_.5} parent=0
    _
  %s6 = ssub.s32 1, %s4
  %s7 = scalar_select 0, %s6, %s4
  loop: start=0, step=1, limit=6
  $region2: #{_lambda_.5} parent=0 // loop_pre_header
    _
  $region3: #{_lambda_.5} parent=0 // loop_header
    %s9 = sphi 0, %s13
    %p10 = scmp.ge.s32.totalorder %s9, 6
    %s16 = sphi 0, %s28
    %s17 = sphi 0, %s24
    %s18 = sphi 0, %s16
    %s19 = sphi 0, %s17
    %s20 = sphi 0, %s18
    %s21 = sphi 0, %s19
    %s31 = sphi 0, %s33
    %s34 = sphi 0, %s31
    %s35 = sphi 0, %s34
    %s51 = sphi 0, %s35
    %s57 = sphi 0, %s59
    %s60 = sphi 0, %s57
    %s61 = sphi 0, %s60
    %s77 = sphi 0, %s61
    %s83 = sphi 0, %s85
    %s86 = sphi 0, %s83
    %s87 = sphi 0, %s86
    %s103 = sphi 0, %s87
    %s111 = sphi 0, %s113
    %s114 = sphi 0, %s111
    %s115 = sphi 0, %s114
    %s131 = sphi 0, %s115
  $region4: #{_lambda_.5} parent=0 // loop_header_branch
    %12 = sbr.rel (%p10) target = $region8
  $region5: #{_lambda_.5} parent=0 // loop_body
    %s14 = ssub.s32 %s9, 1
    %s15 = ssub.s32 %s9, 2
    %s22 = sadd.s32 1, %s17
    %p23 = scmp.ge.s32.totalorder %s22, 1
    %s24 = scalar_select %p23, 0, %s22
    %s25 = sadd.s32 1, %s16
    %s26 = scalar_select %p23, %s25, %s16
    %p27 = scmp.ge.s32.totalorder %s26, 4
    %s28 = scalar_select %p27, 0, %s26
    %s29 = ssub.s32 %s16, %s28
    %p30 = scmp.eq.s32.totalorder %s29, 0
    %s32 = sadd.s32 %s31, 1
    %s33 = scalar_select %p30, %s31, %s32
    %p36 = pneg %p30
    %p37 = scmp.eq.s32.totalorder %s9, 3
    %p38 = por %p36, %p37
    %p39 = scmp.ne.s32.totalorder %s31, %s34
    %p40 = scmp.eq.s32.totalorder %s9, 0
    %p41 = por %p39, %p40
    %p42 = scmp.ne.s32.totalorder %s31, %s34
    %p43 = scmp.eq.s32.totalorder %s14, 3
    %p44 = por %p42, %p43
    %p45 = scmp.ne.s32.totalorder %s34, %s35
    %p46 = scmp.eq.s32.totalorder %s14, 0
    %p47 = por %p45, %p46
    %p48 = scmp.ne.s32.totalorder %s34, %s35
    %p49 = scmp.eq.s32.totalorder %s15, 3
    %p50 = por %p48, %p49
    %p52 = scmp.ne.s32.totalorder %s35, %s51
    %p53 = scmp.eq.s32.totalorder %s15, 0
    %p54 = por %p52, %p53
    %s55 = ssub.s32 %s17, %s24
    %p56 = scmp.eq.s32.totalorder %s55, 0
    %s58 = sadd.s32 %s57, 1
    %s59 = scalar_select %p56, %s57, %s58
    %p62 = pneg %p56
    %p63 = scmp.eq.s32.totalorder %s9, 3
    %p64 = por %p62, %p63
    %p65 = scmp.ne.s32.totalorder %s57, %s60
    %p66 = scmp.eq.s32.totalorder %s9, 0
    %p67 = por %p65, %p66
    %p68 = scmp.ne.s32.totalorder %s57, %s60
    %p69 = scmp.eq.s32.totalorder %s14, 3
    %p70 = por %p68, %p69
    %p71 = scmp.ne.s32.totalorder %s60, %s61
    %p72 = scmp.eq.s32.totalorder %s14, 0
    %p73 = por %p71, %p72
    %p74 = scmp.ne.s32.totalorder %s60, %s61
    %p75 = scmp.eq.s32.totalorder %s15, 3
    %p76 = por %p74, %p75
    %p78 = scmp.ne.s32.totalorder %s61, %s77
    %p79 = scmp.eq.s32.totalorder %s15, 0
    %p80 = por %p78, %p79
    %s81 = ssub.s32 %s17, %s24
    %p82 = scmp.eq.s32.totalorder %s81, 0
    %s84 = sadd.s32 %s83, 1
    %s85 = scalar_select %p82, %s83, %s84
    %p88 = pneg %p82
    %p89 = scmp.eq.s32.totalorder %s9, 3
    %p90 = por %p88, %p89
    %p91 = scmp.ne.s32.totalorder %s83, %s86
    %p92 = scmp.eq.s32.totalorder %s9, 0
    %p93 = por %p91, %p92
    %p94 = scmp.ne.s32.totalorder %s83, %s86
    %p95 = scmp.eq.s32.totalorder %s14, 3
    %p96 = por %p94, %p95
    %p97 = scmp.ne.s32.totalorder %s86, %s87
    %p98 = scmp.eq.s32.totalorder %s14, 0
    %p99 = por %p97, %p98
    %p100 = scmp.ne.s32.totalorder %s86, %s87
    %p101 = scmp.eq.s32.totalorder %s15, 3
    %p102 = por %p100, %p101
    %p104 = scmp.ne.s32.totalorder %s87, %s103
    %p105 = scmp.eq.s32.totalorder %s15, 0
    %p106 = por %p104, %p105
    %s107 = ssub.s32 %s16, %s28
    %s108 = ssub.s32 %s17, %s24
    %s109 = sor.u32 %s107, %s108
    %p110 = scmp.eq.s32.totalorder %s109, 0
    %s112 = sadd.s32 %s111, 1
    %s113 = scalar_select %p110, %s111, %s112
    %p116 = pneg %p110
    %p117 = scmp.eq.s32.totalorder %s9, 3
    %p118 = por %p116, %p117
    %p119 = scmp.ne.s32.totalorder %s111, %s114
    %p120 = scmp.eq.s32.totalorder %s9, 0
    %p121 = por %p119, %p120
    %p122 = scmp.ne.s32.totalorder %s111, %s114
    %p123 = scmp.eq.s32.totalorder %s14, 3
    %p124 = por %p122, %p123
    %p125 = scmp.ne.s32.totalorder %s114, %s115
    %p126 = scmp.eq.s32.totalorder %s14, 0
    %p127 = por %p125, %p126
    %p128 = scmp.ne.s32.totalorder %s114, %s115
    %p129 = scmp.eq.s32.totalorder %s15, 3
    %p130 = por %p128, %p129
    %p132 = scmp.ne.s32.totalorder %s115, %s131
    %p133 = scmp.eq.s32.totalorder %s15, 0
    %p134 = por %p132, %p133
    %p135 = scmp.le.s32.totalorder 1, %s9
    %p136 = scmp.lt.s32.totalorder %s9, 5
    %p137 = pnand %p135, %p136
    %p138 = pneg %p137
    // Predicated region
    $region9: #{_lambda_.5} parent=5 // pred_check
      _
    $region10: #{_lambda_.5} parent=5 // pred_check_branch
      %140 = sbr.rel (%p137) target = $region12
    $region11: #{_lambda_.5} parent=5 // pred_region
      %s141 = ssub.s32 %s9, 1
      // Predicated region
      $region13: #{_lambda_.5} parent=11 // pred_check
        %p142 = pneg %p73
      $region14: #{_lambda_.5} parent=11 // pred_check_branch
        %144 = sbr.rel (%p142) target = $region16
      $region15: #{_lambda_.5} parent=11 // pred_region
        %p145 = scmp.lt.s32.totalorder %s19, 0
        %s146 = scalar_select %p145, %s19, 0
        %s147 = smul.addr %s146, 4
        %s148 = scalar_lea.vmem %s1, %s147
      $region16: #{_lambda_.5} parent=11 // pred_fallthru
        _
      // Predicated region
      $region17: #{_lambda_.5} parent=11 // pred_check
        %p149 = pneg %p99
      $region18: #{_lambda_.5} parent=11 // pred_check_branch
        %151 = sbr.rel (%p149) target = $region20
      $region19: #{_lambda_.5} parent=11 // pred_region
        %p152 = scmp.lt.s32.totalorder %s19, 0
        %s153 = scalar_select %p152, %s19, 0
        %s154 = scalar_lea.vmem %s2, %s153
      $region20: #{_lambda_.5} parent=11 // pred_fallthru
        _
    $region12: #{_lambda_.5} parent=5 // pred_fallthru
      _
    %p155 = scmp.lt.s32.totalorder %s9, 4
    // Predicated region
    $region21: #{_lambda_.5} parent=5 // pred_check
      %p156 = pneg %p155
    $region22: #{_lambda_.5} parent=5 // pred_check_branch
      %158 = sbr.rel (%p156) target = $region24
    $region23: #{_lambda_.5} parent=5 // pred_region
      // Predicated region
      $region25: #{_lambda_.5} parent=23 // pred_check
        %p159 = pneg %p41
      $region26: #{_lambda_.5} parent=23 // pred_check_branch
        %161 = sbr.rel (%p159) target = $region28
      $region27: #{_lambda_.5} parent=23 // pred_region
        %s162 = smul.u32 25, %s16
        %p163 = scmp.lt.s32.totalorder %s162, 99
        %s164 = scalar_select %p163, %s162, 99
        %s165 = smul.addr %s164, 2
        %s166 = smul.addr %s165, 4
        %s167 = scalar_lea.vmem %s0, %s166
        %s168 = smul.u32 25, %s16
      $region28: #{_lambda_.5} parent=23 // pred_fallthru
        _
    $region24: #{_lambda_.5} parent=5 // pred_fallthru
      _
    %p169 = scmp.le.s32.totalorder 1, %s9
    %p170 = scmp.lt.s32.totalorder %s9, 5
    %p171 = pnand %p169, %p170
    %p172 = pneg %p171
    // Predicated region
    $region29: #{_lambda_.5} parent=5 // pred_check
      _
    $region30: #{_lambda_.5} parent=5 // pred_check_branch
      %174 = sbr.rel (%p171) target = $region32
    $region31: #{_lambda_.5} parent=5 // pred_region
      %s175 = ssub.s32 %s9, 1
      %s176 = smul.u32 25, %s18
      %p177 = scmp.lt.s32.totalorder %s176, 99
      %s178 = scalar_select %p177, %s176, 99
      %s179 = smul.addr %s178, 2
      %s180 = smul.addr %s179, 4
      %s181 = scalar_lea.vmem %s0, %s180
      %p182 = pneg %p47
      %p183 = pneg %p44
      %p184 = scmp.lt.s32.totalorder %s19, 0
      %s185 = scalar_select %p184, %s19, 0
      %s186 = smul.addr %s185, 4
      %s187 = scalar_lea.vmem %s1, %s186
      %p188 = pneg %p73
      %p189 = pneg %p70
      %p190 = scmp.lt.s32.totalorder %s19, 0
      %s191 = scalar_select %p190, %s19, 0
      %s192 = scalar_lea.vmem %s2, %s191
      %p193 = pneg %p99
      %p194 = pneg %p96
      %p195 = pneg %p127
      %p196 = pneg %p124
      %s197 = smul.u32 25, %s18
      %p198 = scmp.lt.s32.totalorder %s197, 99
      %s199 = scalar_select %p198, %s197, 99
      %p200 = scmp.lt.s32.totalorder %s19, 0
      %s201 = scalar_select %p200, %s19, 0
      %s202 = sadd.s32 %s201, %s199
      %s203 = smul.addr %s202, 4
      %s204 = scalar_lea.vmem %s3, %s203
      %s205 = smul.u32 25, %s18
      %p206 = scmp.lt.s32.totalorder %s205, 99
      %s207 = scalar_select %p206, %s205, 99
      %s208 = smul.addr %s207, 2
      %s209 = smul.addr %s208, 4
      %s210 = scalar_lea.vmem %s0, %s209
      %s211 = smul.u32 25, %s18
      %p212 = scmp.lt.s32.totalorder %s19, 0
      %s213 = scalar_select %p212, %s19, 0
      %s214 = smul.addr %s213, 4
      %s215 = scalar_lea.vmem %s1, %s214
      %p216 = scmp.lt.s32.totalorder %s19, 0
      %s217 = scalar_select %p216, %s19, 0
      %s218 = scalar_lea.vmem %s2, %s217
      %s219 = smul.u32 25, %s18
      %p220 = scmp.lt.s32.totalorder %s219, 99
      %s221 = scalar_select %p220, %s219, 99
      %p222 = scmp.lt.s32.totalorder %s19, 0
      %s223 = scalar_select %p222, %s19, 0
      %s224 = sadd.s32 %s223, %s221
      %s225 = smul.addr %s224, 4
      %s226 = scalar_lea.vmem %s3, %s225
      %s227 = smul.u32 25, %s18
      %v229 = vld [vmem:[%s210] sm:$0xff]
      %v230 = vld [vmem:[%s210 + $0x8] sm:$0xff]
      %v231 = vld [vmem:[%s210 + $0x10] sm:$0xff]
      %v232 = vld [vmem:[%s210 + $0x18] sm:$0xff]
      %v233 = vld [vmem:[%s210 + $0x20] sm:$0xff]
      %v234 = vld [vmem:[%s210 + $0x28] sm:$0xff]
      %v235 = vld [vmem:[%s210 + $0x30] sm:$0xff]
      %v236 = vld [vmem:[%s210 + $0x38] sm:$0xff]
      %v237 = vld [vmem:[%s210 + $0x40] sm:$0xff]
      %v238 = vld [vmem:[%s210 + $0x48] sm:$0xff]
      %v239 = vld [vmem:[%s210 + $0x50] sm:$0xff]
      %v240 = vld [vmem:[%s210 + $0x58] sm:$0xff]
      %v241 = vld [vmem:[%s210 + $0x60] sm:$0xff]
      %v242 = vld [vmem:[%s210 + $0x68] sm:$0xff]
      %v243 = vld [vmem:[%s210 + $0x70] sm:$0xff]
      %v244 = vld [vmem:[%s210 + $0x78] sm:$0xff]
      %v245 = vld [vmem:[%s210 + $0x80] sm:$0xff]
      %v246 = vld [vmem:[%s210 + $0x88] sm:$0xff]
      %v247 = vld [vmem:[%s210 + $0x90] sm:$0xff]
      %v248 = vld [vmem:[%s210 + $0x98] sm:$0xff]
      %v249 = vld [vmem:[%s210 + $0xa0] sm:$0xff]
      %v250 = vld [vmem:[%s210 + $0xa8] sm:$0xff]
      %v251 = vld [vmem:[%s210 + $0xb0] sm:$0xff]
      %v252 = vld [vmem:[%s210 + $0xb8] sm:$0xff]
      %v253 = vld [vmem:[%s210 + $0xc0] sm:$0xff]
      %v254 = vld [vmem:[%s215] sm:$0xf]
      %v255 = vld [vmem:[%s215 + $0x4] sm:$0xf]
      %v256 = vld [vmem:[%s215 + $0x8] sm:$0xf]
      %v257 = vld [vmem:[%s215 + $0xc] sm:$0xf]
      %v258 = vld [vmem:[%s215 + $0x10] sm:$0xf]
      %v259 = vld [vmem:[%s215 + $0x14] sm:$0xf]
      %v260 = vld [vmem:[%s215 + $0x18] sm:$0xf]
      %v261 = vld [vmem:[%s215 + $0x1c] sm:$0xf]
      %v262 = vld [vmem:[%s215 + $0x20] sm:$0xf]
      %v263 = vld [vmem:[%s215 + $0x24] sm:$0xf]
      %v264 = vld [vmem:[%s215 + $0x28] sm:$0xf]
      %v265 = vld [vmem:[%s215 + $0x2c] sm:$0xf]
      %v266 = vld [vmem:[%s215 + $0x30] sm:$0xf]
      %v267 = vld [vmem:[%s215 + $0x34] sm:$0xf]
      %v268 = vld [vmem:[%s215 + $0x38] sm:$0xf]
      %v269 = vld [vmem:[%s215 + $0x3c] sm:$0xf]
      %v270 = vld [vmem:[%s215 + $0x40] sm:$0xf]
      %v271 = vld [vmem:[%s215 + $0x44] sm:$0xf]
      %v272 = vld [vmem:[%s215 + $0x48] sm:$0xf]
      %v273 = vld [vmem:[%s215 + $0x4c] sm:$0xf]
      %v274 = vld [vmem:[%s215 + $0x50] sm:$0xf]
      %v275 = vld [vmem:[%s215 + $0x54] sm:$0xf]
      %v276 = vld [vmem:[%s215 + $0x58] sm:$0xf]
      %v277 = vld [vmem:[%s215 + $0x5c] sm:$0xf]
      %v278 = vld [vmem:[%s215 + $0x60] sm:$0xf]
      %v279 = vld [vmem:[%s215 + $0x64] sm:$0xf]
      %v280 = vld [vmem:[%s215 + $0x68] sm:$0xf]
      %v281 = vld [vmem:[%s215 + $0x6c] sm:$0xf]
      %v282 = vld [vmem:[%s215 + $0x70] sm:$0xf]
      %v283 = vld [vmem:[%s215 + $0x74] sm:$0xf]
      %v284 = vld [vmem:[%s215 + $0x78] sm:$0xf]
      %v285 = vld [vmem:[%s215 + $0x7c] sm:$0xf]
      %v286 = vld [vmem:[%s218] sm:$0x1]
      %v288 = vlaneseq
      %v289 = vshrl.u32 %v288, 7
      %v290 = vsub.s32 0, %v289
      %v291 = vrot.slane %v286, %v290
      %v318 = vunpack.c.l.b16 %v229
      %v319 = vunpack.c.h.b16 %v229
      %v320 = vunpack.c.l.b16 %v230
      %v321 = vunpack.c.h.b16 %v230
      %v322 = vunpack.c.l.b16 %v231
      %v323 = vunpack.c.h.b16 %v231
      %v324 = vunpack.c.l.b16 %v232
      %v325 = vunpack.c.h.b16 %v232
      %v326 = vunpack.c.l.b16 %v233
      %v327 = vunpack.c.h.b16 %v233
      %v328 = vunpack.c.l.b16 %v234
      %v329 = vunpack.c.h.b16 %v234
      %v330 = vunpack.c.l.b16 %v235
      %v331 = vunpack.c.h.b16 %v235
      %v332 = vunpack.c.l.b16 %v236
      %v333 = vunpack.c.h.b16 %v236
      %v334 = vunpack.c.l.b16 %v237
      %v335 = vunpack.c.h.b16 %v237
      %v336 = vunpack.c.l.b16 %v238
      %v337 = vunpack.c.h.b16 %v238
      %v338 = vunpack.c.l.b16 %v239
      %v339 = vunpack.c.h.b16 %v239
      %v340 = vunpack.c.l.b16 %v240
      %v341 = vunpack.c.h.b16 %v240
      %v342 = vunpack.c.l.b16 %v241
      %v343 = vunpack.c.h.b16 %v241
      %v344 = vunpack.c.l.b16 %v242
      %v345 = vunpack.c.h.b16 %v242
      %v346 = vunpack.c.l.b16 %v243
      %v347 = vunpack.c.h.b16 %v243
      %v348 = vunpack.c.l.b16 %v244
      %v349 = vunpack.c.h.b16 %v244
      %v350 = vunpack.c.l.b16 %v245
      %v351 = vunpack.c.h.b16 %v245
      %v352 = vunpack.c.l.b16 %v246
      %v353 = vunpack.c.h.b16 %v246
      %v354 = vunpack.c.l.b16 %v247
      %v355 = vunpack.c.h.b16 %v247
      %v356 = vunpack.c.l.b16 %v248
      %v357 = vunpack.c.h.b16 %v248
      %v358 = vunpack.c.l.b16 %v249
      %v359 = vunpack.c.h.b16 %v249
      %v360 = vunpack.c.l.b16 %v250
      %v361 = vunpack.c.h.b16 %v250
      %v362 = vunpack.c.l.b16 %v251
      %v363 = vunpack.c.h.b16 %v251
      %v364 = vunpack.c.l.b16 %v252
      %v365 = vunpack.c.h.b16 %v252
      %v366 = vunpack.c.l.b16 %v253
      %v367 = vunpack.c.h.b16 %v253
      %v368 = vpack.c.b16 %v320, %v318
      %v369 = vpack.c.b16 %v321, %v319
      %v370 = vpack.c.b16 %v324, %v322
      %v371 = vpack.c.b16 %v325, %v323
      %v372 = vpack.c.b16 %v328, %v326
      %v373 = vpack.c.b16 %v329, %v327
      %v374 = vpack.c.b16 %v332, %v330
      %v375 = vpack.c.b16 %v333, %v331
      %v376 = vpack.c.b16 %v336, %v334
      %v377 = vpack.c.b16 %v337, %v335
      %v378 = vpack.c.b16 %v340, %v338
      %v379 = vpack.c.b16 %v341, %v339
      %v380 = vpack.c.b16 %v344, %v342
      %v381 = vpack.c.b16 %v345, %v343
      %v382 = vpack.c.b16 %v348, %v346
      %v383 = vpack.c.b16 %v349, %v347
      %v384 = vpack.c.b16 %v352, %v350
      %v385 = vpack.c.b16 %v353, %v351
      %v386 = vpack.c.b16 %v356, %v354
      %v387 = vpack.c.b16 %v357, %v355
      %v388 = vpack.c.b16 %v360, %v358
      %v389 = vpack.c.b16 %v361, %v359
      %v390 = vpack.c.b16 %v364, %v362
      %v391 = vpack.c.b16 %v365, %v363
      %v392 = vpack.c.b16 %v366, %v366
      %v393 = vpack.c.b16 %v367, %v367
      %v452 = vunpack.c.l.b16 %v254
      %v453 = vunpack.c.l.b16 %v255
      %v454 = vunpack.c.l.b16 %v256
      %v455 = vunpack.c.l.b16 %v257
      %v456 = vunpack.c.l.b16 %v258
      %v457 = vunpack.c.l.b16 %v259
      %v458 = vunpack.c.l.b16 %v260
      %v459 = vunpack.c.l.b16 %v261
      %v460 = vunpack.c.l.b16 %v262
      %v461 = vunpack.c.l.b16 %v263
      %v462 = vunpack.c.l.b16 %v264
      %v463 = vunpack.c.l.b16 %v265
      %v464 = vunpack.c.l.b16 %v266
      %v465 = vunpack.c.l.b16 %v267
      %v466 = vunpack.c.l.b16 %v268
      %v467 = vunpack.c.l.b16 %v269
      %v468 = vunpack.c.l.b16 %v270
      %v469 = vunpack.c.l.b16 %v271
      %v470 = vunpack.c.l.b16 %v272
      %v471 = vunpack.c.l.b16 %v273
      %v472 = vunpack.c.l.b16 %v274
      %v473 = vunpack.c.l.b16 %v275
      %v474 = vunpack.c.l.b16 %v276
      %v475 = vunpack.c.l.b16 %v277
      %v476 = vunpack.c.l.b16 %v278
      %v477 = vunpack.c.l.b16 %v279
      %v478 = vunpack.c.l.b16 %v280
      %v479 = vunpack.c.l.b16 %v281
      %v480 = vunpack.c.l.b16 %v282
      %v481 = vunpack.c.l.b16 %v283
      %v482 = vunpack.c.l.b16 %v284
      %v483 = vunpack.c.l.b16 %v285
      %v484 = vpack.c.b16 %v453, %v452
      %v485 = vpack.c.b16 %v455, %v454
      %v486 = vpack.c.b16 %v457, %v456
      %v487 = vpack.c.b16 %v459, %v458
      %v488 = vpack.c.b16 %v461, %v460
      %v489 = vpack.c.b16 %v463, %v462
      %v490 = vpack.c.b16 %v465, %v464
      %v491 = vpack.c.b16 %v467, %v466
      %v492 = vpack.c.b16 %v469, %v468
      %v493 = vpack.c.b16 %v471, %v470
      %v494 = vpack.c.b16 %v473, %v472
      %v495 = vpack.c.b16 %v475, %v474
      %v496 = vpack.c.b16 %v477, %v476
      %v497 = vpack.c.b16 %v479, %v478
      %v498 = vpack.c.b16 %v481, %v480
      %v499 = vpack.c.b16 %v483, %v482
      %516 = vmatprep.subr.bf16.mxu0 0
      %517 = vmatpush1.bf16.msra.mxu0 %v491
      %518 = vmatprep.subr.bf16.mxu0 0
      %519 = vmatpush1.bf16.msra.mxu0 %v490
      %520 = vmatprep.subr.bf16.mxu0 0
      %521 = vmatpush1.bf16.msra.mxu0 %v489
      %522 = vmatprep.subr.bf16.mxu0 0
      %523 = vmatpush1.bf16.msra.mxu0 %v488
      %524 = vmatprep.subr.bf16.mxu0 0
      %525 = vmatpush1.bf16.msra.mxu0 %v487
      %526 = vmatprep.subr.bf16.mxu0 0
      %527 = vmatpush1.bf16.msra.mxu0 %v486
      %528 = vmatprep.subr.bf16.mxu0 0
      %529 = vmatpush1.bf16.msra.mxu0 %v485
      %530 = vmatprep.subr.bf16.mxu0 0
      %531 = vmatpush1.bf16.msra.mxu0 %v484
      %532 = vmatprep.subr.bf16.mxu0 0
      %533 = vmatpush2.bf16.msra.mxu0 %v499
      %534 = vmatprep.subr.bf16.mxu0 0
      %535 = vmatpush2.bf16.msra.mxu0 %v498
      %536 = vmatprep.subr.bf16.mxu0 0
      %537 = vmatpush2.bf16.msra.mxu0 %v497
      %538 = vmatprep.subr.bf16.mxu0 0
      %539 = vmatpush2.bf16.msra.mxu0 %v496
      %540 = vmatprep.subr.bf16.mxu0 0
      %541 = vmatpush2.bf16.msra.mxu0 %v495
      %542 = vmatprep.subr.bf16.mxu0 0
      %543 = vmatpush2.bf16.msra.mxu0 %v494
      %544 = vmatprep.subr.bf16.mxu0 0
      %545 = vmatpush2.bf16.msra.mxu0 %v493
      %546 = vmatprep.subr.bf16.mxu0 0
      %547 = vmatpush2.bf16.msra.mxu0 %v492
      %548 = vmatprep.mubr.bf16.mxu0 %v369
      %549 = vmatmul.mubr.bf16.gmra.mxu0 %v368
      %v550 = vpop.f32.mrf.mxu0
      %v551 = vadd.f32 %v291, %v550
      %v552 = vpop.f32.mrf.mxu0
      %v553 = vpop.f32.mrf.mxu0
      %v554 = vadd.f32 %v291, %v553
      %v555 = vpop.f32.mrf.mxu0
      %556 = vmatprep.mubr.bf16.mxu0 %v371
      %557 = vmatmul.mubr.bf16.gmra.mxu0 %v370
      %v558 = vpop.f32.mrf.mxu0
      %v559 = vadd.f32 %v291, %v558
      %v560 = vpop.f32.mrf.mxu0
      %v561 = vpop.f32.mrf.mxu0
      %v562 = vadd.f32 %v291, %v561
      %v563 = vpop.f32.mrf.mxu0
      %564 = vmatprep.mubr.bf16.mxu0 %v373
      %565 = vmatmul.mubr.bf16.gmra.mxu0 %v372
      %v566 = vpop.f32.mrf.mxu0
      %v567 = vadd.f32 %v291, %v566
      %v568 = vpop.f32.mrf.mxu0
      %v569 = vpop.f32.mrf.mxu0
      %v570 = vadd.f32 %v291, %v569
      %v571 = vpop.f32.mrf.mxu0
      %572 = vmatprep.mubr.bf16.mxu0 %v375
      %573 = vmatmul.mubr.bf16.gmra.mxu0 %v374
      %v574 = vpop.f32.mrf.mxu0
      %v575 = vadd.f32 %v291, %v574
      %v576 = vpop.f32.mrf.mxu0
      %v577 = vpop.f32.mrf.mxu0
      %v578 = vadd.f32 %v291, %v577
      %v579 = vpop.f32.mrf.mxu0
      %580 = vmatprep.mubr.bf16.mxu0 %v377
      %581 = vmatmul.mubr.bf16.gmra.mxu0 %v376
      %v582 = vpop.f32.mrf.mxu0
      %v583 = vadd.f32 %v291, %v582
      %v584 = vpop.f32.mrf.mxu0
      %v585 = vpop.f32.mrf.mxu0
      %v586 = vadd.f32 %v291, %v585
      %v587 = vpop.f32.mrf.mxu0
      %588 = vmatprep.mubr.bf16.mxu0 %v379
      %589 = vmatmul.mubr.bf16.gmra.mxu0 %v378
      %v590 = vpop.f32.mrf.mxu0
      %v591 = vadd.f32 %v291, %v590
      %v592 = vpop.f32.mrf.mxu0
      %v593 = vpop.f32.mrf.mxu0
      %v594 = vadd.f32 %v291, %v593
      %v595 = vpop.f32.mrf.mxu0
      %596 = vmatprep.mubr.bf16.mxu0 %v381
      %597 = vmatmul.mubr.bf16.gmra.mxu0 %v380
      %v598 = vpop.f32.mrf.mxu0
      %v599 = vadd.f32 %v291, %v598
      %v600 = vpop.f32.mrf.mxu0
      %v601 = vpop.f32.mrf.mxu0
      %v602 = vadd.f32 %v291, %v601
      %v603 = vpop.f32.mrf.mxu0
      %604 = vmatprep.mubr.bf16.mxu0 %v383
      %605 = vmatmul.mubr.bf16.gmra.mxu0 %v382
      %v606 = vpop.f32.mrf.mxu0
      %v607 = vadd.f32 %v291, %v606
      %v608 = vpop.f32.mrf.mxu0
      %v609 = vpop.f32.mrf.mxu0
      %v610 = vadd.f32 %v291, %v609
      %v611 = vpop.f32.mrf.mxu0
      %612 = vmatprep.mubr.bf16.mxu0 %v385
      %613 = vmatmul.mubr.bf16.gmra.mxu0 %v384
      %v614 = vpop.f32.mrf.mxu0
      %v615 = vadd.f32 %v291, %v614
      %v616 = vpop.f32.mrf.mxu0
      %v617 = vpop.f32.mrf.mxu0
      %v618 = vadd.f32 %v291, %v617
      %v619 = vpop.f32.mrf.mxu0
      %620 = vmatprep.mubr.bf16.mxu0 %v387
      %621 = vmatmul.mubr.bf16.gmra.mxu0 %v386
      %v622 = vpop.f32.mrf.mxu0
      %v623 = vadd.f32 %v291, %v622
      %v624 = vpop.f32.mrf.mxu0
      %v625 = vpop.f32.mrf.mxu0
      %v626 = vadd.f32 %v291, %v625
      %v627 = vpop.f32.mrf.mxu0
      %628 = vmatprep.mubr.bf16.mxu0 %v389
      %629 = vmatmul.mubr.bf16.gmra.mxu0 %v388
      %v630 = vpop.f32.mrf.mxu0
      %v631 = vadd.f32 %v291, %v630
      %v632 = vpop.f32.mrf.mxu0
      %v633 = vpop.f32.mrf.mxu0
      %v634 = vadd.f32 %v291, %v633
      %v635 = vpop.f32.mrf.mxu0
      %636 = vmatprep.mubr.bf16.mxu0 %v391
      %637 = vmatmul.mubr.bf16.gmra.mxu0 %v390
      %v638 = vpop.f32.mrf.mxu0
      %v639 = vadd.f32 %v291, %v638
      %v640 = vpop.f32.mrf.mxu0
      %v641 = vpop.f32.mrf.mxu0
      %v642 = vadd.f32 %v291, %v641
      %v643 = vpop.f32.mrf.mxu0
      %644 = vmatprep.mubr.bf16.mxu0 %v393
      %645 = vmatmul.mubr.bf16.gmra.mxu0 %v392
      %v646 = vpop.f32.mrf.mxu0
      %v647 = vadd.f32 %v291, %v646
      %v648 = vpop.f32.mrf.mxu0
      %v649 = vpop.f32.mrf.mxu0
      %v650 = vpop.f32.mrf.mxu0
      %651 = vdwg.mxu0
      %v652 = vmax.f32 %v551, 0.0
      %v653 = vmax.f32 %v554, 0.0
      %v654 = vmax.f32 %v559, 0.0
      %v655 = vmax.f32 %v562, 0.0
      %v656 = vmax.f32 %v567, 0.0
      %v657 = vmax.f32 %v570, 0.0
      %v658 = vmax.f32 %v575, 0.0
      %v659 = vmax.f32 %v578, 0.0
      %v660 = vmax.f32 %v583, 0.0
      %v661 = vmax.f32 %v586, 0.0
      %v662 = vmax.f32 %v591, 0.0
      %v663 = vmax.f32 %v594, 0.0
      %v664 = vmax.f32 %v599, 0.0
      %v665 = vmax.f32 %v602, 0.0
      %v666 = vmax.f32 %v607, 0.0
      %v667 = vmax.f32 %v610, 0.0
      %v668 = vmax.f32 %v615, 0.0
      %v669 = vmax.f32 %v618, 0.0
      %v670 = vmax.f32 %v623, 0.0
      %v671 = vmax.f32 %v626, 0.0
      %v672 = vmax.f32 %v631, 0.0
      %v673 = vmax.f32 %v634, 0.0
      %v674 = vmax.f32 %v639, 0.0
      %v675 = vmax.f32 %v642, 0.0
      %v676 = vmax.f32 %v647, 0.0
      %v677 = vpack.c.bf16 %v653, %v652
      %v678 = vpack.c.bf16 %v655, %v654
      %v679 = vpack.c.bf16 %v657, %v656
      %v680 = vpack.c.bf16 %v659, %v658
      %v681 = vpack.c.bf16 %v661, %v660
      %v682 = vpack.c.bf16 %v663, %v662
      %v683 = vpack.c.bf16 %v665, %v664
      %v684 = vpack.c.bf16 %v667, %v666
      %v685 = vpack.c.bf16 %v669, %v668
      %v686 = vpack.c.bf16 %v671, %v670
      %v687 = vpack.c.bf16 %v673, %v672
      %v688 = vpack.c.bf16 %v675, %v674
      %v689 = vpack.c.bf16 %v676, %v676
      %v703 = vunpack.c.l.b16 %v677
      %v704 = vunpack.c.h.b16 %v677
      %v705 = vunpack.c.l.b16 %v678
      %v706 = vunpack.c.h.b16 %v678
      %v707 = vunpack.c.l.b16 %v679
      %v708 = vunpack.c.h.b16 %v679
      %v709 = vunpack.c.l.b16 %v680
      %v710 = vunpack.c.h.b16 %v680
      %v711 = vunpack.c.l.b16 %v681
      %v712 = vunpack.c.h.b16 %v681
      %v713 = vunpack.c.l.b16 %v682
      %v714 = vunpack.c.h.b16 %v682
      %v715 = vunpack.c.l.b16 %v683
      %v716 = vunpack.c.h.b16 %v683
      %v717 = vunpack.c.l.b16 %v684
      %v718 = vunpack.c.h.b16 %v684
      %v719 = vunpack.c.l.b16 %v685
      %v720 = vunpack.c.h.b16 %v685
      %v721 = vunpack.c.l.b16 %v686
      %v722 = vunpack.c.h.b16 %v686
      %v723 = vunpack.c.l.b16 %v687
      %v724 = vunpack.c.h.b16 %v687
      %v725 = vunpack.c.l.b16 %v688
      %v726 = vunpack.c.h.b16 %v688
      %v727 = vunpack.c.l.b16 %v689
      %v728 = vpack.c.b16 %v703, %v703
      %v729 = vpack.c.b16 %v704, %v704
      %v730 = vpack.c.b16 %v705, %v705
      %v731 = vpack.c.b16 %v706, %v706
      %v732 = vpack.c.b16 %v707, %v707
      %v733 = vpack.c.b16 %v708, %v708
      %v734 = vpack.c.b16 %v709, %v709
      %v735 = vpack.c.b16 %v710, %v710
      %v736 = vpack.c.b16 %v711, %v711
      %v737 = vpack.c.b16 %v712, %v712
      %v738 = vpack.c.b16 %v713, %v713
      %v739 = vpack.c.b16 %v714, %v714
      %v740 = vpack.c.b16 %v715, %v715
      %v741 = vpack.c.b16 %v716, %v716
      %v742 = vpack.c.b16 %v717, %v717
      %v743 = vpack.c.b16 %v718, %v718
      %v744 = vpack.c.b16 %v719, %v719
      %v745 = vpack.c.b16 %v720, %v720
      %v746 = vpack.c.b16 %v721, %v721
      %v747 = vpack.c.b16 %v722, %v722
      %v748 = vpack.c.b16 %v723, %v723
      %v749 = vpack.c.b16 %v724, %v724
      %v750 = vpack.c.b16 %v725, %v725
      %v751 = vpack.c.b16 %v726, %v726
      %v752 = vpack.c.b16 %v727, %v727
      %vm778 = vcmask 257024
      %779 = vst.msk [vmem:[%s226] sm:$0xf] %vm778, %v728
      %780 = vst.msk [vmem:[%s226 + $0x4] sm:$0xf] %vm778, %v729
      %781 = vst.msk [vmem:[%s226 + $0x8] sm:$0xf] %vm778, %v730
      %782 = vst.msk [vmem:[%s226 + $0xc] sm:$0xf] %vm778, %v731
      %783 = vst.msk [vmem:[%s226 + $0x10] sm:$0xf] %vm778, %v732
      %784 = vst.msk [vmem:[%s226 + $0x14] sm:$0xf] %vm778, %v733
      %785 = vst.msk [vmem:[%s226 + $0x18] sm:$0xf] %vm778, %v734
      %786 = vst.msk [vmem:[%s226 + $0x1c] sm:$0xf] %vm778, %v735
      %787 = vst.msk [vmem:[%s226 + $0x20] sm:$0xf] %vm778, %v736
      %788 = vst.msk [vmem:[%s226 + $0x24] sm:$0xf] %vm778, %v737
      %789 = vst.msk [vmem:[%s226 + $0x28] sm:$0xf] %vm778, %v738
      %790 = vst.msk [vmem:[%s226 + $0x2c] sm:$0xf] %vm778, %v739
      %791 = vst.msk [vmem:[%s226 + $0x30] sm:$0xf] %vm778, %v740
      %792 = vst.msk [vmem:[%s226 + $0x34] sm:$0xf] %vm778, %v741
      %793 = vst.msk [vmem:[%s226 + $0x38] sm:$0xf] %vm778, %v742
      %794 = vst.msk [vmem:[%s226 + $0x3c] sm:$0xf] %vm778, %v743
      %795 = vst.msk [vmem:[%s226 + $0x40] sm:$0xf] %vm778, %v744
      %796 = vst.msk [vmem:[%s226 + $0x44] sm:$0xf] %vm778, %v745
      %797 = vst.msk [vmem:[%s226 + $0x48] sm:$0xf] %vm778, %v746
      %798 = vst.msk [vmem:[%s226 + $0x4c] sm:$0xf] %vm778, %v747
      %799 = vst.msk [vmem:[%s226 + $0x50] sm:$0xf] %vm778, %v748
      %800 = vst.msk [vmem:[%s226 + $0x54] sm:$0xf] %vm778, %v749
      %801 = vst.msk [vmem:[%s226 + $0x58] sm:$0xf] %vm778, %v750
      %802 = vst.msk [vmem:[%s226 + $0x5c] sm:$0xf] %vm778, %v751
      %803 = vst.msk [vmem:[%s226 + $0x60] sm:$0xf] %vm778, %v752
      %s804 = smul.u32 25, %s18
      %p805 = scmp.lt.s32.totalorder %s804, 99
      %s806 = scalar_select %p805, %s804, 99
      %p807 = scmp.lt.s32.totalorder %s19, 0
      %s808 = scalar_select %p807, %s19, 0
      %s809 = sadd.s32 %s808, %s806
      %s810 = smul.addr %s809, 4
      %s811 = scalar_lea.vmem %s3, %s810
      // Predicated region
      $region33: #{_lambda_.5} parent=31 // pred_check
        %p812 = pneg %p124
      $region34: #{_lambda_.5} parent=31 // pred_check_branch
        %814 = sbr.rel (%p812) target = $region36
      $region35: #{_lambda_.5} parent=31 // pred_region
        %s815 = smul.u32 25, %s18
      $region36: #{_lambda_.5} parent=31 // pred_fallthru
        _
    $region32: #{_lambda_.5} parent=5 // pred_fallthru
      _
    %p816 = scmp.le.s32.totalorder 2, %s9
    // Predicated region
    $region37: #{_lambda_.5} parent=5 // pred_check
      %p817 = pneg %p816
    $region38: #{_lambda_.5} parent=5 // pred_check_branch
      %819 = sbr.rel (%p817) target = $region40
    $region39: #{_lambda_.5} parent=5 // pred_region
      %s820 = ssub.s32 %s9, 2
      // Predicated region
      $region41: #{_lambda_.5} parent=39 // pred_check
        %p821 = pneg %p130
      $region42: #{_lambda_.5} parent=39 // pred_check_branch
        %823 = sbr.rel (%p821) target = $region44
      $region43: #{_lambda_.5} parent=39 // pred_region
        %s824 = smul.u32 25, %s20
        %p825 = scmp.lt.s32.totalorder %s824, 99
        %s826 = scalar_select %p825, %s824, 99
        %p827 = scmp.lt.s32.totalorder %s21, 0
        %s828 = scalar_select %p827, %s21, 0
        %s829 = sadd.s32 %s828, %s826
        %s830 = smul.addr %s829, 4
        %s831 = scalar_lea.vmem %s3, %s830
      $region44: #{_lambda_.5} parent=39 // pred_fallthru
        _
    $region40: #{_lambda_.5} parent=5 // pred_fallthru
      _
  $region6: #{_lambda_.5} parent=0 // loop_footer
    %s13 = sadd.s32 1, %s9
  $region7: #{_lambda_.5} parent=0 // loop_footer_branch
    %8 = sbr.rel target = $region3
  $region8: #{_lambda_.5} parent=0 // loop_exit
    _

// kernel: _lambda_.6
$region0: #{_lambda_.6}
  #allocation0 [shape = 'u32[]', space=smem, size = 0x4, offset = 0x4, fixed_abs, tag = 'smem constant byte address 0x4 - core index']
  #allocation1 [shape = 'u32[144,128]{1,0:T(1,128)}', space=vmem, size = 0x12000, scoped, tag = 'internal scratch']
  %s0 = inlined_call_operand.vmem [shape: bf16[162,512], index: 0, kind: input, shape index: {}]
  %s1 = inlined_call_operand.vmem [shape: bf16[512,64], index: 1, kind: input, shape index: {}]
  %s2 = inlined_call_operand.vmem [shape: f32[1,64], index: 2, kind: input, shape index: {}]
  %s3 = inlined_call_operand.vmem [shape: bf16[162,64], index: 3, kind: output, shape index: {}]
  %s4 = sld [smem:[#allocation0]]
  $region22: #{_lambda_.6} parent=0
    _
  %s6 = ssub.s32 1, %s4
  %s7 = scalar_select 0, %s6, %s4
  // Predicated region
  $region2: #{_lambda_.6} parent=0 // pred_check
    _
  $region3: #{_lambda_.6} parent=0 // pred_check_branch
    %9 = sbr.rel (0) target = $region5
  $region4: #{_lambda_.6} parent=0 // pred_region
    _
  $region5: #{_lambda_.6} parent=0 // pred_fallthru
    _
  // Predicated region
  $region6: #{_lambda_.6} parent=0 // pred_check
    _
  $region7: #{_lambda_.6} parent=0 // pred_check_branch
    %11 = sbr.rel (0) target = $region9
  $region8: #{_lambda_.6} parent=0 // pred_region
    _
  $region9: #{_lambda_.6} parent=0 // pred_fallthru
    _
  // Predicated region
  $region10: #{_lambda_.6} parent=0 // pred_check
    _
  $region11: #{_lambda_.6} parent=0 // pred_check_branch
    %13 = sbr.rel (0) target = $region13
  $region12: #{_lambda_.6} parent=0 // pred_region
    _
  $region13: #{_lambda_.6} parent=0 // pred_fallthru
    _
  %v15 = vld [vmem:[%s0] sm:$0xff]
  %v16 = vld [vmem:[%s0 + $0x8] sm:$0xff]
  %v17 = vld [vmem:[%s0 + $0x10] sm:$0xff]
  %v18 = vld [vmem:[%s0 + $0x18] sm:$0xff]
  %v19 = vld [vmem:[%s0 + $0x20] sm:$0xff]
  %v20 = vld [vmem:[%s0 + $0x28] sm:$0xff]
  %v21 = vld [vmem:[%s0 + $0x30] sm:$0xff]
  %v22 = vld [vmem:[%s0 + $0x38] sm:$0xff]
  %v23 = vld [vmem:[%s0 + $0x40] sm:$0xff]
  %v24 = vld [vmem:[%s0 + $0x48] sm:$0xff]
  %v25 = vld [vmem:[%s0 + $0x50] sm:$0xff]
  %v26 = vld [vmem:[%s0 + $0x58] sm:$0xff]
  %v27 = vld [vmem:[%s0 + $0x60] sm:$0xff]
  %v28 = vld [vmem:[%s0 + $0x68] sm:$0xff]
  %v29 = vld [vmem:[%s0 + $0x70] sm:$0xff]
  %v30 = vld [vmem:[%s0 + $0x78] sm:$0xff]
  %v31 = vld [vmem:[%s0 + $0x80] sm:$0xff]
  %v32 = vld [vmem:[%s0 + $0x88] sm:$0xff]
  %v33 = vld [vmem:[%s0 + $0x90] sm:$0xff]
  %v34 = vld [vmem:[%s0 + $0x98] sm:$0xff]
  %v35 = vld [vmem:[%s0 + $0xa0] sm:$0xff]
  %v36 = vld [vmem:[%s0 + $0xa8] sm:$0xff]
  %v37 = vld [vmem:[%s0 + $0xb0] sm:$0xff]
  %v38 = vld [vmem:[%s0 + $0xb8] sm:$0xff]
  %v39 = vld [vmem:[%s0 + $0xc0] sm:$0xff]
  %v40 = vld [vmem:[%s0 + $0xc8] sm:$0xff]
  %v41 = vld [vmem:[%s0 + $0xd0] sm:$0xff]
  %v42 = vld [vmem:[%s0 + $0xd8] sm:$0xff]
  %v43 = vld [vmem:[%s0 + $0xe0] sm:$0xff]
  %v44 = vld [vmem:[%s0 + $0xe8] sm:$0xff]
  %v45 = vld [vmem:[%s0 + $0xf0] sm:$0xff]
  %v46 = vld [vmem:[%s0 + $0xf8] sm:$0xff]
  %v47 = vld [vmem:[%s0 + $0x100] sm:$0xff]
  %v48 = vld [vmem:[%s0 + $0x108] sm:$0xff]
  %v49 = vld [vmem:[%s0 + $0x110] sm:$0xff]
  %v50 = vld [vmem:[%s0 + $0x118] sm:$0xff]
  %v51 = vld [vmem:[%s0 + $0x120] sm:$0xff]
  %v52 = vld [vmem:[%s0 + $0x128] sm:$0xff]
  %v53 = vld [vmem:[%s0 + $0x130] sm:$0xff]
  %v54 = vld [vmem:[%s0 + $0x138] sm:$0xff]
  %v55 = vld [vmem:[%s0 + $0x140] sm:$0x11]
  %v56 = vld [vmem:[%s0 + $0x148] sm:$0x11]
  %v57 = vld [vmem:[%s1] sm:$0xf]
  %v58 = vld [vmem:[%s1 + $0x4] sm:$0xf]
  %v59 = vld [vmem:[%s1 + $0x8] sm:$0xf]
  %v60 = vld [vmem:[%s1 + $0xc] sm:$0xf]
  %v61 = vld [vmem:[%s1 + $0x10] sm:$0xf]
  %v62 = vld [vmem:[%s1 + $0x14] sm:$0xf]
  %v63 = vld [vmem:[%s1 + $0x18] sm:$0xf]
  %v64 = vld [vmem:[%s1 + $0x1c] sm:$0xf]
  %v65 = vld [vmem:[%s1 + $0x20] sm:$0xf]
  %v66 = vld [vmem:[%s1 + $0x24] sm:$0xf]
  %v67 = vld [vmem:[%s1 + $0x28] sm:$0xf]
  %v68 = vld [vmem:[%s1 + $0x2c] sm:$0xf]
  %v69 = vld [vmem:[%s1 + $0x30] sm:$0xf]
  %v70 = vld [vmem:[%s1 + $0x34] sm:$0xf]
  %v71 = vld [vmem:[%s1 + $0x38] sm:$0xf]
  %v72 = vld [vmem:[%s1 + $0x3c] sm:$0xf]
  %v73 = vld [vmem:[%s1 + $0x40] sm:$0xf]
  %v74 = vld [vmem:[%s1 + $0x44] sm:$0xf]
  %v75 = vld [vmem:[%s1 + $0x48] sm:$0xf]
  %v76 = vld [vmem:[%s1 + $0x4c] sm:$0xf]
  %v77 = vld [vmem:[%s1 + $0x50] sm:$0xf]
  %v78 = vld [vmem:[%s1 + $0x54] sm:$0xf]
  %v79 = vld [vmem:[%s1 + $0x58] sm:$0xf]
  %v80 = vld [vmem:[%s1 + $0x5c] sm:$0xf]
  %v81 = vld [vmem:[%s1 + $0x60] sm:$0xf]
  %v82 = vld [vmem:[%s1 + $0x64] sm:$0xf]
  %v83 = vld [vmem:[%s1 + $0x68] sm:$0xf]
  %v84 = vld [vmem:[%s1 + $0x6c] sm:$0xf]
  %v85 = vld [vmem:[%s1 + $0x70] sm:$0xf]
  %v86 = vld [vmem:[%s1 + $0x74] sm:$0xf]
  %v87 = vld [vmem:[%s1 + $0x78] sm:$0xf]
  %v88 = vld [vmem:[%s1 + $0x7c] sm:$0xf]
  %v89 = vld [vmem:[%s1 + $0x80] sm:$0xf]
  %v90 = vld [vmem:[%s1 + $0x84] sm:$0xf]
  %v91 = vld [vmem:[%s1 + $0x88] sm:$0xf]
  %v92 = vld [vmem:[%s1 + $0x8c] sm:$0xf]
  %v93 = vld [vmem:[%s1 + $0x90] sm:$0xf]
  %v94 = vld [vmem:[%s1 + $0x94] sm:$0xf]
  %v95 = vld [vmem:[%s1 + $0x98] sm:$0xf]
  %v96 = vld [vmem:[%s1 + $0x9c] sm:$0xf]
  %v97 = vld [vmem:[%s1 + $0xa0] sm:$0xf]
  %v98 = vld [vmem:[%s1 + $0xa4] sm:$0xf]
  %v99 = vld [vmem:[%s1 + $0xa8] sm:$0xf]
  %v100 = vld [vmem:[%s1 + $0xac] sm:$0xf]
  %v101 = vld [vmem:[%s1 + $0xb0] sm:$0xf]
  %v102 = vld [vmem:[%s1 + $0xb4] sm:$0xf]
  %v103 = vld [vmem:[%s1 + $0xb8] sm:$0xf]
  %v104 = vld [vmem:[%s1 + $0xbc] sm:$0xf]
  %v105 = vld [vmem:[%s1 + $0xc0] sm:$0xf]
  %v106 = vld [vmem:[%s1 + $0xc4] sm:$0xf]
  %v107 = vld [vmem:[%s1 + $0xc8] sm:$0xf]
  %v108 = vld [vmem:[%s1 + $0xcc] sm:$0xf]
  %v109 = vld [vmem:[%s1 + $0xd0] sm:$0xf]
  %v110 = vld [vmem:[%s1 + $0xd4] sm:$0xf]
  %v111 = vld [vmem:[%s1 + $0xd8] sm:$0xf]
  %v112 = vld [vmem:[%s1 + $0xdc] sm:$0xf]
  %v113 = vld [vmem:[%s1 + $0xe0] sm:$0xf]
  %v114 = vld [vmem:[%s1 + $0xe4] sm:$0xf]
  %v115 = vld [vmem:[%s1 + $0xe8] sm:$0xf]
  %v116 = vld [vmem:[%s1 + $0xec] sm:$0xf]
  %v117 = vld [vmem:[%s1 + $0xf0] sm:$0xf]
  %v118 = vld [vmem:[%s1 + $0xf4] sm:$0xf]
  %v119 = vld [vmem:[%s1 + $0xf8] sm:$0xf]
  %v120 = vld [vmem:[%s1 + $0xfc] sm:$0xf]
  %v121 = vld [vmem:[%s2] sm:$0x1]
  %v123 = vlaneseq
  %v124 = vshrl.u32 %v123, 7
  %v125 = vsub.s32 0, %v124
  %v126 = vrot.slane %v121, %v125
  %v170 = vunpack.c.l.b16 %v15
  %v171 = vunpack.c.h.b16 %v15
  %v172 = vunpack.c.l.b16 %v16
  %v173 = vunpack.c.h.b16 %v16
  %v174 = vunpack.c.l.b16 %v17
  %v175 = vunpack.c.h.b16 %v17
  %v176 = vunpack.c.l.b16 %v18
  %v177 = vunpack.c.h.b16 %v18
  %v178 = vunpack.c.l.b16 %v19
  %v179 = vunpack.c.h.b16 %v19
  %v180 = vunpack.c.l.b16 %v20
  %v181 = vunpack.c.h.b16 %v20
  %v182 = vunpack.c.l.b16 %v21
  %v183 = vunpack.c.h.b16 %v21
  %v184 = vunpack.c.l.b16 %v22
  %v185 = vunpack.c.h.b16 %v22
  %v186 = vunpack.c.l.b16 %v23
  %v187 = vunpack.c.h.b16 %v23
  %v188 = vunpack.c.l.b16 %v24
  %v189 = vunpack.c.h.b16 %v24
  %v190 = vunpack.c.l.b16 %v25
  %v191 = vunpack.c.h.b16 %v25
  %v192 = vunpack.c.l.b16 %v26
  %v193 = vunpack.c.h.b16 %v26
  %v194 = vunpack.c.l.b16 %v27
  %v195 = vunpack.c.h.b16 %v27
  %v196 = vunpack.c.l.b16 %v28
  %v197 = vunpack.c.h.b16 %v28
  %v198 = vunpack.c.l.b16 %v29
  %v199 = vunpack.c.h.b16 %v29
  %v200 = vunpack.c.l.b16 %v30
  %v201 = vunpack.c.h.b16 %v30
  %v202 = vunpack.c.l.b16 %v31
  %v203 = vunpack.c.h.b16 %v31
  %v204 = vunpack.c.l.b16 %v32
  %v205 = vunpack.c.h.b16 %v32
  %v206 = vunpack.c.l.b16 %v33
  %v207 = vunpack.c.h.b16 %v33
  %v208 = vunpack.c.l.b16 %v34
  %v209 = vunpack.c.h.b16 %v34
  %v210 = vunpack.c.l.b16 %v35
  %v211 = vunpack.c.h.b16 %v35
  %v212 = vunpack.c.l.b16 %v36
  %v213 = vunpack.c.h.b16 %v36
  %v214 = vunpack.c.l.b16 %v37
  %v215 = vunpack.c.h.b16 %v37
  %v216 = vunpack.c.l.b16 %v38
  %v217 = vunpack.c.h.b16 %v38
  %v218 = vunpack.c.l.b16 %v39
  %v219 = vunpack.c.h.b16 %v39
  %v220 = vunpack.c.l.b16 %v40
  %v221 = vunpack.c.h.b16 %v40
  %v222 = vunpack.c.l.b16 %v41
  %v223 = vunpack.c.h.b16 %v41
  %v224 = vunpack.c.l.b16 %v42
  %v225 = vunpack.c.h.b16 %v42
  %v226 = vunpack.c.l.b16 %v43
  %v227 = vunpack.c.h.b16 %v43
  %v228 = vunpack.c.l.b16 %v44
  %v229 = vunpack.c.h.b16 %v44
  %v230 = vunpack.c.l.b16 %v45
  %v231 = vunpack.c.h.b16 %v45
  %v232 = vunpack.c.l.b16 %v46
  %v233 = vunpack.c.h.b16 %v46
  %v234 = vunpack.c.l.b16 %v47
  %v235 = vunpack.c.h.b16 %v47
  %v236 = vunpack.c.l.b16 %v48
  %v237 = vunpack.c.h.b16 %v48
  %v238 = vunpack.c.l.b16 %v49
  %v239 = vunpack.c.h.b16 %v49
  %v240 = vunpack.c.l.b16 %v50
  %v241 = vunpack.c.h.b16 %v50
  %v242 = vunpack.c.l.b16 %v51
  %v243 = vunpack.c.h.b16 %v51
  %v244 = vunpack.c.l.b16 %v52
  %v245 = vunpack.c.h.b16 %v52
  %v246 = vunpack.c.l.b16 %v53
  %v247 = vunpack.c.h.b16 %v53
  %v248 = vunpack.c.l.b16 %v54
  %v249 = vunpack.c.h.b16 %v54
  %v250 = vunpack.c.l.b16 %v55
  %v251 = vunpack.c.h.b16 %v55
  %v252 = vunpack.c.l.b16 %v56
  %v253 = vunpack.c.h.b16 %v56
  %v254 = vpack.c.b16 %v174, %v170
  %v255 = vpack.c.b16 %v175, %v171
  %v256 = vpack.c.b16 %v176, %v172
  %v257 = vpack.c.b16 %v177, %v173
  %v258 = vpack.c.b16 %v182, %v178
  %v259 = vpack.c.b16 %v183, %v179
  %v260 = vpack.c.b16 %v184, %v180
  %v261 = vpack.c.b16 %v185, %v181
  %v262 = vpack.c.b16 %v190, %v186
  %v263 = vpack.c.b16 %v191, %v187
  %v264 = vpack.c.b16 %v192, %v188
  %v265 = vpack.c.b16 %v193, %v189
  %v266 = vpack.c.b16 %v198, %v194
  %v267 = vpack.c.b16 %v199, %v195
  %v268 = vpack.c.b16 %v200, %v196
  %v269 = vpack.c.b16 %v201, %v197
  %v270 = vpack.c.b16 %v206, %v202
  %v271 = vpack.c.b16 %v207, %v203
  %v272 = vpack.c.b16 %v208, %v204
  %v273 = vpack.c.b16 %v209, %v205
  %v274 = vpack.c.b16 %v214, %v210
  %v275 = vpack.c.b16 %v215, %v211
  %v276 = vpack.c.b16 %v216, %v212
  %v277 = vpack.c.b16 %v217, %v213
  %v278 = vpack.c.b16 %v222, %v218
  %v279 = vpack.c.b16 %v223, %v219
  %v280 = vpack.c.b16 %v224, %v220
  %v281 = vpack.c.b16 %v225, %v221
  %v282 = vpack.c.b16 %v230, %v226
  %v283 = vpack.c.b16 %v231, %v227
  %v284 = vpack.c.b16 %v232, %v228
  %v285 = vpack.c.b16 %v233, %v229
  %v286 = vpack.c.b16 %v238, %v234
  %v287 = vpack.c.b16 %v239, %v235
  %v288 = vpack.c.b16 %v240, %v236
  %v289 = vpack.c.b16 %v241, %v237
  %v290 = vpack.c.b16 %v246, %v242
  %v291 = vpack.c.b16 %v247, %v243
  %v292 = vpack.c.b16 %v248, %v244
  %v293 = vpack.c.b16 %v249, %v245
  %v294 = vpack.c.b16 %v250, %v250
  %v295 = vpack.c.b16 %v251, %v251
  %v296 = vpack.c.b16 %v252, %v252
  %v297 = vpack.c.b16 %v253, %v253
  %v406 = vunpack.c.l.b16 %v57
  %v407 = vunpack.c.l.b16 %v58
  %v408 = vunpack.c.l.b16 %v59
  %v409 = vunpack.c.l.b16 %v60
  %v410 = vunpack.c.l.b16 %v61
  %v411 = vunpack.c.l.b16 %v62
  %v412 = vunpack.c.l.b16 %v63
  %v413 = vunpack.c.l.b16 %v64
  %v414 = vunpack.c.l.b16 %v65
  %v415 = vunpack.c.l.b16 %v66
  %v416 = vunpack.c.l.b16 %v67
  %v417 = vunpack.c.l.b16 %v68
  %v418 = vunpack.c.l.b16 %v69
  %v419 = vunpack.c.l.b16 %v70
  %v420 = vunpack.c.l.b16 %v71
  %v421 = vunpack.c.l.b16 %v72
  %v422 = vunpack.c.l.b16 %v73
  %v423 = vunpack.c.l.b16 %v74
  %v424 = vunpack.c.l.b16 %v75
  %v425 = vunpack.c.l.b16 %v76
  %v426 = vunpack.c.l.b16 %v77
  %v427 = vunpack.c.l.b16 %v78
  %v428 = vunpack.c.l.b16 %v79
  %v429 = vunpack.c.l.b16 %v80
  %v430 = vunpack.c.l.b16 %v81
  %v431 = vunpack.c.l.b16 %v82
  %v432 = vunpack.c.l.b16 %v83
  %v433 = vunpack.c.l.b16 %v84
  %v434 = vunpack.c.l.b16 %v85
  %v435 = vunpack.c.l.b16 %v86
  %v436 = vunpack.c.l.b16 %v87
  %v437 = vunpack.c.l.b16 %v88
  %v438 = vunpack.c.l.b16 %v89
  %v439 = vunpack.c.l.b16 %v90
  %v440 = vunpack.c.l.b16 %v91
  %v441 = vunpack.c.l.b16 %v92
  %v442 = vunpack.c.l.b16 %v93
  %v443 = vunpack.c.l.b16 %v94
  %v444 = vunpack.c.l.b16 %v95
  %v445 = vunpack.c.l.b16 %v96
  %v446 = vunpack.c.l.b16 %v97
  %v447 = vunpack.c.l.b16 %v98
  %v448 = vunpack.c.l.b16 %v99
  %v449 = vunpack.c.l.b16 %v100
  %v450 = vunpack.c.l.b16 %v101
  %v451 = vunpack.c.l.b16 %v102
  %v452 = vunpack.c.l.b16 %v103
  %v453 = vunpack.c.l.b16 %v104
  %v454 = vunpack.c.l.b16 %v105
  %v455 = vunpack.c.l.b16 %v106
  %v456 = vunpack.c.l.b16 %v107
  %v457 = vunpack.c.l.b16 %v108
  %v458 = vunpack.c.l.b16 %v109
  %v459 = vunpack.c.l.b16 %v110
  %v460 = vunpack.c.l.b16 %v111
  %v461 = vunpack.c.l.b16 %v112
  %v462 = vunpack.c.l.b16 %v113
  %v463 = vunpack.c.l.b16 %v114
  %v464 = vunpack.c.l.b16 %v115
  %v465 = vunpack.c.l.b16 %v116
  %v466 = vunpack.c.l.b16 %v117
  %v467 = vunpack.c.l.b16 %v118
  %v468 = vunpack.c.l.b16 %v119
  %v469 = vunpack.c.l.b16 %v120
  %v470 = vpack.c.b16 %v407, %v406
  %v471 = vpack.c.b16 %v409, %v408
  %v472 = vpack.c.b16 %v411, %v410
  %v473 = vpack.c.b16 %v413, %v412
  %v474 = vpack.c.b16 %v415, %v414
  %v475 = vpack.c.b16 %v417, %v416
  %v476 = vpack.c.b16 %v419, %v418
  %v477 = vpack.c.b16 %v421, %v420
  %v478 = vpack.c.b16 %v423, %v422
  %v479 = vpack.c.b16 %v425, %v424
  %v480 = vpack.c.b16 %v427, %v426
  %v481 = vpack.c.b16 %v429, %v428
  %v482 = vpack.c.b16 %v431, %v430
  %v483 = vpack.c.b16 %v433, %v432
  %v484 = vpack.c.b16 %v435, %v434
  %v485 = vpack.c.b16 %v437, %v436
  %v486 = vpack.c.b16 %v439, %v438
  %v487 = vpack.c.b16 %v441, %v440
  %v488 = vpack.c.b16 %v443, %v442
  %v489 = vpack.c.b16 %v445, %v444
  %v490 = vpack.c.b16 %v447, %v446
  %v491 = vpack.c.b16 %v449, %v448
  %v492 = vpack.c.b16 %v451, %v450
  %v493 = vpack.c.b16 %v453, %v452
  %v494 = vpack.c.b16 %v455, %v454
  %v495 = vpack.c.b16 %v457, %v456
  %v496 = vpack.c.b16 %v459, %v458
  %v497 = vpack.c.b16 %v461, %v460
  %v498 = vpack.c.b16 %v463, %v462
  %v499 = vpack.c.b16 %v465, %v464
  %v500 = vpack.c.b16 %v467, %v466
  %v501 = vpack.c.b16 %v469, %v468
  %534 = vmatprep.subr.bf16.mxu0 0
  %535 = vmatpush1.bf16.msra.mxu0 %v477
  %536 = vmatprep.subr.bf16.mxu0 0
  %537 = vmatpush1.bf16.msra.mxu0 %v476
  %538 = vmatprep.subr.bf16.mxu0 0
  %539 = vmatpush1.bf16.msra.mxu0 %v475
  %540 = vmatprep.subr.bf16.mxu0 0
  %541 = vmatpush1.bf16.msra.mxu0 %v474
  %542 = vmatprep.subr.bf16.mxu0 0
  %543 = vmatpush1.bf16.msra.mxu0 %v473
  %544 = vmatprep.subr.bf16.mxu0 0
  %545 = vmatpush1.bf16.msra.mxu0 %v472
  %546 = vmatprep.subr.bf16.mxu0 0
  %547 = vmatpush1.bf16.msra.mxu0 %v471
  %548 = vmatprep.subr.bf16.mxu0 0
  %549 = vmatpush1.bf16.msra.mxu0 %v470
  %550 = vmatprep.subr.bf16.mxu0 0
  %551 = vmatpush2.bf16.msra.mxu0 %v485
  %552 = vmatprep.subr.bf16.mxu0 0
  %553 = vmatpush2.bf16.msra.mxu0 %v484
  %554 = vmatprep.subr.bf16.mxu0 0
  %555 = vmatpush2.bf16.msra.mxu0 %v483
  %556 = vmatprep.subr.bf16.mxu0 0
  %557 = vmatpush2.bf16.msra.mxu0 %v482
  %558 = vmatprep.subr.bf16.mxu0 0
  %559 = vmatpush2.bf16.msra.mxu0 %v481
  %560 = vmatprep.subr.bf16.mxu0 0
  %561 = vmatpush2.bf16.msra.mxu0 %v480
  %562 = vmatprep.subr.bf16.mxu0 0
  %563 = vmatpush2.bf16.msra.mxu0 %v479
  %564 = vmatprep.subr.bf16.mxu0 0
  %565 = vmatpush2.bf16.msra.mxu0 %v478
  %566 = vmatprep.mubr.bf16.mxu0 %v255
  %567 = vmatmul.mubr.bf16.gmra.mxu0 %v254
  %v568 = vpop.f32.mrf.mxu0
  %v569 = vadd.f32 %v126, %v568
  %v570 = vpop.f32.mrf.mxu0
  %v571 = vpop.f32.mrf.mxu0
  %v572 = vadd.f32 %v126, %v571
  %v573 = vpop.f32.mrf.mxu0
  %574 = vmatprep.mubr.bf16.mxu0 %v259
  %575 = vmatmul.mubr.bf16.gmra.mxu0 %v258
  %v576 = vpop.f32.mrf.mxu0
  %v577 = vadd.f32 %v126, %v576
  %v578 = vpop.f32.mrf.mxu0
  %v579 = vpop.f32.mrf.mxu0
  %v580 = vadd.f32 %v126, %v579
  %v581 = vpop.f32.mrf.mxu0
  %582 = vmatprep.mubr.bf16.mxu0 %v263
  %583 = vmatmul.mubr.bf16.gmra.mxu0 %v262
  %v584 = vpop.f32.mrf.mxu0
  %v585 = vadd.f32 %v126, %v584
  %v586 = vpop.f32.mrf.mxu0
  %v587 = vpop.f32.mrf.mxu0
  %v588 = vadd.f32 %v126, %v587
  %v589 = vpop.f32.mrf.mxu0
  %590 = vmatprep.mubr.bf16.mxu0 %v267
  %591 = vmatmul.mubr.bf16.gmra.mxu0 %v266
  %v592 = vpop.f32.mrf.mxu0
  %v593 = vadd.f32 %v126, %v592
  %v594 = vpop.f32.mrf.mxu0
  %v595 = vpop.f32.mrf.mxu0
  %v596 = vadd.f32 %v126, %v595
  %v597 = vpop.f32.mrf.mxu0
  %598 = vmatprep.mubr.bf16.mxu0 %v271
  %599 = vmatmul.mubr.bf16.gmra.mxu0 %v270
  %v600 = vpop.f32.mrf.mxu0
  %v601 = vadd.f32 %v126, %v600
  %v602 = vpop.f32.mrf.mxu0
  %v603 = vpop.f32.mrf.mxu0
  %v604 = vadd.f32 %v126, %v603
  %v605 = vpop.f32.mrf.mxu0
  %606 = vmatprep.mubr.bf16.mxu0 %v275
  %607 = vmatmul.mubr.bf16.gmra.mxu0 %v274
  %v608 = vpop.f32.mrf.mxu0
  %v609 = vadd.f32 %v126, %v608
  %v610 = vpop.f32.mrf.mxu0
  %v611 = vpop.f32.mrf.mxu0
  %v612 = vadd.f32 %v126, %v611
  %v613 = vpop.f32.mrf.mxu0
  %614 = vmatprep.mubr.bf16.mxu0 %v279
  %615 = vmatmul.mubr.bf16.gmra.mxu0 %v278
  %v616 = vpop.f32.mrf.mxu0
  %v617 = vadd.f32 %v126, %v616
  %v618 = vpop.f32.mrf.mxu0
  %v619 = vpop.f32.mrf.mxu0
  %v620 = vadd.f32 %v126, %v619
  %v621 = vpop.f32.mrf.mxu0
  %622 = vmatprep.mubr.bf16.mxu0 %v283
  %623 = vmatmul.mubr.bf16.gmra.mxu0 %v282
  %v624 = vpop.f32.mrf.mxu0
  %v625 = vadd.f32 %v126, %v624
  %v626 = vpop.f32.mrf.mxu0
  %v627 = vpop.f32.mrf.mxu0
  %v628 = vadd.f32 %v126, %v627
  %v629 = vpop.f32.mrf.mxu0
  %630 = vmatprep.mubr.bf16.mxu0 %v287
  %631 = vmatmul.mubr.bf16.gmra.mxu0 %v286
  %v632 = vpop.f32.mrf.mxu0
  %v633 = vadd.f32 %v126, %v632
  %v634 = vpop.f32.mrf.mxu0
  %v635 = vpop.f32.mrf.mxu0
  %v636 = vadd.f32 %v126, %v635
  %v637 = vpop.f32.mrf.mxu0
  %638 = vmatprep.mubr.bf16.mxu0 %v291
  %639 = vmatmul.mubr.bf16.gmra.mxu0 %v290
  %v640 = vpop.f32.mrf.mxu0
  %v641 = vadd.f32 %v126, %v640
  %v642 = vpop.f32.mrf.mxu0
  %v643 = vpop.f32.mrf.mxu0
  %v644 = vadd.f32 %v126, %v643
  %v645 = vpop.f32.mrf.mxu0
  %646 = vmatprep.mubr.bf16.mxu0 %v295
  %647 = vmatmul.mubr.bf16.gmra.mxu0 %v294
  %v648 = vpop.f32.mrf.mxu0
  %v649 = vadd.f32 %v126, %v648
  %v650 = vpop.f32.mrf.mxu0
  %v651 = vpop.f32.mrf.mxu0
  %v652 = vpop.f32.mrf.mxu0
  %653 = vdwg.mxu0
  %654 = vmatprep.subr.bf16.mxu0 0
  %655 = vmatpush1.bf16.msra.mxu0 %v493
  %656 = vmatprep.subr.bf16.mxu0 0
  %657 = vmatpush1.bf16.msra.mxu0 %v492
  %658 = vmatprep.subr.bf16.mxu0 0
  %659 = vmatpush1.bf16.msra.mxu0 %v491
  %660 = vmatprep.subr.bf16.mxu0 0
  %661 = vmatpush1.bf16.msra.mxu0 %v490
  %662 = vmatprep.subr.bf16.mxu0 0
  %663 = vmatpush1.bf16.msra.mxu0 %v489
  %664 = vmatprep.subr.bf16.mxu0 0
  %665 = vmatpush1.bf16.msra.mxu0 %v488
  %666 = vmatprep.subr.bf16.mxu0 0
  %667 = vmatpush1.bf16.msra.mxu0 %v487
  %668 = vmatprep.subr.bf16.mxu0 0
  %669 = vmatpush1.bf16.msra.mxu0 %v486
  %670 = vmatprep.subr.bf16.mxu0 0
  %671 = vmatpush2.bf16.msra.mxu0 %v501
  %672 = vmatprep.subr.bf16.mxu0 0
  %673 = vmatpush2.bf16.msra.mxu0 %v500
  %674 = vmatprep.subr.bf16.mxu0 0
  %675 = vmatpush2.bf16.msra.mxu0 %v499
  %676 = vmatprep.subr.bf16.mxu0 0
  %677 = vmatpush2.bf16.msra.mxu0 %v498
  %678 = vmatprep.subr.bf16.mxu0 0
  %679 = vmatpush2.bf16.msra.mxu0 %v497
  %680 = vmatprep.subr.bf16.mxu0 0
  %681 = vmatpush2.bf16.msra.mxu0 %v496
  %682 = vmatprep.subr.bf16.mxu0 0
  %683 = vmatpush2.bf16.msra.mxu0 %v495
  %684 = vmatprep.subr.bf16.mxu0 0
  %685 = vmatpush2.bf16.msra.mxu0 %v494
  %686 = vmatprep.mubr.bf16.mxu0 %v257
  %687 = vmatmul.mubr.bf16.gmra.mxu0 %v256
  %v688 = vpop.f32.mrf.mxu0
  %v689 = vadd.f32 %v569, %v688
  %v690 = vpop.f32.mrf.mxu0
  %v691 = vpop.f32.mrf.mxu0
  %v692 = vadd.f32 %v572, %v691
  %v693 = vpop.f32.mrf.mxu0
  %694 = vmatprep.mubr.bf16.mxu0 %v261
  %695 = vmatmul.mubr.bf16.gmra.mxu0 %v260
  %v696 = vpop.f32.mrf.mxu0
  %v697 = vadd.f32 %v577, %v696
  %v698 = vpop.f32.mrf.mxu0
  %v699 = vpop.f32.mrf.mxu0
  %v700 = vadd.f32 %v580, %v699
  %v701 = vpop.f32.mrf.mxu0
  %702 = vmatprep.mubr.bf16.mxu0 %v265
  %703 = vmatmul.mubr.bf16.gmra.mxu0 %v264
  %v704 = vpop.f32.mrf.mxu0
  %v705 = vadd.f32 %v585, %v704
  %v706 = vpop.f32.mrf.mxu0
  %v707 = vpop.f32.mrf.mxu0
  %v708 = vadd.f32 %v588, %v707
  %v709 = vpop.f32.mrf.mxu0
  %710 = vmatprep.mubr.bf16.mxu0 %v269
  %711 = vmatmul.mubr.bf16.gmra.mxu0 %v268
  %v712 = vpop.f32.mrf.mxu0
  %v713 = vadd.f32 %v593, %v712
  %v714 = vpop.f32.mrf.mxu0
  %v715 = vpop.f32.mrf.mxu0
  %v716 = vadd.f32 %v596, %v715
  %v717 = vpop.f32.mrf.mxu0
  %718 = vmatprep.mubr.bf16.mxu0 %v273
  %719 = vmatmul.mubr.bf16.gmra.mxu0 %v272
  %v720 = vpop.f32.mrf.mxu0
  %v721 = vadd.f32 %v601, %v720
  %v722 = vpop.f32.mrf.mxu0
  %v723 = vpop.f32.mrf.mxu0
  %v724 = vadd.f32 %v604, %v723
  %v725 = vpop.f32.mrf.mxu0
  %726 = vmatprep.mubr.bf16.mxu0 %v277
  %727 = vmatmul.mubr.bf16.gmra.mxu0 %v276
  %v728 = vpop.f32.mrf.mxu0
  %v729 = vadd.f32 %v609, %v728
  %v730 = vpop.f32.mrf.mxu0
  %v731 = vpop.f32.mrf.mxu0
  %v732 = vadd.f32 %v612, %v731
  %v733 = vpop.f32.mrf.mxu0
  %734 = vmatprep.mubr.bf16.mxu0 %v281
  %735 = vmatmul.mubr.bf16.gmra.mxu0 %v280
  %v736 = vpop.f32.mrf.mxu0
  %v737 = vadd.f32 %v617, %v736
  %v738 = vpop.f32.mrf.mxu0
  %v739 = vpop.f32.mrf.mxu0
  %v740 = vadd.f32 %v620, %v739
  %v741 = vpop.f32.mrf.mxu0
  %742 = vmatprep.mubr.bf16.mxu0 %v285
  %743 = vmatmul.mubr.bf16.gmra.mxu0 %v284
  %v744 = vpop.f32.mrf.mxu0
  %v745 = vadd.f32 %v625, %v744
  %v746 = vpop.f32.mrf.mxu0
  %v747 = vpop.f32.mrf.mxu0
  %v748 = vadd.f32 %v628, %v747
  %v749 = vpop.f32.mrf.mxu0
  %750 = vmatprep.mubr.bf16.mxu0 %v289
  %751 = vmatmul.mubr.bf16.gmra.mxu0 %v288
  %v752 = vpop.f32.mrf.mxu0
  %v753 = vadd.f32 %v633, %v752
  %v754 = vpop.f32.mrf.mxu0
  %v755 = vpop.f32.mrf.mxu0
  %v756 = vadd.f32 %v636, %v755
  %v757 = vpop.f32.mrf.mxu0
  %758 = vmatprep.mubr.bf16.mxu0 %v293
  %759 = vmatmul.mubr.bf16.gmra.mxu0 %v292
  %v760 = vpop.f32.mrf.mxu0
  %v761 = vadd.f32 %v641, %v760
  %v762 = vpop.f32.mrf.mxu0
  %v763 = vpop.f32.mrf.mxu0
  %v764 = vadd.f32 %v644, %v763
  %v765 = vpop.f32.mrf.mxu0
  %766 = vmatprep.mubr.bf16.mxu0 %v297
  %767 = vmatmul.mubr.bf16.gmra.mxu0 %v296
  %v768 = vpop.f32.mrf.mxu0
  %v769 = vadd.f32 %v649, %v768
  %v770 = vpop.f32.mrf.mxu0
  %v771 = vpop.f32.mrf.mxu0
  %v772 = vpop.f32.mrf.mxu0
  %773 = vdwg.mxu0
  %v774 = vmax.f32 %v689, 0.0
  %v775 = vmax.f32 %v692, 0.0
  %v776 = vmax.f32 %v697, 0.0
  %v777 = vmax.f32 %v700, 0.0
  %v778 = vmax.f32 %v705, 0.0
  %v779 = vmax.f32 %v708, 0.0
  %v780 = vmax.f32 %v713, 0.0
  %v781 = vmax.f32 %v716, 0.0
  %v782 = vmax.f32 %v721, 0.0
  %v783 = vmax.f32 %v724, 0.0
  %v784 = vmax.f32 %v729, 0.0
  %v785 = vmax.f32 %v732, 0.0
  %v786 = vmax.f32 %v737, 0.0
  %v787 = vmax.f32 %v740, 0.0
  %v788 = vmax.f32 %v745, 0.0
  %v789 = vmax.f32 %v748, 0.0
  %v790 = vmax.f32 %v753, 0.0
  %v791 = vmax.f32 %v756, 0.0
  %v792 = vmax.f32 %v761, 0.0
  %v793 = vmax.f32 %v764, 0.0
  %v794 = vmax.f32 %v769, 0.0
  %v795 = vpack.c.bf16 %v775, %v774
  %v796 = vpack.c.bf16 %v777, %v776
  %v797 = vpack.c.bf16 %v779, %v778
  %v798 = vpack.c.bf16 %v781, %v780
  %v799 = vpack.c.bf16 %v783, %v782
  %v800 = vpack.c.bf16 %v785, %v784
  %v801 = vpack.c.bf16 %v787, %v786
  %v802 = vpack.c.bf16 %v789, %v788
  %v803 = vpack.c.bf16 %v791, %v790
  %v804 = vpack.c.bf16 %v793, %v792
  %v805 = vpack.c.bf16 %v794, %v794
  %v817 = vunpack.c.l.b16 %v795
  %v818 = vunpack.c.h.b16 %v795
  %v819 = vunpack.c.l.b16 %v796
  %v820 = vunpack.c.h.b16 %v796
  %v821 = vunpack.c.l.b16 %v797
  %v822 = vunpack.c.h.b16 %v797
  %v823 = vunpack.c.l.b16 %v798
  %v824 = vunpack.c.h.b16 %v798
  %v825 = vunpack.c.l.b16 %v799
  %v826 = vunpack.c.h.b16 %v799
  %v827 = vunpack.c.l.b16 %v800
  %v828 = vunpack.c.h.b16 %v800
  %v829 = vunpack.c.l.b16 %v801
  %v830 = vunpack.c.h.b16 %v801
  %v831 = vunpack.c.l.b16 %v802
  %v832 = vunpack.c.h.b16 %v802
  %v833 = vunpack.c.l.b16 %v803
  %v834 = vunpack.c.h.b16 %v803
  %v835 = vunpack.c.l.b16 %v804
  %v836 = vunpack.c.h.b16 %v804
  %v837 = vunpack.c.l.b16 %v805
  %v838 = vpack.c.b16 %v817, %v817
  %v839 = vpack.c.b16 %v818, %v818
  %v840 = vpack.c.b16 %v819, %v819
  %v841 = vpack.c.b16 %v820, %v820
  %v842 = vpack.c.b16 %v821, %v821
  %v843 = vpack.c.b16 %v822, %v822
  %v844 = vpack.c.b16 %v823, %v823
  %v845 = vpack.c.b16 %v824, %v824
  %v846 = vpack.c.b16 %v825, %v825
  %v847 = vpack.c.b16 %v826, %v826
  %v848 = vpack.c.b16 %v827, %v827
  %v849 = vpack.c.b16 %v828, %v828
  %v850 = vpack.c.b16 %v829, %v829
  %v851 = vpack.c.b16 %v830, %v830
  %v852 = vpack.c.b16 %v831, %v831
  %v853 = vpack.c.b16 %v832, %v832
  %v854 = vpack.c.b16 %v833, %v833
  %v855 = vpack.c.b16 %v834, %v834
  %v856 = vpack.c.b16 %v835, %v835
  %v857 = vpack.c.b16 %v836, %v836
  %v858 = vpack.c.b16 %v837, %v837
  %vm880 = vcmask 519168
  %881 = vst.msk [vmem:[%s3] sm:$0xf] %vm880, %v838
  %882 = vst.msk [vmem:[%s3 + $0x4] sm:$0xf] %vm880, %v839
  %883 = vst.msk [vmem:[%s3 + $0x8] sm:$0xf] %vm880, %v840
  %884 = vst.msk [vmem:[%s3 + $0xc] sm:$0xf] %vm880, %v841
  %885 = vst.msk [vmem:[%s3 + $0x10] sm:$0xf] %vm880, %v842
  %886 = vst.msk [vmem:[%s3 + $0x14] sm:$0xf] %vm880, %v843
  %887 = vst.msk [vmem:[%s3 + $0x18] sm:$0xf] %vm880, %v844
  %888 = vst.msk [vmem:[%s3 + $0x1c] sm:$0xf] %vm880, %v845
  %889 = vst.msk [vmem:[%s3 + $0x20] sm:$0xf] %vm880, %v846
  %890 = vst.msk [vmem:[%s3 + $0x24] sm:$0xf] %vm880, %v847
  %891 = vst.msk [vmem:[%s3 + $0x28] sm:$0xf] %vm880, %v848
  %892 = vst.msk [vmem:[%s3 + $0x2c] sm:$0xf] %vm880, %v849
  %893 = vst.msk [vmem:[%s3 + $0x30] sm:$0xf] %vm880, %v850
  %894 = vst.msk [vmem:[%s3 + $0x34] sm:$0xf] %vm880, %v851
  %895 = vst.msk [vmem:[%s3 + $0x38] sm:$0xf] %vm880, %v852
  %896 = vst.msk [vmem:[%s3 + $0x3c] sm:$0xf] %vm880, %v853
  %897 = vst.msk [vmem:[%s3 + $0x40] sm:$0xf] %vm880, %v854
  %898 = vst.msk [vmem:[%s3 + $0x44] sm:$0xf] %vm880, %v855
  %899 = vst.msk [vmem:[%s3 + $0x48] sm:$0xf] %vm880, %v856
  %900 = vst.msk [vmem:[%s3 + $0x4c] sm:$0xf] %vm880, %v857
  %vm901 = vcmask 516096
  %902 = vst.msk [vmem:[%s3 + $0x50] sm:$0x1] %vm901, %v858
  // Predicated region
  $region14: #{_lambda_.6} parent=0 // pred_check
    _
  $region15: #{_lambda_.6} parent=0 // pred_check_branch
    %904 = sbr.rel (0) target = $region17
  $region16: #{_lambda_.6} parent=0 // pred_region
    _
  $region17: #{_lambda_.6} parent=0 // pred_fallthru
    _
  // Predicated region
  $region18: #{_lambda_.6} parent=0 // pred_check
    _
  $region19: #{_lambda_.6} parent=0 // pred_check_branch
    %906 = sbr.rel (0) target = $region21
  $region20: #{_lambda_.6} parent=0 // pred_region
    _
  $region21: #{_lambda_.6} parent=0 // pred_fallthru
    _

// kernel: _lambda_.7
$region0: #{_lambda_.7}
  #allocation0 [shape = 'u32[]', space=smem, size = 0x4, offset = 0x4, fixed_abs, tag = 'smem constant byte address 0x4 - core index']
  #allocation1 [shape = 'u32[144,128]{1,0:T(1,128)}', space=vmem, size = 0x12000, scoped, tag = 'internal scratch']
  %s0 = inlined_call_operand.vmem [shape: bf16[98,576], index: 0, kind: input, shape index: {}]
  %s1 = inlined_call_operand.vmem [shape: bf16[576,64], index: 1, kind: input, shape index: {}]
  %s2 = inlined_call_operand.vmem [shape: f32[1,64], index: 2, kind: input, shape index: {}]
  %s3 = inlined_call_operand.vmem [shape: bf16[98,64], index: 3, kind: output, shape index: {}]
  %s4 = sld [smem:[#allocation0]]
  $region22: #{_lambda_.7} parent=0
    _
  %s6 = ssub.s32 1, %s4
  %s7 = scalar_select 0, %s6, %s4
  // Predicated region
  $region2: #{_lambda_.7} parent=0 // pred_check
    _
  $region3: #{_lambda_.7} parent=0 // pred_check_branch
    %9 = sbr.rel (0) target = $region5
  $region4: #{_lambda_.7} parent=0 // pred_region
    _
  $region5: #{_lambda_.7} parent=0 // pred_fallthru
    _
  // Predicated region
  $region6: #{_lambda_.7} parent=0 // pred_check
    _
  $region7: #{_lambda_.7} parent=0 // pred_check_branch
    %11 = sbr.rel (0) target = $region9
  $region8: #{_lambda_.7} parent=0 // pred_region
    _
  $region9: #{_lambda_.7} parent=0 // pred_fallthru
    _
  // Predicated region
  $region10: #{_lambda_.7} parent=0 // pred_check
    _
  $region11: #{_lambda_.7} parent=0 // pred_check_branch
    %13 = sbr.rel (0) target = $region13
  $region12: #{_lambda_.7} parent=0 // pred_region
    _
  $region13: #{_lambda_.7} parent=0 // pred_fallthru
    _
  %v15 = vld [vmem:[%s0] sm:$0xff]
  %v16 = vld [vmem:[%s0 + $0x8] sm:$0xff]
  %v17 = vld [vmem:[%s0 + $0x10] sm:$0xf]
  %v18 = vld [vmem:[%s0 + $0x14] sm:$0xff]
  %v19 = vld [vmem:[%s0 + $0x1c] sm:$0xff]
  %v20 = vld [vmem:[%s0 + $0x24] sm:$0xf]
  %v21 = vld [vmem:[%s0 + $0x28] sm:$0xff]
  %v22 = vld [vmem:[%s0 + $0x30] sm:$0xff]
  %v23 = vld [vmem:[%s0 + $0x38] sm:$0xf]
  %v24 = vld [vmem:[%s0 + $0x3c] sm:$0xff]
  %v25 = vld [vmem:[%s0 + $0x44] sm:$0xff]
  %v26 = vld [vmem:[%s0 + $0x4c] sm:$0xf]
  %v27 = vld [vmem:[%s0 + $0x50] sm:$0xff]
  %v28 = vld [vmem:[%s0 + $0x58] sm:$0xff]
  %v29 = vld [vmem:[%s0 + $0x60] sm:$0xf]
  %v30 = vld [vmem:[%s0 + $0x64] sm:$0xff]
  %v31 = vld [vmem:[%s0 + $0x6c] sm:$0xff]
  %v32 = vld [vmem:[%s0 + $0x74] sm:$0xf]
  %v33 = vld [vmem:[%s0 + $0x78] sm:$0xff]
  %v34 = vld [vmem:[%s0 + $0x80] sm:$0xff]
  %v35 = vld [vmem:[%s0 + $0x88] sm:$0xf]
  %v36 = vld [vmem:[%s0 + $0x8c] sm:$0xff]
  %v37 = vld [vmem:[%s0 + $0x94] sm:$0xff]
  %v38 = vld [vmem:[%s0 + $0x9c] sm:$0xf]
  %v39 = vld [vmem:[%s0 + $0xa0] sm:$0xff]
  %v40 = vld [vmem:[%s0 + $0xa8] sm:$0xff]
  %v41 = vld [vmem:[%s0 + $0xb0] sm:$0xf]
  %v42 = vld [vmem:[%s0 + $0xb4] sm:$0xff]
  %v43 = vld [vmem:[%s0 + $0xbc] sm:$0xff]
  %v44 = vld [vmem:[%s0 + $0xc4] sm:$0xf]
  %v45 = vld [vmem:[%s0 + $0xc8] sm:$0xff]
  %v46 = vld [vmem:[%s0 + $0xd0] sm:$0xff]
  %v47 = vld [vmem:[%s0 + $0xd8] sm:$0xf]
  %v48 = vld [vmem:[%s0 + $0xdc] sm:$0xff]
  %v49 = vld [vmem:[%s0 + $0xe4] sm:$0xff]
  %v50 = vld [vmem:[%s0 + $0xec] sm:$0xf]
  %v51 = vld [vmem:[%s0 + $0xf0] sm:$0x11]
  %v52 = vld [vmem:[%s0 + $0xf8] sm:$0x11]
  %v53 = vld [vmem:[%s0 + $0x100] sm:$0x1]
  %v54 = vld [vmem:[%s1] sm:$0xf]
  %v55 = vld [vmem:[%s1 + $0x4] sm:$0xf]
  %v56 = vld [vmem:[%s1 + $0x8] sm:$0xf]
  %v57 = vld [vmem:[%s1 + $0xc] sm:$0xf]
  %v58 = vld [vmem:[%s1 + $0x10] sm:$0xf]
  %v59 = vld [vmem:[%s1 + $0x14] sm:$0xf]
  %v60 = vld [vmem:[%s1 + $0x18] sm:$0xf]
  %v61 = vld [vmem:[%s1 + $0x1c] sm:$0xf]
  %v62 = vld [vmem:[%s1 + $0x20] sm:$0xf]
  %v63 = vld [vmem:[%s1 + $0x24] sm:$0xf]
  %v64 = vld [vmem:[%s1 + $0x28] sm:$0xf]
  %v65 = vld [vmem:[%s1 + $0x2c] sm:$0xf]
  %v66 = vld [vmem:[%s1 + $0x30] sm:$0xf]
  %v67 = vld [vmem:[%s1 + $0x34] sm:$0xf]
  %v68 = vld [vmem:[%s1 + $0x38] sm:$0xf]
  %v69 = vld [vmem:[%s1 + $0x3c] sm:$0xf]
  %v70 = vld [vmem:[%s1 + $0x40] sm:$0xf]
  %v71 = vld [vmem:[%s1 + $0x44] sm:$0xf]
  %v72 = vld [vmem:[%s1 + $0x48] sm:$0xf]
  %v73 = vld [vmem:[%s1 + $0x4c] sm:$0xf]
  %v74 = vld [vmem:[%s1 + $0x50] sm:$0xf]
  %v75 = vld [vmem:[%s1 + $0x54] sm:$0xf]
  %v76 = vld [vmem:[%s1 + $0x58] sm:$0xf]
  %v77 = vld [vmem:[%s1 + $0x5c] sm:$0xf]
  %v78 = vld [vmem:[%s1 + $0x60] sm:$0xf]
  %v79 = vld [vmem:[%s1 + $0x64] sm:$0xf]
  %v80 = vld [vmem:[%s1 + $0x68] sm:$0xf]
  %v81 = vld [vmem:[%s1 + $0x6c] sm:$0xf]
  %v82 = vld [vmem:[%s1 + $0x70] sm:$0xf]
  %v83 = vld [vmem:[%s1 + $0x74] sm:$0xf]
  %v84 = vld [vmem:[%s1 + $0x78] sm:$0xf]
  %v85 = vld [vmem:[%s1 + $0x7c] sm:$0xf]
  %v86 = vld [vmem:[%s1 + $0x80] sm:$0xf]
  %v87 = vld [vmem:[%s1 + $0x84] sm:$0xf]
  %v88 = vld [vmem:[%s1 + $0x88] sm:$0xf]
  %v89 = vld [vmem:[%s1 + $0x8c] sm:$0xf]
  %v90 = vld [vmem:[%s1 + $0x90] sm:$0xf]
  %v91 = vld [vmem:[%s1 + $0x94] sm:$0xf]
  %v92 = vld [vmem:[%s1 + $0x98] sm:$0xf]
  %v93 = vld [vmem:[%s1 + $0x9c] sm:$0xf]
  %v94 = vld [vmem:[%s1 + $0xa0] sm:$0xf]
  %v95 = vld [vmem:[%s1 + $0xa4] sm:$0xf]
  %v96 = vld [vmem:[%s1 + $0xa8] sm:$0xf]
  %v97 = vld [vmem:[%s1 + $0xac] sm:$0xf]
  %v98 = vld [vmem:[%s1 + $0xb0] sm:$0xf]
  %v99 = vld [vmem:[%s1 + $0xb4] sm:$0xf]
  %v100 = vld [vmem:[%s1 + $0xb8] sm:$0xf]
  %v101 = vld [vmem:[%s1 + $0xbc] sm:$0xf]
  %v102 = vld [vmem:[%s1 + $0xc0] sm:$0xf]
  %v103 = vld [vmem:[%s1 + $0xc4] sm:$0xf]
  %v104 = vld [vmem:[%s1 + $0xc8] sm:$0xf]
  %v105 = vld [vmem:[%s1 + $0xcc] sm:$0xf]
  %v106 = vld [vmem:[%s1 + $0xd0] sm:$0xf]
  %v107 = vld [vmem:[%s1 + $0xd4] sm:$0xf]
  %v108 = vld [vmem:[%s1 + $0xd8] sm:$0xf]
  %v109 = vld [vmem:[%s1 + $0xdc] sm:$0xf]
  %v110 = vld [vmem:[%s1 + $0xe0] sm:$0xf]
  %v111 = vld [vmem:[%s1 + $0xe4] sm:$0xf]
  %v112 = vld [vmem:[%s1 + $0xe8] sm:$0xf]
  %v113 = vld [vmem:[%s1 + $0xec] sm:$0xf]
  %v114 = vld [vmem:[%s1 + $0xf0] sm:$0xf]
  %v115 = vld [vmem:[%s1 + $0xf4] sm:$0xf]
  %v116 = vld [vmem:[%s1 + $0xf8] sm:$0xf]
  %v117 = vld [vmem:[%s1 + $0xfc] sm:$0xf]
  %v118 = vld [vmem:[%s1 + $0x100] sm:$0xf]
  %v119 = vld [vmem:[%s1 + $0x104] sm:$0xf]
  %v120 = vld [vmem:[%s1 + $0x108] sm:$0xf]
  %v121 = vld [vmem:[%s1 + $0x10c] sm:$0xf]
  %v122 = vld [vmem:[%s1 + $0x110] sm:$0xf]
  %v123 = vld [vmem:[%s1 + $0x114] sm:$0xf]
  %v124 = vld [vmem:[%s1 + $0x118] sm:$0xf]
  %v125 = vld [vmem:[%s1 + $0x11c] sm:$0xf]
  %v126 = vld [vmem:[%s2] sm:$0x1]
  %v128 = vlaneseq
  %v129 = vshrl.u32 %v128, 7
  %v130 = vsub.s32 0, %v129
  %v131 = vrot.slane %v126, %v130
  %v172 = vunpack.c.l.b16 %v15
  %v173 = vunpack.c.h.b16 %v15
  %v174 = vunpack.c.l.b16 %v16
  %v175 = vunpack.c.h.b16 %v16
  %v176 = vunpack.c.l.b16 %v17
  %v177 = vunpack.c.l.b16 %v18
  %v178 = vunpack.c.h.b16 %v18
  %v179 = vunpack.c.l.b16 %v19
  %v180 = vunpack.c.h.b16 %v19
  %v181 = vunpack.c.l.b16 %v20
  %v182 = vunpack.c.l.b16 %v21
  %v183 = vunpack.c.h.b16 %v21
  %v184 = vunpack.c.l.b16 %v22
  %v185 = vunpack.c.h.b16 %v22
  %v186 = vunpack.c.l.b16 %v23
  %v187 = vunpack.c.l.b16 %v24
  %v188 = vunpack.c.h.b16 %v24
  %v189 = vunpack.c.l.b16 %v25
  %v190 = vunpack.c.h.b16 %v25
  %v191 = vunpack.c.l.b16 %v26
  %v192 = vunpack.c.l.b16 %v27
  %v193 = vunpack.c.h.b16 %v27
  %v194 = vunpack.c.l.b16 %v28
  %v195 = vunpack.c.h.b16 %v28
  %v196 = vunpack.c.l.b16 %v29
  %v197 = vunpack.c.l.b16 %v30
  %v198 = vunpack.c.h.b16 %v30
  %v199 = vunpack.c.l.b16 %v31
  %v200 = vunpack.c.h.b16 %v31
  %v201 = vunpack.c.l.b16 %v32
  %v202 = vunpack.c.l.b16 %v33
  %v203 = vunpack.c.h.b16 %v33
  %v204 = vunpack.c.l.b16 %v34
  %v205 = vunpack.c.h.b16 %v34
  %v206 = vunpack.c.l.b16 %v35
  %v207 = vunpack.c.l.b16 %v36
  %v208 = vunpack.c.h.b16 %v36
  %v209 = vunpack.c.l.b16 %v37
  %v210 = vunpack.c.h.b16 %v37
  %v211 = vunpack.c.l.b16 %v38
  %v212 = vunpack.c.l.b16 %v39
  %v213 = vunpack.c.h.b16 %v39
  %v214 = vunpack.c.l.b16 %v40
  %v215 = vunpack.c.h.b16 %v40
  %v216 = vunpack.c.l.b16 %v41
  %v217 = vunpack.c.l.b16 %v42
  %v218 = vunpack.c.h.b16 %v42
  %v219 = vunpack.c.l.b16 %v43
  %v220 = vunpack.c.h.b16 %v43
  %v221 = vunpack.c.l.b16 %v44
  %v222 = vunpack.c.l.b16 %v45
  %v223 = vunpack.c.h.b16 %v45
  %v224 = vunpack.c.l.b16 %v46
  %v225 = vunpack.c.h.b16 %v46
  %v226 = vunpack.c.l.b16 %v47
  %v227 = vunpack.c.l.b16 %v48
  %v228 = vunpack.c.h.b16 %v48
  %v229 = vunpack.c.l.b16 %v49
  %v230 = vunpack.c.h.b16 %v49
  %v231 = vunpack.c.l.b16 %v50
  %v232 = vunpack.c.l.b16 %v51
  %v233 = vunpack.c.h.b16 %v51
  %v234 = vunpack.c.l.b16 %v52
  %v235 = vunpack.c.h.b16 %v52
  %v236 = vunpack.c.l.b16 %v53
  %v237 = vpack.c.b16 %v177, %v172
  %v238 = vpack.c.b16 %v178, %v173
  %v239 = vpack.c.b16 %v179, %v174
  %v240 = vpack.c.b16 %v180, %v175
  %v241 = vpack.c.b16 %v181, %v176
  %v242 = vpack.c.b16 %v187, %v182
  %v243 = vpack.c.b16 %v188, %v183
  %v244 = vpack.c.b16 %v189, %v184
  %v245 = vpack.c.b16 %v190, %v185
  %v246 = vpack.c.b16 %v191, %v186
  %v247 = vpack.c.b16 %v197, %v192
  %v248 = vpack.c.b16 %v198, %v193
  %v249 = vpack.c.b16 %v199, %v194
  %v250 = vpack.c.b16 %v200, %v195
  %v251 = vpack.c.b16 %v201, %v196
  %v252 = vpack.c.b16 %v207, %v202
  %v253 = vpack.c.b16 %v208, %v203
  %v254 = vpack.c.b16 %v209, %v204
  %v255 = vpack.c.b16 %v210, %v205
  %v256 = vpack.c.b16 %v211, %v206
  %v257 = vpack.c.b16 %v217, %v212
  %v258 = vpack.c.b16 %v218, %v213
  %v259 = vpack.c.b16 %v219, %v214
  %v260 = vpack.c.b16 %v220, %v215
  %v261 = vpack.c.b16 %v221, %v216
  %v262 = vpack.c.b16 %v227, %v222
  %v263 = vpack.c.b16 %v228, %v223
  %v264 = vpack.c.b16 %v229, %v224
  %v265 = vpack.c.b16 %v230, %v225
  %v266 = vpack.c.b16 %v231, %v226
  %v267 = vpack.c.b16 %v232, %v232
  %v268 = vpack.c.b16 %v233, %v233
  %v269 = vpack.c.b16 %v234, %v234
  %v270 = vpack.c.b16 %v235, %v235
  %v271 = vpack.c.b16 %v236, %v236
  %v372 = vunpack.c.l.b16 %v54
  %v373 = vunpack.c.l.b16 %v55
  %v374 = vunpack.c.l.b16 %v56
  %v375 = vunpack.c.l.b16 %v57
  %v376 = vunpack.c.l.b16 %v58
  %v377 = vunpack.c.l.b16 %v59
  %v378 = vunpack.c.l.b16 %v60
  %v379 = vunpack.c.l.b16 %v61
  %v380 = vunpack.c.l.b16 %v62
  %v381 = vunpack.c.l.b16 %v63
  %v382 = vunpack.c.l.b16 %v64
  %v383 = vunpack.c.l.b16 %v65
  %v384 = vunpack.c.l.b16 %v66
  %v385 = vunpack.c.l.b16 %v67
  %v386 = vunpack.c.l.b16 %v68
  %v387 = vunpack.c.l.b16 %v69
  %v388 = vunpack.c.l.b16 %v70
  %v389 = vunpack.c.l.b16 %v71
  %v390 = vunpack.c.l.b16 %v72
  %v391 = vunpack.c.l.b16 %v73
  %v392 = vunpack.c.l.b16 %v74
  %v393 = vunpack.c.l.b16 %v75
  %v394 = vunpack.c.l.b16 %v76
  %v395 = vunpack.c.l.b16 %v77
  %v396 = vunpack.c.l.b16 %v78
  %v397 = vunpack.c.l.b16 %v79
  %v398 = vunpack.c.l.b16 %v80
  %v399 = vunpack.c.l.b16 %v81
  %v400 = vunpack.c.l.b16 %v82
  %v401 = vunpack.c.l.b16 %v83
  %v402 = vunpack.c.l.b16 %v84
  %v403 = vunpack.c.l.b16 %v85
  %v404 = vunpack.c.l.b16 %v86
  %v405 = vunpack.c.l.b16 %v87
  %v406 = vunpack.c.l.b16 %v88
  %v407 = vunpack.c.l.b16 %v89
  %v408 = vunpack.c.l.b16 %v90
  %v409 = vunpack.c.l.b16 %v91
  %v410 = vunpack.c.l.b16 %v92
  %v411 = vunpack.c.l.b16 %v93
  %v412 = vunpack.c.l.b16 %v94
  %v413 = vunpack.c.l.b16 %v95
  %v414 = vunpack.c.l.b16 %v96
  %v415 = vunpack.c.l.b16 %v97
  %v416 = vunpack.c.l.b16 %v98
  %v417 = vunpack.c.l.b16 %v99
  %v418 = vunpack.c.l.b16 %v100
  %v419 = vunpack.c.l.b16 %v101
  %v420 = vunpack.c.l.b16 %v102
  %v421 = vunpack.c.l.b16 %v103
  %v422 = vunpack.c.l.b16 %v104
  %v423 = vunpack.c.l.b16 %v105
  %v424 = vunpack.c.l.b16 %v106
  %v425 = vunpack.c.l.b16 %v107
  %v426 = vunpack.c.l.b16 %v108
  %v427 = vunpack.c.l.b16 %v109
  %v428 = vunpack.c.l.b16 %v110
  %v429 = vunpack.c.l.b16 %v111
  %v430 = vunpack.c.l.b16 %v112
  %v431 = vunpack.c.l.b16 %v113
  %v432 = vunpack.c.l.b16 %v114
  %v433 = vunpack.c.l.b16 %v115
  %v434 = vunpack.c.l.b16 %v116
  %v435 = vunpack.c.l.b16 %v117
  %v436 = vunpack.c.l.b16 %v118
  %v437 = vunpack.c.l.b16 %v119
  %v438 = vunpack.c.l.b16 %v120
  %v439 = vunpack.c.l.b16 %v121
  %v440 = vunpack.c.l.b16 %v122
  %v441 = vunpack.c.l.b16 %v123
  %v442 = vunpack.c.l.b16 %v124
  %v443 = vunpack.c.l.b16 %v125
  %v444 = vpack.c.b16 %v373, %v372
  %v445 = vpack.c.b16 %v375, %v374
  %v446 = vpack.c.b16 %v377, %v376
  %v447 = vpack.c.b16 %v379, %v378
  %v448 = vpack.c.b16 %v381, %v380
  %v449 = vpack.c.b16 %v383, %v382
  %v450 = vpack.c.b16 %v385, %v384
  %v451 = vpack.c.b16 %v387, %v386
  %v452 = vpack.c.b16 %v389, %v388
  %v453 = vpack.c.b16 %v391, %v390
  %v454 = vpack.c.b16 %v393, %v392
  %v455 = vpack.c.b16 %v395, %v394
  %v456 = vpack.c.b16 %v397, %v396
  %v457 = vpack.c.b16 %v399, %v398
  %v458 = vpack.c.b16 %v401, %v400
  %v459 = vpack.c.b16 %v403, %v402
  %v460 = vpack.c.b16 %v405, %v404
  %v461 = vpack.c.b16 %v407, %v406
  %v462 = vpack.c.b16 %v409, %v408
  %v463 = vpack.c.b16 %v411, %v410
  %v464 = vpack.c.b16 %v413, %v412
  %v465 = vpack.c.b16 %v415, %v414
  %v466 = vpack.c.b16 %v417, %v416
  %v467 = vpack.c.b16 %v419, %v418
  %v468 = vpack.c.b16 %v421, %v420
  %v469 = vpack.c.b16 %v423, %v422
  %v470 = vpack.c.b16 %v425, %v424
  %v471 = vpack.c.b16 %v427, %v426
  %v472 = vpack.c.b16 %v429, %v428
  %v473 = vpack.c.b16 %v431, %v430
  %v474 = vpack.c.b16 %v433, %v432
  %v475 = vpack.c.b16 %v435, %v434
  %v476 = vpack.c.b16 %v437, %v436
  %v477 = vpack.c.b16 %v439, %v438
  %v478 = vpack.c.b16 %v441, %v440
  %v479 = vpack.c.b16 %v443, %v442
  %vm516 = vcmask 523264
  %v518 = vsel %vm516, %v241, 0
  %v521 = vsel %vm516, %v246, 0
  %v524 = vsel %vm516, %v251, 0
  %v527 = vsel %vm516, %v256, 0
  %v530 = vsel %vm516, %v261, 0
  %v533 = vsel %vm516, %v266, 0
  %v536 = vsel %vm516, %v271, 0
  %538 = vmatprep.subr.bf16.mxu0 0
  %539 = vmatpush1.bf16.msra.mxu0 %v451
  %540 = vmatprep.subr.bf16.mxu0 0
  %541 = vmatpush1.bf16.msra.mxu0 %v450
  %542 = vmatprep.subr.bf16.mxu0 0
  %543 = vmatpush1.bf16.msra.mxu0 %v449
  %544 = vmatprep.subr.bf16.mxu0 0
  %545 = vmatpush1.bf16.msra.mxu0 %v448
  %546 = vmatprep.subr.bf16.mxu0 0
  %547 = vmatpush1.bf16.msra.mxu0 %v447
  %548 = vmatprep.subr.bf16.mxu0 0
  %549 = vmatpush1.bf16.msra.mxu0 %v446
  %550 = vmatprep.subr.bf16.mxu0 0
  %551 = vmatpush1.bf16.msra.mxu0 %v445
  %552 = vmatprep.subr.bf16.mxu0 0
  %553 = vmatpush1.bf16.msra.mxu0 %v444
  %554 = vmatprep.subr.bf16.mxu0 0
  %555 = vmatpush2.bf16.msra.mxu0 %v459
  %556 = vmatprep.subr.bf16.mxu0 0
  %557 = vmatpush2.bf16.msra.mxu0 %v458
  %558 = vmatprep.subr.bf16.mxu0 0
  %559 = vmatpush2.bf16.msra.mxu0 %v457
  %560 = vmatprep.subr.bf16.mxu0 0
  %561 = vmatpush2.bf16.msra.mxu0 %v456
  %562 = vmatprep.subr.bf16.mxu0 0
  %563 = vmatpush2.bf16.msra.mxu0 %v455
  %564 = vmatprep.subr.bf16.mxu0 0
  %565 = vmatpush2.bf16.msra.mxu0 %v454
  %566 = vmatprep.subr.bf16.mxu0 0
  %567 = vmatpush2.bf16.msra.mxu0 %v453
  %568 = vmatprep.subr.bf16.mxu0 0
  %569 = vmatpush2.bf16.msra.mxu0 %v452
  %570 = vmatprep.mubr.bf16.mxu0 %v238
  %571 = vmatmul.mubr.bf16.gmra.mxu0 %v237
  %v572 = vpop.f32.mrf.mxu0
  %v573 = vadd.f32 %v131, %v572
  %v574 = vpop.f32.mrf.mxu0
  %v575 = vpop.f32.mrf.mxu0
  %v576 = vadd.f32 %v131, %v575
  %v577 = vpop.f32.mrf.mxu0
  %578 = vmatprep.mubr.bf16.mxu0 %v243
  %579 = vmatmul.mubr.bf16.gmra.mxu0 %v242
  %v580 = vpop.f32.mrf.mxu0
  %v581 = vadd.f32 %v131, %v580
  %v582 = vpop.f32.mrf.mxu0
  %v583 = vpop.f32.mrf.mxu0
  %v584 = vadd.f32 %v131, %v583
  %v585 = vpop.f32.mrf.mxu0
  %586 = vmatprep.mubr.bf16.mxu0 %v248
  %587 = vmatmul.mubr.bf16.gmra.mxu0 %v247
  %v588 = vpop.f32.mrf.mxu0
  %v589 = vadd.f32 %v131, %v588
  %v590 = vpop.f32.mrf.mxu0
  %v591 = vpop.f32.mrf.mxu0
  %v592 = vadd.f32 %v131, %v591
  %v593 = vpop.f32.mrf.mxu0
  %594 = vmatprep.mubr.bf16.mxu0 %v253
  %595 = vmatmul.mubr.bf16.gmra.mxu0 %v252
  %v596 = vpop.f32.mrf.mxu0
  %v597 = vadd.f32 %v131, %v596
  %v598 = vpop.f32.mrf.mxu0
  %v599 = vpop.f32.mrf.mxu0
  %v600 = vadd.f32 %v131, %v599
  %v601 = vpop.f32.mrf.mxu0
  %602 = vmatprep.mubr.bf16.mxu0 %v258
  %603 = vmatmul.mubr.bf16.gmra.mxu0 %v257
  %v604 = vpop.f32.mrf.mxu0
  %v605 = vadd.f32 %v131, %v604
  %v606 = vpop.f32.mrf.mxu0
  %v607 = vpop.f32.mrf.mxu0
  %v608 = vadd.f32 %v131, %v607
  %v609 = vpop.f32.mrf.mxu0
  %610 = vmatprep.mubr.bf16.mxu0 %v263
  %611 = vmatmul.mubr.bf16.gmra.mxu0 %v262
  %v612 = vpop.f32.mrf.mxu0
  %v613 = vadd.f32 %v131, %v612
  %v614 = vpop.f32.mrf.mxu0
  %v615 = vpop.f32.mrf.mxu0
  %v616 = vadd.f32 %v131, %v615
  %v617 = vpop.f32.mrf.mxu0
  %618 = vmatprep.mubr.bf16.mxu0 %v268
  %619 = vmatmul.mubr.bf16.gmra.mxu0 %v267
  %v620 = vpop.f32.mrf.mxu0
  %v621 = vadd.f32 %v131, %v620
  %v622 = vpop.f32.mrf.mxu0
  %v623 = vpop.f32.mrf.mxu0
  %v624 = vpop.f32.mrf.mxu0
  %625 = vdwg.mxu0
  %626 = vmatprep.subr.bf16.mxu0 0
  %627 = vmatpush1.bf16.msra.mxu0 %v467
  %628 = vmatprep.subr.bf16.mxu0 0
  %629 = vmatpush1.bf16.msra.mxu0 %v466
  %630 = vmatprep.subr.bf16.mxu0 0
  %631 = vmatpush1.bf16.msra.mxu0 %v465
  %632 = vmatprep.subr.bf16.mxu0 0
  %633 = vmatpush1.bf16.msra.mxu0 %v464
  %634 = vmatprep.subr.bf16.mxu0 0
  %635 = vmatpush1.bf16.msra.mxu0 %v463
  %636 = vmatprep.subr.bf16.mxu0 0
  %637 = vmatpush1.bf16.msra.mxu0 %v462
  %638 = vmatprep.subr.bf16.mxu0 0
  %639 = vmatpush1.bf16.msra.mxu0 %v461
  %640 = vmatprep.subr.bf16.mxu0 0
  %641 = vmatpush1.bf16.msra.mxu0 %v460
  %642 = vmatprep.subr.bf16.mxu0 0
  %643 = vmatpush2.bf16.msra.mxu0 %v475
  %644 = vmatprep.subr.bf16.mxu0 0
  %645 = vmatpush2.bf16.msra.mxu0 %v474
  %646 = vmatprep.subr.bf16.mxu0 0
  %647 = vmatpush2.bf16.msra.mxu0 %v473
  %648 = vmatprep.subr.bf16.mxu0 0
  %649 = vmatpush2.bf16.msra.mxu0 %v472
  %650 = vmatprep.subr.bf16.mxu0 0
  %651 = vmatpush2.bf16.msra.mxu0 %v471
  %652 = vmatprep.subr.bf16.mxu0 0
  %653 = vmatpush2.bf16.msra.mxu0 %v470
  %654 = vmatprep.subr.bf16.mxu0 0
  %655 = vmatpush2.bf16.msra.mxu0 %v469
  %656 = vmatprep.subr.bf16.mxu0 0
  %657 = vmatpush2.bf16.msra.mxu0 %v468
  %658 = vmatprep.mubr.bf16.mxu0 %v240
  %659 = vmatmul.mubr.bf16.gmra.mxu0 %v239
  %v660 = vpop.f32.mrf.mxu0
  %v661 = vadd.f32 %v573, %v660
  %v662 = vpop.f32.mrf.mxu0
  %v663 = vpop.f32.mrf.mxu0
  %v664 = vadd.f32 %v576, %v663
  %v665 = vpop.f32.mrf.mxu0
  %666 = vmatprep.mubr.bf16.mxu0 %v245
  %667 = vmatmul.mubr.bf16.gmra.mxu0 %v244
  %v668 = vpop.f32.mrf.mxu0
  %v669 = vadd.f32 %v581, %v668
  %v670 = vpop.f32.mrf.mxu0
  %v671 = vpop.f32.mrf.mxu0
  %v672 = vadd.f32 %v584, %v671
  %v673 = vpop.f32.mrf.mxu0
  %674 = vmatprep.mubr.bf16.mxu0 %v250
  %675 = vmatmul.mubr.bf16.gmra.mxu0 %v249
  %v676 = vpop.f32.mrf.mxu0
  %v677 = vadd.f32 %v589, %v676
  %v678 = vpop.f32.mrf.mxu0
  %v679 = vpop.f32.mrf.mxu0
  %v680 = vadd.f32 %v592, %v679
  %v681 = vpop.f32.mrf.mxu0
  %682 = vmatprep.mubr.bf16.mxu0 %v255
  %683 = vmatmul.mubr.bf16.gmra.mxu0 %v254
  %v684 = vpop.f32.mrf.mxu0
  %v685 = vadd.f32 %v597, %v684
  %v686 = vpop.f32.mrf.mxu0
  %v687 = vpop.f32.mrf.mxu0
  %v688 = vadd.f32 %v600, %v687
  %v689 = vpop.f32.mrf.mxu0
  %690 = vmatprep.mubr.bf16.mxu0 %v260
  %691 = vmatmul.mubr.bf16.gmra.mxu0 %v259
  %v692 = vpop.f32.mrf.mxu0
  %v693 = vadd.f32 %v605, %v692
  %v694 = vpop.f32.mrf.mxu0
  %v695 = vpop.f32.mrf.mxu0
  %v696 = vadd.f32 %v608, %v695
  %v697 = vpop.f32.mrf.mxu0
  %698 = vmatprep.mubr.bf16.mxu0 %v265
  %699 = vmatmul.mubr.bf16.gmra.mxu0 %v264
  %v700 = vpop.f32.mrf.mxu0
  %v701 = vadd.f32 %v613, %v700
  %v702 = vpop.f32.mrf.mxu0
  %v703 = vpop.f32.mrf.mxu0
  %v704 = vadd.f32 %v616, %v703
  %v705 = vpop.f32.mrf.mxu0
  %706 = vmatprep.mubr.bf16.mxu0 %v270
  %707 = vmatmul.mubr.bf16.gmra.mxu0 %v269
  %v708 = vpop.f32.mrf.mxu0
  %v709 = vadd.f32 %v621, %v708
  %v710 = vpop.f32.mrf.mxu0
  %v711 = vpop.f32.mrf.mxu0
  %v712 = vpop.f32.mrf.mxu0
  %713 = vdwg.mxu0
  %714 = vmatprep.subr.bf16.mxu0 0
  %715 = vmatpush1.bf16.msra.mxu0 0
  %716 = vmatprep.subr.bf16.mxu0 0
  %717 = vmatpush1.bf16.msra.mxu0 0
  %718 = vmatprep.subr.bf16.mxu0 0
  %719 = vmatpush1.bf16.msra.mxu0 0
  %720 = vmatprep.subr.bf16.mxu0 0
  %721 = vmatpush1.bf16.msra.mxu0 0
  %722 = vmatprep.subr.bf16.mxu0 0
  %723 = vmatpush1.bf16.msra.mxu0 %v479
  %724 = vmatprep.subr.bf16.mxu0 0
  %725 = vmatpush1.bf16.msra.mxu0 %v478
  %726 = vmatprep.subr.bf16.mxu0 0
  %727 = vmatpush1.bf16.msra.mxu0 %v477
  %728 = vmatprep.subr.bf16.mxu0 0
  %729 = vmatpush1.bf16.msra.mxu0 %v476
  %730 = vmatprep.subr.bf16.mxu0 0
  %731 = vmatpush2.bf16.msra.mxu0 0
  %732 = vmatprep.subr.bf16.mxu0 0
  %733 = vmatpush2.bf16.msra.mxu0 0
  %734 = vmatprep.subr.bf16.mxu0 0
  %735 = vmatpush2.bf16.msra.mxu0 0
  %736 = vmatprep.subr.bf16.mxu0 0
  %737 = vmatpush2.bf16.msra.mxu0 0
  %738 = vmatprep.subr.bf16.mxu0 0
  %739 = vmatpush2.bf16.msra.mxu0 0
  %740 = vmatprep.subr.bf16.mxu0 0
  %741 = vmatpush2.bf16.msra.mxu0 0
  %742 = vmatprep.subr.bf16.mxu0 0
  %743 = vmatpush2.bf16.msra.mxu0 0
  %744 = vmatprep.subr.bf16.mxu0 0
  %745 = vmatpush2.bf16.msra.mxu0 0
  %746 = vmatprep.mubr.bf16.mxu0 0
  %747 = vmatmul.mubr.bf16.gmra.mxu0 %v518
  %v748 = vpop.f32.mrf.mxu0
  %v749 = vadd.f32 %v661, %v748
  %v750 = vpop.f32.mrf.mxu0
  %v751 = vpop.f32.mrf.mxu0
  %v752 = vadd.f32 %v664, %v751
  %v753 = vpop.f32.mrf.mxu0
  %754 = vmatprep.mubr.bf16.mxu0 0
  %755 = vmatmul.mubr.bf16.gmra.mxu0 %v521
  %v756 = vpop.f32.mrf.mxu0
  %v757 = vadd.f32 %v669, %v756
  %v758 = vpop.f32.mrf.mxu0
  %v759 = vpop.f32.mrf.mxu0
  %v760 = vadd.f32 %v672, %v759
  %v761 = vpop.f32.mrf.mxu0
  %762 = vmatprep.mubr.bf16.mxu0 0
  %763 = vmatmul.mubr.bf16.gmra.mxu0 %v524
  %v764 = vpop.f32.mrf.mxu0
  %v765 = vadd.f32 %v677, %v764
  %v766 = vpop.f32.mrf.mxu0
  %v767 = vpop.f32.mrf.mxu0
  %v768 = vadd.f32 %v680, %v767
  %v769 = vpop.f32.mrf.mxu0
  %770 = vmatprep.mubr.bf16.mxu0 0
  %771 = vmatmul.mubr.bf16.gmra.mxu0 %v527
  %v772 = vpop.f32.mrf.mxu0
  %v773 = vadd.f32 %v685, %v772
  %v774 = vpop.f32.mrf.mxu0
  %v775 = vpop.f32.mrf.mxu0
  %v776 = vadd.f32 %v688, %v775
  %v777 = vpop.f32.mrf.mxu0
  %778 = vmatprep.mubr.bf16.mxu0 0
  %779 = vmatmul.mubr.bf16.gmra.mxu0 %v530
  %v780 = vpop.f32.mrf.mxu0
  %v781 = vadd.f32 %v693, %v780
  %v782 = vpop.f32.mrf.mxu0
  %v783 = vpop.f32.mrf.mxu0
  %v784 = vadd.f32 %v696, %v783
  %v785 = vpop.f32.mrf.mxu0
  %786 = vmatprep.mubr.bf16.mxu0 0
  %787 = vmatmul.mubr.bf16.gmra.mxu0 %v533
  %v788 = vpop.f32.mrf.mxu0
  %v789 = vadd.f32 %v701, %v788
  %v790 = vpop.f32.mrf.mxu0
  %v791 = vpop.f32.mrf.mxu0
  %v792 = vadd.f32 %v704, %v791
  %v793 = vpop.f32.mrf.mxu0
  %794 = vmatprep.mubr.bf16.mxu0 0
  %795 = vmatmul.mubr.bf16.gmra.mxu0 %v536
  %v796 = vpop.f32.mrf.mxu0
  %v797 = vadd.f32 %v709, %v796
  %v798 = vpop.f32.mrf.mxu0
  %v799 = vpop.f32.mrf.mxu0
  %v800 = vpop.f32.mrf.mxu0
  %801 = vdwg.mxu0
  %v802 = vmax.f32 %v749, 0.0
  %v803 = vmax.f32 %v752, 0.0
  %v804 = vmax.f32 %v757, 0.0
  %v805 = vmax.f32 %v760, 0.0
  %v806 = vmax.f32 %v765, 0.0
  %v807 = vmax.f32 %v768, 0.0
  %v808 = vmax.f32 %v773, 0.0
  %v809 = vmax.f32 %v776, 0.0
  %v810 = vmax.f32 %v781, 0.0
  %v811 = vmax.f32 %v784, 0.0
  %v812 = vmax.f32 %v789, 0.0
  %v813 = vmax.f32 %v792, 0.0
  %v814 = vmax.f32 %v797, 0.0
  %v815 = vpack.c.bf16 %v803, %v802
  %v816 = vpack.c.bf16 %v805, %v804
  %v817 = vpack.c.bf16 %v807, %v806
  %v818 = vpack.c.bf16 %v809, %v808
  %v819 = vpack.c.bf16 %v811, %v810
  %v820 = vpack.c.bf16 %v813, %v812
  %v821 = vpack.c.bf16 %v814, %v814
  %v829 = vunpack.c.l.b16 %v815
  %v830 = vunpack.c.h.b16 %v815
  %v831 = vunpack.c.l.b16 %v816
  %v832 = vunpack.c.h.b16 %v816
  %v833 = vunpack.c.l.b16 %v817
  %v834 = vunpack.c.h.b16 %v817
  %v835 = vunpack.c.l.b16 %v818
  %v836 = vunpack.c.h.b16 %v818
  %v837 = vunpack.c.l.b16 %v819
  %v838 = vunpack.c.h.b16 %v819
  %v839 = vunpack.c.l.b16 %v820
  %v840 = vunpack.c.h.b16 %v820
  %v841 = vunpack.c.l.b16 %v821
  %v842 = vpack.c.b16 %v829, %v829
  %v843 = vpack.c.b16 %v830, %v830
  %v844 = vpack.c.b16 %v831, %v831
  %v845 = vpack.c.b16 %v832, %v832
  %v846 = vpack.c.b16 %v833, %v833
  %v847 = vpack.c.b16 %v834, %v834
  %v848 = vpack.c.b16 %v835, %v835
  %v849 = vpack.c.b16 %v836, %v836
  %v850 = vpack.c.b16 %v837, %v837
  %v851 = vpack.c.b16 %v838, %v838
  %v852 = vpack.c.b16 %v839, %v839
  %v853 = vpack.c.b16 %v840, %v840
  %v854 = vpack.c.b16 %v841, %v841
  %vm868 = vcmask 519168
  %869 = vst.msk [vmem:[%s3] sm:$0xf] %vm868, %v842
  %870 = vst.msk [vmem:[%s3 + $0x4] sm:$0xf] %vm868, %v843
  %871 = vst.msk [vmem:[%s3 + $0x8] sm:$0xf] %vm868, %v844
  %872 = vst.msk [vmem:[%s3 + $0xc] sm:$0xf] %vm868, %v845
  %873 = vst.msk [vmem:[%s3 + $0x10] sm:$0xf] %vm868, %v846
  %874 = vst.msk [vmem:[%s3 + $0x14] sm:$0xf] %vm868, %v847
  %875 = vst.msk [vmem:[%s3 + $0x18] sm:$0xf] %vm868, %v848
  %876 = vst.msk [vmem:[%s3 + $0x1c] sm:$0xf] %vm868, %v849
  %877 = vst.msk [vmem:[%s3 + $0x20] sm:$0xf] %vm868, %v850
  %878 = vst.msk [vmem:[%s3 + $0x24] sm:$0xf] %vm868, %v851
  %879 = vst.msk [vmem:[%s3 + $0x28] sm:$0xf] %vm868, %v852
  %880 = vst.msk [vmem:[%s3 + $0x2c] sm:$0xf] %vm868, %v853
  %vm881 = vcmask 516096
  %882 = vst.msk [vmem:[%s3 + $0x30] sm:$0x1] %vm881, %v854
  // Predicated region
  $region14: #{_lambda_.7} parent=0 // pred_check
    _
  $region15: #{_lambda_.7} parent=0 // pred_check_branch
    %884 = sbr.rel (0) target = $region17
  $region16: #{_lambda_.7} parent=0 // pred_region
    _
  $region17: #{_lambda_.7} parent=0 // pred_fallthru
    _
  // Predicated region
  $region18: #{_lambda_.7} parent=0 // pred_check
    _
  $region19: #{_lambda_.7} parent=0 // pred_check_branch
    %886 = sbr.rel (0) target = $region21
  $region20: #{_lambda_.7} parent=0 // pred_region
    _
  $region21: #{_lambda_.7} parent=0 // pred_fallthru
    _

// kernel: _lambda_.9
$region0: #{_lambda_.9}
  #allocation0 [shape = 'u32[]', space=smem, size = 0x4, offset = 0x4, fixed_abs, tag = 'smem constant byte address 0x4 - core index']
  #allocation1 [shape = 'u32[144,128]{1,0:T(1,128)}', space=vmem, size = 0x12000, scoped, tag = 'internal scratch']
  %s0 = inlined_call_operand.vmem [shape: bf16[2,1536], index: 0, kind: input, shape index: {}]
  %s1 = inlined_call_operand.vmem [shape: bf16[1536,128], index: 1, kind: input, shape index: {}]
  %s2 = inlined_call_operand.vmem [shape: f32[1,128], index: 2, kind: input, shape index: {}]
  %s3 = inlined_call_operand.vmem [shape: f32[2,128], index: 3, kind: output, shape index: {}]
  %s4 = sld [smem:[#allocation0]]
  $region22: #{_lambda_.9} parent=0
    _
  %s6 = ssub.s32 1, %s4
  %s7 = scalar_select 0, %s6, %s4
  // Predicated region
  $region2: #{_lambda_.9} parent=0 // pred_check
    _
  $region3: #{_lambda_.9} parent=0 // pred_check_branch
    %9 = sbr.rel (0) target = $region5
  $region4: #{_lambda_.9} parent=0 // pred_region
    _
  $region5: #{_lambda_.9} parent=0 // pred_fallthru
    _
  // Predicated region
  $region6: #{_lambda_.9} parent=0 // pred_check
    _
  $region7: #{_lambda_.9} parent=0 // pred_check_branch
    %11 = sbr.rel (0) target = $region9
  $region8: #{_lambda_.9} parent=0 // pred_region
    _
  $region9: #{_lambda_.9} parent=0 // pred_fallthru
    _
  // Predicated region
  $region10: #{_lambda_.9} parent=0 // pred_check
    _
  $region11: #{_lambda_.9} parent=0 // pred_check_branch
    %13 = sbr.rel (0) target = $region13
  $region12: #{_lambda_.9} parent=0 // pred_region
    _
  $region13: #{_lambda_.9} parent=0 // pred_fallthru
    _
  %v15 = vld [vmem:[%s0] sm:$0xff]
  %v16 = vld [vmem:[%s0 + $0x8] sm:$0xf]
  %v17 = vld [vmem:[%s1] sm:$0xf]
  %v18 = vld [vmem:[%s1 + $0x4] sm:$0xf]
  %v19 = vld [vmem:[%s1 + $0x8] sm:$0xf]
  %v20 = vld [vmem:[%s1 + $0xc] sm:$0xf]
  %v21 = vld [vmem:[%s1 + $0x10] sm:$0xf]
  %v22 = vld [vmem:[%s1 + $0x14] sm:$0xf]
  %v23 = vld [vmem:[%s1 + $0x18] sm:$0xf]
  %v24 = vld [vmem:[%s1 + $0x1c] sm:$0xf]
  %v25 = vld [vmem:[%s1 + $0x20] sm:$0xf]
  %v26 = vld [vmem:[%s1 + $0x24] sm:$0xf]
  %v27 = vld [vmem:[%s1 + $0x28] sm:$0xf]
  %v28 = vld [vmem:[%s1 + $0x2c] sm:$0xf]
  %v29 = vld [vmem:[%s1 + $0x30] sm:$0xf]
  %v30 = vld [vmem:[%s1 + $0x34] sm:$0xf]
  %v31 = vld [vmem:[%s1 + $0x38] sm:$0xf]
  %v32 = vld [vmem:[%s1 + $0x3c] sm:$0xf]
  %v33 = vld [vmem:[%s1 + $0x40] sm:$0xf]
  %v34 = vld [vmem:[%s1 + $0x44] sm:$0xf]
  %v35 = vld [vmem:[%s1 + $0x48] sm:$0xf]
  %v36 = vld [vmem:[%s1 + $0x4c] sm:$0xf]
  %v37 = vld [vmem:[%s1 + $0x50] sm:$0xf]
  %v38 = vld [vmem:[%s1 + $0x54] sm:$0xf]
  %v39 = vld [vmem:[%s1 + $0x58] sm:$0xf]
  %v40 = vld [vmem:[%s1 + $0x5c] sm:$0xf]
  %v41 = vld [vmem:[%s1 + $0x60] sm:$0xf]
  %v42 = vld [vmem:[%s1 + $0x64] sm:$0xf]
  %v43 = vld [vmem:[%s1 + $0x68] sm:$0xf]
  %v44 = vld [vmem:[%s1 + $0x6c] sm:$0xf]
  %v45 = vld [vmem:[%s1 + $0x70] sm:$0xf]
  %v46 = vld [vmem:[%s1 + $0x74] sm:$0xf]
  %v47 = vld [vmem:[%s1 + $0x78] sm:$0xf]
  %v48 = vld [vmem:[%s1 + $0x7c] sm:$0xf]
  %v49 = vld [vmem:[%s1 + $0x80] sm:$0xf]
  %v50 = vld [vmem:[%s1 + $0x84] sm:$0xf]
  %v51 = vld [vmem:[%s1 + $0x88] sm:$0xf]
  %v52 = vld [vmem:[%s1 + $0x8c] sm:$0xf]
  %v53 = vld [vmem:[%s1 + $0x90] sm:$0xf]
  %v54 = vld [vmem:[%s1 + $0x94] sm:$0xf]
  %v55 = vld [vmem:[%s1 + $0x98] sm:$0xf]
  %v56 = vld [vmem:[%s1 + $0x9c] sm:$0xf]
  %v57 = vld [vmem:[%s1 + $0xa0] sm:$0xf]
  %v58 = vld [vmem:[%s1 + $0xa4] sm:$0xf]
  %v59 = vld [vmem:[%s1 + $0xa8] sm:$0xf]
  %v60 = vld [vmem:[%s1 + $0xac] sm:$0xf]
  %v61 = vld [vmem:[%s1 + $0xb0] sm:$0xf]
  %v62 = vld [vmem:[%s1 + $0xb4] sm:$0xf]
  %v63 = vld [vmem:[%s1 + $0xb8] sm:$0xf]
  %v64 = vld [vmem:[%s1 + $0xbc] sm:$0xf]
  %v65 = vld [vmem:[%s1 + $0xc0] sm:$0xf]
  %v66 = vld [vmem:[%s1 + $0xc4] sm:$0xf]
  %v67 = vld [vmem:[%s1 + $0xc8] sm:$0xf]
  %v68 = vld [vmem:[%s1 + $0xcc] sm:$0xf]
  %v69 = vld [vmem:[%s1 + $0xd0] sm:$0xf]
  %v70 = vld [vmem:[%s1 + $0xd4] sm:$0xf]
  %v71 = vld [vmem:[%s1 + $0xd8] sm:$0xf]
  %v72 = vld [vmem:[%s1 + $0xdc] sm:$0xf]
  %v73 = vld [vmem:[%s1 + $0xe0] sm:$0xf]
  %v74 = vld [vmem:[%s1 + $0xe4] sm:$0xf]
  %v75 = vld [vmem:[%s1 + $0xe8] sm:$0xf]
  %v76 = vld [vmem:[%s1 + $0xec] sm:$0xf]
  %v77 = vld [vmem:[%s1 + $0xf0] sm:$0xf]
  %v78 = vld [vmem:[%s1 + $0xf4] sm:$0xf]
  %v79 = vld [vmem:[%s1 + $0xf8] sm:$0xf]
  %v80 = vld [vmem:[%s1 + $0xfc] sm:$0xf]
  %v81 = vld [vmem:[%s1 + $0x100] sm:$0xf]
  %v82 = vld [vmem:[%s1 + $0x104] sm:$0xf]
  %v83 = vld [vmem:[%s1 + $0x108] sm:$0xf]
  %v84 = vld [vmem:[%s1 + $0x10c] sm:$0xf]
  %v85 = vld [vmem:[%s1 + $0x110] sm:$0xf]
  %v86 = vld [vmem:[%s1 + $0x114] sm:$0xf]
  %v87 = vld [vmem:[%s1 + $0x118] sm:$0xf]
  %v88 = vld [vmem:[%s1 + $0x11c] sm:$0xf]
  %v89 = vld [vmem:[%s1 + $0x120] sm:$0xf]
  %v90 = vld [vmem:[%s1 + $0x124] sm:$0xf]
  %v91 = vld [vmem:[%s1 + $0x128] sm:$0xf]
  %v92 = vld [vmem:[%s1 + $0x12c] sm:$0xf]
  %v93 = vld [vmem:[%s1 + $0x130] sm:$0xf]
  %v94 = vld [vmem:[%s1 + $0x134] sm:$0xf]
  %v95 = vld [vmem:[%s1 + $0x138] sm:$0xf]
  %v96 = vld [vmem:[%s1 + $0x13c] sm:$0xf]
  %v97 = vld [vmem:[%s1 + $0x140] sm:$0xf]
  %v98 = vld [vmem:[%s1 + $0x144] sm:$0xf]
  %v99 = vld [vmem:[%s1 + $0x148] sm:$0xf]
  %v100 = vld [vmem:[%s1 + $0x14c] sm:$0xf]
  %v101 = vld [vmem:[%s1 + $0x150] sm:$0xf]
  %v102 = vld [vmem:[%s1 + $0x154] sm:$0xf]
  %v103 = vld [vmem:[%s1 + $0x158] sm:$0xf]
  %v104 = vld [vmem:[%s1 + $0x15c] sm:$0xf]
  %v105 = vld [vmem:[%s1 + $0x160] sm:$0xf]
  %v106 = vld [vmem:[%s1 + $0x164] sm:$0xf]
  %v107 = vld [vmem:[%s1 + $0x168] sm:$0xf]
  %v108 = vld [vmem:[%s1 + $0x16c] sm:$0xf]
  %v109 = vld [vmem:[%s1 + $0x170] sm:$0xf]
  %v110 = vld [vmem:[%s1 + $0x174] sm:$0xf]
  %v111 = vld [vmem:[%s1 + $0x178] sm:$0xf]
  %v112 = vld [vmem:[%s1 + $0x17c] sm:$0xf]
  %v113 = vld [vmem:[%s1 + $0x180] sm:$0xf]
  %v114 = vld [vmem:[%s1 + $0x184] sm:$0xf]
  %v115 = vld [vmem:[%s1 + $0x188] sm:$0xf]
  %v116 = vld [vmem:[%s1 + $0x18c] sm:$0xf]
  %v117 = vld [vmem:[%s1 + $0x190] sm:$0xf]
  %v118 = vld [vmem:[%s1 + $0x194] sm:$0xf]
  %v119 = vld [vmem:[%s1 + $0x198] sm:$0xf]
  %v120 = vld [vmem:[%s1 + $0x19c] sm:$0xf]
  %v121 = vld [vmem:[%s1 + $0x1a0] sm:$0xf]
  %v122 = vld [vmem:[%s1 + $0x1a4] sm:$0xf]
  %v123 = vld [vmem:[%s1 + $0x1a8] sm:$0xf]
  %v124 = vld [vmem:[%s1 + $0x1ac] sm:$0xf]
  %v125 = vld [vmem:[%s1 + $0x1b0] sm:$0xf]
  %v126 = vld [vmem:[%s1 + $0x1b4] sm:$0xf]
  %v127 = vld [vmem:[%s1 + $0x1b8] sm:$0xf]
  %v128 = vld [vmem:[%s1 + $0x1bc] sm:$0xf]
  %v129 = vld [vmem:[%s1 + $0x1c0] sm:$0xf]
  %v130 = vld [vmem:[%s1 + $0x1c4] sm:$0xf]
  %v131 = vld [vmem:[%s1 + $0x1c8] sm:$0xf]
  %v132 = vld [vmem:[%s1 + $0x1cc] sm:$0xf]
  %v133 = vld [vmem:[%s1 + $0x1d0] sm:$0xf]
  %v134 = vld [vmem:[%s1 + $0x1d4] sm:$0xf]
  %v135 = vld [vmem:[%s1 + $0x1d8] sm:$0xf]
  %v136 = vld [vmem:[%s1 + $0x1dc] sm:$0xf]
  %v137 = vld [vmem:[%s1 + $0x1e0] sm:$0xf]
  %v138 = vld [vmem:[%s1 + $0x1e4] sm:$0xf]
  %v139 = vld [vmem:[%s1 + $0x1e8] sm:$0xf]
  %v140 = vld [vmem:[%s1 + $0x1ec] sm:$0xf]
  %v141 = vld [vmem:[%s1 + $0x1f0] sm:$0xf]
  %v142 = vld [vmem:[%s1 + $0x1f4] sm:$0xf]
  %v143 = vld [vmem:[%s1 + $0x1f8] sm:$0xf]
  %v144 = vld [vmem:[%s1 + $0x1fc] sm:$0xf]
  %v145 = vld [vmem:[%s1 + $0x200] sm:$0xf]
  %v146 = vld [vmem:[%s1 + $0x204] sm:$0xf]
  %v147 = vld [vmem:[%s1 + $0x208] sm:$0xf]
  %v148 = vld [vmem:[%s1 + $0x20c] sm:$0xf]
  %v149 = vld [vmem:[%s1 + $0x210] sm:$0xf]
  %v150 = vld [vmem:[%s1 + $0x214] sm:$0xf]
  %v151 = vld [vmem:[%s1 + $0x218] sm:$0xf]
  %v152 = vld [vmem:[%s1 + $0x21c] sm:$0xf]
  %v153 = vld [vmem:[%s1 + $0x220] sm:$0xf]
  %v154 = vld [vmem:[%s1 + $0x224] sm:$0xf]
  %v155 = vld [vmem:[%s1 + $0x228] sm:$0xf]
  %v156 = vld [vmem:[%s1 + $0x22c] sm:$0xf]
  %v157 = vld [vmem:[%s1 + $0x230] sm:$0xf]
  %v158 = vld [vmem:[%s1 + $0x234] sm:$0xf]
  %v159 = vld [vmem:[%s1 + $0x238] sm:$0xf]
  %v160 = vld [vmem:[%s1 + $0x23c] sm:$0xf]
  %v161 = vld [vmem:[%s1 + $0x240] sm:$0xf]
  %v162 = vld [vmem:[%s1 + $0x244] sm:$0xf]
  %v163 = vld [vmem:[%s1 + $0x248] sm:$0xf]
  %v164 = vld [vmem:[%s1 + $0x24c] sm:$0xf]
  %v165 = vld [vmem:[%s1 + $0x250] sm:$0xf]
  %v166 = vld [vmem:[%s1 + $0x254] sm:$0xf]
  %v167 = vld [vmem:[%s1 + $0x258] sm:$0xf]
  %v168 = vld [vmem:[%s1 + $0x25c] sm:$0xf]
  %v169 = vld [vmem:[%s1 + $0x260] sm:$0xf]
  %v170 = vld [vmem:[%s1 + $0x264] sm:$0xf]
  %v171 = vld [vmem:[%s1 + $0x268] sm:$0xf]
  %v172 = vld [vmem:[%s1 + $0x26c] sm:$0xf]
  %v173 = vld [vmem:[%s1 + $0x270] sm:$0xf]
  %v174 = vld [vmem:[%s1 + $0x274] sm:$0xf]
  %v175 = vld [vmem:[%s1 + $0x278] sm:$0xf]
  %v176 = vld [vmem:[%s1 + $0x27c] sm:$0xf]
  %v177 = vld [vmem:[%s1 + $0x280] sm:$0xf]
  %v178 = vld [vmem:[%s1 + $0x284] sm:$0xf]
  %v179 = vld [vmem:[%s1 + $0x288] sm:$0xf]
  %v180 = vld [vmem:[%s1 + $0x28c] sm:$0xf]
  %v181 = vld [vmem:[%s1 + $0x290] sm:$0xf]
  %v182 = vld [vmem:[%s1 + $0x294] sm:$0xf]
  %v183 = vld [vmem:[%s1 + $0x298] sm:$0xf]
  %v184 = vld [vmem:[%s1 + $0x29c] sm:$0xf]
  %v185 = vld [vmem:[%s1 + $0x2a0] sm:$0xf]
  %v186 = vld [vmem:[%s1 + $0x2a4] sm:$0xf]
  %v187 = vld [vmem:[%s1 + $0x2a8] sm:$0xf]
  %v188 = vld [vmem:[%s1 + $0x2ac] sm:$0xf]
  %v189 = vld [vmem:[%s1 + $0x2b0] sm:$0xf]
  %v190 = vld [vmem:[%s1 + $0x2b4] sm:$0xf]
  %v191 = vld [vmem:[%s1 + $0x2b8] sm:$0xf]
  %v192 = vld [vmem:[%s1 + $0x2bc] sm:$0xf]
  %v193 = vld [vmem:[%s1 + $0x2c0] sm:$0xf]
  %v194 = vld [vmem:[%s1 + $0x2c4] sm:$0xf]
  %v195 = vld [vmem:[%s1 + $0x2c8] sm:$0xf]
  %v196 = vld [vmem:[%s1 + $0x2cc] sm:$0xf]
  %v197 = vld [vmem:[%s1 + $0x2d0] sm:$0xf]
  %v198 = vld [vmem:[%s1 + $0x2d4] sm:$0xf]
  %v199 = vld [vmem:[%s1 + $0x2d8] sm:$0xf]
  %v200 = vld [vmem:[%s1 + $0x2dc] sm:$0xf]
  %v201 = vld [vmem:[%s1 + $0x2e0] sm:$0xf]
  %v202 = vld [vmem:[%s1 + $0x2e4] sm:$0xf]
  %v203 = vld [vmem:[%s1 + $0x2e8] sm:$0xf]
  %v204 = vld [vmem:[%s1 + $0x2ec] sm:$0xf]
  %v205 = vld [vmem:[%s1 + $0x2f0] sm:$0xf]
  %v206 = vld [vmem:[%s1 + $0x2f4] sm:$0xf]
  %v207 = vld [vmem:[%s1 + $0x2f8] sm:$0xf]
  %v208 = vld [vmem:[%s1 + $0x2fc] sm:$0xf]
  %v209 = vld [vmem:[%s2] sm:$0x1]
  %v211 = vlaneseq
  %v212 = vshrl.u32 %v211, 7
  %v213 = vsub.s32 0, %v212
  %v214 = vrot.slane %v209, %v213
  %v218 = vcombine.high %v15, %v15
  %v220 = vunpack.c.l.s4 1966171168
  %v221 = vunpack.c.0.s8 %v220
  %v222 = vlaneseq
  %v223 = vshrl.u32 %v222, 7
  %v224 = vsub.s32 %v221, %v223
  %v225 = vrot.slane %v15, %v224
  %v227 = vunpack.c.l.s4 1966171168
  %v228 = vunpack.c.0.s8 %v227
  %v229 = vlaneseq
  %v230 = vshrl.u32 %v229, 7
  %v231 = vsub.s32 %v228, %v230
  %v232 = vrot.slane %v218, %v231
  %v233 = vcombine.high %v225, %v225
  %v234 = vcombine.high %v232, %v232
  %v236 = vunpack.c.l.s4 1966171168
  %v237 = vunpack.c.0.s8 %v236
  %v238 = vlaneseq
  %v239 = vshrl.u32 %v238, 7
  %v240 = vsub.s32 %v237, %v239
  %v241 = vrot.slane %v225, %v240
  %v243 = vunpack.c.l.s4 1966171168
  %v244 = vunpack.c.0.s8 %v243
  %v245 = vlaneseq
  %v246 = vshrl.u32 %v245, 7
  %v247 = vsub.s32 %v244, %v246
  %v248 = vrot.slane %v232, %v247
  %v250 = vunpack.c.l.s4 1966171168
  %v251 = vunpack.c.0.s8 %v250
  %v252 = vlaneseq
  %v253 = vshrl.u32 %v252, 7
  %v254 = vsub.s32 %v251, %v253
  %v255 = vrot.slane %v233, %v254
  %v257 = vunpack.c.l.s4 1966171168
  %v258 = vunpack.c.0.s8 %v257
  %v259 = vlaneseq
  %v260 = vshrl.u32 %v259, 7
  %v261 = vsub.s32 %v258, %v260
  %v262 = vrot.slane %v234, %v261
  %v263 = vcombine.high %v241, %v241
  %v264 = vcombine.high %v248, %v248
  %v265 = vcombine.high %v255, %v255
  %v266 = vcombine.high %v262, %v262
  %v268 = vunpack.c.l.s4 1966171168
  %v269 = vunpack.c.0.s8 %v268
  %v270 = vlaneseq
  %v271 = vshrl.u32 %v270, 7
  %v272 = vsub.s32 %v269, %v271
  %v273 = vrot.slane %v16, %v272
  %v274 = vcombine.high %v273, %v273
  %v276 = vunpack.c.l.s4 1966171168
  %v277 = vunpack.c.0.s8 %v276
  %v278 = vlaneseq
  %v279 = vshrl.u32 %v278, 7
  %v280 = vsub.s32 %v277, %v279
  %v281 = vrot.slane %v273, %v280
  %v283 = vunpack.c.l.s4 1966171168
  %v284 = vunpack.c.0.s8 %v283
  %v285 = vlaneseq
  %v286 = vshrl.u32 %v285, 7
  %v287 = vsub.s32 %v284, %v286
  %v288 = vrot.slane %v274, %v287
  %v289 = vcombine.high %v281, %v281
  %v290 = vcombine.high %v288, %v288
  %v495 = vunpack.c.l.b16 %v17
  %v496 = vunpack.c.l.b16 %v18
  %v497 = vunpack.c.l.b16 %v19
  %v498 = vunpack.c.l.b16 %v20
  %v499 = vunpack.c.l.b16 %v21
  %v500 = vunpack.c.l.b16 %v22
  %v501 = vunpack.c.l.b16 %v23
  %v502 = vunpack.c.l.b16 %v24
  %v503 = vunpack.c.l.b16 %v25
  %v504 = vunpack.c.l.b16 %v26
  %v505 = vunpack.c.l.b16 %v27
  %v506 = vunpack.c.l.b16 %v28
  %v507 = vunpack.c.l.b16 %v29
  %v508 = vunpack.c.l.b16 %v30
  %v509 = vunpack.c.l.b16 %v31
  %v510 = vunpack.c.l.b16 %v32
  %v511 = vunpack.c.l.b16 %v33
  %v512 = vunpack.c.l.b16 %v34
  %v513 = vunpack.c.l.b16 %v35
  %v514 = vunpack.c.l.b16 %v36
  %v515 = vunpack.c.l.b16 %v37
  %v516 = vunpack.c.l.b16 %v38
  %v517 = vunpack.c.l.b16 %v39
  %v518 = vunpack.c.l.b16 %v40
  %v519 = vunpack.c.l.b16 %v41
  %v520 = vunpack.c.l.b16 %v42
  %v521 = vunpack.c.l.b16 %v43
  %v522 = vunpack.c.l.b16 %v44
  %v523 = vunpack.c.l.b16 %v45
  %v524 = vunpack.c.l.b16 %v46
  %v525 = vunpack.c.l.b16 %v47
  %v526 = vunpack.c.l.b16 %v48
  %v527 = vunpack.c.l.b16 %v49
  %v528 = vunpack.c.l.b16 %v50
  %v529 = vunpack.c.l.b16 %v51
  %v530 = vunpack.c.l.b16 %v52
  %v531 = vunpack.c.l.b16 %v53
  %v532 = vunpack.c.l.b16 %v54
  %v533 = vunpack.c.l.b16 %v55
  %v534 = vunpack.c.l.b16 %v56
  %v535 = vunpack.c.l.b16 %v57
  %v536 = vunpack.c.l.b16 %v58
  %v537 = vunpack.c.l.b16 %v59
  %v538 = vunpack.c.l.b16 %v60
  %v539 = vunpack.c.l.b16 %v61
  %v540 = vunpack.c.l.b16 %v62
  %v541 = vunpack.c.l.b16 %v63
  %v542 = vunpack.c.l.b16 %v64
  %v543 = vunpack.c.l.b16 %v65
  %v544 = vunpack.c.l.b16 %v66
  %v545 = vunpack.c.l.b16 %v67
  %v546 = vunpack.c.l.b16 %v68
  %v547 = vunpack.c.l.b16 %v69
  %v548 = vunpack.c.l.b16 %v70
  %v549 = vunpack.c.l.b16 %v71
  %v550 = vunpack.c.l.b16 %v72
  %v551 = vunpack.c.l.b16 %v73
  %v552 = vunpack.c.l.b16 %v74
  %v553 = vunpack.c.l.b16 %v75
  %v554 = vunpack.c.l.b16 %v76
  %v555 = vunpack.c.l.b16 %v77
  %v556 = vunpack.c.l.b16 %v78
  %v557 = vunpack.c.l.b16 %v79
  %v558 = vunpack.c.l.b16 %v80
  %v559 = vunpack.c.l.b16 %v81
  %v560 = vunpack.c.l.b16 %v82
  %v561 = vunpack.c.l.b16 %v83
  %v562 = vunpack.c.l.b16 %v84
  %v563 = vunpack.c.l.b16 %v85
  %v564 = vunpack.c.l.b16 %v86
  %v565 = vunpack.c.l.b16 %v87
  %v566 = vunpack.c.l.b16 %v88
  %v567 = vunpack.c.l.b16 %v89
  %v568 = vunpack.c.l.b16 %v90
  %v569 = vunpack.c.l.b16 %v91
  %v570 = vunpack.c.l.b16 %v92
  %v571 = vunpack.c.l.b16 %v93
  %v572 = vunpack.c.l.b16 %v94
  %v573 = vunpack.c.l.b16 %v95
  %v574 = vunpack.c.l.b16 %v96
  %v575 = vunpack.c.l.b16 %v97
  %v576 = vunpack.c.l.b16 %v98
  %v577 = vunpack.c.l.b16 %v99
  %v578 = vunpack.c.l.b16 %v100
  %v579 = vunpack.c.l.b16 %v101
  %v580 = vunpack.c.l.b16 %v102
  %v581 = vunpack.c.l.b16 %v103
  %v582 = vunpack.c.l.b16 %v104
  %v583 = vunpack.c.l.b16 %v105
  %v584 = vunpack.c.l.b16 %v106
  %v585 = vunpack.c.l.b16 %v107
  %v586 = vunpack.c.l.b16 %v108
  %v587 = vunpack.c.l.b16 %v109
  %v588 = vunpack.c.l.b16 %v110
  %v589 = vunpack.c.l.b16 %v111
  %v590 = vunpack.c.l.b16 %v112
  %v591 = vunpack.c.l.b16 %v113
  %v592 = vunpack.c.l.b16 %v114
  %v593 = vunpack.c.l.b16 %v115
  %v594 = vunpack.c.l.b16 %v116
  %v595 = vunpack.c.l.b16 %v117
  %v596 = vunpack.c.l.b16 %v118
  %v597 = vunpack.c.l.b16 %v119
  %v598 = vunpack.c.l.b16 %v120
  %v599 = vunpack.c.l.b16 %v121
  %v600 = vunpack.c.l.b16 %v122
  %v601 = vunpack.c.l.b16 %v123
  %v602 = vunpack.c.l.b16 %v124
  %v603 = vunpack.c.l.b16 %v125
  %v604 = vunpack.c.l.b16 %v126
  %v605 = vunpack.c.l.b16 %v127
  %v606 = vunpack.c.l.b16 %v128
  %v607 = vunpack.c.l.b16 %v129
  %v608 = vunpack.c.l.b16 %v130
  %v609 = vunpack.c.l.b16 %v131
  %v610 = vunpack.c.l.b16 %v132
  %v611 = vunpack.c.l.b16 %v133
  %v612 = vunpack.c.l.b16 %v134
  %v613 = vunpack.c.l.b16 %v135
  %v614 = vunpack.c.l.b16 %v136
  %v615 = vunpack.c.l.b16 %v137
  %v616 = vunpack.c.l.b16 %v138
  %v617 = vunpack.c.l.b16 %v139
  %v618 = vunpack.c.l.b16 %v140
  %v619 = vunpack.c.l.b16 %v141
  %v620 = vunpack.c.l.b16 %v142
  %v621 = vunpack.c.l.b16 %v143
  %v622 = vunpack.c.l.b16 %v144
  %v623 = vunpack.c.l.b16 %v145
  %v624 = vunpack.c.l.b16 %v146
  %v625 = vunpack.c.l.b16 %v147
  %v626 = vunpack.c.l.b16 %v148
  %v627 = vunpack.c.l.b16 %v149
  %v628 = vunpack.c.l.b16 %v150
  %v629 = vunpack.c.l.b16 %v151
  %v630 = vunpack.c.l.b16 %v152
  %v631 = vunpack.c.l.b16 %v153
  %v632 = vunpack.c.l.b16 %v154
  %v633 = vunpack.c.l.b16 %v155
  %v634 = vunpack.c.l.b16 %v156
  %v635 = vunpack.c.l.b16 %v157
  %v636 = vunpack.c.l.b16 %v158
  %v637 = vunpack.c.l.b16 %v159
  %v638 = vunpack.c.l.b16 %v160
  %v639 = vunpack.c.l.b16 %v161
  %v640 = vunpack.c.l.b16 %v162
  %v641 = vunpack.c.l.b16 %v163
  %v642 = vunpack.c.l.b16 %v164
  %v643 = vunpack.c.l.b16 %v165
  %v644 = vunpack.c.l.b16 %v166
  %v645 = vunpack.c.l.b16 %v167
  %v646 = vunpack.c.l.b16 %v168
  %v647 = vunpack.c.l.b16 %v169
  %v648 = vunpack.c.l.b16 %v170
  %v649 = vunpack.c.l.b16 %v171
  %v650 = vunpack.c.l.b16 %v172
  %v651 = vunpack.c.l.b16 %v173
  %v652 = vunpack.c.l.b16 %v174
  %v653 = vunpack.c.l.b16 %v175
  %v654 = vunpack.c.l.b16 %v176
  %v655 = vunpack.c.l.b16 %v177
  %v656 = vunpack.c.l.b16 %v178
  %v657 = vunpack.c.l.b16 %v179
  %v658 = vunpack.c.l.b16 %v180
  %v659 = vunpack.c.l.b16 %v181
  %v660 = vunpack.c.l.b16 %v182
  %v661 = vunpack.c.l.b16 %v183
  %v662 = vunpack.c.l.b16 %v184
  %v663 = vunpack.c.l.b16 %v185
  %v664 = vunpack.c.l.b16 %v186
  %v665 = vunpack.c.l.b16 %v187
  %v666 = vunpack.c.l.b16 %v188
  %v667 = vunpack.c.l.b16 %v189
  %v668 = vunpack.c.l.b16 %v190
  %v669 = vunpack.c.l.b16 %v191
  %v670 = vunpack.c.l.b16 %v192
  %v671 = vunpack.c.l.b16 %v193
  %v672 = vunpack.c.l.b16 %v194
  %v673 = vunpack.c.l.b16 %v195
  %v674 = vunpack.c.l.b16 %v196
  %v675 = vunpack.c.l.b16 %v197
  %v676 = vunpack.c.l.b16 %v198
  %v677 = vunpack.c.l.b16 %v199
  %v678 = vunpack.c.l.b16 %v200
  %v679 = vunpack.c.l.b16 %v201
  %v680 = vunpack.c.l.b16 %v202
  %v681 = vunpack.c.l.b16 %v203
  %v682 = vunpack.c.l.b16 %v204
  %v683 = vunpack.c.l.b16 %v205
  %v684 = vunpack.c.l.b16 %v206
  %v685 = vunpack.c.l.b16 %v207
  %v686 = vunpack.c.l.b16 %v208
  %v687 = vpack.c.b16 %v496, %v495
  %v688 = vpack.c.b16 %v498, %v497
  %v689 = vpack.c.b16 %v500, %v499
  %v690 = vpack.c.b16 %v502, %v501
  %v691 = vpack.c.b16 %v504, %v503
  %v692 = vpack.c.b16 %v506, %v505
  %v693 = vpack.c.b16 %v508, %v507
  %v694 = vpack.c.b16 %v510, %v509
  %v695 = vpack.c.b16 %v512, %v511
  %v696 = vpack.c.b16 %v514, %v513
  %v697 = vpack.c.b16 %v516, %v515
  %v698 = vpack.c.b16 %v518, %v517
  %v699 = vpack.c.b16 %v520, %v519
  %v700 = vpack.c.b16 %v522, %v521
  %v701 = vpack.c.b16 %v524, %v523
  %v702 = vpack.c.b16 %v526, %v525
  %v703 = vpack.c.b16 %v528, %v527
  %v704 = vpack.c.b16 %v530, %v529
  %v705 = vpack.c.b16 %v532, %v531
  %v706 = vpack.c.b16 %v534, %v533
  %v707 = vpack.c.b16 %v536, %v535
  %v708 = vpack.c.b16 %v538, %v537
  %v709 = vpack.c.b16 %v540, %v539
  %v710 = vpack.c.b16 %v542, %v541
  %v711 = vpack.c.b16 %v544, %v543
  %v712 = vpack.c.b16 %v546, %v545
  %v713 = vpack.c.b16 %v548, %v547
  %v714 = vpack.c.b16 %v550, %v549
  %v715 = vpack.c.b16 %v552, %v551
  %v716 = vpack.c.b16 %v554, %v553
  %v717 = vpack.c.b16 %v556, %v555
  %v718 = vpack.c.b16 %v558, %v557
  %v719 = vpack.c.b16 %v560, %v559
  %v720 = vpack.c.b16 %v562, %v561
  %v721 = vpack.c.b16 %v564, %v563
  %v722 = vpack.c.b16 %v566, %v565
  %v723 = vpack.c.b16 %v568, %v567
  %v724 = vpack.c.b16 %v570, %v569
  %v725 = vpack.c.b16 %v572, %v571
  %v726 = vpack.c.b16 %v574, %v573
  %v727 = vpack.c.b16 %v576, %v575
  %v728 = vpack.c.b16 %v578, %v577
  %v729 = vpack.c.b16 %v580, %v579
  %v730 = vpack.c.b16 %v582, %v581
  %v731 = vpack.c.b16 %v584, %v583
  %v732 = vpack.c.b16 %v586, %v585
  %v733 = vpack.c.b16 %v588, %v587
  %v734 = vpack.c.b16 %v590, %v589
  %v735 = vpack.c.b16 %v592, %v591
  %v736 = vpack.c.b16 %v594, %v593
  %v737 = vpack.c.b16 %v596, %v595
  %v738 = vpack.c.b16 %v598, %v597
  %v739 = vpack.c.b16 %v600, %v599
  %v740 = vpack.c.b16 %v602, %v601
  %v741 = vpack.c.b16 %v604, %v603
  %v742 = vpack.c.b16 %v606, %v605
  %v743 = vpack.c.b16 %v608, %v607
  %v744 = vpack.c.b16 %v610, %v609
  %v745 = vpack.c.b16 %v612, %v611
  %v746 = vpack.c.b16 %v614, %v613
  %v747 = vpack.c.b16 %v616, %v615
  %v748 = vpack.c.b16 %v618, %v617
  %v749 = vpack.c.b16 %v620, %v619
  %v750 = vpack.c.b16 %v622, %v621
  %v751 = vpack.c.b16 %v624, %v623
  %v752 = vpack.c.b16 %v626, %v625
  %v753 = vpack.c.b16 %v628, %v627
  %v754 = vpack.c.b16 %v630, %v629
  %v755 = vpack.c.b16 %v632, %v631
  %v756 = vpack.c.b16 %v634, %v633
  %v757 = vpack.c.b16 %v636, %v635
  %v758 = vpack.c.b16 %v638, %v637
  %v759 = vpack.c.b16 %v640, %v639
  %v760 = vpack.c.b16 %v642, %v641
  %v761 = vpack.c.b16 %v644, %v643
  %v762 = vpack.c.b16 %v646, %v645
  %v763 = vpack.c.b16 %v648, %v647
  %v764 = vpack.c.b16 %v650, %v649
  %v765 = vpack.c.b16 %v652, %v651
  %v766 = vpack.c.b16 %v654, %v653
  %v767 = vpack.c.b16 %v656, %v655
  %v768 = vpack.c.b16 %v658, %v657
  %v769 = vpack.c.b16 %v660, %v659
  %v770 = vpack.c.b16 %v662, %v661
  %v771 = vpack.c.b16 %v664, %v663
  %v772 = vpack.c.b16 %v666, %v665
  %v773 = vpack.c.b16 %v668, %v667
  %v774 = vpack.c.b16 %v670, %v669
  %v775 = vpack.c.b16 %v672, %v671
  %v776 = vpack.c.b16 %v674, %v673
  %v777 = vpack.c.b16 %v676, %v675
  %v778 = vpack.c.b16 %v678, %v677
  %v779 = vpack.c.b16 %v680, %v679
  %v780 = vpack.c.b16 %v682, %v681
  %v781 = vpack.c.b16 %v684, %v683
  %v782 = vpack.c.b16 %v686, %v685
  %879 = vmatprep.subr.bf16.mxu0 0
  %880 = vmatpush1.bf16.msra.mxu0 %v694
  %881 = vmatprep.subr.bf16.mxu0 0
  %882 = vmatpush1.bf16.msra.mxu0 %v693
  %883 = vmatprep.subr.bf16.mxu0 0
  %884 = vmatpush1.bf16.msra.mxu0 %v692
  %885 = vmatprep.subr.bf16.mxu0 0
  %886 = vmatpush1.bf16.msra.mxu0 %v691
  %887 = vmatprep.subr.bf16.mxu0 0
  %888 = vmatpush1.bf16.msra.mxu0 %v690
  %889 = vmatprep.subr.bf16.mxu0 0
  %890 = vmatpush1.bf16.msra.mxu0 %v689
  %891 = vmatprep.subr.bf16.mxu0 0
  %892 = vmatpush1.bf16.msra.mxu0 %v688
  %893 = vmatprep.subr.bf16.mxu0 0
  %894 = vmatpush1.bf16.msra.mxu0 %v687
  %895 = vmatprep.subr.bf16.mxu0 0
  %896 = vmatpush2.bf16.msra.mxu0 %v702
  %897 = vmatprep.subr.bf16.mxu0 0
  %898 = vmatpush2.bf16.msra.mxu0 %v701
  %899 = vmatprep.subr.bf16.mxu0 0
  %900 = vmatpush2.bf16.msra.mxu0 %v700
  %901 = vmatprep.subr.bf16.mxu0 0
  %902 = vmatpush2.bf16.msra.mxu0 %v699
  %903 = vmatprep.subr.bf16.mxu0 0
  %904 = vmatpush2.bf16.msra.mxu0 %v698
  %905 = vmatprep.subr.bf16.mxu0 0
  %906 = vmatpush2.bf16.msra.mxu0 %v697
  %907 = vmatprep.subr.bf16.mxu0 0
  %908 = vmatpush2.bf16.msra.mxu0 %v696
  %909 = vmatprep.subr.bf16.mxu0 0
  %910 = vmatpush2.bf16.msra.mxu0 %v695
  %911 = vmatprep.mubr.bf16.mxu0 %v255
  %912 = vmatmul.mubr.bf16.gmra.mxu0 %v241
  %v913 = vpop.f32.mrf.mxu0
  %v914 = vadd.f32 %v214, %v913
  %v915 = vpop.f32.mrf.mxu0
  %v916 = vpop.f32.mrf.mxu0
  %v917 = vpop.f32.mrf.mxu0
  %918 = vdwg.mxu0
  %919 = vmatprep.subr.bf16.mxu0 0
  %920 = vmatpush1.bf16.msra.mxu0 %v710
  %921 = vmatprep.subr.bf16.mxu0 0
  %922 = vmatpush1.bf16.msra.mxu0 %v709
  %923 = vmatprep.subr.bf16.mxu0 0
  %924 = vmatpush1.bf16.msra.mxu0 %v708
  %925 = vmatprep.subr.bf16.mxu0 0
  %926 = vmatpush1.bf16.msra.mxu0 %v707
  %927 = vmatprep.subr.bf16.mxu0 0
  %928 = vmatpush1.bf16.msra.mxu0 %v706
  %929 = vmatprep.subr.bf16.mxu0 0
  %930 = vmatpush1.bf16.msra.mxu0 %v705
  %931 = vmatprep.subr.bf16.mxu0 0
  %932 = vmatpush1.bf16.msra.mxu0 %v704
  %933 = vmatprep.subr.bf16.mxu0 0
  %934 = vmatpush1.bf16.msra.mxu0 %v703
  %935 = vmatprep.subr.bf16.mxu0 0
  %936 = vmatpush2.bf16.msra.mxu0 %v718
  %937 = vmatprep.subr.bf16.mxu0 0
  %938 = vmatpush2.bf16.msra.mxu0 %v717
  %939 = vmatprep.subr.bf16.mxu0 0
  %940 = vmatpush2.bf16.msra.mxu0 %v716
  %941 = vmatprep.subr.bf16.mxu0 0
  %942 = vmatpush2.bf16.msra.mxu0 %v715
  %943 = vmatprep.subr.bf16.mxu0 0
  %944 = vmatpush2.bf16.msra.mxu0 %v714
  %945 = vmatprep.subr.bf16.mxu0 0
  %946 = vmatpush2.bf16.msra.mxu0 %v713
  %947 = vmatprep.subr.bf16.mxu0 0
  %948 = vmatpush2.bf16.msra.mxu0 %v712
  %949 = vmatprep.subr.bf16.mxu0 0
  %950 = vmatpush2.bf16.msra.mxu0 %v711
  %951 = vmatprep.mubr.bf16.mxu0 %v265
  %952 = vmatmul.mubr.bf16.gmra.mxu0 %v263
  %v953 = vpop.f32.mrf.mxu0
  %v954 = vadd.f32 %v914, %v953
  %v955 = vpop.f32.mrf.mxu0
  %v956 = vpop.f32.mrf.mxu0
  %v957 = vpop.f32.mrf.mxu0
  %958 = vdwg.mxu0
  %959 = vmatprep.subr.bf16.mxu0 0
  %960 = vmatpush1.bf16.msra.mxu0 %v726
  %961 = vmatprep.subr.bf16.mxu0 0
  %962 = vmatpush1.bf16.msra.mxu0 %v725
  %963 = vmatprep.subr.bf16.mxu0 0
  %964 = vmatpush1.bf16.msra.mxu0 %v724
  %965 = vmatprep.subr.bf16.mxu0 0
  %966 = vmatpush1.bf16.msra.mxu0 %v723
  %967 = vmatprep.subr.bf16.mxu0 0
  %968 = vmatpush1.bf16.msra.mxu0 %v722
  %969 = vmatprep.subr.bf16.mxu0 0
  %970 = vmatpush1.bf16.msra.mxu0 %v721
  %971 = vmatprep.subr.bf16.mxu0 0
  %972 = vmatpush1.bf16.msra.mxu0 %v720
  %973 = vmatprep.subr.bf16.mxu0 0
  %974 = vmatpush1.bf16.msra.mxu0 %v719
  %975 = vmatprep.subr.bf16.mxu0 0
  %976 = vmatpush2.bf16.msra.mxu0 %v734
  %977 = vmatprep.subr.bf16.mxu0 0
  %978 = vmatpush2.bf16.msra.mxu0 %v733
  %979 = vmatprep.subr.bf16.mxu0 0
  %980 = vmatpush2.bf16.msra.mxu0 %v732
  %981 = vmatprep.subr.bf16.mxu0 0
  %982 = vmatpush2.bf16.msra.mxu0 %v731
  %983 = vmatprep.subr.bf16.mxu0 0
  %984 = vmatpush2.bf16.msra.mxu0 %v730
  %985 = vmatprep.subr.bf16.mxu0 0
  %986 = vmatpush2.bf16.msra.mxu0 %v729
  %987 = vmatprep.subr.bf16.mxu0 0
  %988 = vmatpush2.bf16.msra.mxu0 %v728
  %989 = vmatprep.subr.bf16.mxu0 0
  %990 = vmatpush2.bf16.msra.mxu0 %v727
  %991 = vmatprep.mubr.bf16.mxu0 %v262
  %992 = vmatmul.mubr.bf16.gmra.mxu0 %v248
  %v993 = vpop.f32.mrf.mxu0
  %v994 = vadd.f32 %v954, %v993
  %v995 = vpop.f32.mrf.mxu0
  %v996 = vpop.f32.mrf.mxu0
  %v997 = vpop.f32.mrf.mxu0
  %998 = vdwg.mxu0
  %999 = vmatprep.subr.bf16.mxu0 0
  %1000 = vmatpush1.bf16.msra.mxu0 %v742
  %1001 = vmatprep.subr.bf16.mxu0 0
  %1002 = vmatpush1.bf16.msra.mxu0 %v741
  %1003 = vmatprep.subr.bf16.mxu0 0
  %1004 = vmatpush1.bf16.msra.mxu0 %v740
  %1005 = vmatprep.subr.bf16.mxu0 0
  %1006 = vmatpush1.bf16.msra.mxu0 %v739
  %1007 = vmatprep.subr.bf16.mxu0 0
  %1008 = vmatpush1.bf16.msra.mxu0 %v738
  %1009 = vmatprep.subr.bf16.mxu0 0
  %1010 = vmatpush1.bf16.msra.mxu0 %v737
  %1011 = vmatprep.subr.bf16.mxu0 0
  %1012 = vmatpush1.bf16.msra.mxu0 %v736
  %1013 = vmatprep.subr.bf16.mxu0 0
  %1014 = vmatpush1.bf16.msra.mxu0 %v735
  %1015 = vmatprep.subr.bf16.mxu0 0
  %1016 = vmatpush2.bf16.msra.mxu0 %v750
  %1017 = vmatprep.subr.bf16.mxu0 0
  %1018 = vmatpush2.bf16.msra.mxu0 %v749
  %1019 = vmatprep.subr.bf16.mxu0 0
  %1020 = vmatpush2.bf16.msra.mxu0 %v748
  %1021 = vmatprep.subr.bf16.mxu0 0
  %1022 = vmatpush2.bf16.msra.mxu0 %v747
  %1023 = vmatprep.subr.bf16.mxu0 0
  %1024 = vmatpush2.bf16.msra.mxu0 %v746
  %1025 = vmatprep.subr.bf16.mxu0 0
  %1026 = vmatpush2.bf16.msra.mxu0 %v745
  %1027 = vmatprep.subr.bf16.mxu0 0
  %1028 = vmatpush2.bf16.msra.mxu0 %v744
  %1029 = vmatprep.subr.bf16.mxu0 0
  %1030 = vmatpush2.bf16.msra.mxu0 %v743
  %1031 = vmatprep.mubr.bf16.mxu0 %v266
  %1032 = vmatmul.mubr.bf16.gmra.mxu0 %v264
  %v1033 = vpop.f32.mrf.mxu0
  %v1034 = vadd.f32 %v994, %v1033
  %v1035 = vpop.f32.mrf.mxu0
  %v1036 = vpop.f32.mrf.mxu0
  %v1037 = vpop.f32.mrf.mxu0
  %1038 = vdwg.mxu0
  %1039 = vmatprep.subr.bf16.mxu0 0
  %1040 = vmatpush1.bf16.msra.mxu0 %v758
  %1041 = vmatprep.subr.bf16.mxu0 0
  %1042 = vmatpush1.bf16.msra.mxu0 %v757
  %1043 = vmatprep.subr.bf16.mxu0 0
  %1044 = vmatpush1.bf16.msra.mxu0 %v756
  %1045 = vmatprep.subr.bf16.mxu0 0
  %1046 = vmatpush1.bf16.msra.mxu0 %v755
  %1047 = vmatprep.subr.bf16.mxu0 0
  %1048 = vmatpush1.bf16.msra.mxu0 %v754
  %1049 = vmatprep.subr.bf16.mxu0 0
  %1050 = vmatpush1.bf16.msra.mxu0 %v753
  %1051 = vmatprep.subr.bf16.mxu0 0
  %1052 = vmatpush1.bf16.msra.mxu0 %v752
  %1053 = vmatprep.subr.bf16.mxu0 0
  %1054 = vmatpush1.bf16.msra.mxu0 %v751
  %1055 = vmatprep.subr.bf16.mxu0 0
  %1056 = vmatpush2.bf16.msra.mxu0 %v766
  %1057 = vmatprep.subr.bf16.mxu0 0
  %1058 = vmatpush2.bf16.msra.mxu0 %v765
  %1059 = vmatprep.subr.bf16.mxu0 0
  %1060 = vmatpush2.bf16.msra.mxu0 %v764
  %1061 = vmatprep.subr.bf16.mxu0 0
  %1062 = vmatpush2.bf16.msra.mxu0 %v763
  %1063 = vmatprep.subr.bf16.mxu0 0
  %1064 = vmatpush2.bf16.msra.mxu0 %v762
  %1065 = vmatprep.subr.bf16.mxu0 0
  %1066 = vmatpush2.bf16.msra.mxu0 %v761
  %1067 = vmatprep.subr.bf16.mxu0 0
  %1068 = vmatpush2.bf16.msra.mxu0 %v760
  %1069 = vmatprep.subr.bf16.mxu0 0
  %1070 = vmatpush2.bf16.msra.mxu0 %v759
  %1071 = vmatprep.mubr.bf16.mxu0 %v288
  %1072 = vmatmul.mubr.bf16.gmra.mxu0 %v281
  %v1073 = vpop.f32.mrf.mxu0
  %v1074 = vadd.f32 %v1034, %v1073
  %v1075 = vpop.f32.mrf.mxu0
  %v1076 = vpop.f32.mrf.mxu0
  %v1077 = vpop.f32.mrf.mxu0
  %1078 = vdwg.mxu0
  %1079 = vmatprep.subr.bf16.mxu0 0
  %1080 = vmatpush1.bf16.msra.mxu0 %v774
  %1081 = vmatprep.subr.bf16.mxu0 0
  %1082 = vmatpush1.bf16.msra.mxu0 %v773
  %1083 = vmatprep.subr.bf16.mxu0 0
  %1084 = vmatpush1.bf16.msra.mxu0 %v772
  %1085 = vmatprep.subr.bf16.mxu0 0
  %1086 = vmatpush1.bf16.msra.mxu0 %v771
  %1087 = vmatprep.subr.bf16.mxu0 0
  %1088 = vmatpush1.bf16.msra.mxu0 %v770
  %1089 = vmatprep.subr.bf16.mxu0 0
  %1090 = vmatpush1.bf16.msra.mxu0 %v769
  %1091 = vmatprep.subr.bf16.mxu0 0
  %1092 = vmatpush1.bf16.msra.mxu0 %v768
  %1093 = vmatprep.subr.bf16.mxu0 0
  %1094 = vmatpush1.bf16.msra.mxu0 %v767
  %1095 = vmatprep.subr.bf16.mxu0 0
  %1096 = vmatpush2.bf16.msra.mxu0 %v782
  %1097 = vmatprep.subr.bf16.mxu0 0
  %1098 = vmatpush2.bf16.msra.mxu0 %v781
  %1099 = vmatprep.subr.bf16.mxu0 0
  %1100 = vmatpush2.bf16.msra.mxu0 %v780
  %1101 = vmatprep.subr.bf16.mxu0 0
  %1102 = vmatpush2.bf16.msra.mxu0 %v779
  %1103 = vmatprep.subr.bf16.mxu0 0
  %1104 = vmatpush2.bf16.msra.mxu0 %v778
  %1105 = vmatprep.subr.bf16.mxu0 0
  %1106 = vmatpush2.bf16.msra.mxu0 %v777
  %1107 = vmatprep.subr.bf16.mxu0 0
  %1108 = vmatpush2.bf16.msra.mxu0 %v776
  %1109 = vmatprep.subr.bf16.mxu0 0
  %1110 = vmatpush2.bf16.msra.mxu0 %v775
  %1111 = vmatprep.mubr.bf16.mxu0 %v290
  %1112 = vmatmul.mubr.bf16.gmra.mxu0 %v289
  %v1113 = vpop.f32.mrf.mxu0
  %v1114 = vadd.f32 %v1074, %v1113
  %v1115 = vpop.f32.mrf.mxu0
  %v1116 = vpop.f32.mrf.mxu0
  %v1117 = vpop.f32.mrf.mxu0
  %1118 = vdwg.mxu0
  %1119 = vst [vmem:[%s3] sm:$0x3] %v1114
  // Predicated region
  $region14: #{_lambda_.9} parent=0 // pred_check
    _
  $region15: #{_lambda_.9} parent=0 // pred_check_branch
    %1121 = sbr.rel (0) target = $region17
  $region16: #{_lambda_.9} parent=0 // pred_region
    _
  $region17: #{_lambda_.9} parent=0 // pred_fallthru
    _
  // Predicated region
  $region18: #{_lambda_.9} parent=0 // pred_check
    _
  $region19: #{_lambda_.9} parent=0 // pred_check_branch
    %1123 = sbr.rel (0) target = $region21
  $region20: #{_lambda_.9} parent=0 // pred_region
    _
  $region21: #{_lambda_.9} parent=0 // pred_fallthru
    _

// kernel: _lambda_.8
$region0: #{_lambda_.8}
  #allocation0 [shape = 'u32[]', space=smem, size = 0x4, offset = 0x4, fixed_abs, tag = 'smem constant byte address 0x4 - core index']
  #allocation1 [shape = 'u32[144,128]{1,0:T(1,128)}', space=vmem, size = 0x12000, scoped, tag = 'internal scratch']
  %s0 = inlined_call_operand.vmem [shape: bf16[2,3136], index: 0, kind: input, shape index: {}]
  %s1 = inlined_call_operand.vmem [shape: bf16[3136,1536], index: 1, kind: input, shape index: {}]
  %s2 = inlined_call_operand.vmem [shape: f32[1,1536], index: 2, kind: input, shape index: {}]
  %s3 = inlined_call_operand.vmem [shape: bf16[2,1536], index: 3, kind: output, shape index: {}]
  %s4 = sld [smem:[#allocation0]]
  $region68: #{_lambda_.8} parent=0
    _
  %s6 = ssub.s32 1, %s4
  %s7 = scalar_select 0, %s6, %s4
  $region1: #{_lambda_.8} parent=0
    #allocation2 [shape = 'u8[6422528]{0}', space=vmem, size = 0x620000, scoped, tag = 'input window, operand 1']
    loop: start=0, step=1, limit=5
    $region2: #{_lambda_.8} parent=1 // loop_pre_header
      _
    $region3: #{_lambda_.8} parent=1 // loop_header
      %s9 = sphi 0, %s13
      %p10 = scmp.ge.s32.totalorder %s9, 5
      %s16 = sphi 0, %s28
      %s17 = sphi 0, %s24
      %s18 = sphi 0, %s16
      %s19 = sphi 0, %s17
      %s20 = sphi 0, %s18
      %s21 = sphi 0, %s19
      %s31 = sphi 0, %s33
      %s34 = sphi 0, %s31
      %s35 = sphi 0, %s34
      %s51 = sphi 0, %s35
      %s57 = sphi 0, %s59
      %s60 = sphi 0, %s57
      %s61 = sphi 0, %s60
      %s77 = sphi 0, %s61
      %s83 = sphi 0, %s85
      %s86 = sphi 0, %s83
      %s87 = sphi 0, %s86
      %s103 = sphi 0, %s87
      %s111 = sphi 0, %s113
      %s114 = sphi 0, %s111
      %s115 = sphi 0, %s114
      %s131 = sphi 0, %s115
    $region4: #{_lambda_.8} parent=1 // loop_header_branch
      %12 = sbr.rel (%p10) target = $region8
    $region5: #{_lambda_.8} parent=1 // loop_body
      %s14 = ssub.s32 %s9, 1
      %s15 = ssub.s32 %s9, 2
      %s22 = sadd.s32 1, %s17
      %p23 = scmp.ge.s32.totalorder %s22, 3
      %s24 = scalar_select %p23, 0, %s22
      %s25 = sadd.s32 1, %s16
      %s26 = scalar_select %p23, %s25, %s16
      %p27 = scmp.ge.s32.totalorder %s26, 1
      %s28 = scalar_select %p27, 0, %s26
      %s29 = ssub.s32 %s16, %s28
      %p30 = scmp.eq.s32.totalorder %s29, 0
      %s32 = sadd.s32 %s31, 1
      %s33 = scalar_select %p30, %s31, %s32
      %p36 = pneg %p30
      %p37 = scmp.eq.s32.totalorder %s9, 2
      %p38 = por %p36, %p37
      %p39 = scmp.ne.s32.totalorder %s31, %s34
      %p40 = scmp.eq.s32.totalorder %s9, 0
      %p41 = por %p39, %p40
      %p42 = scmp.ne.s32.totalorder %s31, %s34
      %p43 = scmp.eq.s32.totalorder %s14, 2
      %p44 = por %p42, %p43
      %p45 = scmp.ne.s32.totalorder %s34, %s35
      %p46 = scmp.eq.s32.totalorder %s14, 0
      %p47 = por %p45, %p46
      %p48 = scmp.ne.s32.totalorder %s34, %s35
      %p49 = scmp.eq.s32.totalorder %s15, 2
      %p50 = por %p48, %p49
      %p52 = scmp.ne.s32.totalorder %s35, %s51
      %p53 = scmp.eq.s32.totalorder %s15, 0
      %p54 = por %p52, %p53
      %s55 = ssub.s32 %s17, %s24
      %p56 = scmp.eq.s32.totalorder %s55, 0
      %s58 = sadd.s32 %s57, 1
      %s59 = scalar_select %p56, %s57, %s58
      %p62 = pneg %p56
      %p63 = scmp.eq.s32.totalorder %s9, 2
      %p64 = por %p62, %p63
      %p65 = scmp.ne.s32.totalorder %s57, %s60
      %p66 = scmp.eq.s32.totalorder %s9, 0
      %p67 = por %p65, %p66
      %p68 = scmp.ne.s32.totalorder %s57, %s60
      %p69 = scmp.eq.s32.totalorder %s14, 2
      %p70 = por %p68, %p69
      %p71 = scmp.ne.s32.totalorder %s60, %s61
      %p72 = scmp.eq.s32.totalorder %s14, 0
      %p73 = por %p71, %p72
      %p74 = scmp.ne.s32.totalorder %s60, %s61
      %p75 = scmp.eq.s32.totalorder %s15, 2
      %p76 = por %p74, %p75
      %p78 = scmp.ne.s32.totalorder %s61, %s77
      %p79 = scmp.eq.s32.totalorder %s15, 0
      %p80 = por %p78, %p79
      %s81 = ssub.s32 %s17, %s24
      %p82 = scmp.eq.s32.totalorder %s81, 0
      %s84 = sadd.s32 %s83, 1
      %s85 = scalar_select %p82, %s83, %s84
      %p88 = pneg %p82
      %p89 = scmp.eq.s32.totalorder %s9, 2
      %p90 = por %p88, %p89
      %p91 = scmp.ne.s32.totalorder %s83, %s86
      %p92 = scmp.eq.s32.totalorder %s9, 0
      %p93 = por %p91, %p92
      %p94 = scmp.ne.s32.totalorder %s83, %s86
      %p95 = scmp.eq.s32.totalorder %s14, 2
      %p96 = por %p94, %p95
      %p97 = scmp.ne.s32.totalorder %s86, %s87
      %p98 = scmp.eq.s32.totalorder %s14, 0
      %p99 = por %p97, %p98
      %p100 = scmp.ne.s32.totalorder %s86, %s87
      %p101 = scmp.eq.s32.totalorder %s15, 2
      %p102 = por %p100, %p101
      %p104 = scmp.ne.s32.totalorder %s87, %s103
      %p105 = scmp.eq.s32.totalorder %s15, 0
      %p106 = por %p104, %p105
      %s107 = ssub.s32 %s16, %s28
      %s108 = ssub.s32 %s17, %s24
      %s109 = sor.u32 %s107, %s108
      %p110 = scmp.eq.s32.totalorder %s109, 0
      %s112 = sadd.s32 %s111, 1
      %s113 = scalar_select %p110, %s111, %s112
      %p116 = pneg %p110
      %p117 = scmp.eq.s32.totalorder %s9, 2
      %p118 = por %p116, %p117
      %p119 = scmp.ne.s32.totalorder %s111, %s114
      %p120 = scmp.eq.s32.totalorder %s9, 0
      %p121 = por %p119, %p120
      %p122 = scmp.ne.s32.totalorder %s111, %s114
      %p123 = scmp.eq.s32.totalorder %s14, 2
      %p124 = por %p122, %p123
      %p125 = scmp.ne.s32.totalorder %s114, %s115
      %p126 = scmp.eq.s32.totalorder %s14, 0
      %p127 = por %p125, %p126
      %p128 = scmp.ne.s32.totalorder %s114, %s115
      %p129 = scmp.eq.s32.totalorder %s15, 2
      %p130 = por %p128, %p129
      %p132 = scmp.ne.s32.totalorder %s115, %s131
      %p133 = scmp.eq.s32.totalorder %s15, 0
      %p134 = por %p132, %p133
      %p135 = scmp.le.s32.totalorder 1, %s9
      %p136 = scmp.lt.s32.totalorder %s9, 4
      %p137 = pnand %p135, %p136
      %p138 = pneg %p137
      // Predicated region
      $region9: #{_lambda_.8} parent=5 // pred_check
        _
      $region10: #{_lambda_.8} parent=5 // pred_check_branch
        %140 = sbr.rel (%p137) target = $region12
      $region11: #{_lambda_.8} parent=5 // pred_region
        %s141 = ssub.s32 %s9, 1
        // Predicated region
        $region13: #{_lambda_.8} parent=11 // pred_check
          %p142 = pneg %p47
        $region14: #{_lambda_.8} parent=11 // pred_check_branch
          %144 = sbr.rel (%p142) target = $region16
        $region15: #{_lambda_.8} parent=11 // pred_region
          %p145 = scmp.lt.s32.totalorder %s18, 0
          %s146 = scalar_select %p145, %s18, 0
          %s147 = smul.addr %s146, 25
          %s148 = scalar_lea.vmem %s0, %s147
        $region16: #{_lambda_.8} parent=11 // pred_fallthru
          _
      $region12: #{_lambda_.8} parent=5 // pred_fallthru
        _
      %p149 = scmp.lt.s32.totalorder %s9, 3
      // Predicated region
      $region17: #{_lambda_.8} parent=5 // pred_check
        %p150 = pneg %p149
      $region18: #{_lambda_.8} parent=5 // pred_check_branch
        %152 = sbr.rel (%p150) target = $region20
      $region19: #{_lambda_.8} parent=5 // pred_region
        // Predicated region
        $region21: #{_lambda_.8} parent=19 // pred_check
          %p153 = pneg %p67
        $region22: #{_lambda_.8} parent=19 // pred_check_branch
          %155 = sbr.rel (%p153) target = $region24
        $region23: #{_lambda_.8} parent=19 // pred_region
          %s156 = sand.u32 %s57, 1
          %s157 = sand.u32 %s57, 1
          %s158 = smul.addr %s157, 6272
          %s159 = scalar_lea.vmem [#allocation2], %s158
          %s160 = smul.u32 4, %s17
          %s161 = smul.addr %s160, 4
          %s162 = scalar_lea.vmem %s1, %s161
          // Predicated region
          $region25: #{_lambda_.8} parent=23 // pred_check
            _
          $region26: #{_lambda_.8} parent=23 // pred_check_branch
            %164 = sbr.rel (0) target = $region28
          $region27: #{_lambda_.8} parent=23 // pred_region
            // Predicated region
            $region29: #{_lambda_.8} parent=27 // pred_check
              _
            $region30: #{_lambda_.8} parent=27 // pred_check_branch
              %166 = sbr.rel (0) target = $region32
            $region31: #{_lambda_.8} parent=27 // pred_region
              loop: start=0, step=1, limit=1
              $region33: #{_lambda_.8} parent=31 // loop_pre_header
                _
              $region34: #{_lambda_.8} parent=31 // loop_header
                %s168 = sphi 0, %s172
                %p169 = scmp.ge.s32.totalorder %s168, 1
                %s173 = sphi %s162, %s162
                %s174 = sphi %s159, %s159
              $region35: #{_lambda_.8} parent=31 // loop_header_branch
                %171 = sbr.rel (%p169) target = $region39
              $region36: #{_lambda_.8} parent=31 // loop_body
                %v175 = vld [vmem:[%s173] sm:$0xff]
                %176 = vst [vmem:[%s174] sm:$0xff] %v175
                %v177 = vld [vmem:[%s173 + $0x8] sm:$0xff]
                %178 = vst [vmem:[%s174 + $0x8] sm:$0xff] %v177
                %v179 = vld [vmem:[%s173 + $0x30] sm:$0xff]
                %180 = vst [vmem:[%s174 + $0x10] sm:$0xff] %v179
                %v181 = vld [vmem:[%s173 + $0x38] sm:$0xff]
                %182 = vst [vmem:[%s174 + $0x18] sm:$0xff] %v181
                %v183 = vld [vmem:[%s173 + $0x60] sm:$0xff]
                %184 = vst [vmem:[%s174 + $0x20] sm:$0xff] %v183
                %v185 = vld [vmem:[%s173 + $0x68] sm:$0xff]
                %186 = vst [vmem:[%s174 + $0x28] sm:$0xff] %v185
                %v187 = vld [vmem:[%s173 + $0x90] sm:$0xff]
                %188 = vst [vmem:[%s174 + $0x30] sm:$0xff] %v187
                %v189 = vld [vmem:[%s173 + $0x98] sm:$0xff]
                %190 = vst [vmem:[%s174 + $0x38] sm:$0xff] %v189
                %v191 = vld [vmem:[%s173 + $0xc0] sm:$0xff]
                %192 = vst [vmem:[%s174 + $0x40] sm:$0xff] %v191
                %v193 = vld [vmem:[%s173 + $0xc8] sm:$0xff]
                %194 = vst [vmem:[%s174 + $0x48] sm:$0xff] %v193
                %v195 = vld [vmem:[%s173 + $0xf0] sm:$0xff]
                %196 = vst [vmem:[%s174 + $0x50] sm:$0xff] %v195
                %v197 = vld [vmem:[%s173 + $0xf8] sm:$0xff]
                %198 = vst [vmem:[%s174 + $0x58] sm:$0xff] %v197
                %v199 = vld [vmem:[%s173 + $0x120] sm:$0xff]
                %200 = vst [vmem:[%s174 + $0x60] sm:$0xff] %v199
                %v201 = vld [vmem:[%s173 + $0x128] sm:$0xff]
                %202 = vst [vmem:[%s174 + $0x68] sm:$0xff] %v201
                %v203 = vld [vmem:[%s173 + $0x150] sm:$0xff]
                %204 = vst [vmem:[%s174 + $0x70] sm:$0xff] %v203
                %v205 = vld [vmem:[%s173 + $0x158] sm:$0xff]
                %206 = vst [vmem:[%s174 + $0x78] sm:$0xff] %v205
                %v207 = vld [vmem:[%s173 + $0x180] sm:$0xff]
                %208 = vst [vmem:[%s174 + $0x80] sm:$0xff] %v207
                %v209 = vld [vmem:[%s173 + $0x188] sm:$0xff]
                %210 = vst [vmem:[%s174 + $0x88] sm:$0xff] %v209
                %v211 = vld [vmem:[%s173 + $0x1b0] sm:$0xff]
                %212 = vst [vmem:[%s174 + $0x90] sm:$0xff] %v211
                %v213 = vld [vmem:[%s173 + $0x1b8] sm:$0xff]
                %214 = vst [vmem:[%s174 + $0x98] sm:$0xff] %v213
                %v215 = vld [vmem:[%s173 + $0x1e0] sm:$0xff]
                %216 = vst [vmem:[%s174 + $0xa0] sm:$0xff] %v215
                %v217 = vld [vmem:[%s173 + $0x1e8] sm:$0xff]
                %218 = vst [vmem:[%s174 + $0xa8] sm:$0xff] %v217
                %v219 = vld [vmem:[%s173 + $0x210] sm:$0xff]
                %220 = vst [vmem:[%s174 + $0xb0] sm:$0xff] %v219
                %v221 = vld [vmem:[%s173 + $0x218] sm:$0xff]
                %222 = vst [vmem:[%s174 + $0xb8] sm:$0xff] %v221
                %v223 = vld [vmem:[%s173 + $0x240] sm:$0xff]
                %224 = vst [vmem:[%s174 + $0xc0] sm:$0xff] %v223
                %v225 = vld [vmem:[%s173 + $0x248] sm:$0xff]
                %226 = vst [vmem:[%s174 + $0xc8] sm:$0xff] %v225
                %v227 = vld [vmem:[%s173 + $0x270] sm:$0xff]
                %228 = vst [vmem:[%s174 + $0xd0] sm:$0xff] %v227
                %v229 = vld [vmem:[%s173 + $0x278] sm:$0xff]
                %230 = vst [vmem:[%s174 + $0xd8] sm:$0xff] %v229
                %v231 = vld [vmem:[%s173 + $0x2a0] sm:$0xff]
                %232 = vst [vmem:[%s174 + $0xe0] sm:$0xff] %v231
                %v233 = vld [vmem:[%s173 + $0x2a8] sm:$0xff]
                %234 = vst [vmem:[%s174 + $0xe8] sm:$0xff] %v233
                %v235 = vld [vmem:[%s173 + $0x2d0] sm:$0xff]
                %236 = vst [vmem:[%s174 + $0xf0] sm:$0xff] %v235
                %v237 = vld [vmem:[%s173 + $0x2d8] sm:$0xff]
                %238 = vst [vmem:[%s174 + $0xf8] sm:$0xff] %v237
                %v239 = vld [vmem:[%s173 + $0x300] sm:$0xff]
                %240 = vst [vmem:[%s174 + $0x100] sm:$0xff] %v239
                %v241 = vld [vmem:[%s173 + $0x308] sm:$0xff]
                %242 = vst [vmem:[%s174 + $0x108] sm:$0xff] %v241
                %v243 = vld [vmem:[%s173 + $0x330] sm:$0xff]
                %244 = vst [vmem:[%s174 + $0x110] sm:$0xff] %v243
                %v245 = vld [vmem:[%s173 + $0x338] sm:$0xff]
                %246 = vst [vmem:[%s174 + $0x118] sm:$0xff] %v245
                %v247 = vld [vmem:[%s173 + $0x360] sm:$0xff]
                %248 = vst [vmem:[%s174 + $0x120] sm:$0xff] %v247
                %v249 = vld [vmem:[%s173 + $0x368] sm:$0xff]
                %250 = vst [vmem:[%s174 + $0x128] sm:$0xff] %v249
                %v251 = vld [vmem:[%s173 + $0x390] sm:$0xff]
                %252 = vst [vmem:[%s174 + $0x130] sm:$0xff] %v251
                %v253 = vld [vmem:[%s173 + $0x398] sm:$0xff]
                %254 = vst [vmem:[%s174 + $0x138] sm:$0xff] %v253
                %v255 = vld [vmem:[%s173 + $0x3c0] sm:$0xff]
                %256 = vst [vmem:[%s174 + $0x140] sm:$0xff] %v255
                %v257 = vld [vmem:[%s173 + $0x3c8] sm:$0xff]
                %258 = vst [vmem:[%s174 + $0x148] sm:$0xff] %v257
                %v259 = vld [vmem:[%s173 + $0x3f0] sm:$0xff]
                %260 = vst [vmem:[%s174 + $0x150] sm:$0xff] %v259
                %v261 = vld [vmem:[%s173 + $0x3f8] sm:$0xff]
                %262 = vst [vmem:[%s174 + $0x158] sm:$0xff] %v261
                %v263 = vld [vmem:[%s173 + $0x420] sm:$0xff]
                %264 = vst [vmem:[%s174 + $0x160] sm:$0xff] %v263
                %v265 = vld [vmem:[%s173 + $0x428] sm:$0xff]
                %266 = vst [vmem:[%s174 + $0x168] sm:$0xff] %v265
                %v267 = vld [vmem:[%s173 + $0x450] sm:$0xff]
                %268 = vst [vmem:[%s174 + $0x170] sm:$0xff] %v267
                %v269 = vld [vmem:[%s173 + $0x458] sm:$0xff]
                %270 = vst [vmem:[%s174 + $0x178] sm:$0xff] %v269
                %v271 = vld [vmem:[%s173 + $0x480] sm:$0xff]
                %272 = vst [vmem:[%s174 + $0x180] sm:$0xff] %v271
                %v273 = vld [vmem:[%s173 + $0x488] sm:$0xff]
                %274 = vst [vmem:[%s174 + $0x188] sm:$0xff] %v273
                %v275 = vld [vmem:[%s173 + $0x4b0] sm:$0xff]
                %276 = vst [vmem:[%s174 + $0x190] sm:$0xff] %v275
                %v277 = vld [vmem:[%s173 + $0x4b8] sm:$0xff]
                %278 = vst [vmem:[%s174 + $0x198] sm:$0xff] %v277
                %v279 = vld [vmem:[%s173 + $0x4e0] sm:$0xff]
                %280 = vst [vmem:[%s174 + $0x1a0] sm:$0xff] %v279
                %v281 = vld [vmem:[%s173 + $0x4e8] sm:$0xff]
                %282 = vst [vmem:[%s174 + $0x1a8] sm:$0xff] %v281
                %v283 = vld [vmem:[%s173 + $0x510] sm:$0xff]
                %284 = vst [vmem:[%s174 + $0x1b0] sm:$0xff] %v283
                %v285 = vld [vmem:[%s173 + $0x518] sm:$0xff]
                %286 = vst [vmem:[%s174 + $0x1b8] sm:$0xff] %v285
                %v287 = vld [vmem:[%s173 + $0x540] sm:$0xff]
                %288 = vst [vmem:[%s174 + $0x1c0] sm:$0xff] %v287
                %v289 = vld [vmem:[%s173 + $0x548] sm:$0xff]
                %290 = vst [vmem:[%s174 + $0x1c8] sm:$0xff] %v289
                %v291 = vld [vmem:[%s173 + $0x570] sm:$0xff]
                %292 = vst [vmem:[%s174 + $0x1d0] sm:$0xff] %v291
                %v293 = vld [vmem:[%s173 + $0x578] sm:$0xff]
                %294 = vst [vmem:[%s174 + $0x1d8] sm:$0xff] %v293
                %v295 = vld [vmem:[%s173 + $0x5a0] sm:$0xff]
                %296 = vst [vmem:[%s174 + $0x1e0] sm:$0xff] %v295
                %v297 = vld [vmem:[%s173 + $0x5a8] sm:$0xff]
                %298 = vst [vmem:[%s174 + $0x1e8] sm:$0xff] %v297
                %v299 = vld [vmem:[%s173 + $0x5d0] sm:$0xff]
                %300 = vst [vmem:[%s174 + $0x1f0] sm:$0xff] %v299
                %v301 = vld [vmem:[%s173 + $0x5d8] sm:$0xff]
                %302 = vst [vmem:[%s174 + $0x1f8] sm:$0xff] %v301
                %v303 = vld [vmem:[%s173 + $0x600] sm:$0xff]
                %304 = vst [vmem:[%s174 + $0x200] sm:$0xff] %v303
                %v305 = vld [vmem:[%s173 + $0x608] sm:$0xff]
                %306 = vst [vmem:[%s174 + $0x208] sm:$0xff] %v305
                %v307 = vld [vmem:[%s173 + $0x630] sm:$0xff]
                %308 = vst [vmem:[%s174 + $0x210] sm:$0xff] %v307
                %v309 = vld [vmem:[%s173 + $0x638] sm:$0xff]
                %310 = vst [vmem:[%s174 + $0x218] sm:$0xff] %v309
                %v311 = vld [vmem:[%s173 + $0x660] sm:$0xff]
                %312 = vst [vmem:[%s174 + $0x220] sm:$0xff] %v311
                %v313 = vld [vmem:[%s173 + $0x668] sm:$0xff]
                %314 = vst [vmem:[%s174 + $0x228] sm:$0xff] %v313
                %v315 = vld [vmem:[%s173 + $0x690] sm:$0xff]
                %316 = vst [vmem:[%s174 + $0x230] sm:$0xff] %v315
                %v317 = vld [vmem:[%s173 + $0x698] sm:$0xff]
                %318 = vst [vmem:[%s174 + $0x238] sm:$0xff] %v317
                %v319 = vld [vmem:[%s173 + $0x6c0] sm:$0xff]
                %320 = vst [vmem:[%s174 + $0x240] sm:$0xff] %v319
                %v321 = vld [vmem:[%s173 + $0x6c8] sm:$0xff]
                %322 = vst [vmem:[%s174 + $0x248] sm:$0xff] %v321
                %v323 = vld [vmem:[%s173 + $0x6f0] sm:$0xff]
                %324 = vst [vmem:[%s174 + $0x250] sm:$0xff] %v323
                %v325 = vld [vmem:[%s173 + $0x6f8] sm:$0xff]
                %326 = vst [vmem:[%s174 + $0x258] sm:$0xff] %v325
                %v327 = vld [vmem:[%s173 + $0x720] sm:$0xff]
                %328 = vst [vmem:[%s174 + $0x260] sm:$0xff] %v327
                %v329 = vld [vmem:[%s173 + $0x728] sm:$0xff]
                %330 = vst [vmem:[%s174 + $0x268] sm:$0xff] %v329
                %v331 = vld [vmem:[%s173 + $0x750] sm:$0xff]
                %332 = vst [vmem:[%s174 + $0x270] sm:$0xff] %v331
                %v333 = vld [vmem:[%s173 + $0x758] sm:$0xff]
                %334 = vst [vmem:[%s174 + $0x278] sm:$0xff] %v333
                %v335 = vld [vmem:[%s173 + $0x780] sm:$0xff]
                %336 = vst [vmem:[%s174 + $0x280] sm:$0xff] %v335
                %v337 = vld [vmem:[%s173 + $0x788] sm:$0xff]
                %338 = vst [vmem:[%s174 + $0x288] sm:$0xff] %v337
                %v339 = vld [vmem:[%s173 + $0x7b0] sm:$0xff]
                %340 = vst [vmem:[%s174 + $0x290] sm:$0xff] %v339
                %v341 = vld [vmem:[%s173 + $0x7b8] sm:$0xff]
                %342 = vst [vmem:[%s174 + $0x298] sm:$0xff] %v341
                %v343 = vld [vmem:[%s173 + $0x7e0] sm:$0xff]
                %344 = vst [vmem:[%s174 + $0x2a0] sm:$0xff] %v343
                %v345 = vld [vmem:[%s173 + $0x7e8] sm:$0xff]
                %346 = vst [vmem:[%s174 + $0x2a8] sm:$0xff] %v345
                %v347 = vld [vmem:[%s173 + $0x810] sm:$0xff]
                %348 = vst [vmem:[%s174 + $0x2b0] sm:$0xff] %v347
                %v349 = vld [vmem:[%s173 + $0x818] sm:$0xff]
                %350 = vst [vmem:[%s174 + $0x2b8] sm:$0xff] %v349
                %v351 = vld [vmem:[%s173 + $0x840] sm:$0xff]
                %352 = vst [vmem:[%s174 + $0x2c0] sm:$0xff] %v351
                %v353 = vld [vmem:[%s173 + $0x848] sm:$0xff]
                %354 = vst [vmem:[%s174 + $0x2c8] sm:$0xff] %v353
                %v355 = vld [vmem:[%s173 + $0x870] sm:$0xff]
                %356 = vst [vmem:[%s174 + $0x2d0] sm:$0xff] %v355
                %v357 = vld [vmem:[%s173 + $0x878] sm:$0xff]
                %358 = vst [vmem:[%s174 + $0x2d8] sm:$0xff] %v357
                %v359 = vld [vmem:[%s173 + $0x8a0] sm:$0xff]
                %360 = vst [vmem:[%s174 + $0x2e0] sm:$0xff] %v359
                %v361 = vld [vmem:[%s173 + $0x8a8] sm:$0xff]
                %362 = vst [vmem:[%s174 + $0x2e8] sm:$0xff] %v361
                %v363 = vld [vmem:[%s173 + $0x8d0] sm:$0xff]
                %364 = vst [vmem:[%s174 + $0x2f0] sm:$0xff] %v363
                %v365 = vld [vmem:[%s173 + $0x8d8] sm:$0xff]
                %366 = vst [vmem:[%s174 + $0x2f8] sm:$0xff] %v365
                %v367 = vld [vmem:[%s173 + $0x900] sm:$0xff]
                %368 = vst [vmem:[%s174 + $0x300] sm:$0xff] %v367
                %v369 = vld [vmem:[%s173 + $0x908] sm:$0xff]
                %370 = vst [vmem:[%s174 + $0x308] sm:$0xff] %v369
                %v371 = vld [vmem:[%s173 + $0x930] sm:$0xff]
                %372 = vst [vmem:[%s174 + $0x310] sm:$0xff] %v371
                %v373 = vld [vmem:[%s173 + $0x938] sm:$0xff]
                %374 = vst [vmem:[%s174 + $0x318] sm:$0xff] %v373
                %v375 = vld [vmem:[%s173 + $0x960] sm:$0xff]
                %376 = vst [vmem:[%s174 + $0x320] sm:$0xff] %v375
                %v377 = vld [vmem:[%s173 + $0x968] sm:$0xff]
                %378 = vst [vmem:[%s174 + $0x328] sm:$0xff] %v377
                %v379 = vld [vmem:[%s173 + $0x990] sm:$0xff]
                %380 = vst [vmem:[%s174 + $0x330] sm:$0xff] %v379
                %v381 = vld [vmem:[%s173 + $0x998] sm:$0xff]
                %382 = vst [vmem:[%s174 + $0x338] sm:$0xff] %v381
                %v383 = vld [vmem:[%s173 + $0x9c0] sm:$0xff]
                %384 = vst [vmem:[%s174 + $0x340] sm:$0xff] %v383
                %v385 = vld [vmem:[%s173 + $0x9c8] sm:$0xff]
                %386 = vst [vmem:[%s174 + $0x348] sm:$0xff] %v385
                %v387 = vld [vmem:[%s173 + $0x9f0] sm:$0xff]
                %388 = vst [vmem:[%s174 + $0x350] sm:$0xff] %v387
                %v389 = vld [vmem:[%s173 + $0x9f8] sm:$0xff]
                %390 = vst [vmem:[%s174 + $0x358] sm:$0xff] %v389
                %v391 = vld [vmem:[%s173 + $0xa20] sm:$0xff]
                %392 = vst [vmem:[%s174 + $0x360] sm:$0xff] %v391
                %v393 = vld [vmem:[%s173 + $0xa28] sm:$0xff]
                %394 = vst [vmem:[%s174 + $0x368] sm:$0xff] %v393
                %v395 = vld [vmem:[%s173 + $0xa50] sm:$0xff]
                %396 = vst [vmem:[%s174 + $0x370] sm:$0xff] %v395
                %v397 = vld [vmem:[%s173 + $0xa58] sm:$0xff]
                %398 = vst [vmem:[%s174 + $0x378] sm:$0xff] %v397
                %v399 = vld [vmem:[%s173 + $0xa80] sm:$0xff]
                %400 = vst [vmem:[%s174 + $0x380] sm:$0xff] %v399
                %v401 = vld [vmem:[%s173 + $0xa88] sm:$0xff]
                %402 = vst [vmem:[%s174 + $0x388] sm:$0xff] %v401
                %v403 = vld [vmem:[%s173 + $0xab0] sm:$0xff]
                %404 = vst [vmem:[%s174 + $0x390] sm:$0xff] %v403
                %v405 = vld [vmem:[%s173 + $0xab8] sm:$0xff]
                %406 = vst [vmem:[%s174 + $0x398] sm:$0xff] %v405
                %v407 = vld [vmem:[%s173 + $0xae0] sm:$0xff]
                %408 = vst [vmem:[%s174 + $0x3a0] sm:$0xff] %v407
                %v409 = vld [vmem:[%s173 + $0xae8] sm:$0xff]
                %410 = vst [vmem:[%s174 + $0x3a8] sm:$0xff] %v409
                %v411 = vld [vmem:[%s173 + $0xb10] sm:$0xff]
                %412 = vst [vmem:[%s174 + $0x3b0] sm:$0xff] %v411
                %v413 = vld [vmem:[%s173 + $0xb18] sm:$0xff]
                %414 = vst [vmem:[%s174 + $0x3b8] sm:$0xff] %v413
                %v415 = vld [vmem:[%s173 + $0xb40] sm:$0xff]
                %416 = vst [vmem:[%s174 + $0x3c0] sm:$0xff] %v415
                %v417 = vld [vmem:[%s173 + $0xb48] sm:$0xff]
                %418 = vst [vmem:[%s174 + $0x3c8] sm:$0xff] %v417
                %v419 = vld [vmem:[%s173 + $0xb70] sm:$0xff]
                %420 = vst [vmem:[%s174 + $0x3d0] sm:$0xff] %v419
                %v421 = vld [vmem:[%s173 + $0xb78] sm:$0xff]
                %422 = vst [vmem:[%s174 + $0x3d8] sm:$0xff] %v421
                %v423 = vld [vmem:[%s173 + $0xba0] sm:$0xff]
                %424 = vst [vmem:[%s174 + $0x3e0] sm:$0xff] %v423
                %v425 = vld [vmem:[%s173 + $0xba8] sm:$0xff]
                %426 = vst [vmem:[%s174 + $0x3e8] sm:$0xff] %v425
                %v427 = vld [vmem:[%s173 + $0xbd0] sm:$0xff]
                %428 = vst [vmem:[%s174 + $0x3f0] sm:$0xff] %v427
                %v429 = vld [vmem:[%s173 + $0xbd8] sm:$0xff]
                %430 = vst [vmem:[%s174 + $0x3f8] sm:$0xff] %v429
                %v431 = vld [vmem:[%s173 + $0xc00] sm:$0xff]
                %432 = vst [vmem:[%s174 + $0x400] sm:$0xff] %v431
                %v433 = vld [vmem:[%s173 + $0xc08] sm:$0xff]
                %434 = vst [vmem:[%s174 + $0x408] sm:$0xff] %v433
                %v435 = vld [vmem:[%s173 + $0xc30] sm:$0xff]
                %436 = vst [vmem:[%s174 + $0x410] sm:$0xff] %v435
                %v437 = vld [vmem:[%s173 + $0xc38] sm:$0xff]
                %438 = vst [vmem:[%s174 + $0x418] sm:$0xff] %v437
                %v439 = vld [vmem:[%s173 + $0xc60] sm:$0xff]
                %440 = vst [vmem:[%s174 + $0x420] sm:$0xff] %v439
                %v441 = vld [vmem:[%s173 + $0xc68] sm:$0xff]
                %442 = vst [vmem:[%s174 + $0x428] sm:$0xff] %v441
                %v443 = vld [vmem:[%s173 + $0xc90] sm:$0xff]
                %444 = vst [vmem:[%s174 + $0x430] sm:$0xff] %v443
                %v445 = vld [vmem:[%s173 + $0xc98] sm:$0xff]
                %446 = vst [vmem:[%s174 + $0x438] sm:$0xff] %v445
                %v447 = vld [vmem:[%s173 + $0xcc0] sm:$0xff]
                %448 = vst [vmem:[%s174 + $0x440] sm:$0xff] %v447
                %v449 = vld [vmem:[%s173 + $0xcc8] sm:$0xff]
                %450 = vst [vmem:[%s174 + $0x448] sm:$0xff] %v449
                %v451 = vld [vmem:[%s173 + $0xcf0] sm:$0xff]
                %452 = vst [vmem:[%s174 + $0x450] sm:$0xff] %v451
                %v453 = vld [vmem:[%s173 + $0xcf8] sm:$0xff]
                %454 = vst [vmem:[%s174 + $0x458] sm:$0xff] %v453
                %v455 = vld [vmem:[%s173 + $0xd20] sm:$0xff]
                %456 = vst [vmem:[%s174 + $0x460] sm:$0xff] %v455
                %v457 = vld [vmem:[%s173 + $0xd28] sm:$0xff]
                %458 = vst [vmem:[%s174 + $0x468] sm:$0xff] %v457
                %v459 = vld [vmem:[%s173 + $0xd50] sm:$0xff]
                %460 = vst [vmem:[%s174 + $0x470] sm:$0xff] %v459
                %v461 = vld [vmem:[%s173 + $0xd58] sm:$0xff]
                %462 = vst [vmem:[%s174 + $0x478] sm:$0xff] %v461
                %v463 = vld [vmem:[%s173 + $0xd80] sm:$0xff]
                %464 = vst [vmem:[%s174 + $0x480] sm:$0xff] %v463
                %v465 = vld [vmem:[%s173 + $0xd88] sm:$0xff]
                %466 = vst [vmem:[%s174 + $0x488] sm:$0xff] %v465
                %v467 = vld [vmem:[%s173 + $0xdb0] sm:$0xff]
                %468 = vst [vmem:[%s174 + $0x490] sm:$0xff] %v467
                %v469 = vld [vmem:[%s173 + $0xdb8] sm:$0xff]
                %470 = vst [vmem:[%s174 + $0x498] sm:$0xff] %v469
                %v471 = vld [vmem:[%s173 + $0xde0] sm:$0xff]
                %472 = vst [vmem:[%s174 + $0x4a0] sm:$0xff] %v471
                %v473 = vld [vmem:[%s173 + $0xde8] sm:$0xff]
                %474 = vst [vmem:[%s174 + $0x4a8] sm:$0xff] %v473
                %v475 = vld [vmem:[%s173 + $0xe10] sm:$0xff]
                %476 = vst [vmem:[%s174 + $0x4b0] sm:$0xff] %v475
                %v477 = vld [vmem:[%s173 + $0xe18] sm:$0xff]
                %478 = vst [vmem:[%s174 + $0x4b8] sm:$0xff] %v477
                %v479 = vld [vmem:[%s173 + $0xe40] sm:$0xff]
                %480 = vst [vmem:[%s174 + $0x4c0] sm:$0xff] %v479
                %v481 = vld [vmem:[%s173 + $0xe48] sm:$0xff]
                %482 = vst [vmem:[%s174 + $0x4c8] sm:$0xff] %v481
                %v483 = vld [vmem:[%s173 + $0xe70] sm:$0xff]
                %484 = vst [vmem:[%s174 + $0x4d0] sm:$0xff] %v483
                %v485 = vld [vmem:[%s173 + $0xe78] sm:$0xff]
                %486 = vst [vmem:[%s174 + $0x4d8] sm:$0xff] %v485
                %v487 = vld [vmem:[%s173 + $0xea0] sm:$0xff]
                %488 = vst [vmem:[%s174 + $0x4e0] sm:$0xff] %v487
                %v489 = vld [vmem:[%s173 + $0xea8] sm:$0xff]
                %490 = vst [vmem:[%s174 + $0x4e8] sm:$0xff] %v489
                %v491 = vld [vmem:[%s173 + $0xed0] sm:$0xff]
                %492 = vst [vmem:[%s174 + $0x4f0] sm:$0xff] %v491
                %v493 = vld [vmem:[%s173 + $0xed8] sm:$0xff]
                %494 = vst [vmem:[%s174 + $0x4f8] sm:$0xff] %v493
                %v495 = vld [vmem:[%s173 + $0xf00] sm:$0xff]
                %496 = vst [vmem:[%s174 + $0x500] sm:$0xff] %v495
                %v497 = vld [vmem:[%s173 + $0xf08] sm:$0xff]
                %498 = vst [vmem:[%s174 + $0x508] sm:$0xff] %v497
                %v499 = vld [vmem:[%s173 + $0xf30] sm:$0xff]
                %500 = vst [vmem:[%s174 + $0x510] sm:$0xff] %v499
                %v501 = vld [vmem:[%s173 + $0xf38] sm:$0xff]
                %502 = vst [vmem:[%s174 + $0x518] sm:$0xff] %v501
                %v503 = vld [vmem:[%s173 + $0xf60] sm:$0xff]
                %504 = vst [vmem:[%s174 + $0x520] sm:$0xff] %v503
                %v505 = vld [vmem:[%s173 + $0xf68] sm:$0xff]
                %506 = vst [vmem:[%s174 + $0x528] sm:$0xff] %v505
                %v507 = vld [vmem:[%s173 + $0xf90] sm:$0xff]
                %508 = vst [vmem:[%s174 + $0x530] sm:$0xff] %v507
                %v509 = vld [vmem:[%s173 + $0xf98] sm:$0xff]
                %510 = vst [vmem:[%s174 + $0x538] sm:$0xff] %v509
                %v511 = vld [vmem:[%s173 + $0xfc0] sm:$0xff]
                %512 = vst [vmem:[%s174 + $0x540] sm:$0xff] %v511
                %v513 = vld [vmem:[%s173 + $0xfc8] sm:$0xff]
                %514 = vst [vmem:[%s174 + $0x548] sm:$0xff] %v513
                %v515 = vld [vmem:[%s173 + $0xff0] sm:$0xff]
                %516 = vst [vmem:[%s174 + $0x550] sm:$0xff] %v515
                %v517 = vld [vmem:[%s173 + $0xff8] sm:$0xff]
                %518 = vst [vmem:[%s174 + $0x558] sm:$0xff] %v517
                %v519 = vld [vmem:[%s173 + $0x1020] sm:$0xff]
                %520 = vst [vmem:[%s174 + $0x560] sm:$0xff] %v519
                %v521 = vld [vmem:[%s173 + $0x1028] sm:$0xff]
                %522 = vst [vmem:[%s174 + $0x568] sm:$0xff] %v521
                %v523 = vld [vmem:[%s173 + $0x1050] sm:$0xff]
                %524 = vst [vmem:[%s174 + $0x570] sm:$0xff] %v523
                %v525 = vld [vmem:[%s173 + $0x1058] sm:$0xff]
                %526 = vst [vmem:[%s174 + $0x578] sm:$0xff] %v525
                %v527 = vld [vmem:[%s173 + $0x1080] sm:$0xff]
                %528 = vst [vmem:[%s174 + $0x580] sm:$0xff] %v527
                %v529 = vld [vmem:[%s173 + $0x1088] sm:$0xff]
                %530 = vst [vmem:[%s174 + $0x588] sm:$0xff] %v529
                %v531 = vld [vmem:[%s173 + $0x10b0] sm:$0xff]
                %532 = vst [vmem:[%s174 + $0x590] sm:$0xff] %v531
                %v533 = vld [vmem:[%s173 + $0x10b8] sm:$0xff]
                %534 = vst [vmem:[%s174 + $0x598] sm:$0xff] %v533
                %v535 = vld [vmem:[%s173 + $0x10e0] sm:$0xff]
                %536 = vst [vmem:[%s174 + $0x5a0] sm:$0xff] %v535
                %v537 = vld [vmem:[%s173 + $0x10e8] sm:$0xff]
                %538 = vst [vmem:[%s174 + $0x5a8] sm:$0xff] %v537
                %v539 = vld [vmem:[%s173 + $0x1110] sm:$0xff]
                %540 = vst [vmem:[%s174 + $0x5b0] sm:$0xff] %v539
                %v541 = vld [vmem:[%s173 + $0x1118] sm:$0xff]
                %542 = vst [vmem:[%s174 + $0x5b8] sm:$0xff] %v541
                %v543 = vld [vmem:[%s173 + $0x1140] sm:$0xff]
                %544 = vst [vmem:[%s174 + $0x5c0] sm:$0xff] %v543
                %v545 = vld [vmem:[%s173 + $0x1148] sm:$0xff]
                %546 = vst [vmem:[%s174 + $0x5c8] sm:$0xff] %v545
                %v547 = vld [vmem:[%s173 + $0x1170] sm:$0xff]
                %548 = vst [vmem:[%s174 + $0x5d0] sm:$0xff] %v547
                %v549 = vld [vmem:[%s173 + $0x1178] sm:$0xff]
                %550 = vst [vmem:[%s174 + $0x5d8] sm:$0xff] %v549
                %v551 = vld [vmem:[%s173 + $0x11a0] sm:$0xff]
                %552 = vst [vmem:[%s174 + $0x5e0] sm:$0xff] %v551
                %v553 = vld [vmem:[%s173 + $0x11a8] sm:$0xff]
                %554 = vst [vmem:[%s174 + $0x5e8] sm:$0xff] %v553
                %v555 = vld [vmem:[%s173 + $0x11d0] sm:$0xff]
                %556 = vst [vmem:[%s174 + $0x5f0] sm:$0xff] %v555
                %v557 = vld [vmem:[%s173 + $0x11d8] sm:$0xff]
                %558 = vst [vmem:[%s174 + $0x5f8] sm:$0xff] %v557
                %v559 = vld [vmem:[%s173 + $0x1200] sm:$0xff]
                %560 = vst [vmem:[%s174 + $0x600] sm:$0xff] %v559
                %v561 = vld [vmem:[%s173 + $0x1208] sm:$0xff]
                %562 = vst [vmem:[%s174 + $0x608] sm:$0xff] %v561
                %v563 = vld [vmem:[%s173 + $0x1230] sm:$0xff]
                %564 = vst [vmem:[%s174 + $0x610] sm:$0xff] %v563
                %v565 = vld [vmem:[%s173 + $0x1238] sm:$0xff]
                %566 = vst [vmem:[%s174 + $0x618] sm:$0xff] %v565
                %v567 = vld [vmem:[%s173 + $0x1260] sm:$0xff]
                %568 = vst [vmem:[%s174 + $0x620] sm:$0xff] %v567
                %v569 = vld [vmem:[%s173 + $0x1268] sm:$0xff]
                %570 = vst [vmem:[%s174 + $0x628] sm:$0xff] %v569
                %v571 = vld [vmem:[%s173 + $0x1290] sm:$0xff]
                %572 = vst [vmem:[%s174 + $0x630] sm:$0xff] %v571
                %v573 = vld [vmem:[%s173 + $0x1298] sm:$0xff]
                %574 = vst [vmem:[%s174 + $0x638] sm:$0xff] %v573
                %v575 = vld [vmem:[%s173 + $0x12c0] sm:$0xff]
                %576 = vst [vmem:[%s174 + $0x640] sm:$0xff] %v575
                %v577 = vld [vmem:[%s173 + $0x12c8] sm:$0xff]
                %578 = vst [vmem:[%s174 + $0x648] sm:$0xff] %v577
                %v579 = vld [vmem:[%s173 + $0x12f0] sm:$0xff]
                %580 = vst [vmem:[%s174 + $0x650] sm:$0xff] %v579
                %v581 = vld [vmem:[%s173 + $0x12f8] sm:$0xff]
                %582 = vst [vmem:[%s174 + $0x658] sm:$0xff] %v581
                %v583 = vld [vmem:[%s173 + $0x1320] sm:$0xff]
                %584 = vst [vmem:[%s174 + $0x660] sm:$0xff] %v583
                %v585 = vld [vmem:[%s173 + $0x1328] sm:$0xff]
                %586 = vst [vmem:[%s174 + $0x668] sm:$0xff] %v585
                %v587 = vld [vmem:[%s173 + $0x1350] sm:$0xff]
                %588 = vst [vmem:[%s174 + $0x670] sm:$0xff] %v587
                %v589 = vld [vmem:[%s173 + $0x1358] sm:$0xff]
                %590 = vst [vmem:[%s174 + $0x678] sm:$0xff] %v589
                %v591 = vld [vmem:[%s173 + $0x1380] sm:$0xff]
                %592 = vst [vmem:[%s174 + $0x680] sm:$0xff] %v591
                %v593 = vld [vmem:[%s173 + $0x1388] sm:$0xff]
                %594 = vst [vmem:[%s174 + $0x688] sm:$0xff] %v593
                %v595 = vld [vmem:[%s173 + $0x13b0] sm:$0xff]
                %596 = vst [vmem:[%s174 + $0x690] sm:$0xff] %v595
                %v597 = vld [vmem:[%s173 + $0x13b8] sm:$0xff]
                %598 = vst [vmem:[%s174 + $0x698] sm:$0xff] %v597
                %v599 = vld [vmem:[%s173 + $0x13e0] sm:$0xff]
                %600 = vst [vmem:[%s174 + $0x6a0] sm:$0xff] %v599
                %v601 = vld [vmem:[%s173 + $0x13e8] sm:$0xff]
                %602 = vst [vmem:[%s174 + $0x6a8] sm:$0xff] %v601
                %v603 = vld [vmem:[%s173 + $0x1410] sm:$0xff]
                %604 = vst [vmem:[%s174 + $0x6b0] sm:$0xff] %v603
                %v605 = vld [vmem:[%s173 + $0x1418] sm:$0xff]
                %606 = vst [vmem:[%s174 + $0x6b8] sm:$0xff] %v605
                %v607 = vld [vmem:[%s173 + $0x1440] sm:$0xff]
                %608 = vst [vmem:[%s174 + $0x6c0] sm:$0xff] %v607
                %v609 = vld [vmem:[%s173 + $0x1448] sm:$0xff]
                %610 = vst [vmem:[%s174 + $0x6c8] sm:$0xff] %v609
                %v611 = vld [vmem:[%s173 + $0x1470] sm:$0xff]
                %612 = vst [vmem:[%s174 + $0x6d0] sm:$0xff] %v611
                %v613 = vld [vmem:[%s173 + $0x1478] sm:$0xff]
                %614 = vst [vmem:[%s174 + $0x6d8] sm:$0xff] %v613
                %v615 = vld [vmem:[%s173 + $0x14a0] sm:$0xff]
                %616 = vst [vmem:[%s174 + $0x6e0] sm:$0xff] %v615
                %v617 = vld [vmem:[%s173 + $0x14a8] sm:$0xff]
                %618 = vst [vmem:[%s174 + $0x6e8] sm:$0xff] %v617
                %v619 = vld [vmem:[%s173 + $0x14d0] sm:$0xff]
                %620 = vst [vmem:[%s174 + $0x6f0] sm:$0xff] %v619
                %v621 = vld [vmem:[%s173 + $0x14d8] sm:$0xff]
                %622 = vst [vmem:[%s174 + $0x6f8] sm:$0xff] %v621
                %v623 = vld [vmem:[%s173 + $0x1500] sm:$0xff]
                %624 = vst [vmem:[%s174 + $0x700] sm:$0xff] %v623
                %v625 = vld [vmem:[%s173 + $0x1508] sm:$0xff]
                %626 = vst [vmem:[%s174 + $0x708] sm:$0xff] %v625
                %v627 = vld [vmem:[%s173 + $0x1530] sm:$0xff]
                %628 = vst [vmem:[%s174 + $0x710] sm:$0xff] %v627
                %v629 = vld [vmem:[%s173 + $0x1538] sm:$0xff]
                %630 = vst [vmem:[%s174 + $0x718] sm:$0xff] %v629
                %v631 = vld [vmem:[%s173 + $0x1560] sm:$0xff]
                %632 = vst [vmem:[%s174 + $0x720] sm:$0xff] %v631
                %v633 = vld [vmem:[%s173 + $0x1568] sm:$0xff]
                %634 = vst [vmem:[%s174 + $0x728] sm:$0xff] %v633
                %v635 = vld [vmem:[%s173 + $0x1590] sm:$0xff]
                %636 = vst [vmem:[%s174 + $0x730] sm:$0xff] %v635
                %v637 = vld [vmem:[%s173 + $0x1598] sm:$0xff]
                %638 = vst [vmem:[%s174 + $0x738] sm:$0xff] %v637
                %v639 = vld [vmem:[%s173 + $0x15c0] sm:$0xff]
                %640 = vst [vmem:[%s174 + $0x740] sm:$0xff] %v639
                %v641 = vld [vmem:[%s173 + $0x15c8] sm:$0xff]
                %642 = vst [vmem:[%s174 + $0x748] sm:$0xff] %v641
                %v643 = vld [vmem:[%s173 + $0x15f0] sm:$0xff]
                %644 = vst [vmem:[%s174 + $0x750] sm:$0xff] %v643
                %v645 = vld [vmem:[%s173 + $0x15f8] sm:$0xff]
                %646 = vst [vmem:[%s174 + $0x758] sm:$0xff] %v645
                %v647 = vld [vmem:[%s173 + $0x1620] sm:$0xff]
                %648 = vst [vmem:[%s174 + $0x760] sm:$0xff] %v647
                %v649 = vld [vmem:[%s173 + $0x1628] sm:$0xff]
                %650 = vst [vmem:[%s174 + $0x768] sm:$0xff] %v649
                %v651 = vld [vmem:[%s173 + $0x1650] sm:$0xff]
                %652 = vst [vmem:[%s174 + $0x770] sm:$0xff] %v651
                %v653 = vld [vmem:[%s173 + $0x1658] sm:$0xff]
                %654 = vst [vmem:[%s174 + $0x778] sm:$0xff] %v653
                %v655 = vld [vmem:[%s173 + $0x1680] sm:$0xff]
                %656 = vst [vmem:[%s174 + $0x780] sm:$0xff] %v655
                %v657 = vld [vmem:[%s173 + $0x1688] sm:$0xff]
                %658 = vst [vmem:[%s174 + $0x788] sm:$0xff] %v657
                %v659 = vld [vmem:[%s173 + $0x16b0] sm:$0xff]
                %660 = vst [vmem:[%s174 + $0x790] sm:$0xff] %v659
                %v661 = vld [vmem:[%s173 + $0x16b8] sm:$0xff]
                %662 = vst [vmem:[%s174 + $0x798] sm:$0xff] %v661
                %v663 = vld [vmem:[%s173 + $0x16e0] sm:$0xff]
                %664 = vst [vmem:[%s174 + $0x7a0] sm:$0xff] %v663
                %v665 = vld [vmem:[%s173 + $0x16e8] sm:$0xff]
                %666 = vst [vmem:[%s174 + $0x7a8] sm:$0xff] %v665
                %v667 = vld [vmem:[%s173 + $0x1710] sm:$0xff]
                %668 = vst [vmem:[%s174 + $0x7b0] sm:$0xff] %v667
                %v669 = vld [vmem:[%s173 + $0x1718] sm:$0xff]
                %670 = vst [vmem:[%s174 + $0x7b8] sm:$0xff] %v669
                %v671 = vld [vmem:[%s173 + $0x1740] sm:$0xff]
                %672 = vst [vmem:[%s174 + $0x7c0] sm:$0xff] %v671
                %v673 = vld [vmem:[%s173 + $0x1748] sm:$0xff]
                %674 = vst [vmem:[%s174 + $0x7c8] sm:$0xff] %v673
                %v675 = vld [vmem:[%s173 + $0x1770] sm:$0xff]
                %676 = vst [vmem:[%s174 + $0x7d0] sm:$0xff] %v675
                %v677 = vld [vmem:[%s173 + $0x1778] sm:$0xff]
                %678 = vst [vmem:[%s174 + $0x7d8] sm:$0xff] %v677
                %v679 = vld [vmem:[%s173 + $0x17a0] sm:$0xff]
                %680 = vst [vmem:[%s174 + $0x7e0] sm:$0xff] %v679
                %v681 = vld [vmem:[%s173 + $0x17a8] sm:$0xff]
                %682 = vst [vmem:[%s174 + $0x7e8] sm:$0xff] %v681
                %v683 = vld [vmem:[%s173 + $0x17d0] sm:$0xff]
                %684 = vst [vmem:[%s174 + $0x7f0] sm:$0xff] %v683
                %v685 = vld [vmem:[%s173 + $0x17d8] sm:$0xff]
                %686 = vst [vmem:[%s174 + $0x7f8] sm:$0xff] %v685
                %v687 = vld [vmem:[%s173 + $0x1800] sm:$0xff]
                %688 = vst [vmem:[%s174 + $0x800] sm:$0xff] %v687
                %v689 = vld [vmem:[%s173 + $0x1808] sm:$0xff]
                %690 = vst [vmem:[%s174 + $0x808] sm:$0xff] %v689
                %v691 = vld [vmem:[%s173 + $0x1830] sm:$0xff]
                %692 = vst [vmem:[%s174 + $0x810] sm:$0xff] %v691
                %v693 = vld [vmem:[%s173 + $0x1838] sm:$0xff]
                %694 = vst [vmem:[%s174 + $0x818] sm:$0xff] %v693
                %v695 = vld [vmem:[%s173 + $0x1860] sm:$0xff]
                %696 = vst [vmem:[%s174 + $0x820] sm:$0xff] %v695
                %v697 = vld [vmem:[%s173 + $0x1868] sm:$0xff]
                %698 = vst [vmem:[%s174 + $0x828] sm:$0xff] %v697
                %v699 = vld [vmem:[%s173 + $0x1890] sm:$0xff]
                %700 = vst [vmem:[%s174 + $0x830] sm:$0xff] %v699
                %v701 = vld [vmem:[%s173 + $0x1898] sm:$0xff]
                %702 = vst [vmem:[%s174 + $0x838] sm:$0xff] %v701
                %v703 = vld [vmem:[%s173 + $0x18c0] sm:$0xff]
                %704 = vst [vmem:[%s174 + $0x840] sm:$0xff] %v703
                %v705 = vld [vmem:[%s173 + $0x18c8] sm:$0xff]
                %706 = vst [vmem:[%s174 + $0x848] sm:$0xff] %v705
                %v707 = vld [vmem:[%s173 + $0x18f0] sm:$0xff]
                %708 = vst [vmem:[%s174 + $0x850] sm:$0xff] %v707
                %v709 = vld [vmem:[%s173 + $0x18f8] sm:$0xff]
                %710 = vst [vmem:[%s174 + $0x858] sm:$0xff] %v709
                %v711 = vld [vmem:[%s173 + $0x1920] sm:$0xff]
                %712 = vst [vmem:[%s174 + $0x860] sm:$0xff] %v711
                %v713 = vld [vmem:[%s173 + $0x1928] sm:$0xff]
                %714 = vst [vmem:[%s174 + $0x868] sm:$0xff] %v713
                %v715 = vld [vmem:[%s173 + $0x1950] sm:$0xff]
                %716 = vst [vmem:[%s174 + $0x870] sm:$0xff] %v715
                %v717 = vld [vmem:[%s173 + $0x1958] sm:$0xff]
                %718 = vst [vmem:[%s174 + $0x878] sm:$0xff] %v717
                %v719 = vld [vmem:[%s173 + $0x1980] sm:$0xff]
                %720 = vst [vmem:[%s174 + $0x880] sm:$0xff] %v719
                %v721 = vld [vmem:[%s173 + $0x1988] sm:$0xff]
                %722 = vst [vmem:[%s174 + $0x888] sm:$0xff] %v721
                %v723 = vld [vmem:[%s173 + $0x19b0] sm:$0xff]
                %724 = vst [vmem:[%s174 + $0x890] sm:$0xff] %v723
                %v725 = vld [vmem:[%s173 + $0x19b8] sm:$0xff]
                %726 = vst [vmem:[%s174 + $0x898] sm:$0xff] %v725
                %v727 = vld [vmem:[%s173 + $0x19e0] sm:$0xff]
                %728 = vst [vmem:[%s174 + $0x8a0] sm:$0xff] %v727
                %v729 = vld [vmem:[%s173 + $0x19e8] sm:$0xff]
                %730 = vst [vmem:[%s174 + $0x8a8] sm:$0xff] %v729
                %v731 = vld [vmem:[%s173 + $0x1a10] sm:$0xff]
                %732 = vst [vmem:[%s174 + $0x8b0] sm:$0xff] %v731
                %v733 = vld [vmem:[%s173 + $0x1a18] sm:$0xff]
                %734 = vst [vmem:[%s174 + $0x8b8] sm:$0xff] %v733
                %v735 = vld [vmem:[%s173 + $0x1a40] sm:$0xff]
                %736 = vst [vmem:[%s174 + $0x8c0] sm:$0xff] %v735
                %v737 = vld [vmem:[%s173 + $0x1a48] sm:$0xff]
                %738 = vst [vmem:[%s174 + $0x8c8] sm:$0xff] %v737
                %v739 = vld [vmem:[%s173 + $0x1a70] sm:$0xff]
                %740 = vst [vmem:[%s174 + $0x8d0] sm:$0xff] %v739
                %v741 = vld [vmem:[%s173 + $0x1a78] sm:$0xff]
                %742 = vst [vmem:[%s174 + $0x8d8] sm:$0xff] %v741
                %v743 = vld [vmem:[%s173 + $0x1aa0] sm:$0xff]
                %744 = vst [vmem:[%s174 + $0x8e0] sm:$0xff] %v743
                %v745 = vld [vmem:[%s173 + $0x1aa8] sm:$0xff]
                %746 = vst [vmem:[%s174 + $0x8e8] sm:$0xff] %v745
                %v747 = vld [vmem:[%s173 + $0x1ad0] sm:$0xff]
                %748 = vst [vmem:[%s174 + $0x8f0] sm:$0xff] %v747
                %v749 = vld [vmem:[%s173 + $0x1ad8] sm:$0xff]
                %750 = vst [vmem:[%s174 + $0x8f8] sm:$0xff] %v749
                %v751 = vld [vmem:[%s173 + $0x1b00] sm:$0xff]
                %752 = vst [vmem:[%s174 + $0x900] sm:$0xff] %v751
                %v753 = vld [vmem:[%s173 + $0x1b08] sm:$0xff]
                %754 = vst [vmem:[%s174 + $0x908] sm:$0xff] %v753
                %v755 = vld [vmem:[%s173 + $0x1b30] sm:$0xff]
                %756 = vst [vmem:[%s174 + $0x910] sm:$0xff] %v755
                %v757 = vld [vmem:[%s173 + $0x1b38] sm:$0xff]
                %758 = vst [vmem:[%s174 + $0x918] sm:$0xff] %v757
                %v759 = vld [vmem:[%s173 + $0x1b60] sm:$0xff]
                %760 = vst [vmem:[%s174 + $0x920] sm:$0xff] %v759
                %v761 = vld [vmem:[%s173 + $0x1b68] sm:$0xff]
                %762 = vst [vmem:[%s174 + $0x928] sm:$0xff] %v761
                %v763 = vld [vmem:[%s173 + $0x1b90] sm:$0xff]
                %764 = vst [vmem:[%s174 + $0x930] sm:$0xff] %v763
                %v765 = vld [vmem:[%s173 + $0x1b98] sm:$0xff]
                %766 = vst [vmem:[%s174 + $0x938] sm:$0xff] %v765
                %v767 = vld [vmem:[%s173 + $0x1bc0] sm:$0xff]
                %768 = vst [vmem:[%s174 + $0x940] sm:$0xff] %v767
                %v769 = vld [vmem:[%s173 + $0x1bc8] sm:$0xff]
                %770 = vst [vmem:[%s174 + $0x948] sm:$0xff] %v769
                %v771 = vld [vmem:[%s173 + $0x1bf0] sm:$0xff]
                %772 = vst [vmem:[%s174 + $0x950] sm:$0xff] %v771
                %v773 = vld [vmem:[%s173 + $0x1bf8] sm:$0xff]
                %774 = vst [vmem:[%s174 + $0x958] sm:$0xff] %v773
                %v775 = vld [vmem:[%s173 + $0x1c20] sm:$0xff]
                %776 = vst [vmem:[%s174 + $0x960] sm:$0xff] %v775
                %v777 = vld [vmem:[%s173 + $0x1c28] sm:$0xff]
                %778 = vst [vmem:[%s174 + $0x968] sm:$0xff] %v777
                %v779 = vld [vmem:[%s173 + $0x1c50] sm:$0xff]
                %780 = vst [vmem:[%s174 + $0x970] sm:$0xff] %v779
                %v781 = vld [vmem:[%s173 + $0x1c58] sm:$0xff]
                %782 = vst [vmem:[%s174 + $0x978] sm:$0xff] %v781
                %v783 = vld [vmem:[%s173 + $0x1c80] sm:$0xff]
                %784 = vst [vmem:[%s174 + $0x980] sm:$0xff] %v783
                %v785 = vld [vmem:[%s173 + $0x1c88] sm:$0xff]
                %786 = vst [vmem:[%s174 + $0x988] sm:$0xff] %v785
                %v787 = vld [vmem:[%s173 + $0x1cb0] sm:$0xff]
                %788 = vst [vmem:[%s174 + $0x990] sm:$0xff] %v787
                %v789 = vld [vmem:[%s173 + $0x1cb8] sm:$0xff]
                %790 = vst [vmem:[%s174 + $0x998] sm:$0xff] %v789
                %v791 = vld [vmem:[%s173 + $0x1ce0] sm:$0xff]
                %792 = vst [vmem:[%s174 + $0x9a0] sm:$0xff] %v791
                %v793 = vld [vmem:[%s173 + $0x1ce8] sm:$0xff]
                %794 = vst [vmem:[%s174 + $0x9a8] sm:$0xff] %v793
                %v795 = vld [vmem:[%s173 + $0x1d10] sm:$0xff]
                %796 = vst [vmem:[%s174 + $0x9b0] sm:$0xff] %v795
                %v797 = vld [vmem:[%s173 + $0x1d18] sm:$0xff]
                %798 = vst [vmem:[%s174 + $0x9b8] sm:$0xff] %v797
                %v799 = vld [vmem:[%s173 + $0x1d40] sm:$0xff]
                %800 = vst [vmem:[%s174 + $0x9c0] sm:$0xff] %v799
                %v801 = vld [vmem:[%s173 + $0x1d48] sm:$0xff]
                %802 = vst [vmem:[%s174 + $0x9c8] sm:$0xff] %v801
                %v803 = vld [vmem:[%s173 + $0x1d70] sm:$0xff]
                %804 = vst [vmem:[%s174 + $0x9d0] sm:$0xff] %v803
                %v805 = vld [vmem:[%s173 + $0x1d78] sm:$0xff]
                %806 = vst [vmem:[%s174 + $0x9d8] sm:$0xff] %v805
                %v807 = vld [vmem:[%s173 + $0x1da0] sm:$0xff]
                %808 = vst [vmem:[%s174 + $0x9e0] sm:$0xff] %v807
                %v809 = vld [vmem:[%s173 + $0x1da8] sm:$0xff]
                %810 = vst [vmem:[%s174 + $0x9e8] sm:$0xff] %v809
                %v811 = vld [vmem:[%s173 + $0x1dd0] sm:$0xff]
                %812 = vst [vmem:[%s174 + $0x9f0] sm:$0xff] %v811
                %v813 = vld [vmem:[%s173 + $0x1dd8] sm:$0xff]
                %814 = vst [vmem:[%s174 + $0x9f8] sm:$0xff] %v813
                %v815 = vld [vmem:[%s173 + $0x1e00] sm:$0xff]
                %816 = vst [vmem:[%s174 + $0xa00] sm:$0xff] %v815
                %v817 = vld [vmem:[%s173 + $0x1e08] sm:$0xff]
                %818 = vst [vmem:[%s174 + $0xa08] sm:$0xff] %v817
                %v819 = vld [vmem:[%s173 + $0x1e30] sm:$0xff]
                %820 = vst [vmem:[%s174 + $0xa10] sm:$0xff] %v819
                %v821 = vld [vmem:[%s173 + $0x1e38] sm:$0xff]
                %822 = vst [vmem:[%s174 + $0xa18] sm:$0xff] %v821
                %v823 = vld [vmem:[%s173 + $0x1e60] sm:$0xff]
                %824 = vst [vmem:[%s174 + $0xa20] sm:$0xff] %v823
                %v825 = vld [vmem:[%s173 + $0x1e68] sm:$0xff]
                %826 = vst [vmem:[%s174 + $0xa28] sm:$0xff] %v825
                %v827 = vld [vmem:[%s173 + $0x1e90] sm:$0xff]
                %828 = vst [vmem:[%s174 + $0xa30] sm:$0xff] %v827
                %v829 = vld [vmem:[%s173 + $0x1e98] sm:$0xff]
                %830 = vst [vmem:[%s174 + $0xa38] sm:$0xff] %v829
                %v831 = vld [vmem:[%s173 + $0x1ec0] sm:$0xff]
                %832 = vst [vmem:[%s174 + $0xa40] sm:$0xff] %v831
                %v833 = vld [vmem:[%s173 + $0x1ec8] sm:$0xff]
                %834 = vst [vmem:[%s174 + $0xa48] sm:$0xff] %v833
                %v835 = vld [vmem:[%s173 + $0x1ef0] sm:$0xff]
                %836 = vst [vmem:[%s174 + $0xa50] sm:$0xff] %v835
                %v837 = vld [vmem:[%s173 + $0x1ef8] sm:$0xff]
                %838 = vst [vmem:[%s174 + $0xa58] sm:$0xff] %v837
                %v839 = vld [vmem:[%s173 + $0x1f20] sm:$0xff]
                %840 = vst [vmem:[%s174 + $0xa60] sm:$0xff] %v839
                %v841 = vld [vmem:[%s173 + $0x1f28] sm:$0xff]
                %842 = vst [vmem:[%s174 + $0xa68] sm:$0xff] %v841
                %v843 = vld [vmem:[%s173 + $0x1f50] sm:$0xff]
                %844 = vst [vmem:[%s174 + $0xa70] sm:$0xff] %v843
                %v845 = vld [vmem:[%s173 + $0x1f58] sm:$0xff]
                %846 = vst [vmem:[%s174 + $0xa78] sm:$0xff] %v845
                %v847 = vld [vmem:[%s173 + $0x1f80] sm:$0xff]
                %848 = vst [vmem:[%s174 + $0xa80] sm:$0xff] %v847
                %v849 = vld [vmem:[%s173 + $0x1f88] sm:$0xff]
                %850 = vst [vmem:[%s174 + $0xa88] sm:$0xff] %v849
                %v851 = vld [vmem:[%s173 + $0x1fb0] sm:$0xff]
                %852 = vst [vmem:[%s174 + $0xa90] sm:$0xff] %v851
                %v853 = vld [vmem:[%s173 + $0x1fb8] sm:$0xff]
                %854 = vst [vmem:[%s174 + $0xa98] sm:$0xff] %v853
                %v855 = vld [vmem:[%s173 + $0x1fe0] sm:$0xff]
                %856 = vst [vmem:[%s174 + $0xaa0] sm:$0xff] %v855
                %v857 = vld [vmem:[%s173 + $0x1fe8] sm:$0xff]
                %858 = vst [vmem:[%s174 + $0xaa8] sm:$0xff] %v857
                %v859 = vld [vmem:[%s173 + $0x2010] sm:$0xff]
                %860 = vst [vmem:[%s174 + $0xab0] sm:$0xff] %v859
                %v861 = vld [vmem:[%s173 + $0x2018] sm:$0xff]
                %862 = vst [vmem:[%s174 + $0xab8] sm:$0xff] %v861
                %v863 = vld [vmem:[%s173 + $0x2040] sm:$0xff]
                %864 = vst [vmem:[%s174 + $0xac0] sm:$0xff] %v863
                %v865 = vld [vmem:[%s173 + $0x2048] sm:$0xff]
                %866 = vst [vmem:[%s174 + $0xac8] sm:$0xff] %v865
                %v867 = vld [vmem:[%s173 + $0x2070] sm:$0xff]
                %868 = vst [vmem:[%s174 + $0xad0] sm:$0xff] %v867
                %v869 = vld [vmem:[%s173 + $0x2078] sm:$0xff]
                %870 = vst [vmem:[%s174 + $0xad8] sm:$0xff] %v869
                %v871 = vld [vmem:[%s173 + $0x20a0] sm:$0xff]
                %872 = vst [vmem:[%s174 + $0xae0] sm:$0xff] %v871
                %v873 = vld [vmem:[%s173 + $0x20a8] sm:$0xff]
                %874 = vst [vmem:[%s174 + $0xae8] sm:$0xff] %v873
                %v875 = vld [vmem:[%s173 + $0x20d0] sm:$0xff]
                %876 = vst [vmem:[%s174 + $0xaf0] sm:$0xff] %v875
                %v877 = vld [vmem:[%s173 + $0x20d8] sm:$0xff]
                %878 = vst [vmem:[%s174 + $0xaf8] sm:$0xff] %v877
                %v879 = vld [vmem:[%s173 + $0x2100] sm:$0xff]
                %880 = vst [vmem:[%s174 + $0xb00] sm:$0xff] %v879
                %v881 = vld [vmem:[%s173 + $0x2108] sm:$0xff]
                %882 = vst [vmem:[%s174 + $0xb08] sm:$0xff] %v881
                %v883 = vld [vmem:[%s173 + $0x2130] sm:$0xff]
                %884 = vst [vmem:[%s174 + $0xb10] sm:$0xff] %v883
                %v885 = vld [vmem:[%s173 + $0x2138] sm:$0xff]
                %886 = vst [vmem:[%s174 + $0xb18] sm:$0xff] %v885
                %v887 = vld [vmem:[%s173 + $0x2160] sm:$0xff]
                %888 = vst [vmem:[%s174 + $0xb20] sm:$0xff] %v887
                %v889 = vld [vmem:[%s173 + $0x2168] sm:$0xff]
                %890 = vst [vmem:[%s174 + $0xb28] sm:$0xff] %v889
                %v891 = vld [vmem:[%s173 + $0x2190] sm:$0xff]
                %892 = vst [vmem:[%s174 + $0xb30] sm:$0xff] %v891
                %v893 = vld [vmem:[%s173 + $0x2198] sm:$0xff]
                %894 = vst [vmem:[%s174 + $0xb38] sm:$0xff] %v893
                %v895 = vld [vmem:[%s173 + $0x21c0] sm:$0xff]
                %896 = vst [vmem:[%s174 + $0xb40] sm:$0xff] %v895
                %v897 = vld [vmem:[%s173 + $0x21c8] sm:$0xff]
                %898 = vst [vmem:[%s174 + $0xb48] sm:$0xff] %v897
                %v899 = vld [vmem:[%s173 + $0x21f0] sm:$0xff]
                %900 = vst [vmem:[%s174 + $0xb50] sm:$0xff] %v899
                %v901 = vld [vmem:[%s173 + $0x21f8] sm:$0xff]
                %902 = vst [vmem:[%s174 + $0xb58] sm:$0xff] %v901
                %v903 = vld [vmem:[%s173 + $0x2220] sm:$0xff]
                %904 = vst [vmem:[%s174 + $0xb60] sm:$0xff] %v903
                %v905 = vld [vmem:[%s173 + $0x2228] sm:$0xff]
                %906 = vst [vmem:[%s174 + $0xb68] sm:$0xff] %v905
                %v907 = vld [vmem:[%s173 + $0x2250] sm:$0xff]
                %908 = vst [vmem:[%s174 + $0xb70] sm:$0xff] %v907
                %v909 = vld [vmem:[%s173 + $0x2258] sm:$0xff]
                %910 = vst [vmem:[%s174 + $0xb78] sm:$0xff] %v909
                %v911 = vld [vmem:[%s173 + $0x2280] sm:$0xff]
                %912 = vst [vmem:[%s174 + $0xb80] sm:$0xff] %v911
                %v913 = vld [vmem:[%s173 + $0x2288] sm:$0xff]
                %914 = vst [vmem:[%s174 + $0xb88] sm:$0xff] %v913
                %v915 = vld [vmem:[%s173 + $0x22b0] sm:$0xff]
                %916 = vst [vmem:[%s174 + $0xb90] sm:$0xff] %v915
                %v917 = vld [vmem:[%s173 + $0x22b8] sm:$0xff]
                %918 = vst [vmem:[%s174 + $0xb98] sm:$0xff] %v917
                %v919 = vld [vmem:[%s173 + $0x22e0] sm:$0xff]
                %920 = vst [vmem:[%s174 + $0xba0] sm:$0xff] %v919
                %v921 = vld [vmem:[%s173 + $0x22e8] sm:$0xff]
                %922 = vst [vmem:[%s174 + $0xba8] sm:$0xff] %v921
                %v923 = vld [vmem:[%s173 + $0x2310] sm:$0xff]
                %924 = vst [vmem:[%s174 + $0xbb0] sm:$0xff] %v923
                %v925 = vld [vmem:[%s173 + $0x2318] sm:$0xff]
                %926 = vst [vmem:[%s174 + $0xbb8] sm:$0xff] %v925
                %v927 = vld [vmem:[%s173 + $0x2340] sm:$0xff]
                %928 = vst [vmem:[%s174 + $0xbc0] sm:$0xff] %v927
                %v929 = vld [vmem:[%s173 + $0x2348] sm:$0xff]
                %930 = vst [vmem:[%s174 + $0xbc8] sm:$0xff] %v929
                %v931 = vld [vmem:[%s173 + $0x2370] sm:$0xff]
                %932 = vst [vmem:[%s174 + $0xbd0] sm:$0xff] %v931
                %v933 = vld [vmem:[%s173 + $0x2378] sm:$0xff]
                %934 = vst [vmem:[%s174 + $0xbd8] sm:$0xff] %v933
                %v935 = vld [vmem:[%s173 + $0x23a0] sm:$0xff]
                %936 = vst [vmem:[%s174 + $0xbe0] sm:$0xff] %v935
                %v937 = vld [vmem:[%s173 + $0x23a8] sm:$0xff]
                %938 = vst [vmem:[%s174 + $0xbe8] sm:$0xff] %v937
                %v939 = vld [vmem:[%s173 + $0x23d0] sm:$0xff]
                %940 = vst [vmem:[%s174 + $0xbf0] sm:$0xff] %v939
                %v941 = vld [vmem:[%s173 + $0x23d8] sm:$0xff]
                %942 = vst [vmem:[%s174 + $0xbf8] sm:$0xff] %v941
                %v943 = vld [vmem:[%s173 + $0x2400] sm:$0xff]
                %944 = vst [vmem:[%s174 + $0xc00] sm:$0xff] %v943
                %v945 = vld [vmem:[%s173 + $0x2408] sm:$0xff]
                %946 = vst [vmem:[%s174 + $0xc08] sm:$0xff] %v945
                %v947 = vld [vmem:[%s173 + $0x2430] sm:$0xff]
                %948 = vst [vmem:[%s174 + $0xc10] sm:$0xff] %v947
                %v949 = vld [vmem:[%s173 + $0x2438] sm:$0xff]
                %950 = vst [vmem:[%s174 + $0xc18] sm:$0xff] %v949
                %v951 = vld [vmem:[%s173 + $0x2460] sm:$0xff]
                %952 = vst [vmem:[%s174 + $0xc20] sm:$0xff] %v951
                %v953 = vld [vmem:[%s173 + $0x2468] sm:$0xff]
                %954 = vst [vmem:[%s174 + $0xc28] sm:$0xff] %v953
                %v955 = vld [vmem:[%s173 + $0x2490] sm:$0xff]
                %956 = vst [vmem:[%s174 + $0xc30] sm:$0xff] %v955
                %v957 = vld [vmem:[%s173 + $0x2498] sm:$0xff]
                %958 = vst [vmem:[%s174 + $0xc38] sm:$0xff] %v957
                %v959 = vld [vmem:[%s173 + $0x24c0] sm:$0xff]
                %960 = vst [vmem:[%s174 + $0xc40] sm:$0xff] %v959
                %v961 = vld [vmem:[%s173 + $0x24c8] sm:$0xff]
                %962 = vst [vmem:[%s174 + $0xc48] sm:$0xff] %v961
                %v963 = vld [vmem:[%s173 + $0x24f0] sm:$0xff]
                %964 = vst [vmem:[%s174 + $0xc50] sm:$0xff] %v963
                %v965 = vld [vmem:[%s173 + $0x24f8] sm:$0xff]
                %966 = vst [vmem:[%s174 + $0xc58] sm:$0xff] %v965
                %v967 = vld [vmem:[%s173 + $0x2520] sm:$0xff]
                %968 = vst [vmem:[%s174 + $0xc60] sm:$0xff] %v967
                %v969 = vld [vmem:[%s173 + $0x2528] sm:$0xff]
                %970 = vst [vmem:[%s174 + $0xc68] sm:$0xff] %v969
                %v971 = vld [vmem:[%s173 + $0x2550] sm:$0xff]
                %972 = vst [vmem:[%s174 + $0xc70] sm:$0xff] %v971
                %v973 = vld [vmem:[%s173 + $0x2558] sm:$0xff]
                %974 = vst [vmem:[%s174 + $0xc78] sm:$0xff] %v973
                %v975 = vld [vmem:[%s173 + $0x2580] sm:$0xff]
                %976 = vst [vmem:[%s174 + $0xc80] sm:$0xff] %v975
                %v977 = vld [vmem:[%s173 + $0x2588] sm:$0xff]
                %978 = vst [vmem:[%s174 + $0xc88] sm:$0xff] %v977
                %v979 = vld [vmem:[%s173 + $0x25b0] sm:$0xff]
                %980 = vst [vmem:[%s174 + $0xc90] sm:$0xff] %v979
                %v981 = vld [vmem:[%s173 + $0x25b8] sm:$0xff]
                %982 = vst [vmem:[%s174 + $0xc98] sm:$0xff] %v981
                %v983 = vld [vmem:[%s173 + $0x25e0] sm:$0xff]
                %984 = vst [vmem:[%s174 + $0xca0] sm:$0xff] %v983
                %v985 = vld [vmem:[%s173 + $0x25e8] sm:$0xff]
                %986 = vst [vmem:[%s174 + $0xca8] sm:$0xff] %v985
                %v987 = vld [vmem:[%s173 + $0x2610] sm:$0xff]
                %988 = vst [vmem:[%s174 + $0xcb0] sm:$0xff] %v987
                %v989 = vld [vmem:[%s173 + $0x2618] sm:$0xff]
                %990 = vst [vmem:[%s174 + $0xcb8] sm:$0xff] %v989
                %v991 = vld [vmem:[%s173 + $0x2640] sm:$0xff]
                %992 = vst [vmem:[%s174 + $0xcc0] sm:$0xff] %v991
                %v993 = vld [vmem:[%s173 + $0x2648] sm:$0xff]
                %994 = vst [vmem:[%s174 + $0xcc8] sm:$0xff] %v993
                %v995 = vld [vmem:[%s173 + $0x2670] sm:$0xff]
                %996 = vst [vmem:[%s174 + $0xcd0] sm:$0xff] %v995
                %v997 = vld [vmem:[%s173 + $0x2678] sm:$0xff]
                %998 = vst [vmem:[%s174 + $0xcd8] sm:$0xff] %v997
                %v999 = vld [vmem:[%s173 + $0x26a0] sm:$0xff]
                %1000 = vst [vmem:[%s174 + $0xce0] sm:$0xff] %v999
                %v1001 = vld [vmem:[%s173 + $0x26a8] sm:$0xff]
                %1002 = vst [vmem:[%s174 + $0xce8] sm:$0xff] %v1001
                %v1003 = vld [vmem:[%s173 + $0x26d0] sm:$0xff]
                %1004 = vst [vmem:[%s174 + $0xcf0] sm:$0xff] %v1003
                %v1005 = vld [vmem:[%s173 + $0x26d8] sm:$0xff]
                %1006 = vst [vmem:[%s174 + $0xcf8] sm:$0xff] %v1005
                %v1007 = vld [vmem:[%s173 + $0x2700] sm:$0xff]
                %1008 = vst [vmem:[%s174 + $0xd00] sm:$0xff] %v1007
                %v1009 = vld [vmem:[%s173 + $0x2708] sm:$0xff]
                %1010 = vst [vmem:[%s174 + $0xd08] sm:$0xff] %v1009
                %v1011 = vld [vmem:[%s173 + $0x2730] sm:$0xff]
                %1012 = vst [vmem:[%s174 + $0xd10] sm:$0xff] %v1011
                %v1013 = vld [vmem:[%s173 + $0x2738] sm:$0xff]
                %1014 = vst [vmem:[%s174 + $0xd18] sm:$0xff] %v1013
                %v1015 = vld [vmem:[%s173 + $0x2760] sm:$0xff]
                %1016 = vst [vmem:[%s174 + $0xd20] sm:$0xff] %v1015
                %v1017 = vld [vmem:[%s173 + $0x2768] sm:$0xff]
                %1018 = vst [vmem:[%s174 + $0xd28] sm:$0xff] %v1017
                %v1019 = vld [vmem:[%s173 + $0x2790] sm:$0xff]
                %1020 = vst [vmem:[%s174 + $0xd30] sm:$0xff] %v1019
                %v1021 = vld [vmem:[%s173 + $0x2798] sm:$0xff]
                %1022 = vst [vmem:[%s174 + $0xd38] sm:$0xff] %v1021
                %v1023 = vld [vmem:[%s173 + $0x27c0] sm:$0xff]
                %1024 = vst [vmem:[%s174 + $0xd40] sm:$0xff] %v1023
                %v1025 = vld [vmem:[%s173 + $0x27c8] sm:$0xff]
                %1026 = vst [vmem:[%s174 + $0xd48] sm:$0xff] %v1025
                %v1027 = vld [vmem:[%s173 + $0x27f0] sm:$0xff]
                %1028 = vst [vmem:[%s174 + $0xd50] sm:$0xff] %v1027
                %v1029 = vld [vmem:[%s173 + $0x27f8] sm:$0xff]
                %1030 = vst [vmem:[%s174 + $0xd58] sm:$0xff] %v1029
                %v1031 = vld [vmem:[%s173 + $0x2820] sm:$0xff]
                %1032 = vst [vmem:[%s174 + $0xd60] sm:$0xff] %v1031
                %v1033 = vld [vmem:[%s173 + $0x2828] sm:$0xff]
                %1034 = vst [vmem:[%s174 + $0xd68] sm:$0xff] %v1033
                %v1035 = vld [vmem:[%s173 + $0x2850] sm:$0xff]
                %1036 = vst [vmem:[%s174 + $0xd70] sm:$0xff] %v1035
                %v1037 = vld [vmem:[%s173 + $0x2858] sm:$0xff]
                %1038 = vst [vmem:[%s174 + $0xd78] sm:$0xff] %v1037
                %v1039 = vld [vmem:[%s173 + $0x2880] sm:$0xff]
                %1040 = vst [vmem:[%s174 + $0xd80] sm:$0xff] %v1039
                %v1041 = vld [vmem:[%s173 + $0x2888] sm:$0xff]
                %1042 = vst [vmem:[%s174 + $0xd88] sm:$0xff] %v1041
                %v1043 = vld [vmem:[%s173 + $0x28b0] sm:$0xff]
                %1044 = vst [vmem:[%s174 + $0xd90] sm:$0xff] %v1043
                %v1045 = vld [vmem:[%s173 + $0x28b8] sm:$0xff]
                %1046 = vst [vmem:[%s174 + $0xd98] sm:$0xff] %v1045
                %v1047 = vld [vmem:[%s173 + $0x28e0] sm:$0xff]
                %1048 = vst [vmem:[%s174 + $0xda0] sm:$0xff] %v1047
                %v1049 = vld [vmem:[%s173 + $0x28e8] sm:$0xff]
                %1050 = vst [vmem:[%s174 + $0xda8] sm:$0xff] %v1049
                %v1051 = vld [vmem:[%s173 + $0x2910] sm:$0xff]
                %1052 = vst [vmem:[%s174 + $0xdb0] sm:$0xff] %v1051
                %v1053 = vld [vmem:[%s173 + $0x2918] sm:$0xff]
                %1054 = vst [vmem:[%s174 + $0xdb8] sm:$0xff] %v1053
                %v1055 = vld [vmem:[%s173 + $0x2940] sm:$0xff]
                %1056 = vst [vmem:[%s174 + $0xdc0] sm:$0xff] %v1055
                %v1057 = vld [vmem:[%s173 + $0x2948] sm:$0xff]
                %1058 = vst [vmem:[%s174 + $0xdc8] sm:$0xff] %v1057
                %v1059 = vld [vmem:[%s173 + $0x2970] sm:$0xff]
                %1060 = vst [vmem:[%s174 + $0xdd0] sm:$0xff] %v1059
                %v1061 = vld [vmem:[%s173 + $0x2978] sm:$0xff]
                %1062 = vst [vmem:[%s174 + $0xdd8] sm:$0xff] %v1061
                %v1063 = vld [vmem:[%s173 + $0x29a0] sm:$0xff]
                %1064 = vst [vmem:[%s174 + $0xde0] sm:$0xff] %v1063
                %v1065 = vld [vmem:[%s173 + $0x29a8] sm:$0xff]
                %1066 = vst [vmem:[%s174 + $0xde8] sm:$0xff] %v1065
                %v1067 = vld [vmem:[%s173 + $0x29d0] sm:$0xff]
                %1068 = vst [vmem:[%s174 + $0xdf0] sm:$0xff] %v1067
                %v1069 = vld [vmem:[%s173 + $0x29d8] sm:$0xff]
                %1070 = vst [vmem:[%s174 + $0xdf8] sm:$0xff] %v1069
                %v1071 = vld [vmem:[%s173 + $0x2a00] sm:$0xff]
                %1072 = vst [vmem:[%s174 + $0xe00] sm:$0xff] %v1071
                %v1073 = vld [vmem:[%s173 + $0x2a08] sm:$0xff]
                %1074 = vst [vmem:[%s174 + $0xe08] sm:$0xff] %v1073
                %v1075 = vld [vmem:[%s173 + $0x2a30] sm:$0xff]
                %1076 = vst [vmem:[%s174 + $0xe10] sm:$0xff] %v1075
                %v1077 = vld [vmem:[%s173 + $0x2a38] sm:$0xff]
                %1078 = vst [vmem:[%s174 + $0xe18] sm:$0xff] %v1077
                %v1079 = vld [vmem:[%s173 + $0x2a60] sm:$0xff]
                %1080 = vst [vmem:[%s174 + $0xe20] sm:$0xff] %v1079
                %v1081 = vld [vmem:[%s173 + $0x2a68] sm:$0xff]
                %1082 = vst [vmem:[%s174 + $0xe28] sm:$0xff] %v1081
                %v1083 = vld [vmem:[%s173 + $0x2a90] sm:$0xff]
                %1084 = vst [vmem:[%s174 + $0xe30] sm:$0xff] %v1083
                %v1085 = vld [vmem:[%s173 + $0x2a98] sm:$0xff]
                %1086 = vst [vmem:[%s174 + $0xe38] sm:$0xff] %v1085
                %v1087 = vld [vmem:[%s173 + $0x2ac0] sm:$0xff]
                %1088 = vst [vmem:[%s174 + $0xe40] sm:$0xff] %v1087
                %v1089 = vld [vmem:[%s173 + $0x2ac8] sm:$0xff]
                %1090 = vst [vmem:[%s174 + $0xe48] sm:$0xff] %v1089
                %v1091 = vld [vmem:[%s173 + $0x2af0] sm:$0xff]
                %1092 = vst [vmem:[%s174 + $0xe50] sm:$0xff] %v1091
                %v1093 = vld [vmem:[%s173 + $0x2af8] sm:$0xff]
                %1094 = vst [vmem:[%s174 + $0xe58] sm:$0xff] %v1093
                %v1095 = vld [vmem:[%s173 + $0x2b20] sm:$0xff]
                %1096 = vst [vmem:[%s174 + $0xe60] sm:$0xff] %v1095
                %v1097 = vld [vmem:[%s173 + $0x2b28] sm:$0xff]
                %1098 = vst [vmem:[%s174 + $0xe68] sm:$0xff] %v1097
                %v1099 = vld [vmem:[%s173 + $0x2b50] sm:$0xff]
                %1100 = vst [vmem:[%s174 + $0xe70] sm:$0xff] %v1099
                %v1101 = vld [vmem:[%s173 + $0x2b58] sm:$0xff]
                %1102 = vst [vmem:[%s174 + $0xe78] sm:$0xff] %v1101
                %v1103 = vld [vmem:[%s173 + $0x2b80] sm:$0xff]
                %1104 = vst [vmem:[%s174 + $0xe80] sm:$0xff] %v1103
                %v1105 = vld [vmem:[%s173 + $0x2b88] sm:$0xff]
                %1106 = vst [vmem:[%s174 + $0xe88] sm:$0xff] %v1105
                %v1107 = vld [vmem:[%s173 + $0x2bb0] sm:$0xff]
                %1108 = vst [vmem:[%s174 + $0xe90] sm:$0xff] %v1107
                %v1109 = vld [vmem:[%s173 + $0x2bb8] sm:$0xff]
                %1110 = vst [vmem:[%s174 + $0xe98] sm:$0xff] %v1109
                %v1111 = vld [vmem:[%s173 + $0x2be0] sm:$0xff]
                %1112 = vst [vmem:[%s174 + $0xea0] sm:$0xff] %v1111
                %v1113 = vld [vmem:[%s173 + $0x2be8] sm:$0xff]
                %1114 = vst [vmem:[%s174 + $0xea8] sm:$0xff] %v1113
                %v1115 = vld [vmem:[%s173 + $0x2c10] sm:$0xff]
                %1116 = vst [vmem:[%s174 + $0xeb0] sm:$0xff] %v1115
                %v1117 = vld [vmem:[%s173 + $0x2c18] sm:$0xff]
                %1118 = vst [vmem:[%s174 + $0xeb8] sm:$0xff] %v1117
                %v1119 = vld [vmem:[%s173 + $0x2c40] sm:$0xff]
                %1120 = vst [vmem:[%s174 + $0xec0] sm:$0xff] %v1119
                %v1121 = vld [vmem:[%s173 + $0x2c48] sm:$0xff]
                %1122 = vst [vmem:[%s174 + $0xec8] sm:$0xff] %v1121
                %v1123 = vld [vmem:[%s173 + $0x2c70] sm:$0xff]
                %1124 = vst [vmem:[%s174 + $0xed0] sm:$0xff] %v1123
                %v1125 = vld [vmem:[%s173 + $0x2c78] sm:$0xff]
                %1126 = vst [vmem:[%s174 + $0xed8] sm:$0xff] %v1125
                %v1127 = vld [vmem:[%s173 + $0x2ca0] sm:$0xff]
                %1128 = vst [vmem:[%s174 + $0xee0] sm:$0xff] %v1127
                %v1129 = vld [vmem:[%s173 + $0x2ca8] sm:$0xff]
                %1130 = vst [vmem:[%s174 + $0xee8] sm:$0xff] %v1129
                %v1131 = vld [vmem:[%s173 + $0x2cd0] sm:$0xff]
                %1132 = vst [vmem:[%s174 + $0xef0] sm:$0xff] %v1131
                %v1133 = vld [vmem:[%s173 + $0x2cd8] sm:$0xff]
                %1134 = vst [vmem:[%s174 + $0xef8] sm:$0xff] %v1133
                %v1135 = vld [vmem:[%s173 + $0x2d00] sm:$0xff]
                %1136 = vst [vmem:[%s174 + $0xf00] sm:$0xff] %v1135
                %v1137 = vld [vmem:[%s173 + $0x2d08] sm:$0xff]
                %1138 = vst [vmem:[%s174 + $0xf08] sm:$0xff] %v1137
                %v1139 = vld [vmem:[%s173 + $0x2d30] sm:$0xff]
                %1140 = vst [vmem:[%s174 + $0xf10] sm:$0xff] %v1139
                %v1141 = vld [vmem:[%s173 + $0x2d38] sm:$0xff]
                %1142 = vst [vmem:[%s174 + $0xf18] sm:$0xff] %v1141
                %v1143 = vld [vmem:[%s173 + $0x2d60] sm:$0xff]
                %1144 = vst [vmem:[%s174 + $0xf20] sm:$0xff] %v1143
                %v1145 = vld [vmem:[%s173 + $0x2d68] sm:$0xff]
                %1146 = vst [vmem:[%s174 + $0xf28] sm:$0xff] %v1145
                %v1147 = vld [vmem:[%s173 + $0x2d90] sm:$0xff]
                %1148 = vst [vmem:[%s174 + $0xf30] sm:$0xff] %v1147
                %v1149 = vld [vmem:[%s173 + $0x2d98] sm:$0xff]
                %1150 = vst [vmem:[%s174 + $0xf38] sm:$0xff] %v1149
                %v1151 = vld [vmem:[%s173 + $0x2dc0] sm:$0xff]
                %1152 = vst [vmem:[%s174 + $0xf40] sm:$0xff] %v1151
                %v1153 = vld [vmem:[%s173 + $0x2dc8] sm:$0xff]
                %1154 = vst [vmem:[%s174 + $0xf48] sm:$0xff] %v1153
                %v1155 = vld [vmem:[%s173 + $0x2df0] sm:$0xff]
                %1156 = vst [vmem:[%s174 + $0xf50] sm:$0xff] %v1155
                %v1157 = vld [vmem:[%s173 + $0x2df8] sm:$0xff]
                %1158 = vst [vmem:[%s174 + $0xf58] sm:$0xff] %v1157
                %v1159 = vld [vmem:[%s173 + $0x2e20] sm:$0xff]
                %1160 = vst [vmem:[%s174 + $0xf60] sm:$0xff] %v1159
                %v1161 = vld [vmem:[%s173 + $0x2e28] sm:$0xff]
                %1162 = vst [vmem:[%s174 + $0xf68] sm:$0xff] %v1161
                %v1163 = vld [vmem:[%s173 + $0x2e50] sm:$0xff]
                %1164 = vst [vmem:[%s174 + $0xf70] sm:$0xff] %v1163
                %v1165 = vld [vmem:[%s173 + $0x2e58] sm:$0xff]
                %1166 = vst [vmem:[%s174 + $0xf78] sm:$0xff] %v1165
                %v1167 = vld [vmem:[%s173 + $0x2e80] sm:$0xff]
                %1168 = vst [vmem:[%s174 + $0xf80] sm:$0xff] %v1167
                %v1169 = vld [vmem:[%s173 + $0x2e88] sm:$0xff]
                %1170 = vst [vmem:[%s174 + $0xf88] sm:$0xff] %v1169
                %v1171 = vld [vmem:[%s173 + $0x2eb0] sm:$0xff]
                %1172 = vst [vmem:[%s174 + $0xf90] sm:$0xff] %v1171
                %v1173 = vld [vmem:[%s173 + $0x2eb8] sm:$0xff]
                %1174 = vst [vmem:[%s174 + $0xf98] sm:$0xff] %v1173
                %v1175 = vld [vmem:[%s173 + $0x2ee0] sm:$0xff]
                %1176 = vst [vmem:[%s174 + $0xfa0] sm:$0xff] %v1175
                %v1177 = vld [vmem:[%s173 + $0x2ee8] sm:$0xff]
                %1178 = vst [vmem:[%s174 + $0xfa8] sm:$0xff] %v1177
                %v1179 = vld [vmem:[%s173 + $0x2f10] sm:$0xff]
                %1180 = vst [vmem:[%s174 + $0xfb0] sm:$0xff] %v1179
                %v1181 = vld [vmem:[%s173 + $0x2f18] sm:$0xff]
                %1182 = vst [vmem:[%s174 + $0xfb8] sm:$0xff] %v1181
                %v1183 = vld [vmem:[%s173 + $0x2f40] sm:$0xff]
                %1184 = vst [vmem:[%s174 + $0xfc0] sm:$0xff] %v1183
                %v1185 = vld [vmem:[%s173 + $0x2f48] sm:$0xff]
                %1186 = vst [vmem:[%s174 + $0xfc8] sm:$0xff] %v1185
                %v1187 = vld [vmem:[%s173 + $0x2f70] sm:$0xff]
                %1188 = vst [vmem:[%s174 + $0xfd0] sm:$0xff] %v1187
                %v1189 = vld [vmem:[%s173 + $0x2f78] sm:$0xff]
                %1190 = vst [vmem:[%s174 + $0xfd8] sm:$0xff] %v1189
                %v1191 = vld [vmem:[%s173 + $0x2fa0] sm:$0xff]
                %1192 = vst [vmem:[%s174 + $0xfe0] sm:$0xff] %v1191
                %v1193 = vld [vmem:[%s173 + $0x2fa8] sm:$0xff]
                %1194 = vst [vmem:[%s174 + $0xfe8] sm:$0xff] %v1193
                %v1195 = vld [vmem:[%s173 + $0x2fd0] sm:$0xff]
                %1196 = vst [vmem:[%s174 + $0xff0] sm:$0xff] %v1195
                %v1197 = vld [vmem:[%s173 + $0x2fd8] sm:$0xff]
                %1198 = vst [vmem:[%s174 + $0xff8] sm:$0xff] %v1197
                %v1199 = vld [vmem:[%s173 + $0x3000] sm:$0xff]
                %1200 = vst [vmem:[%s174 + $0x1000] sm:$0xff] %v1199
                %v1201 = vld [vmem:[%s173 + $0x3008] sm:$0xff]
                %1202 = vst [vmem:[%s174 + $0x1008] sm:$0xff] %v1201
                %v1203 = vld [vmem:[%s173 + $0x3030] sm:$0xff]
                %1204 = vst [vmem:[%s174 + $0x1010] sm:$0xff] %v1203
                %v1205 = vld [vmem:[%s173 + $0x3038] sm:$0xff]
                %1206 = vst [vmem:[%s174 + $0x1018] sm:$0xff] %v1205
                %v1207 = vld [vmem:[%s173 + $0x3060] sm:$0xff]
                %1208 = vst [vmem:[%s174 + $0x1020] sm:$0xff] %v1207
                %v1209 = vld [vmem:[%s173 + $0x3068] sm:$0xff]
                %1210 = vst [vmem:[%s174 + $0x1028] sm:$0xff] %v1209
                %v1211 = vld [vmem:[%s173 + $0x3090] sm:$0xff]
                %1212 = vst [vmem:[%s174 + $0x1030] sm:$0xff] %v1211
                %v1213 = vld [vmem:[%s173 + $0x3098] sm:$0xff]
                %1214 = vst [vmem:[%s174 + $0x1038] sm:$0xff] %v1213
                %v1215 = vld [vmem:[%s173 + $0x30c0] sm:$0xff]
                %1216 = vst [vmem:[%s174 + $0x1040] sm:$0xff] %v1215
                %v1217 = vld [vmem:[%s173 + $0x30c8] sm:$0xff]
                %1218 = vst [vmem:[%s174 + $0x1048] sm:$0xff] %v1217
                %v1219 = vld [vmem:[%s173 + $0x30f0] sm:$0xff]
                %1220 = vst [vmem:[%s174 + $0x1050] sm:$0xff] %v1219
                %v1221 = vld [vmem:[%s173 + $0x30f8] sm:$0xff]
                %1222 = vst [vmem:[%s174 + $0x1058] sm:$0xff] %v1221
                %v1223 = vld [vmem:[%s173 + $0x3120] sm:$0xff]
                %1224 = vst [vmem:[%s174 + $0x1060] sm:$0xff] %v1223
                %v1225 = vld [vmem:[%s173 + $0x3128] sm:$0xff]
                %1226 = vst [vmem:[%s174 + $0x1068] sm:$0xff] %v1225
                %v1227 = vld [vmem:[%s173 + $0x3150] sm:$0xff]
                %1228 = vst [vmem:[%s174 + $0x1070] sm:$0xff] %v1227
                %v1229 = vld [vmem:[%s173 + $0x3158] sm:$0xff]
                %1230 = vst [vmem:[%s174 + $0x1078] sm:$0xff] %v1229
                %v1231 = vld [vmem:[%s173 + $0x3180] sm:$0xff]
                %1232 = vst [vmem:[%s174 + $0x1080] sm:$0xff] %v1231
                %v1233 = vld [vmem:[%s173 + $0x3188] sm:$0xff]
                %1234 = vst [vmem:[%s174 + $0x1088] sm:$0xff] %v1233
                %v1235 = vld [vmem:[%s173 + $0x31b0] sm:$0xff]
                %1236 = vst [vmem:[%s174 + $0x1090] sm:$0xff] %v1235
                %v1237 = vld [vmem:[%s173 + $0x31b8] sm:$0xff]
                %1238 = vst [vmem:[%s174 + $0x1098] sm:$0xff] %v1237
                %v1239 = vld [vmem:[%s173 + $0x31e0] sm:$0xff]
                %1240 = vst [vmem:[%s174 + $0x10a0] sm:$0xff] %v1239
                %v1241 = vld [vmem:[%s173 + $0x31e8] sm:$0xff]
                %1242 = vst [vmem:[%s174 + $0x10a8] sm:$0xff] %v1241
                %v1243 = vld [vmem:[%s173 + $0x3210] sm:$0xff]
                %1244 = vst [vmem:[%s174 + $0x10b0] sm:$0xff] %v1243
                %v1245 = vld [vmem:[%s173 + $0x3218] sm:$0xff]
                %1246 = vst [vmem:[%s174 + $0x10b8] sm:$0xff] %v1245
                %v1247 = vld [vmem:[%s173 + $0x3240] sm:$0xff]
                %1248 = vst [vmem:[%s174 + $0x10c0] sm:$0xff] %v1247
                %v1249 = vld [vmem:[%s173 + $0x3248] sm:$0xff]
                %1250 = vst [vmem:[%s174 + $0x10c8] sm:$0xff] %v1249
                %v1251 = vld [vmem:[%s173 + $0x3270] sm:$0xff]
                %1252 = vst [vmem:[%s174 + $0x10d0] sm:$0xff] %v1251
                %v1253 = vld [vmem:[%s173 + $0x3278] sm:$0xff]
                %1254 = vst [vmem:[%s174 + $0x10d8] sm:$0xff] %v1253
                %v1255 = vld [vmem:[%s173 + $0x32a0] sm:$0xff]
                %1256 = vst [vmem:[%s174 + $0x10e0] sm:$0xff] %v1255
                %v1257 = vld [vmem:[%s173 + $0x32a8] sm:$0xff]
                %1258 = vst [vmem:[%s174 + $0x10e8] sm:$0xff] %v1257
                %v1259 = vld [vmem:[%s173 + $0x32d0] sm:$0xff]
                %1260 = vst [vmem:[%s174 + $0x10f0] sm:$0xff] %v1259
                %v1261 = vld [vmem:[%s173 + $0x32d8] sm:$0xff]
                %1262 = vst [vmem:[%s174 + $0x10f8] sm:$0xff] %v1261
                %v1263 = vld [vmem:[%s173 + $0x3300] sm:$0xff]
                %1264 = vst [vmem:[%s174 + $0x1100] sm:$0xff] %v1263
                %v1265 = vld [vmem:[%s173 + $0x3308] sm:$0xff]
                %1266 = vst [vmem:[%s174 + $0x1108] sm:$0xff] %v1265
                %v1267 = vld [vmem:[%s173 + $0x3330] sm:$0xff]
                %1268 = vst [vmem:[%s174 + $0x1110] sm:$0xff] %v1267
                %v1269 = vld [vmem:[%s173 + $0x3338] sm:$0xff]
                %1270 = vst [vmem:[%s174 + $0x1118] sm:$0xff] %v1269
                %v1271 = vld [vmem:[%s173 + $0x3360] sm:$0xff]
                %1272 = vst [vmem:[%s174 + $0x1120] sm:$0xff] %v1271
                %v1273 = vld [vmem:[%s173 + $0x3368] sm:$0xff]
                %1274 = vst [vmem:[%s174 + $0x1128] sm:$0xff] %v1273
                %v1275 = vld [vmem:[%s173 + $0x3390] sm:$0xff]
                %1276 = vst [vmem:[%s174 + $0x1130] sm:$0xff] %v1275
                %v1277 = vld [vmem:[%s173 + $0x3398] sm:$0xff]
                %1278 = vst [vmem:[%s174 + $0x1138] sm:$0xff] %v1277
                %v1279 = vld [vmem:[%s173 + $0x33c0] sm:$0xff]
                %1280 = vst [vmem:[%s174 + $0x1140] sm:$0xff] %v1279
                %v1281 = vld [vmem:[%s173 + $0x33c8] sm:$0xff]
                %1282 = vst [vmem:[%s174 + $0x1148] sm:$0xff] %v1281
                %v1283 = vld [vmem:[%s173 + $0x33f0] sm:$0xff]
                %1284 = vst [vmem:[%s174 + $0x1150] sm:$0xff] %v1283
                %v1285 = vld [vmem:[%s173 + $0x33f8] sm:$0xff]
                %1286 = vst [vmem:[%s174 + $0x1158] sm:$0xff] %v1285
                %v1287 = vld [vmem:[%s173 + $0x3420] sm:$0xff]
                %1288 = vst [vmem:[%s174 + $0x1160] sm:$0xff] %v1287
                %v1289 = vld [vmem:[%s173 + $0x3428] sm:$0xff]
                %1290 = vst [vmem:[%s174 + $0x1168] sm:$0xff] %v1289
                %v1291 = vld [vmem:[%s173 + $0x3450] sm:$0xff]
                %1292 = vst [vmem:[%s174 + $0x1170] sm:$0xff] %v1291
                %v1293 = vld [vmem:[%s173 + $0x3458] sm:$0xff]
                %1294 = vst [vmem:[%s174 + $0x1178] sm:$0xff] %v1293
                %v1295 = vld [vmem:[%s173 + $0x3480] sm:$0xff]
                %1296 = vst [vmem:[%s174 + $0x1180] sm:$0xff] %v1295
                %v1297 = vld [vmem:[%s173 + $0x3488] sm:$0xff]
                %1298 = vst [vmem:[%s174 + $0x1188] sm:$0xff] %v1297
                %v1299 = vld [vmem:[%s173 + $0x34b0] sm:$0xff]
                %1300 = vst [vmem:[%s174 + $0x1190] sm:$0xff] %v1299
                %v1301 = vld [vmem:[%s173 + $0x34b8] sm:$0xff]
                %1302 = vst [vmem:[%s174 + $0x1198] sm:$0xff] %v1301
                %v1303 = vld [vmem:[%s173 + $0x34e0] sm:$0xff]
                %1304 = vst [vmem:[%s174 + $0x11a0] sm:$0xff] %v1303
                %v1305 = vld [vmem:[%s173 + $0x34e8] sm:$0xff]
                %1306 = vst [vmem:[%s174 + $0x11a8] sm:$0xff] %v1305
                %v1307 = vld [vmem:[%s173 + $0x3510] sm:$0xff]
                %1308 = vst [vmem:[%s174 + $0x11b0] sm:$0xff] %v1307
                %v1309 = vld [vmem:[%s173 + $0x3518] sm:$0xff]
                %1310 = vst [vmem:[%s174 + $0x11b8] sm:$0xff] %v1309
                %v1311 = vld [vmem:[%s173 + $0x3540] sm:$0xff]
                %1312 = vst [vmem:[%s174 + $0x11c0] sm:$0xff] %v1311
                %v1313 = vld [vmem:[%s173 + $0x3548] sm:$0xff]
                %1314 = vst [vmem:[%s174 + $0x11c8] sm:$0xff] %v1313
                %v1315 = vld [vmem:[%s173 + $0x3570] sm:$0xff]
                %1316 = vst [vmem:[%s174 + $0x11d0] sm:$0xff] %v1315
                %v1317 = vld [vmem:[%s173 + $0x3578] sm:$0xff]
                %1318 = vst [vmem:[%s174 + $0x11d8] sm:$0xff] %v1317
                %v1319 = vld [vmem:[%s173 + $0x35a0] sm:$0xff]
                %1320 = vst [vmem:[%s174 + $0x11e0] sm:$0xff] %v1319
                %v1321 = vld [vmem:[%s173 + $0x35a8] sm:$0xff]
                %1322 = vst [vmem:[%s174 + $0x11e8] sm:$0xff] %v1321
                %v1323 = vld [vmem:[%s173 + $0x35d0] sm:$0xff]
                %1324 = vst [vmem:[%s174 + $0x11f0] sm:$0xff] %v1323
                %v1325 = vld [vmem:[%s173 + $0x35d8] sm:$0xff]
                %1326 = vst [vmem:[%s174 + $0x11f8] sm:$0xff] %v1325
                %v1327 = vld [vmem:[%s173 + $0x3600] sm:$0xff]
                %1328 = vst [vmem:[%s174 + $0x1200] sm:$0xff] %v1327
                %v1329 = vld [vmem:[%s173 + $0x3608] sm:$0xff]
                %1330 = vst [vmem:[%s174 + $0x1208] sm:$0xff] %v1329
                %v1331 = vld [vmem:[%s173 + $0x3630] sm:$0xff]
                %1332 = vst [vmem:[%s174 + $0x1210] sm:$0xff] %v1331
                %v1333 = vld [vmem:[%s173 + $0x3638] sm:$0xff]
                %1334 = vst [vmem:[%s174 + $0x1218] sm:$0xff] %v1333
                %v1335 = vld [vmem:[%s173 + $0x3660] sm:$0xff]
                %1336 = vst [vmem:[%s174 + $0x1220] sm:$0xff] %v1335
                %v1337 = vld [vmem:[%s173 + $0x3668] sm:$0xff]
                %1338 = vst [vmem:[%s174 + $0x1228] sm:$0xff] %v1337
                %v1339 = vld [vmem:[%s173 + $0x3690] sm:$0xff]
                %1340 = vst [vmem:[%s174 + $0x1230] sm:$0xff] %v1339
                %v1341 = vld [vmem:[%s173 + $0x3698] sm:$0xff]
                %1342 = vst [vmem:[%s174 + $0x1238] sm:$0xff] %v1341
                %v1343 = vld [vmem:[%s173 + $0x36c0] sm:$0xff]
                %1344 = vst [vmem:[%s174 + $0x1240] sm:$0xff] %v1343
                %v1345 = vld [vmem:[%s173 + $0x36c8] sm:$0xff]
                %1346 = vst [vmem:[%s174 + $0x1248] sm:$0xff] %v1345
                %v1347 = vld [vmem:[%s173 + $0x36f0] sm:$0xff]
                %1348 = vst [vmem:[%s174 + $0x1250] sm:$0xff] %v1347
                %v1349 = vld [vmem:[%s173 + $0x36f8] sm:$0xff]
                %1350 = vst [vmem:[%s174 + $0x1258] sm:$0xff] %v1349
                %v1351 = vld [vmem:[%s173 + $0x3720] sm:$0xff]
                %1352 = vst [vmem:[%s174 + $0x1260] sm:$0xff] %v1351
                %v1353 = vld [vmem:[%s173 + $0x3728] sm:$0xff]
                %1354 = vst [vmem:[%s174 + $0x1268] sm:$0xff] %v1353
                %v1355 = vld [vmem:[%s173 + $0x3750] sm:$0xff]
                %1356 = vst [vmem:[%s174 + $0x1270] sm:$0xff] %v1355
                %v1357 = vld [vmem:[%s173 + $0x3758] sm:$0xff]
                %1358 = vst [vmem:[%s174 + $0x1278] sm:$0xff] %v1357
                %v1359 = vld [vmem:[%s173 + $0x3780] sm:$0xff]
                %1360 = vst [vmem:[%s174 + $0x1280] sm:$0xff] %v1359
                %v1361 = vld [vmem:[%s173 + $0x3788] sm:$0xff]
                %1362 = vst [vmem:[%s174 + $0x1288] sm:$0xff] %v1361
                %v1363 = vld [vmem:[%s173 + $0x37b0] sm:$0xff]
                %1364 = vst [vmem:[%s174 + $0x1290] sm:$0xff] %v1363
                %v1365 = vld [vmem:[%s173 + $0x37b8] sm:$0xff]
                %1366 = vst [vmem:[%s174 + $0x1298] sm:$0xff] %v1365
                %v1367 = vld [vmem:[%s173 + $0x37e0] sm:$0xff]
                %1368 = vst [vmem:[%s174 + $0x12a0] sm:$0xff] %v1367
                %v1369 = vld [vmem:[%s173 + $0x37e8] sm:$0xff]
                %1370 = vst [vmem:[%s174 + $0x12a8] sm:$0xff] %v1369
                %v1371 = vld [vmem:[%s173 + $0x3810] sm:$0xff]
                %1372 = vst [vmem:[%s174 + $0x12b0] sm:$0xff] %v1371
                %v1373 = vld [vmem:[%s173 + $0x3818] sm:$0xff]
                %1374 = vst [vmem:[%s174 + $0x12b8] sm:$0xff] %v1373
                %v1375 = vld [vmem:[%s173 + $0x3840] sm:$0xff]
                %1376 = vst [vmem:[%s174 + $0x12c0] sm:$0xff] %v1375
                %v1377 = vld [vmem:[%s173 + $0x3848] sm:$0xff]
                %1378 = vst [vmem:[%s174 + $0x12c8] sm:$0xff] %v1377
                %v1379 = vld [vmem:[%s173 + $0x3870] sm:$0xff]
                %1380 = vst [vmem:[%s174 + $0x12d0] sm:$0xff] %v1379
                %v1381 = vld [vmem:[%s173 + $0x3878] sm:$0xff]
                %1382 = vst [vmem:[%s174 + $0x12d8] sm:$0xff] %v1381
                %v1383 = vld [vmem:[%s173 + $0x38a0] sm:$0xff]
                %1384 = vst [vmem:[%s174 + $0x12e0] sm:$0xff] %v1383
                %v1385 = vld [vmem:[%s173 + $0x38a8] sm:$0xff]
                %1386 = vst [vmem:[%s174 + $0x12e8] sm:$0xff] %v1385
                %v1387 = vld [vmem:[%s173 + $0x38d0] sm:$0xff]
                %1388 = vst [vmem:[%s174 + $0x12f0] sm:$0xff] %v1387
                %v1389 = vld [vmem:[%s173 + $0x38d8] sm:$0xff]
                %1390 = vst [vmem:[%s174 + $0x12f8] sm:$0xff] %v1389
                %v1391 = vld [vmem:[%s173 + $0x3900] sm:$0xff]
                %1392 = vst [vmem:[%s174 + $0x1300] sm:$0xff] %v1391
                %v1393 = vld [vmem:[%s173 + $0x3908] sm:$0xff]
                %1394 = vst [vmem:[%s174 + $0x1308] sm:$0xff] %v1393
                %v1395 = vld [vmem:[%s173 + $0x3930] sm:$0xff]
                %1396 = vst [vmem:[%s174 + $0x1310] sm:$0xff] %v1395
                %v1397 = vld [vmem:[%s173 + $0x3938] sm:$0xff]
                %1398 = vst [vmem:[%s174 + $0x1318] sm:$0xff] %v1397
                %v1399 = vld [vmem:[%s173 + $0x3960] sm:$0xff]
                %1400 = vst [vmem:[%s174 + $0x1320] sm:$0xff] %v1399
                %v1401 = vld [vmem:[%s173 + $0x3968] sm:$0xff]
                %1402 = vst [vmem:[%s174 + $0x1328] sm:$0xff] %v1401
                %v1403 = vld [vmem:[%s173 + $0x3990] sm:$0xff]
                %1404 = vst [vmem:[%s174 + $0x1330] sm:$0xff] %v1403
                %v1405 = vld [vmem:[%s173 + $0x3998] sm:$0xff]
                %1406 = vst [vmem:[%s174 + $0x1338] sm:$0xff] %v1405
                %v1407 = vld [vmem:[%s173 + $0x39c0] sm:$0xff]
                %1408 = vst [vmem:[%s174 + $0x1340] sm:$0xff] %v1407
                %v1409 = vld [vmem:[%s173 + $0x39c8] sm:$0xff]
                %1410 = vst [vmem:[%s174 + $0x1348] sm:$0xff] %v1409
                %v1411 = vld [vmem:[%s173 + $0x39f0] sm:$0xff]
                %1412 = vst [vmem:[%s174 + $0x1350] sm:$0xff] %v1411
                %v1413 = vld [vmem:[%s173 + $0x39f8] sm:$0xff]
                %1414 = vst [vmem:[%s174 + $0x1358] sm:$0xff] %v1413
                %v1415 = vld [vmem:[%s173 + $0x3a20] sm:$0xff]
                %1416 = vst [vmem:[%s174 + $0x1360] sm:$0xff] %v1415
                %v1417 = vld [vmem:[%s173 + $0x3a28] sm:$0xff]
                %1418 = vst [vmem:[%s174 + $0x1368] sm:$0xff] %v1417
                %v1419 = vld [vmem:[%s173 + $0x3a50] sm:$0xff]
                %1420 = vst [vmem:[%s174 + $0x1370] sm:$0xff] %v1419
                %v1421 = vld [vmem:[%s173 + $0x3a58] sm:$0xff]
                %1422 = vst [vmem:[%s174 + $0x1378] sm:$0xff] %v1421
                %v1423 = vld [vmem:[%s173 + $0x3a80] sm:$0xff]
                %1424 = vst [vmem:[%s174 + $0x1380] sm:$0xff] %v1423
                %v1425 = vld [vmem:[%s173 + $0x3a88] sm:$0xff]
                %1426 = vst [vmem:[%s174 + $0x1388] sm:$0xff] %v1425
                %v1427 = vld [vmem:[%s173 + $0x3ab0] sm:$0xff]
                %1428 = vst [vmem:[%s174 + $0x1390] sm:$0xff] %v1427
                %v1429 = vld [vmem:[%s173 + $0x3ab8] sm:$0xff]
                %1430 = vst [vmem:[%s174 + $0x1398] sm:$0xff] %v1429
                %v1431 = vld [vmem:[%s173 + $0x3ae0] sm:$0xff]
                %1432 = vst [vmem:[%s174 + $0x13a0] sm:$0xff] %v1431
                %v1433 = vld [vmem:[%s173 + $0x3ae8] sm:$0xff]
                %1434 = vst [vmem:[%s174 + $0x13a8] sm:$0xff] %v1433
                %v1435 = vld [vmem:[%s173 + $0x3b10] sm:$0xff]
                %1436 = vst [vmem:[%s174 + $0x13b0] sm:$0xff] %v1435
                %v1437 = vld [vmem:[%s173 + $0x3b18] sm:$0xff]
                %1438 = vst [vmem:[%s174 + $0x13b8] sm:$0xff] %v1437
                %v1439 = vld [vmem:[%s173 + $0x3b40] sm:$0xff]
                %1440 = vst [vmem:[%s174 + $0x13c0] sm:$0xff] %v1439
                %v1441 = vld [vmem:[%s173 + $0x3b48] sm:$0xff]
                %1442 = vst [vmem:[%s174 + $0x13c8] sm:$0xff] %v1441
                %v1443 = vld [vmem:[%s173 + $0x3b70] sm:$0xff]
                %1444 = vst [vmem:[%s174 + $0x13d0] sm:$0xff] %v1443
                %v1445 = vld [vmem:[%s173 + $0x3b78] sm:$0xff]
                %1446 = vst [vmem:[%s174 + $0x13d8] sm:$0xff] %v1445
                %v1447 = vld [vmem:[%s173 + $0x3ba0] sm:$0xff]
                %1448 = vst [vmem:[%s174 + $0x13e0] sm:$0xff] %v1447
                %v1449 = vld [vmem:[%s173 + $0x3ba8] sm:$0xff]
                %1450 = vst [vmem:[%s174 + $0x13e8] sm:$0xff] %v1449
                %v1451 = vld [vmem:[%s173 + $0x3bd0] sm:$0xff]
                %1452 = vst [vmem:[%s174 + $0x13f0] sm:$0xff] %v1451
                %v1453 = vld [vmem:[%s173 + $0x3bd8] sm:$0xff]
                %1454 = vst [vmem:[%s174 + $0x13f8] sm:$0xff] %v1453
                %v1455 = vld [vmem:[%s173 + $0x3c00] sm:$0xff]
                %1456 = vst [vmem:[%s174 + $0x1400] sm:$0xff] %v1455
                %v1457 = vld [vmem:[%s173 + $0x3c08] sm:$0xff]
                %1458 = vst [vmem:[%s174 + $0x1408] sm:$0xff] %v1457
                %v1459 = vld [vmem:[%s173 + $0x3c30] sm:$0xff]
                %1460 = vst [vmem:[%s174 + $0x1410] sm:$0xff] %v1459
                %v1461 = vld [vmem:[%s173 + $0x3c38] sm:$0xff]
                %1462 = vst [vmem:[%s174 + $0x1418] sm:$0xff] %v1461
                %v1463 = vld [vmem:[%s173 + $0x3c60] sm:$0xff]
                %1464 = vst [vmem:[%s174 + $0x1420] sm:$0xff] %v1463
                %v1465 = vld [vmem:[%s173 + $0x3c68] sm:$0xff]
                %1466 = vst [vmem:[%s174 + $0x1428] sm:$0xff] %v1465
                %v1467 = vld [vmem:[%s173 + $0x3c90] sm:$0xff]
                %1468 = vst [vmem:[%s174 + $0x1430] sm:$0xff] %v1467
                %v1469 = vld [vmem:[%s173 + $0x3c98] sm:$0xff]
                %1470 = vst [vmem:[%s174 + $0x1438] sm:$0xff] %v1469
                %v1471 = vld [vmem:[%s173 + $0x3cc0] sm:$0xff]
                %1472 = vst [vmem:[%s174 + $0x1440] sm:$0xff] %v1471
                %v1473 = vld [vmem:[%s173 + $0x3cc8] sm:$0xff]
                %1474 = vst [vmem:[%s174 + $0x1448] sm:$0xff] %v1473
                %v1475 = vld [vmem:[%s173 + $0x3cf0] sm:$0xff]
                %1476 = vst [vmem:[%s174 + $0x1450] sm:$0xff] %v1475
                %v1477 = vld [vmem:[%s173 + $0x3cf8] sm:$0xff]
                %1478 = vst [vmem:[%s174 + $0x1458] sm:$0xff] %v1477
                %v1479 = vld [vmem:[%s173 + $0x3d20] sm:$0xff]
                %1480 = vst [vmem:[%s174 + $0x1460] sm:$0xff] %v1479
                %v1481 = vld [vmem:[%s173 + $0x3d28] sm:$0xff]
                %1482 = vst [vmem:[%s174 + $0x1468] sm:$0xff] %v1481
                %v1483 = vld [vmem:[%s173 + $0x3d50] sm:$0xff]
                %1484 = vst [vmem:[%s174 + $0x1470] sm:$0xff] %v1483
                %v1485 = vld [vmem:[%s173 + $0x3d58] sm:$0xff]
                %1486 = vst [vmem:[%s174 + $0x1478] sm:$0xff] %v1485
                %v1487 = vld [vmem:[%s173 + $0x3d80] sm:$0xff]
                %1488 = vst [vmem:[%s174 + $0x1480] sm:$0xff] %v1487
                %v1489 = vld [vmem:[%s173 + $0x3d88] sm:$0xff]
                %1490 = vst [vmem:[%s174 + $0x1488] sm:$0xff] %v1489
                %v1491 = vld [vmem:[%s173 + $0x3db0] sm:$0xff]
                %1492 = vst [vmem:[%s174 + $0x1490] sm:$0xff] %v1491
                %v1493 = vld [vmem:[%s173 + $0x3db8] sm:$0xff]
                %1494 = vst [vmem:[%s174 + $0x1498] sm:$0xff] %v1493
                %v1495 = vld [vmem:[%s173 + $0x3de0] sm:$0xff]
                %1496 = vst [vmem:[%s174 + $0x14a0] sm:$0xff] %v1495
                %v1497 = vld [vmem:[%s173 + $0x3de8] sm:$0xff]
                %1498 = vst [vmem:[%s174 + $0x14a8] sm:$0xff] %v1497
                %v1499 = vld [vmem:[%s173 + $0x3e10] sm:$0xff]
                %1500 = vst [vmem:[%s174 + $0x14b0] sm:$0xff] %v1499
                %v1501 = vld [vmem:[%s173 + $0x3e18] sm:$0xff]
                %1502 = vst [vmem:[%s174 + $0x14b8] sm:$0xff] %v1501
                %v1503 = vld [vmem:[%s173 + $0x3e40] sm:$0xff]
                %1504 = vst [vmem:[%s174 + $0x14c0] sm:$0xff] %v1503
                %v1505 = vld [vmem:[%s173 + $0x3e48] sm:$0xff]
                %1506 = vst [vmem:[%s174 + $0x14c8] sm:$0xff] %v1505
                %v1507 = vld [vmem:[%s173 + $0x3e70] sm:$0xff]
                %1508 = vst [vmem:[%s174 + $0x14d0] sm:$0xff] %v1507
                %v1509 = vld [vmem:[%s173 + $0x3e78] sm:$0xff]
                %1510 = vst [vmem:[%s174 + $0x14d8] sm:$0xff] %v1509
                %v1511 = vld [vmem:[%s173 + $0x3ea0] sm:$0xff]
                %1512 = vst [vmem:[%s174 + $0x14e0] sm:$0xff] %v1511
                %v1513 = vld [vmem:[%s173 + $0x3ea8] sm:$0xff]
                %1514 = vst [vmem:[%s174 + $0x14e8] sm:$0xff] %v1513
                %v1515 = vld [vmem:[%s173 + $0x3ed0] sm:$0xff]
                %1516 = vst [vmem:[%s174 + $0x14f0] sm:$0xff] %v1515
                %v1517 = vld [vmem:[%s173 + $0x3ed8] sm:$0xff]
                %1518 = vst [vmem:[%s174 + $0x14f8] sm:$0xff] %v1517
                %v1519 = vld [vmem:[%s173 + $0x3f00] sm:$0xff]
                %1520 = vst [vmem:[%s174 + $0x1500] sm:$0xff] %v1519
                %v1521 = vld [vmem:[%s173 + $0x3f08] sm:$0xff]
                %1522 = vst [vmem:[%s174 + $0x1508] sm:$0xff] %v1521
                %v1523 = vld [vmem:[%s173 + $0x3f30] sm:$0xff]
                %1524 = vst [vmem:[%s174 + $0x1510] sm:$0xff] %v1523
                %v1525 = vld [vmem:[%s173 + $0x3f38] sm:$0xff]
                %1526 = vst [vmem:[%s174 + $0x1518] sm:$0xff] %v1525
                %v1527 = vld [vmem:[%s173 + $0x3f60] sm:$0xff]
                %1528 = vst [vmem:[%s174 + $0x1520] sm:$0xff] %v1527
                %v1529 = vld [vmem:[%s173 + $0x3f68] sm:$0xff]
                %1530 = vst [vmem:[%s174 + $0x1528] sm:$0xff] %v1529
                %v1531 = vld [vmem:[%s173 + $0x3f90] sm:$0xff]
                %1532 = vst [vmem:[%s174 + $0x1530] sm:$0xff] %v1531
                %v1533 = vld [vmem:[%s173 + $0x3f98] sm:$0xff]
                %1534 = vst [vmem:[%s174 + $0x1538] sm:$0xff] %v1533
                %v1535 = vld [vmem:[%s173 + $0x3fc0] sm:$0xff]
                %1536 = vst [vmem:[%s174 + $0x1540] sm:$0xff] %v1535
                %v1537 = vld [vmem:[%s173 + $0x3fc8] sm:$0xff]
                %1538 = vst [vmem:[%s174 + $0x1548] sm:$0xff] %v1537
                %v1539 = vld [vmem:[%s173 + $0x3ff0] sm:$0xff]
                %1540 = vst [vmem:[%s174 + $0x1550] sm:$0xff] %v1539
                %v1541 = vld [vmem:[%s173 + $0x3ff8] sm:$0xff]
                %1542 = vst [vmem:[%s174 + $0x1558] sm:$0xff] %v1541
                %v1543 = vld [vmem:[%s173 + $0x4020] sm:$0xff]
                %1544 = vst [vmem:[%s174 + $0x1560] sm:$0xff] %v1543
                %v1545 = vld [vmem:[%s173 + $0x4028] sm:$0xff]
                %1546 = vst [vmem:[%s174 + $0x1568] sm:$0xff] %v1545
                %v1547 = vld [vmem:[%s173 + $0x4050] sm:$0xff]
                %1548 = vst [vmem:[%s174 + $0x1570] sm:$0xff] %v1547
                %v1549 = vld [vmem:[%s173 + $0x4058] sm:$0xff]
                %1550 = vst [vmem:[%s174 + $0x1578] sm:$0xff] %v1549
                %v1551 = vld [vmem:[%s173 + $0x4080] sm:$0xff]
                %1552 = vst [vmem:[%s174 + $0x1580] sm:$0xff] %v1551
                %v1553 = vld [vmem:[%s173 + $0x4088] sm:$0xff]
                %1554 = vst [vmem:[%s174 + $0x1588] sm:$0xff] %v1553
                %v1555 = vld [vmem:[%s173 + $0x40b0] sm:$0xff]
                %1556 = vst [vmem:[%s174 + $0x1590] sm:$0xff] %v1555
                %v1557 = vld [vmem:[%s173 + $0x40b8] sm:$0xff]
                %1558 = vst [vmem:[%s174 + $0x1598] sm:$0xff] %v1557
                %v1559 = vld [vmem:[%s173 + $0x40e0] sm:$0xff]
                %1560 = vst [vmem:[%s174 + $0x15a0] sm:$0xff] %v1559
                %v1561 = vld [vmem:[%s173 + $0x40e8] sm:$0xff]
                %1562 = vst [vmem:[%s174 + $0x15a8] sm:$0xff] %v1561
                %v1563 = vld [vmem:[%s173 + $0x4110] sm:$0xff]
                %1564 = vst [vmem:[%s174 + $0x15b0] sm:$0xff] %v1563
                %v1565 = vld [vmem:[%s173 + $0x4118] sm:$0xff]
                %1566 = vst [vmem:[%s174 + $0x15b8] sm:$0xff] %v1565
                %v1567 = vld [vmem:[%s173 + $0x4140] sm:$0xff]
                %1568 = vst [vmem:[%s174 + $0x15c0] sm:$0xff] %v1567
                %v1569 = vld [vmem:[%s173 + $0x4148] sm:$0xff]
                %1570 = vst [vmem:[%s174 + $0x15c8] sm:$0xff] %v1569
                %v1571 = vld [vmem:[%s173 + $0x4170] sm:$0xff]
                %1572 = vst [vmem:[%s174 + $0x15d0] sm:$0xff] %v1571
                %v1573 = vld [vmem:[%s173 + $0x4178] sm:$0xff]
                %1574 = vst [vmem:[%s174 + $0x15d8] sm:$0xff] %v1573
                %v1575 = vld [vmem:[%s173 + $0x41a0] sm:$0xff]
                %1576 = vst [vmem:[%s174 + $0x15e0] sm:$0xff] %v1575
                %v1577 = vld [vmem:[%s173 + $0x41a8] sm:$0xff]
                %1578 = vst [vmem:[%s174 + $0x15e8] sm:$0xff] %v1577
                %v1579 = vld [vmem:[%s173 + $0x41d0] sm:$0xff]
                %1580 = vst [vmem:[%s174 + $0x15f0] sm:$0xff] %v1579
                %v1581 = vld [vmem:[%s173 + $0x41d8] sm:$0xff]
                %1582 = vst [vmem:[%s174 + $0x15f8] sm:$0xff] %v1581
                %v1583 = vld [vmem:[%s173 + $0x4200] sm:$0xff]
                %1584 = vst [vmem:[%s174 + $0x1600] sm:$0xff] %v1583
                %v1585 = vld [vmem:[%s173 + $0x4208] sm:$0xff]
                %1586 = vst [vmem:[%s174 + $0x1608] sm:$0xff] %v1585
                %v1587 = vld [vmem:[%s173 + $0x4230] sm:$0xff]
                %1588 = vst [vmem:[%s174 + $0x1610] sm:$0xff] %v1587
                %v1589 = vld [vmem:[%s173 + $0x4238] sm:$0xff]
                %1590 = vst [vmem:[%s174 + $0x1618] sm:$0xff] %v1589
                %v1591 = vld [vmem:[%s173 + $0x4260] sm:$0xff]
                %1592 = vst [vmem:[%s174 + $0x1620] sm:$0xff] %v1591
                %v1593 = vld [vmem:[%s173 + $0x4268] sm:$0xff]
                %1594 = vst [vmem:[%s174 + $0x1628] sm:$0xff] %v1593
                %v1595 = vld [vmem:[%s173 + $0x4290] sm:$0xff]
                %1596 = vst [vmem:[%s174 + $0x1630] sm:$0xff] %v1595
                %v1597 = vld [vmem:[%s173 + $0x4298] sm:$0xff]
                %1598 = vst [vmem:[%s174 + $0x1638] sm:$0xff] %v1597
                %v1599 = vld [vmem:[%s173 + $0x42c0] sm:$0xff]
                %1600 = vst [vmem:[%s174 + $0x1640] sm:$0xff] %v1599
                %v1601 = vld [vmem:[%s173 + $0x42c8] sm:$0xff]
                %1602 = vst [vmem:[%s174 + $0x1648] sm:$0xff] %v1601
                %v1603 = vld [vmem:[%s173 + $0x42f0] sm:$0xff]
                %1604 = vst [vmem:[%s174 + $0x1650] sm:$0xff] %v1603
                %v1605 = vld [vmem:[%s173 + $0x42f8] sm:$0xff]
                %1606 = vst [vmem:[%s174 + $0x1658] sm:$0xff] %v1605
                %v1607 = vld [vmem:[%s173 + $0x4320] sm:$0xff]
                %1608 = vst [vmem:[%s174 + $0x1660] sm:$0xff] %v1607
                %v1609 = vld [vmem:[%s173 + $0x4328] sm:$0xff]
                %1610 = vst [vmem:[%s174 + $0x1668] sm:$0xff] %v1609
                %v1611 = vld [vmem:[%s173 + $0x4350] sm:$0xff]
                %1612 = vst [vmem:[%s174 + $0x1670] sm:$0xff] %v1611
                %v1613 = vld [vmem:[%s173 + $0x4358] sm:$0xff]
                %1614 = vst [vmem:[%s174 + $0x1678] sm:$0xff] %v1613
                %v1615 = vld [vmem:[%s173 + $0x4380] sm:$0xff]
                %1616 = vst [vmem:[%s174 + $0x1680] sm:$0xff] %v1615
                %v1617 = vld [vmem:[%s173 + $0x4388] sm:$0xff]
                %1618 = vst [vmem:[%s174 + $0x1688] sm:$0xff] %v1617
                %v1619 = vld [vmem:[%s173 + $0x43b0] sm:$0xff]
                %1620 = vst [vmem:[%s174 + $0x1690] sm:$0xff] %v1619
                %v1621 = vld [vmem:[%s173 + $0x43b8] sm:$0xff]
                %1622 = vst [vmem:[%s174 + $0x1698] sm:$0xff] %v1621
                %v1623 = vld [vmem:[%s173 + $0x43e0] sm:$0xff]
                %1624 = vst [vmem:[%s174 + $0x16a0] sm:$0xff] %v1623
                %v1625 = vld [vmem:[%s173 + $0x43e8] sm:$0xff]
                %1626 = vst [vmem:[%s174 + $0x16a8] sm:$0xff] %v1625
                %v1627 = vld [vmem:[%s173 + $0x4410] sm:$0xff]
                %1628 = vst [vmem:[%s174 + $0x16b0] sm:$0xff] %v1627
                %v1629 = vld [vmem:[%s173 + $0x4418] sm:$0xff]
                %1630 = vst [vmem:[%s174 + $0x16b8] sm:$0xff] %v1629
                %v1631 = vld [vmem:[%s173 + $0x4440] sm:$0xff]
                %1632 = vst [vmem:[%s174 + $0x16c0] sm:$0xff] %v1631
                %v1633 = vld [vmem:[%s173 + $0x4448] sm:$0xff]
                %1634 = vst [vmem:[%s174 + $0x16c8] sm:$0xff] %v1633
                %v1635 = vld [vmem:[%s173 + $0x4470] sm:$0xff]
                %1636 = vst [vmem:[%s174 + $0x16d0] sm:$0xff] %v1635
                %v1637 = vld [vmem:[%s173 + $0x4478] sm:$0xff]
                %1638 = vst [vmem:[%s174 + $0x16d8] sm:$0xff] %v1637
                %v1639 = vld [vmem:[%s173 + $0x44a0] sm:$0xff]
                %1640 = vst [vmem:[%s174 + $0x16e0] sm:$0xff] %v1639
                %v1641 = vld [vmem:[%s173 + $0x44a8] sm:$0xff]
                %1642 = vst [vmem:[%s174 + $0x16e8] sm:$0xff] %v1641
                %v1643 = vld [vmem:[%s173 + $0x44d0] sm:$0xff]
                %1644 = vst [vmem:[%s174 + $0x16f0] sm:$0xff] %v1643
                %v1645 = vld [vmem:[%s173 + $0x44d8] sm:$0xff]
                %1646 = vst [vmem:[%s174 + $0x16f8] sm:$0xff] %v1645
                %v1647 = vld [vmem:[%s173 + $0x4500] sm:$0xff]
                %1648 = vst [vmem:[%s174 + $0x1700] sm:$0xff] %v1647
                %v1649 = vld [vmem:[%s173 + $0x4508] sm:$0xff]
                %1650 = vst [vmem:[%s174 + $0x1708] sm:$0xff] %v1649
                %v1651 = vld [vmem:[%s173 + $0x4530] sm:$0xff]
                %1652 = vst [vmem:[%s174 + $0x1710] sm:$0xff] %v1651
                %v1653 = vld [vmem:[%s173 + $0x4538] sm:$0xff]
                %1654 = vst [vmem:[%s174 + $0x1718] sm:$0xff] %v1653
                %v1655 = vld [vmem:[%s173 + $0x4560] sm:$0xff]
                %1656 = vst [vmem:[%s174 + $0x1720] sm:$0xff] %v1655
                %v1657 = vld [vmem:[%s173 + $0x4568] sm:$0xff]
                %1658 = vst [vmem:[%s174 + $0x1728] sm:$0xff] %v1657
                %v1659 = vld [vmem:[%s173 + $0x4590] sm:$0xff]
                %1660 = vst [vmem:[%s174 + $0x1730] sm:$0xff] %v1659
                %v1661 = vld [vmem:[%s173 + $0x4598] sm:$0xff]
                %1662 = vst [vmem:[%s174 + $0x1738] sm:$0xff] %v1661
                %v1663 = vld [vmem:[%s173 + $0x45c0] sm:$0xff]
                %1664 = vst [vmem:[%s174 + $0x1740] sm:$0xff] %v1663
                %v1665 = vld [vmem:[%s173 + $0x45c8] sm:$0xff]
                %1666 = vst [vmem:[%s174 + $0x1748] sm:$0xff] %v1665
                %v1667 = vld [vmem:[%s173 + $0x45f0] sm:$0xff]
                %1668 = vst [vmem:[%s174 + $0x1750] sm:$0xff] %v1667
                %v1669 = vld [vmem:[%s173 + $0x45f8] sm:$0xff]
                %1670 = vst [vmem:[%s174 + $0x1758] sm:$0xff] %v1669
                %v1671 = vld [vmem:[%s173 + $0x4620] sm:$0xff]
                %1672 = vst [vmem:[%s174 + $0x1760] sm:$0xff] %v1671
                %v1673 = vld [vmem:[%s173 + $0x4628] sm:$0xff]
                %1674 = vst [vmem:[%s174 + $0x1768] sm:$0xff] %v1673
                %v1675 = vld [vmem:[%s173 + $0x4650] sm:$0xff]
                %1676 = vst [vmem:[%s174 + $0x1770] sm:$0xff] %v1675
                %v1677 = vld [vmem:[%s173 + $0x4658] sm:$0xff]
                %1678 = vst [vmem:[%s174 + $0x1778] sm:$0xff] %v1677
                %v1679 = vld [vmem:[%s173 + $0x4680] sm:$0xff]
                %1680 = vst [vmem:[%s174 + $0x1780] sm:$0xff] %v1679
                %v1681 = vld [vmem:[%s173 + $0x4688] sm:$0xff]
                %1682 = vst [vmem:[%s174 + $0x1788] sm:$0xff] %v1681
                %v1683 = vld [vmem:[%s173 + $0x46b0] sm:$0xff]
                %1684 = vst [vmem:[%s174 + $0x1790] sm:$0xff] %v1683
                %v1685 = vld [vmem:[%s173 + $0x46b8] sm:$0xff]
                %1686 = vst [vmem:[%s174 + $0x1798] sm:$0xff] %v1685
                %v1687 = vld [vmem:[%s173 + $0x46e0] sm:$0xff]
                %1688 = vst [vmem:[%s174 + $0x17a0] sm:$0xff] %v1687
                %v1689 = vld [vmem:[%s173 + $0x46e8] sm:$0xff]
                %1690 = vst [vmem:[%s174 + $0x17a8] sm:$0xff] %v1689
                %v1691 = vld [vmem:[%s173 + $0x4710] sm:$0xff]
                %1692 = vst [vmem:[%s174 + $0x17b0] sm:$0xff] %v1691
                %v1693 = vld [vmem:[%s173 + $0x4718] sm:$0xff]
                %1694 = vst [vmem:[%s174 + $0x17b8] sm:$0xff] %v1693
                %v1695 = vld [vmem:[%s173 + $0x4740] sm:$0xff]
                %1696 = vst [vmem:[%s174 + $0x17c0] sm:$0xff] %v1695
                %v1697 = vld [vmem:[%s173 + $0x4748] sm:$0xff]
                %1698 = vst [vmem:[%s174 + $0x17c8] sm:$0xff] %v1697
                %v1699 = vld [vmem:[%s173 + $0x4770] sm:$0xff]
                %1700 = vst [vmem:[%s174 + $0x17d0] sm:$0xff] %v1699
                %v1701 = vld [vmem:[%s173 + $0x4778] sm:$0xff]
                %1702 = vst [vmem:[%s174 + $0x17d8] sm:$0xff] %v1701
                %v1703 = vld [vmem:[%s173 + $0x47a0] sm:$0xff]
                %1704 = vst [vmem:[%s174 + $0x17e0] sm:$0xff] %v1703
                %v1705 = vld [vmem:[%s173 + $0x47a8] sm:$0xff]
                %1706 = vst [vmem:[%s174 + $0x17e8] sm:$0xff] %v1705
                %v1707 = vld [vmem:[%s173 + $0x47d0] sm:$0xff]
                %1708 = vst [vmem:[%s174 + $0x17f0] sm:$0xff] %v1707
                %v1709 = vld [vmem:[%s173 + $0x47d8] sm:$0xff]
                %1710 = vst [vmem:[%s174 + $0x17f8] sm:$0xff] %v1709
                %v1711 = vld [vmem:[%s173 + $0x4800] sm:$0xff]
                %1712 = vst [vmem:[%s174 + $0x1800] sm:$0xff] %v1711
                %v1713 = vld [vmem:[%s173 + $0x4808] sm:$0xff]
                %1714 = vst [vmem:[%s174 + $0x1808] sm:$0xff] %v1713
                %v1715 = vld [vmem:[%s173 + $0x4830] sm:$0xff]
                %1716 = vst [vmem:[%s174 + $0x1810] sm:$0xff] %v1715
                %v1717 = vld [vmem:[%s173 + $0x4838] sm:$0xff]
                %1718 = vst [vmem:[%s174 + $0x1818] sm:$0xff] %v1717
                %v1719 = vld [vmem:[%s173 + $0x4860] sm:$0xff]
                %1720 = vst [vmem:[%s174 + $0x1820] sm:$0xff] %v1719
                %v1721 = vld [vmem:[%s173 + $0x4868] sm:$0xff]
                %1722 = vst [vmem:[%s174 + $0x1828] sm:$0xff] %v1721
                %v1723 = vld [vmem:[%s173 + $0x4890] sm:$0xff]
                %1724 = vst [vmem:[%s174 + $0x1830] sm:$0xff] %v1723
                %v1725 = vld [vmem:[%s173 + $0x4898] sm:$0xff]
                %1726 = vst [vmem:[%s174 + $0x1838] sm:$0xff] %v1725
                %v1727 = vld [vmem:[%s173 + $0x48c0] sm:$0xff]
                %1728 = vst [vmem:[%s174 + $0x1840] sm:$0xff] %v1727
                %v1729 = vld [vmem:[%s173 + $0x48c8] sm:$0xff]
                %1730 = vst [vmem:[%s174 + $0x1848] sm:$0xff] %v1729
                %v1731 = vld [vmem:[%s173 + $0x48f0] sm:$0xff]
                %1732 = vst [vmem:[%s174 + $0x1850] sm:$0xff] %v1731
                %v1733 = vld [vmem:[%s173 + $0x48f8] sm:$0xff]
                %1734 = vst [vmem:[%s174 + $0x1858] sm:$0xff] %v1733
                %v1735 = vld [vmem:[%s173 + $0x4920] sm:$0xff]
                %1736 = vst [vmem:[%s174 + $0x1860] sm:$0xff] %v1735
                %v1737 = vld [vmem:[%s173 + $0x4928] sm:$0xff]
                %1738 = vst [vmem:[%s174 + $0x1868] sm:$0xff] %v1737
                %v1739 = vld [vmem:[%s173 + $0x4950] sm:$0xff]
                %1740 = vst [vmem:[%s174 + $0x1870] sm:$0xff] %v1739
                %v1741 = vld [vmem:[%s173 + $0x4958] sm:$0xff]
                %1742 = vst [vmem:[%s174 + $0x1878] sm:$0xff] %v1741
              $region37: #{_lambda_.8} parent=31 // loop_footer
                %s172 = sadd.s32 1, %s168
              $region38: #{_lambda_.8} parent=31 // loop_footer_branch
                %167 = sbr.rel target = $region34
              $region39: #{_lambda_.8} parent=31 // loop_exit
                _
            $region32: #{_lambda_.8} parent=27 // pred_fallthru
              _
            // Predicated region
            $region40: #{_lambda_.8} parent=27 // pred_check
              _
            $region41: #{_lambda_.8} parent=27 // pred_check_branch
              %1744 = sbr.rel target = $region43
            $region42: #{_lambda_.8} parent=27 // pred_region
              _
            $region43: #{_lambda_.8} parent=27 // pred_fallthru
              _
          $region28: #{_lambda_.8} parent=23 // pred_fallthru
            _
          %1745 = vnop
        $region24: #{_lambda_.8} parent=19 // pred_fallthru
          _
        // Predicated region
        $region44: #{_lambda_.8} parent=19 // pred_check
          %p1746 = pneg %p93
        $region45: #{_lambda_.8} parent=19 // pred_check_branch
          %1748 = sbr.rel (%p1746) target = $region47
        $region46: #{_lambda_.8} parent=19 // pred_region
          %s1749 = smul.u32 4, %s17
          %p1750 = scmp.lt.s32.totalorder %s1749, 11
          %s1751 = scalar_select %p1750, %s1749, 11
          %s1752 = scalar_lea.vmem %s2, %s1751
          %s1753 = smul.u32 4, %s17
        $region47: #{_lambda_.8} parent=19 // pred_fallthru
          _
      $region20: #{_lambda_.8} parent=5 // pred_fallthru
        _
      %p1754 = scmp.le.s32.totalorder 1, %s9
      %p1755 = scmp.lt.s32.totalorder %s9, 4
      %p1756 = pnand %p1754, %p1755
      %p1757 = pneg %p1756
      // Predicated region
      $region48: #{_lambda_.8} parent=5 // pred_check
        _
      $region49: #{_lambda_.8} parent=5 // pred_check_branch
        %1759 = sbr.rel (%p1756) target = $region51
      $region50: #{_lambda_.8} parent=5 // pred_region
        %s1760 = ssub.s32 %s9, 1
        %s1761 = sand.u32 %s60, 1
        %s1762 = sand.u32 %s60, 1
        %s1763 = smul.addr %s1762, 6272
        %s1764 = scalar_lea.vmem [#allocation2], %s1763
        // Predicated region
        $region52: #{_lambda_.8} parent=50 // pred_check
          %p1765 = pneg %p73
        $region53: #{_lambda_.8} parent=50 // pred_check_branch
          %1767 = sbr.rel (%p1765) target = $region55
        $region54: #{_lambda_.8} parent=50 // pred_region
          _
        $region55: #{_lambda_.8} parent=50 // pred_fallthru
          _
        %p1768 = scmp.lt.s32.totalorder %s18, 0
        %s1769 = scalar_select %p1768, %s18, 0
        %s1770 = smul.addr %s1769, 25
        %s1771 = scalar_lea.vmem %s0, %s1770
        %p1772 = pneg %p47
        %p1773 = pneg %p44
        %s1774 = sand.u32 %s60, 1
        %s1775 = sand.u32 %s60, 1
        %s1776 = smul.addr %s1775, 6272
        %s1777 = scalar_lea.vmem [#allocation2], %s1776
        %p1778 = pneg %p73
        %p1779 = pneg %p70
        %s1780 = smul.u32 4, %s19
        %p1781 = scmp.lt.s32.totalorder %s1780, 11
        %s1782 = scalar_select %p1781, %s1780, 11
        %s1783 = scalar_lea.vmem %s2, %s1782
        %p1784 = pneg %p99
        %p1785 = pneg %p96
        %p1786 = pneg %p127
        %p1787 = pneg %p124
        %s1788 = smul.u32 4, %s19
        %p1789 = scmp.lt.s32.totalorder %s18, 0
        %s1790 = scalar_select %p1789, %s18, 0
        %p1791 = scmp.lt.s32.totalorder %s1788, 11
        %s1792 = scalar_select %p1791, %s1788, 11
        %s1793 = smul.addr %s1790, 12
        %s1794 = sadd.s32 %s1792, %s1793
        %s1795 = scalar_lea.vmem %s3, %s1794
        %p1796 = scmp.lt.s32.totalorder %s18, 0
        %s1797 = scalar_select %p1796, %s18, 0
        %s1798 = smul.addr %s1797, 25
        %s1799 = scalar_lea.vmem %s0, %s1798
        %s1800 = smul.u32 4, %s19
        %s1801 = smul.u32 4, %s19
        %p1802 = scmp.lt.s32.totalorder %s1801, 11
        %s1803 = scalar_select %p1802, %s1801, 11
        %s1804 = scalar_lea.vmem %s2, %s1803
        %s1805 = smul.u32 4, %s19
        %s1806 = smul.u32 4, %s19
        %p1807 = scmp.lt.s32.totalorder %s18, 0
        %s1808 = scalar_select %p1807, %s18, 0
        %p1809 = scmp.lt.s32.totalorder %s1806, 11
        %s1810 = scalar_select %p1809, %s1806, 11
        %s1811 = smul.addr %s1808, 12
        %s1812 = sadd.s32 %s1810, %s1811
        %s1813 = scalar_lea.vmem %s3, %s1812
        %s1814 = smul.u32 4, %s19
        %v1816 = vld [vmem:[%s1799] sm:$0xff]
        %v1817 = vld [vmem:[%s1799 + $0x8] sm:$0xff]
        %v1818 = vld [vmem:[%s1799 + $0x10] sm:$0xff]
        %v1819 = vld [vmem:[%s1799 + $0x18] sm:$0x1]
        %v1820 = vld [vmem:[%s1764] sm:$0xff]
        %v1821 = vld [vmem:[%s1764 + $0x8] sm:$0xff]
        %v1822 = vld [vmem:[%s1764 + $0x10] sm:$0xff]
        %v1823 = vld [vmem:[%s1764 + $0x18] sm:$0xff]
        %v1824 = vld [vmem:[%s1764 + $0x20] sm:$0xff]
        %v1825 = vld [vmem:[%s1764 + $0x28] sm:$0xff]
        %v1826 = vld [vmem:[%s1764 + $0x30] sm:$0xff]
        %v1827 = vld [vmem:[%s1764 + $0x38] sm:$0xff]
        %v1828 = vld [vmem:[%s1764 + $0x40] sm:$0xff]
        %v1829 = vld [vmem:[%s1764 + $0x48] sm:$0xff]
        %v1830 = vld [vmem:[%s1764 + $0x50] sm:$0xff]
        %v1831 = vld [vmem:[%s1764 + $0x58] sm:$0xff]
        %v1832 = vld [vmem:[%s1764 + $0x60] sm:$0xff]
        %v1833 = vld [vmem:[%s1764 + $0x68] sm:$0xff]
        %v1834 = vld [vmem:[%s1764 + $0x70] sm:$0xff]
        %v1835 = vld [vmem:[%s1764 + $0x78] sm:$0xff]
        %v1836 = vld [vmem:[%s1764 + $0x80] sm:$0xff]
        %v1837 = vld [vmem:[%s1764 + $0x88] sm:$0xff]
        %v1838 = vld [vmem:[%s1764 + $0x90] sm:$0xff]
        %v1839 = vld [vmem:[%s1764 + $0x98] sm:$0xff]
        %v1840 = vld [vmem:[%s1764 + $0xa0] sm:$0xff]
        %v1841 = vld [vmem:[%s1764 + $0xa8] sm:$0xff]
        %v1842 = vld [vmem:[%s1764 + $0xb0] sm:$0xff]
        %v1843 = vld [vmem:[%s1764 + $0xb8] sm:$0xff]
        %v1844 = vld [vmem:[%s1764 + $0xc0] sm:$0xff]
        %v1845 = vld [vmem:[%s1764 + $0xc8] sm:$0xff]
        %v1846 = vld [vmem:[%s1764 + $0xd0] sm:$0xff]
        %v1847 = vld [vmem:[%s1764 + $0xd8] sm:$0xff]
        %v1848 = vld [vmem:[%s1764 + $0xe0] sm:$0xff]
        %v1849 = vld [vmem:[%s1764 + $0xe8] sm:$0xff]
        %v1850 = vld [vmem:[%s1764 + $0xf0] sm:$0xff]
        %v1851 = vld [vmem:[%s1764 + $0xf8] sm:$0xff]
        %v1852 = vld [vmem:[%s1764 + $0x100] sm:$0xff]
        %v1853 = vld [vmem:[%s1764 + $0x108] sm:$0xff]
        %v1854 = vld [vmem:[%s1764 + $0x110] sm:$0xff]
        %v1855 = vld [vmem:[%s1764 + $0x118] sm:$0xff]
        %v1856 = vld [vmem:[%s1764 + $0x120] sm:$0xff]
        %v1857 = vld [vmem:[%s1764 + $0x128] sm:$0xff]
        %v1858 = vld [vmem:[%s1764 + $0x130] sm:$0xff]
        %v1859 = vld [vmem:[%s1764 + $0x138] sm:$0xff]
        %v1860 = vld [vmem:[%s1764 + $0x140] sm:$0xff]
        %v1861 = vld [vmem:[%s1764 + $0x148] sm:$0xff]
        %v1862 = vld [vmem:[%s1764 + $0x150] sm:$0xff]
        %v1863 = vld [vmem:[%s1764 + $0x158] sm:$0xff]
        %v1864 = vld [vmem:[%s1764 + $0x160] sm:$0xff]
        %v1865 = vld [vmem:[%s1764 + $0x168] sm:$0xff]
        %v1866 = vld [vmem:[%s1764 + $0x170] sm:$0xff]
        %v1867 = vld [vmem:[%s1764 + $0x178] sm:$0xff]
        %v1868 = vld [vmem:[%s1764 + $0x180] sm:$0xff]
        %v1869 = vld [vmem:[%s1764 + $0x188] sm:$0xff]
        %v1870 = vld [vmem:[%s1764 + $0x190] sm:$0xff]
        %v1871 = vld [vmem:[%s1764 + $0x198] sm:$0xff]
        %v1872 = vld [vmem:[%s1764 + $0x1a0] sm:$0xff]
        %v1873 = vld [vmem:[%s1764 + $0x1a8] sm:$0xff]
        %v1874 = vld [vmem:[%s1764 + $0x1b0] sm:$0xff]
        %v1875 = vld [vmem:[%s1764 + $0x1b8] sm:$0xff]
        %v1876 = vld [vmem:[%s1764 + $0x1c0] sm:$0xff]
        %v1877 = vld [vmem:[%s1764 + $0x1c8] sm:$0xff]
        %v1878 = vld [vmem:[%s1764 + $0x1d0] sm:$0xff]
        %v1879 = vld [vmem:[%s1764 + $0x1d8] sm:$0xff]
        %v1880 = vld [vmem:[%s1764 + $0x1e0] sm:$0xff]
        %v1881 = vld [vmem:[%s1764 + $0x1e8] sm:$0xff]
        %v1882 = vld [vmem:[%s1764 + $0x1f0] sm:$0xff]
        %v1883 = vld [vmem:[%s1764 + $0x1f8] sm:$0xff]
        %v1884 = vld [vmem:[%s1764 + $0x200] sm:$0xff]
        %v1885 = vld [vmem:[%s1764 + $0x208] sm:$0xff]
        %v1886 = vld [vmem:[%s1764 + $0x210] sm:$0xff]
        %v1887 = vld [vmem:[%s1764 + $0x218] sm:$0xff]
        %v1888 = vld [vmem:[%s1764 + $0x220] sm:$0xff]
        %v1889 = vld [vmem:[%s1764 + $0x228] sm:$0xff]
        %v1890 = vld [vmem:[%s1764 + $0x230] sm:$0xff]
        %v1891 = vld [vmem:[%s1764 + $0x238] sm:$0xff]
        %v1892 = vld [vmem:[%s1764 + $0x240] sm:$0xff]
        %v1893 = vld [vmem:[%s1764 + $0x248] sm:$0xff]
        %v1894 = vld [vmem:[%s1764 + $0x250] sm:$0xff]
        %v1895 = vld [vmem:[%s1764 + $0x258] sm:$0xff]
        %v1896 = vld [vmem:[%s1764 + $0x260] sm:$0xff]
        %v1897 = vld [vmem:[%s1764 + $0x268] sm:$0xff]
        %v1898 = vld [vmem:[%s1764 + $0x270] sm:$0xff]
        %v1899 = vld [vmem:[%s1764 + $0x278] sm:$0xff]
        %v1900 = vld [vmem:[%s1764 + $0x280] sm:$0xff]
        %v1901 = vld [vmem:[%s1764 + $0x288] sm:$0xff]
        %v1902 = vld [vmem:[%s1764 + $0x290] sm:$0xff]
        %v1903 = vld [vmem:[%s1764 + $0x298] sm:$0xff]
        %v1904 = vld [vmem:[%s1764 + $0x2a0] sm:$0xff]
        %v1905 = vld [vmem:[%s1764 + $0x2a8] sm:$0xff]
        %v1906 = vld [vmem:[%s1764 + $0x2b0] sm:$0xff]
        %v1907 = vld [vmem:[%s1764 + $0x2b8] sm:$0xff]
        %v1908 = vld [vmem:[%s1764 + $0x2c0] sm:$0xff]
        %v1909 = vld [vmem:[%s1764 + $0x2c8] sm:$0xff]
        %v1910 = vld [vmem:[%s1764 + $0x2d0] sm:$0xff]
        %v1911 = vld [vmem:[%s1764 + $0x2d8] sm:$0xff]
        %v1912 = vld [vmem:[%s1764 + $0x2e0] sm:$0xff]
        %v1913 = vld [vmem:[%s1764 + $0x2e8] sm:$0xff]
        %v1914 = vld [vmem:[%s1764 + $0x2f0] sm:$0xff]
        %v1915 = vld [vmem:[%s1764 + $0x2f8] sm:$0xff]
        %v1916 = vld [vmem:[%s1764 + $0x300] sm:$0xff]
        %v1917 = vld [vmem:[%s1764 + $0x308] sm:$0xff]
        %v1918 = vld [vmem:[%s1764 + $0x310] sm:$0xff]
        %v1919 = vld [vmem:[%s1764 + $0x318] sm:$0xff]
        %v1920 = vld [vmem:[%s1764 + $0x320] sm:$0xff]
        %v1921 = vld [vmem:[%s1764 + $0x328] sm:$0xff]
        %v1922 = vld [vmem:[%s1764 + $0x330] sm:$0xff]
        %v1923 = vld [vmem:[%s1764 + $0x338] sm:$0xff]
        %v1924 = vld [vmem:[%s1764 + $0x340] sm:$0xff]
        %v1925 = vld [vmem:[%s1764 + $0x348] sm:$0xff]
        %v1926 = vld [vmem:[%s1764 + $0x350] sm:$0xff]
        %v1927 = vld [vmem:[%s1764 + $0x358] sm:$0xff]
        %v1928 = vld [vmem:[%s1764 + $0x360] sm:$0xff]
        %v1929 = vld [vmem:[%s1764 + $0x368] sm:$0xff]
        %v1930 = vld [vmem:[%s1764 + $0x370] sm:$0xff]
        %v1931 = vld [vmem:[%s1764 + $0x378] sm:$0xff]
        %v1932 = vld [vmem:[%s1764 + $0x380] sm:$0xff]
        %v1933 = vld [vmem:[%s1764 + $0x388] sm:$0xff]
        %v1934 = vld [vmem:[%s1764 + $0x390] sm:$0xff]
        %v1935 = vld [vmem:[%s1764 + $0x398] sm:$0xff]
        %v1936 = vld [vmem:[%s1764 + $0x3a0] sm:$0xff]
        %v1937 = vld [vmem:[%s1764 + $0x3a8] sm:$0xff]
        %v1938 = vld [vmem:[%s1764 + $0x3b0] sm:$0xff]
        %v1939 = vld [vmem:[%s1764 + $0x3b8] sm:$0xff]
        %v1940 = vld [vmem:[%s1764 + $0x3c0] sm:$0xff]
        %v1941 = vld [vmem:[%s1764 + $0x3c8] sm:$0xff]
        %v1942 = vld [vmem:[%s1764 + $0x3d0] sm:$0xff]
        %v1943 = vld [vmem:[%s1764 + $0x3d8] sm:$0xff]
        %v1944 = vld [vmem:[%s1764 + $0x3e0] sm:$0xff]
        %v1945 = vld [vmem:[%s1764 + $0x3e8] sm:$0xff]
        %v1946 = vld [vmem:[%s1764 + $0x3f0] sm:$0xff]
        %v1947 = vld [vmem:[%s1764 + $0x3f8] sm:$0xff]
        %v1948 = vld [vmem:[%s1764 + $0x400] sm:$0xff]
        %v1949 = vld [vmem:[%s1764 + $0x408] sm:$0xff]
        %v1950 = vld [vmem:[%s1764 + $0x410] sm:$0xff]
        %v1951 = vld [vmem:[%s1764 + $0x418] sm:$0xff]
        %v1952 = vld [vmem:[%s1764 + $0x420] sm:$0xff]
        %v1953 = vld [vmem:[%s1764 + $0x428] sm:$0xff]
        %v1954 = vld [vmem:[%s1764 + $0x430] sm:$0xff]
        %v1955 = vld [vmem:[%s1764 + $0x438] sm:$0xff]
        %v1956 = vld [vmem:[%s1764 + $0x440] sm:$0xff]
        %v1957 = vld [vmem:[%s1764 + $0x448] sm:$0xff]
        %v1958 = vld [vmem:[%s1764 + $0x450] sm:$0xff]
        %v1959 = vld [vmem:[%s1764 + $0x458] sm:$0xff]
        %v1960 = vld [vmem:[%s1764 + $0x460] sm:$0xff]
        %v1961 = vld [vmem:[%s1764 + $0x468] sm:$0xff]
        %v1962 = vld [vmem:[%s1764 + $0x470] sm:$0xff]
        %v1963 = vld [vmem:[%s1764 + $0x478] sm:$0xff]
        %v1964 = vld [vmem:[%s1764 + $0x480] sm:$0xff]
        %v1965 = vld [vmem:[%s1764 + $0x488] sm:$0xff]
        %v1966 = vld [vmem:[%s1764 + $0x490] sm:$0xff]
        %v1967 = vld [vmem:[%s1764 + $0x498] sm:$0xff]
        %v1968 = vld [vmem:[%s1764 + $0x4a0] sm:$0xff]
        %v1969 = vld [vmem:[%s1764 + $0x4a8] sm:$0xff]
        %v1970 = vld [vmem:[%s1764 + $0x4b0] sm:$0xff]
        %v1971 = vld [vmem:[%s1764 + $0x4b8] sm:$0xff]
        %v1972 = vld [vmem:[%s1764 + $0x4c0] sm:$0xff]
        %v1973 = vld [vmem:[%s1764 + $0x4c8] sm:$0xff]
        %v1974 = vld [vmem:[%s1764 + $0x4d0] sm:$0xff]
        %v1975 = vld [vmem:[%s1764 + $0x4d8] sm:$0xff]
        %v1976 = vld [vmem:[%s1764 + $0x4e0] sm:$0xff]
        %v1977 = vld [vmem:[%s1764 + $0x4e8] sm:$0xff]
        %v1978 = vld [vmem:[%s1764 + $0x4f0] sm:$0xff]
        %v1979 = vld [vmem:[%s1764 + $0x4f8] sm:$0xff]
        %v1980 = vld [vmem:[%s1764 + $0x500] sm:$0xff]
        %v1981 = vld [vmem:[%s1764 + $0x508] sm:$0xff]
        %v1982 = vld [vmem:[%s1764 + $0x510] sm:$0xff]
        %v1983 = vld [vmem:[%s1764 + $0x518] sm:$0xff]
        %v1984 = vld [vmem:[%s1764 + $0x520] sm:$0xff]
        %v1985 = vld [vmem:[%s1764 + $0x528] sm:$0xff]
        %v1986 = vld [vmem:[%s1764 + $0x530] sm:$0xff]
        %v1987 = vld [vmem:[%s1764 + $0x538] sm:$0xff]
        %v1988 = vld [vmem:[%s1764 + $0x540] sm:$0xff]
        %v1989 = vld [vmem:[%s1764 + $0x548] sm:$0xff]
        %v1990 = vld [vmem:[%s1764 + $0x550] sm:$0xff]
        %v1991 = vld [vmem:[%s1764 + $0x558] sm:$0xff]
        %v1992 = vld [vmem:[%s1764 + $0x560] sm:$0xff]
        %v1993 = vld [vmem:[%s1764 + $0x568] sm:$0xff]
        %v1994 = vld [vmem:[%s1764 + $0x570] sm:$0xff]
        %v1995 = vld [vmem:[%s1764 + $0x578] sm:$0xff]
        %v1996 = vld [vmem:[%s1764 + $0x580] sm:$0xff]
        %v1997 = vld [vmem:[%s1764 + $0x588] sm:$0xff]
        %v1998 = vld [vmem:[%s1764 + $0x590] sm:$0xff]
        %v1999 = vld [vmem:[%s1764 + $0x598] sm:$0xff]
        %v2000 = vld [vmem:[%s1764 + $0x5a0] sm:$0xff]
        %v2001 = vld [vmem:[%s1764 + $0x5a8] sm:$0xff]
        %v2002 = vld [vmem:[%s1764 + $0x5b0] sm:$0xff]
        %v2003 = vld [vmem:[%s1764 + $0x5b8] sm:$0xff]
        %v2004 = vld [vmem:[%s1764 + $0x5c0] sm:$0xff]
        %v2005 = vld [vmem:[%s1764 + $0x5c8] sm:$0xff]
        %v2006 = vld [vmem:[%s1764 + $0x5d0] sm:$0xff]
        %v2007 = vld [vmem:[%s1764 + $0x5d8] sm:$0xff]
        %v2008 = vld [vmem:[%s1764 + $0x5e0] sm:$0xff]
        %v2009 = vld [vmem:[%s1764 + $0x5e8] sm:$0xff]
        %v2010 = vld [vmem:[%s1764 + $0x5f0] sm:$0xff]
        %v2011 = vld [vmem:[%s1764 + $0x5f8] sm:$0xff]
        %v2012 = vld [vmem:[%s1764 + $0x600] sm:$0xff]
        %v2013 = vld [vmem:[%s1764 + $0x608] sm:$0xff]
        %v2014 = vld [vmem:[%s1764 + $0x610] sm:$0xff]
        %v2015 = vld [vmem:[%s1764 + $0x618] sm:$0xff]
        %v2016 = vld [vmem:[%s1764 + $0x620] sm:$0xff]
        %v2017 = vld [vmem:[%s1764 + $0x628] sm:$0xff]
        %v2018 = vld [vmem:[%s1764 + $0x630] sm:$0xff]
        %v2019 = vld [vmem:[%s1764 + $0x638] sm:$0xff]
        %v2020 = vld [vmem:[%s1764 + $0x640] sm:$0xff]
        %v2021 = vld [vmem:[%s1764 + $0x648] sm:$0xff]
        %v2022 = vld [vmem:[%s1764 + $0x650] sm:$0xff]
        %v2023 = vld [vmem:[%s1764 + $0x658] sm:$0xff]
        %v2024 = vld [vmem:[%s1764 + $0x660] sm:$0xff]
        %v2025 = vld [vmem:[%s1764 + $0x668] sm:$0xff]
        %v2026 = vld [vmem:[%s1764 + $0x670] sm:$0xff]
        %v2027 = vld [vmem:[%s1764 + $0x678] sm:$0xff]
        %v2028 = vld [vmem:[%s1764 + $0x680] sm:$0xff]
        %v2029 = vld [vmem:[%s1764 + $0x688] sm:$0xff]
        %v2030 = vld [vmem:[%s1764 + $0x690] sm:$0xff]
        %v2031 = vld [vmem:[%s1764 + $0x698] sm:$0xff]
        %v2032 = vld [vmem:[%s1764 + $0x6a0] sm:$0xff]
        %v2033 = vld [vmem:[%s1764 + $0x6a8] sm:$0xff]
        %v2034 = vld [vmem:[%s1764 + $0x6b0] sm:$0xff]
        %v2035 = vld [vmem:[%s1764 + $0x6b8] sm:$0xff]
        %v2036 = vld [vmem:[%s1764 + $0x6c0] sm:$0xff]
        %v2037 = vld [vmem:[%s1764 + $0x6c8] sm:$0xff]
        %v2038 = vld [vmem:[%s1764 + $0x6d0] sm:$0xff]
        %v2039 = vld [vmem:[%s1764 + $0x6d8] sm:$0xff]
        %v2040 = vld [vmem:[%s1764 + $0x6e0] sm:$0xff]
        %v2041 = vld [vmem:[%s1764 + $0x6e8] sm:$0xff]
        %v2042 = vld [vmem:[%s1764 + $0x6f0] sm:$0xff]
        %v2043 = vld [vmem:[%s1764 + $0x6f8] sm:$0xff]
        %v2044 = vld [vmem:[%s1764 + $0x700] sm:$0xff]
        %v2045 = vld [vmem:[%s1764 + $0x708] sm:$0xff]
        %v2046 = vld [vmem:[%s1764 + $0x710] sm:$0xff]
        %v2047 = vld [vmem:[%s1764 + $0x718] sm:$0xff]
        %v2048 = vld [vmem:[%s1764 + $0x720] sm:$0xff]
        %v2049 = vld [vmem:[%s1764 + $0x728] sm:$0xff]
        %v2050 = vld [vmem:[%s1764 + $0x730] sm:$0xff]
        %v2051 = vld [vmem:[%s1764 + $0x738] sm:$0xff]
        %v2052 = vld [vmem:[%s1764 + $0x740] sm:$0xff]
        %v2053 = vld [vmem:[%s1764 + $0x748] sm:$0xff]
        %v2054 = vld [vmem:[%s1764 + $0x750] sm:$0xff]
        %v2055 = vld [vmem:[%s1764 + $0x758] sm:$0xff]
        %v2056 = vld [vmem:[%s1764 + $0x760] sm:$0xff]
        %v2057 = vld [vmem:[%s1764 + $0x768] sm:$0xff]
        %v2058 = vld [vmem:[%s1764 + $0x770] sm:$0xff]
        %v2059 = vld [vmem:[%s1764 + $0x778] sm:$0xff]
        %v2060 = vld [vmem:[%s1764 + $0x780] sm:$0xff]
        %v2061 = vld [vmem:[%s1764 + $0x788] sm:$0xff]
        %v2062 = vld [vmem:[%s1764 + $0x790] sm:$0xff]
        %v2063 = vld [vmem:[%s1764 + $0x798] sm:$0xff]
        %v2064 = vld [vmem:[%s1764 + $0x7a0] sm:$0xff]
        %v2065 = vld [vmem:[%s1764 + $0x7a8] sm:$0xff]
        %v2066 = vld [vmem:[%s1764 + $0x7b0] sm:$0xff]
        %v2067 = vld [vmem:[%s1764 + $0x7b8] sm:$0xff]
        %v2068 = vld [vmem:[%s1764 + $0x7c0] sm:$0xff]
        %v2069 = vld [vmem:[%s1764 + $0x7c8] sm:$0xff]
        %v2070 = vld [vmem:[%s1764 + $0x7d0] sm:$0xff]
        %v2071 = vld [vmem:[%s1764 + $0x7d8] sm:$0xff]
        %v2072 = vld [vmem:[%s1764 + $0x7e0] sm:$0xff]
        %v2073 = vld [vmem:[%s1764 + $0x7e8] sm:$0xff]
        %v2074 = vld [vmem:[%s1764 + $0x7f0] sm:$0xff]
        %v2075 = vld [vmem:[%s1764 + $0x7f8] sm:$0xff]
        %v2076 = vld [vmem:[%s1764 + $0x800] sm:$0xff]
        %v2077 = vld [vmem:[%s1764 + $0x808] sm:$0xff]
        %v2078 = vld [vmem:[%s1764 + $0x810] sm:$0xff]
        %v2079 = vld [vmem:[%s1764 + $0x818] sm:$0xff]
        %v2080 = vld [vmem:[%s1764 + $0x820] sm:$0xff]
        %v2081 = vld [vmem:[%s1764 + $0x828] sm:$0xff]
        %v2082 = vld [vmem:[%s1764 + $0x830] sm:$0xff]
        %v2083 = vld [vmem:[%s1764 + $0x838] sm:$0xff]
        %v2084 = vld [vmem:[%s1764 + $0x840] sm:$0xff]
        %v2085 = vld [vmem:[%s1764 + $0x848] sm:$0xff]
        %v2086 = vld [vmem:[%s1764 + $0x850] sm:$0xff]
        %v2087 = vld [vmem:[%s1764 + $0x858] sm:$0xff]
        %v2088 = vld [vmem:[%s1764 + $0x860] sm:$0xff]
        %v2089 = vld [vmem:[%s1764 + $0x868] sm:$0xff]
        %v2090 = vld [vmem:[%s1764 + $0x870] sm:$0xff]
        %v2091 = vld [vmem:[%s1764 + $0x878] sm:$0xff]
        %v2092 = vld [vmem:[%s1764 + $0x880] sm:$0xff]
        %v2093 = vld [vmem:[%s1764 + $0x888] sm:$0xff]
        %v2094 = vld [vmem:[%s1764 + $0x890] sm:$0xff]
        %v2095 = vld [vmem:[%s1764 + $0x898] sm:$0xff]
        %v2096 = vld [vmem:[%s1764 + $0x8a0] sm:$0xff]
        %v2097 = vld [vmem:[%s1764 + $0x8a8] sm:$0xff]
        %v2098 = vld [vmem:[%s1764 + $0x8b0] sm:$0xff]
        %v2099 = vld [vmem:[%s1764 + $0x8b8] sm:$0xff]
        %v2100 = vld [vmem:[%s1764 + $0x8c0] sm:$0xff]
        %v2101 = vld [vmem:[%s1764 + $0x8c8] sm:$0xff]
        %v2102 = vld [vmem:[%s1764 + $0x8d0] sm:$0xff]
        %v2103 = vld [vmem:[%s1764 + $0x8d8] sm:$0xff]
        %v2104 = vld [vmem:[%s1764 + $0x8e0] sm:$0xff]
        %v2105 = vld [vmem:[%s1764 + $0x8e8] sm:$0xff]
        %v2106 = vld [vmem:[%s1764 + $0x8f0] sm:$0xff]
        %v2107 = vld [vmem:[%s1764 + $0x8f8] sm:$0xff]
        %v2108 = vld [vmem:[%s1764 + $0x900] sm:$0xff]
        %v2109 = vld [vmem:[%s1764 + $0x908] sm:$0xff]
        %v2110 = vld [vmem:[%s1764 + $0x910] sm:$0xff]
        %v2111 = vld [vmem:[%s1764 + $0x918] sm:$0xff]
        %v2112 = vld [vmem:[%s1764 + $0x920] sm:$0xff]
        %v2113 = vld [vmem:[%s1764 + $0x928] sm:$0xff]
        %v2114 = vld [vmem:[%s1764 + $0x930] sm:$0xff]
        %v2115 = vld [vmem:[%s1764 + $0x938] sm:$0xff]
        %v2116 = vld [vmem:[%s1764 + $0x940] sm:$0xff]
        %v2117 = vld [vmem:[%s1764 + $0x948] sm:$0xff]
        %v2118 = vld [vmem:[%s1764 + $0x950] sm:$0xff]
        %v2119 = vld [vmem:[%s1764 + $0x958] sm:$0xff]
        %v2120 = vld [vmem:[%s1764 + $0x960] sm:$0xff]
        %v2121 = vld [vmem:[%s1764 + $0x968] sm:$0xff]
        %v2122 = vld [vmem:[%s1764 + $0x970] sm:$0xff]
        %v2123 = vld [vmem:[%s1764 + $0x978] sm:$0xff]
        %v2124 = vld [vmem:[%s1764 + $0x980] sm:$0xff]
        %v2125 = vld [vmem:[%s1764 + $0x988] sm:$0xff]
        %v2126 = vld [vmem:[%s1764 + $0x990] sm:$0xff]
        %v2127 = vld [vmem:[%s1764 + $0x998] sm:$0xff]
        %v2128 = vld [vmem:[%s1764 + $0x9a0] sm:$0xff]
        %v2129 = vld [vmem:[%s1764 + $0x9a8] sm:$0xff]
        %v2130 = vld [vmem:[%s1764 + $0x9b0] sm:$0xff]
        %v2131 = vld [vmem:[%s1764 + $0x9b8] sm:$0xff]
        %v2132 = vld [vmem:[%s1764 + $0x9c0] sm:$0xff]
        %v2133 = vld [vmem:[%s1764 + $0x9c8] sm:$0xff]
        %v2134 = vld [vmem:[%s1764 + $0x9d0] sm:$0xff]
        %v2135 = vld [vmem:[%s1764 + $0x9d8] sm:$0xff]
        %v2136 = vld [vmem:[%s1764 + $0x9e0] sm:$0xff]
        %v2137 = vld [vmem:[%s1764 + $0x9e8] sm:$0xff]
        %v2138 = vld [vmem:[%s1764 + $0x9f0] sm:$0xff]
        %v2139 = vld [vmem:[%s1764 + $0x9f8] sm:$0xff]
        %v2140 = vld [vmem:[%s1764 + $0xa00] sm:$0xff]
        %v2141 = vld [vmem:[%s1764 + $0xa08] sm:$0xff]
        %v2142 = vld [vmem:[%s1764 + $0xa10] sm:$0xff]
        %v2143 = vld [vmem:[%s1764 + $0xa18] sm:$0xff]
        %v2144 = vld [vmem:[%s1764 + $0xa20] sm:$0xff]
        %v2145 = vld [vmem:[%s1764 + $0xa28] sm:$0xff]
        %v2146 = vld [vmem:[%s1764 + $0xa30] sm:$0xff]
        %v2147 = vld [vmem:[%s1764 + $0xa38] sm:$0xff]
        %v2148 = vld [vmem:[%s1764 + $0xa40] sm:$0xff]
        %v2149 = vld [vmem:[%s1764 + $0xa48] sm:$0xff]
        %v2150 = vld [vmem:[%s1764 + $0xa50] sm:$0xff]
        %v2151 = vld [vmem:[%s1764 + $0xa58] sm:$0xff]
        %v2152 = vld [vmem:[%s1764 + $0xa60] sm:$0xff]
        %v2153 = vld [vmem:[%s1764 + $0xa68] sm:$0xff]
        %v2154 = vld [vmem:[%s1764 + $0xa70] sm:$0xff]
        %v2155 = vld [vmem:[%s1764 + $0xa78] sm:$0xff]
        %v2156 = vld [vmem:[%s1764 + $0xa80] sm:$0xff]
        %v2157 = vld [vmem:[%s1764 + $0xa88] sm:$0xff]
        %v2158 = vld [vmem:[%s1764 + $0xa90] sm:$0xff]
        %v2159 = vld [vmem:[%s1764 + $0xa98] sm:$0xff]
        %v2160 = vld [vmem:[%s1764 + $0xaa0] sm:$0xff]
        %v2161 = vld [vmem:[%s1764 + $0xaa8] sm:$0xff]
        %v2162 = vld [vmem:[%s1764 + $0xab0] sm:$0xff]
        %v2163 = vld [vmem:[%s1764 + $0xab8] sm:$0xff]
        %v2164 = vld [vmem:[%s1764 + $0xac0] sm:$0xff]
        %v2165 = vld [vmem:[%s1764 + $0xac8] sm:$0xff]
        %v2166 = vld [vmem:[%s1764 + $0xad0] sm:$0xff]
        %v2167 = vld [vmem:[%s1764 + $0xad8] sm:$0xff]
        %v2168 = vld [vmem:[%s1764 + $0xae0] sm:$0xff]
        %v2169 = vld [vmem:[%s1764 + $0xae8] sm:$0xff]
        %v2170 = vld [vmem:[%s1764 + $0xaf0] sm:$0xff]
        %v2171 = vld [vmem:[%s1764 + $0xaf8] sm:$0xff]
        %v2172 = vld [vmem:[%s1764 + $0xb00] sm:$0xff]
        %v2173 = vld [vmem:[%s1764 + $0xb08] sm:$0xff]
        %v2174 = vld [vmem:[%s1764 + $0xb10] sm:$0xff]
        %v2175 = vld [vmem:[%s1764 + $0xb18] sm:$0xff]
        %v2176 = vld [vmem:[%s1764 + $0xb20] sm:$0xff]
        %v2177 = vld [vmem:[%s1764 + $0xb28] sm:$0xff]
        %v2178 = vld [vmem:[%s1764 + $0xb30] sm:$0xff]
        %v2179 = vld [vmem:[%s1764 + $0xb38] sm:$0xff]
        %v2180 = vld [vmem:[%s1764 + $0xb40] sm:$0xff]
        %v2181 = vld [vmem:[%s1764 + $0xb48] sm:$0xff]
        %v2182 = vld [vmem:[%s1764 + $0xb50] sm:$0xff]
        %v2183 = vld [vmem:[%s1764 + $0xb58] sm:$0xff]
        %v2184 = vld [vmem:[%s1764 + $0xb60] sm:$0xff]
        %v2185 = vld [vmem:[%s1764 + $0xb68] sm:$0xff]
        %v2186 = vld [vmem:[%s1764 + $0xb70] sm:$0xff]
        %v2187 = vld [vmem:[%s1764 + $0xb78] sm:$0xff]
        %v2188 = vld [vmem:[%s1764 + $0xb80] sm:$0xff]
        %v2189 = vld [vmem:[%s1764 + $0xb88] sm:$0xff]
        %v2190 = vld [vmem:[%s1764 + $0xb90] sm:$0xff]
        %v2191 = vld [vmem:[%s1764 + $0xb98] sm:$0xff]
        %v2192 = vld [vmem:[%s1764 + $0xba0] sm:$0xff]
        %v2193 = vld [vmem:[%s1764 + $0xba8] sm:$0xff]
        %v2194 = vld [vmem:[%s1764 + $0xbb0] sm:$0xff]
        %v2195 = vld [vmem:[%s1764 + $0xbb8] sm:$0xff]
        %v2196 = vld [vmem:[%s1764 + $0xbc0] sm:$0xff]
        %v2197 = vld [vmem:[%s1764 + $0xbc8] sm:$0xff]
        %v2198 = vld [vmem:[%s1764 + $0xbd0] sm:$0xff]
        %v2199 = vld [vmem:[%s1764 + $0xbd8] sm:$0xff]
        %v2200 = vld [vmem:[%s1764 + $0xbe0] sm:$0xff]
        %v2201 = vld [vmem:[%s1764 + $0xbe8] sm:$0xff]
        %v2202 = vld [vmem:[%s1764 + $0xbf0] sm:$0xff]
        %v2203 = vld [vmem:[%s1764 + $0xbf8] sm:$0xff]
        %v2204 = vld [vmem:[%s1764 + $0xc00] sm:$0xff]
        %v2205 = vld [vmem:[%s1764 + $0xc08] sm:$0xff]
        %v2206 = vld [vmem:[%s1764 + $0xc10] sm:$0xff]
        %v2207 = vld [vmem:[%s1764 + $0xc18] sm:$0xff]
        %v2208 = vld [vmem:[%s1764 + $0xc20] sm:$0xff]
        %v2209 = vld [vmem:[%s1764 + $0xc28] sm:$0xff]
        %v2210 = vld [vmem:[%s1764 + $0xc30] sm:$0xff]
        %v2211 = vld [vmem:[%s1764 + $0xc38] sm:$0xff]
        %v2212 = vld [vmem:[%s1764 + $0xc40] sm:$0xff]
        %v2213 = vld [vmem:[%s1764 + $0xc48] sm:$0xff]
        %v2214 = vld [vmem:[%s1764 + $0xc50] sm:$0xff]
        %v2215 = vld [vmem:[%s1764 + $0xc58] sm:$0xff]
        %v2216 = vld [vmem:[%s1764 + $0xc60] sm:$0xff]
        %v2217 = vld [vmem:[%s1764 + $0xc68] sm:$0xff]
        %v2218 = vld [vmem:[%s1764 + $0xc70] sm:$0xff]
        %v2219 = vld [vmem:[%s1764 + $0xc78] sm:$0xff]
        %v2220 = vld [vmem:[%s1764 + $0xc80] sm:$0xff]
        %v2221 = vld [vmem:[%s1764 + $0xc88] sm:$0xff]
        %v2222 = vld [vmem:[%s1764 + $0xc90] sm:$0xff]
        %v2223 = vld [vmem:[%s1764 + $0xc98] sm:$0xff]
        %v2224 = vld [vmem:[%s1764 + $0xca0] sm:$0xff]
        %v2225 = vld [vmem:[%s1764 + $0xca8] sm:$0xff]
        %v2226 = vld [vmem:[%s1764 + $0xcb0] sm:$0xff]
        %v2227 = vld [vmem:[%s1764 + $0xcb8] sm:$0xff]
        %v2228 = vld [vmem:[%s1764 + $0xcc0] sm:$0xff]
        %v2229 = vld [vmem:[%s1764 + $0xcc8] sm:$0xff]
        %v2230 = vld [vmem:[%s1764 + $0xcd0] sm:$0xff]
        %v2231 = vld [vmem:[%s1764 + $0xcd8] sm:$0xff]
        %v2232 = vld [vmem:[%s1764 + $0xce0] sm:$0xff]
        %v2233 = vld [vmem:[%s1764 + $0xce8] sm:$0xff]
        %v2234 = vld [vmem:[%s1764 + $0xcf0] sm:$0xff]
        %v2235 = vld [vmem:[%s1764 + $0xcf8] sm:$0xff]
        %v2236 = vld [vmem:[%s1764 + $0xd00] sm:$0xff]
        %v2237 = vld [vmem:[%s1764 + $0xd08] sm:$0xff]
        %v2238 = vld [vmem:[%s1764 + $0xd10] sm:$0xff]
        %v2239 = vld [vmem:[%s1764 + $0xd18] sm:$0xff]
        %v2240 = vld [vmem:[%s1764 + $0xd20] sm:$0xff]
        %v2241 = vld [vmem:[%s1764 + $0xd28] sm:$0xff]
        %v2242 = vld [vmem:[%s1764 + $0xd30] sm:$0xff]
        %v2243 = vld [vmem:[%s1764 + $0xd38] sm:$0xff]
        %v2244 = vld [vmem:[%s1764 + $0xd40] sm:$0xff]
        %v2245 = vld [vmem:[%s1764 + $0xd48] sm:$0xff]
        %v2246 = vld [vmem:[%s1764 + $0xd50] sm:$0xff]
        %v2247 = vld [vmem:[%s1764 + $0xd58] sm:$0xff]
        %v2248 = vld [vmem:[%s1764 + $0xd60] sm:$0xff]
        %v2249 = vld [vmem:[%s1764 + $0xd68] sm:$0xff]
        %v2250 = vld [vmem:[%s1764 + $0xd70] sm:$0xff]
        %v2251 = vld [vmem:[%s1764 + $0xd78] sm:$0xff]
        %v2252 = vld [vmem:[%s1764 + $0xd80] sm:$0xff]
        %v2253 = vld [vmem:[%s1764 + $0xd88] sm:$0xff]
        %v2254 = vld [vmem:[%s1764 + $0xd90] sm:$0xff]
        %v2255 = vld [vmem:[%s1764 + $0xd98] sm:$0xff]
        %v2256 = vld [vmem:[%s1764 + $0xda0] sm:$0xff]
        %v2257 = vld [vmem:[%s1764 + $0xda8] sm:$0xff]
        %v2258 = vld [vmem:[%s1764 + $0xdb0] sm:$0xff]
        %v2259 = vld [vmem:[%s1764 + $0xdb8] sm:$0xff]
        %v2260 = vld [vmem:[%s1764 + $0xdc0] sm:$0xff]
        %v2261 = vld [vmem:[%s1764 + $0xdc8] sm:$0xff]
        %v2262 = vld [vmem:[%s1764 + $0xdd0] sm:$0xff]
        %v2263 = vld [vmem:[%s1764 + $0xdd8] sm:$0xff]
        %v2264 = vld [vmem:[%s1764 + $0xde0] sm:$0xff]
        %v2265 = vld [vmem:[%s1764 + $0xde8] sm:$0xff]
        %v2266 = vld [vmem:[%s1764 + $0xdf0] sm:$0xff]
        %v2267 = vld [vmem:[%s1764 + $0xdf8] sm:$0xff]
        %v2268 = vld [vmem:[%s1764 + $0xe00] sm:$0xff]
        %v2269 = vld [vmem:[%s1764 + $0xe08] sm:$0xff]
        %v2270 = vld [vmem:[%s1764 + $0xe10] sm:$0xff]
        %v2271 = vld [vmem:[%s1764 + $0xe18] sm:$0xff]
        %v2272 = vld [vmem:[%s1764 + $0xe20] sm:$0xff]
        %v2273 = vld [vmem:[%s1764 + $0xe28] sm:$0xff]
        %v2274 = vld [vmem:[%s1764 + $0xe30] sm:$0xff]
        %v2275 = vld [vmem:[%s1764 + $0xe38] sm:$0xff]
        %v2276 = vld [vmem:[%s1764 + $0xe40] sm:$0xff]
        %v2277 = vld [vmem:[%s1764 + $0xe48] sm:$0xff]
        %v2278 = vld [vmem:[%s1764 + $0xe50] sm:$0xff]
        %v2279 = vld [vmem:[%s1764 + $0xe58] sm:$0xff]
        %v2280 = vld [vmem:[%s1764 + $0xe60] sm:$0xff]
        %v2281 = vld [vmem:[%s1764 + $0xe68] sm:$0xff]
        %v2282 = vld [vmem:[%s1764 + $0xe70] sm:$0xff]
        %v2283 = vld [vmem:[%s1764 + $0xe78] sm:$0xff]
        %v2284 = vld [vmem:[%s1764 + $0xe80] sm:$0xff]
        %v2285 = vld [vmem:[%s1764 + $0xe88] sm:$0xff]
        %v2286 = vld [vmem:[%s1764 + $0xe90] sm:$0xff]
        %v2287 = vld [vmem:[%s1764 + $0xe98] sm:$0xff]
        %v2288 = vld [vmem:[%s1764 + $0xea0] sm:$0xff]
        %v2289 = vld [vmem:[%s1764 + $0xea8] sm:$0xff]
        %v2290 = vld [vmem:[%s1764 + $0xeb0] sm:$0xff]
        %v2291 = vld [vmem:[%s1764 + $0xeb8] sm:$0xff]
        %v2292 = vld [vmem:[%s1764 + $0xec0] sm:$0xff]
        %v2293 = vld [vmem:[%s1764 + $0xec8] sm:$0xff]
        %v2294 = vld [vmem:[%s1764 + $0xed0] sm:$0xff]
        %v2295 = vld [vmem:[%s1764 + $0xed8] sm:$0xff]
        %v2296 = vld [vmem:[%s1764 + $0xee0] sm:$0xff]
        %v2297 = vld [vmem:[%s1764 + $0xee8] sm:$0xff]
        %v2298 = vld [vmem:[%s1764 + $0xef0] sm:$0xff]
        %v2299 = vld [vmem:[%s1764 + $0xef8] sm:$0xff]
        %v2300 = vld [vmem:[%s1764 + $0xf00] sm:$0xff]
        %v2301 = vld [vmem:[%s1764 + $0xf08] sm:$0xff]
        %v2302 = vld [vmem:[%s1764 + $0xf10] sm:$0xff]
        %v2303 = vld [vmem:[%s1764 + $0xf18] sm:$0xff]
        %v2304 = vld [vmem:[%s1764 + $0xf20] sm:$0xff]
        %v2305 = vld [vmem:[%s1764 + $0xf28] sm:$0xff]
        %v2306 = vld [vmem:[%s1764 + $0xf30] sm:$0xff]
        %v2307 = vld [vmem:[%s1764 + $0xf38] sm:$0xff]
        %v2308 = vld [vmem:[%s1764 + $0xf40] sm:$0xff]
        %v2309 = vld [vmem:[%s1764 + $0xf48] sm:$0xff]
        %v2310 = vld [vmem:[%s1764 + $0xf50] sm:$0xff]
        %v2311 = vld [vmem:[%s1764 + $0xf58] sm:$0xff]
        %v2312 = vld [vmem:[%s1764 + $0xf60] sm:$0xff]
        %v2313 = vld [vmem:[%s1764 + $0xf68] sm:$0xff]
        %v2314 = vld [vmem:[%s1764 + $0xf70] sm:$0xff]
        %v2315 = vld [vmem:[%s1764 + $0xf78] sm:$0xff]
        %v2316 = vld [vmem:[%s1764 + $0xf80] sm:$0xff]
        %v2317 = vld [vmem:[%s1764 + $0xf88] sm:$0xff]
        %v2318 = vld [vmem:[%s1764 + $0xf90] sm:$0xff]
        %v2319 = vld [vmem:[%s1764 + $0xf98] sm:$0xff]
        %v2320 = vld [vmem:[%s1764 + $0xfa0] sm:$0xff]
        %v2321 = vld [vmem:[%s1764 + $0xfa8] sm:$0xff]
        %v2322 = vld [vmem:[%s1764 + $0xfb0] sm:$0xff]
        %v2323 = vld [vmem:[%s1764 + $0xfb8] sm:$0xff]
        %v2324 = vld [vmem:[%s1764 + $0xfc0] sm:$0xff]
        %v2325 = vld [vmem:[%s1764 + $0xfc8] sm:$0xff]
        %v2326 = vld [vmem:[%s1764 + $0xfd0] sm:$0xff]
        %v2327 = vld [vmem:[%s1764 + $0xfd8] sm:$0xff]
        %v2328 = vld [vmem:[%s1764 + $0xfe0] sm:$0xff]
        %v2329 = vld [vmem:[%s1764 + $0xfe8] sm:$0xff]
        %v2330 = vld [vmem:[%s1764 + $0xff0] sm:$0xff]
        %v2331 = vld [vmem:[%s1764 + $0xff8] sm:$0xff]
        %v2332 = vld [vmem:[%s1764 + $0x1000] sm:$0xff]
        %v2333 = vld [vmem:[%s1764 + $0x1008] sm:$0xff]
        %v2334 = vld [vmem:[%s1764 + $0x1010] sm:$0xff]
        %v2335 = vld [vmem:[%s1764 + $0x1018] sm:$0xff]
        %v2336 = vld [vmem:[%s1764 + $0x1020] sm:$0xff]
        %v2337 = vld [vmem:[%s1764 + $0x1028] sm:$0xff]
        %v2338 = vld [vmem:[%s1764 + $0x1030] sm:$0xff]
        %v2339 = vld [vmem:[%s1764 + $0x1038] sm:$0xff]
        %v2340 = vld [vmem:[%s1764 + $0x1040] sm:$0xff]
        %v2341 = vld [vmem:[%s1764 + $0x1048] sm:$0xff]
        %v2342 = vld [vmem:[%s1764 + $0x1050] sm:$0xff]
        %v2343 = vld [vmem:[%s1764 + $0x1058] sm:$0xff]
        %v2344 = vld [vmem:[%s1764 + $0x1060] sm:$0xff]
        %v2345 = vld [vmem:[%s1764 + $0x1068] sm:$0xff]
        %v2346 = vld [vmem:[%s1764 + $0x1070] sm:$0xff]
        %v2347 = vld [vmem:[%s1764 + $0x1078] sm:$0xff]
        %v2348 = vld [vmem:[%s1764 + $0x1080] sm:$0xff]
        %v2349 = vld [vmem:[%s1764 + $0x1088] sm:$0xff]
        %v2350 = vld [vmem:[%s1764 + $0x1090] sm:$0xff]
        %v2351 = vld [vmem:[%s1764 + $0x1098] sm:$0xff]
        %v2352 = vld [vmem:[%s1764 + $0x10a0] sm:$0xff]
        %v2353 = vld [vmem:[%s1764 + $0x10a8] sm:$0xff]
        %v2354 = vld [vmem:[%s1764 + $0x10b0] sm:$0xff]
        %v2355 = vld [vmem:[%s1764 + $0x10b8] sm:$0xff]
        %v2356 = vld [vmem:[%s1764 + $0x10c0] sm:$0xff]
        %v2357 = vld [vmem:[%s1764 + $0x10c8] sm:$0xff]
        %v2358 = vld [vmem:[%s1764 + $0x10d0] sm:$0xff]
        %v2359 = vld [vmem:[%s1764 + $0x10d8] sm:$0xff]
        %v2360 = vld [vmem:[%s1764 + $0x10e0] sm:$0xff]
        %v2361 = vld [vmem:[%s1764 + $0x10e8] sm:$0xff]
        %v2362 = vld [vmem:[%s1764 + $0x10f0] sm:$0xff]
        %v2363 = vld [vmem:[%s1764 + $0x10f8] sm:$0xff]
        %v2364 = vld [vmem:[%s1764 + $0x1100] sm:$0xff]
        %v2365 = vld [vmem:[%s1764 + $0x1108] sm:$0xff]
        %v2366 = vld [vmem:[%s1764 + $0x1110] sm:$0xff]
        %v2367 = vld [vmem:[%s1764 + $0x1118] sm:$0xff]
        %v2368 = vld [vmem:[%s1764 + $0x1120] sm:$0xff]
        %v2369 = vld [vmem:[%s1764 + $0x1128] sm:$0xff]
        %v2370 = vld [vmem:[%s1764 + $0x1130] sm:$0xff]
        %v2371 = vld [vmem:[%s1764 + $0x1138] sm:$0xff]
        %v2372 = vld [vmem:[%s1764 + $0x1140] sm:$0xff]
        %v2373 = vld [vmem:[%s1764 + $0x1148] sm:$0xff]
        %v2374 = vld [vmem:[%s1764 + $0x1150] sm:$0xff]
        %v2375 = vld [vmem:[%s1764 + $0x1158] sm:$0xff]
        %v2376 = vld [vmem:[%s1764 + $0x1160] sm:$0xff]
        %v2377 = vld [vmem:[%s1764 + $0x1168] sm:$0xff]
        %v2378 = vld [vmem:[%s1764 + $0x1170] sm:$0xff]
        %v2379 = vld [vmem:[%s1764 + $0x1178] sm:$0xff]
        %v2380 = vld [vmem:[%s1764 + $0x1180] sm:$0xff]
        %v2381 = vld [vmem:[%s1764 + $0x1188] sm:$0xff]
        %v2382 = vld [vmem:[%s1764 + $0x1190] sm:$0xff]
        %v2383 = vld [vmem:[%s1764 + $0x1198] sm:$0xff]
        %v2384 = vld [vmem:[%s1764 + $0x11a0] sm:$0xff]
        %v2385 = vld [vmem:[%s1764 + $0x11a8] sm:$0xff]
        %v2386 = vld [vmem:[%s1764 + $0x11b0] sm:$0xff]
        %v2387 = vld [vmem:[%s1764 + $0x11b8] sm:$0xff]
        %v2388 = vld [vmem:[%s1764 + $0x11c0] sm:$0xff]
        %v2389 = vld [vmem:[%s1764 + $0x11c8] sm:$0xff]
        %v2390 = vld [vmem:[%s1764 + $0x11d0] sm:$0xff]
        %v2391 = vld [vmem:[%s1764 + $0x11d8] sm:$0xff]
        %v2392 = vld [vmem:[%s1764 + $0x11e0] sm:$0xff]
        %v2393 = vld [vmem:[%s1764 + $0x11e8] sm:$0xff]
        %v2394 = vld [vmem:[%s1764 + $0x11f0] sm:$0xff]
        %v2395 = vld [vmem:[%s1764 + $0x11f8] sm:$0xff]
        %v2396 = vld [vmem:[%s1764 + $0x1200] sm:$0xff]
        %v2397 = vld [vmem:[%s1764 + $0x1208] sm:$0xff]
        %v2398 = vld [vmem:[%s1764 + $0x1210] sm:$0xff]
        %v2399 = vld [vmem:[%s1764 + $0x1218] sm:$0xff]
        %v2400 = vld [vmem:[%s1764 + $0x1220] sm:$0xff]
        %v2401 = vld [vmem:[%s1764 + $0x1228] sm:$0xff]
        %v2402 = vld [vmem:[%s1764 + $0x1230] sm:$0xff]
        %v2403 = vld [vmem:[%s1764 + $0x1238] sm:$0xff]
        %v2404 = vld [vmem:[%s1764 + $0x1240] sm:$0xff]
        %v2405 = vld [vmem:[%s1764 + $0x1248] sm:$0xff]
        %v2406 = vld [vmem:[%s1764 + $0x1250] sm:$0xff]
        %v2407 = vld [vmem:[%s1764 + $0x1258] sm:$0xff]
        %v2408 = vld [vmem:[%s1764 + $0x1260] sm:$0xff]
        %v2409 = vld [vmem:[%s1764 + $0x1268] sm:$0xff]
        %v2410 = vld [vmem:[%s1764 + $0x1270] sm:$0xff]
        %v2411 = vld [vmem:[%s1764 + $0x1278] sm:$0xff]
        %v2412 = vld [vmem:[%s1764 + $0x1280] sm:$0xff]
        %v2413 = vld [vmem:[%s1764 + $0x1288] sm:$0xff]
        %v2414 = vld [vmem:[%s1764 + $0x1290] sm:$0xff]
        %v2415 = vld [vmem:[%s1764 + $0x1298] sm:$0xff]
        %v2416 = vld [vmem:[%s1764 + $0x12a0] sm:$0xff]
        %v2417 = vld [vmem:[%s1764 + $0x12a8] sm:$0xff]
        %v2418 = vld [vmem:[%s1764 + $0x12b0] sm:$0xff]
        %v2419 = vld [vmem:[%s1764 + $0x12b8] sm:$0xff]
        %v2420 = vld [vmem:[%s1764 + $0x12c0] sm:$0xff]
        %v2421 = vld [vmem:[%s1764 + $0x12c8] sm:$0xff]
        %v2422 = vld [vmem:[%s1764 + $0x12d0] sm:$0xff]
        %v2423 = vld [vmem:[%s1764 + $0x12d8] sm:$0xff]
        %v2424 = vld [vmem:[%s1764 + $0x12e0] sm:$0xff]
        %v2425 = vld [vmem:[%s1764 + $0x12e8] sm:$0xff]
        %v2426 = vld [vmem:[%s1764 + $0x12f0] sm:$0xff]
        %v2427 = vld [vmem:[%s1764 + $0x12f8] sm:$0xff]
        %v2428 = vld [vmem:[%s1764 + $0x1300] sm:$0xff]
        %v2429 = vld [vmem:[%s1764 + $0x1308] sm:$0xff]
        %v2430 = vld [vmem:[%s1764 + $0x1310] sm:$0xff]
        %v2431 = vld [vmem:[%s1764 + $0x1318] sm:$0xff]
        %v2432 = vld [vmem:[%s1764 + $0x1320] sm:$0xff]
        %v2433 = vld [vmem:[%s1764 + $0x1328] sm:$0xff]
        %v2434 = vld [vmem:[%s1764 + $0x1330] sm:$0xff]
        %v2435 = vld [vmem:[%s1764 + $0x1338] sm:$0xff]
        %v2436 = vld [vmem:[%s1764 + $0x1340] sm:$0xff]
        %v2437 = vld [vmem:[%s1764 + $0x1348] sm:$0xff]
        %v2438 = vld [vmem:[%s1764 + $0x1350] sm:$0xff]
        %v2439 = vld [vmem:[%s1764 + $0x1358] sm:$0xff]
        %v2440 = vld [vmem:[%s1764 + $0x1360] sm:$0xff]
        %v2441 = vld [vmem:[%s1764 + $0x1368] sm:$0xff]
        %v2442 = vld [vmem:[%s1764 + $0x1370] sm:$0xff]
        %v2443 = vld [vmem:[%s1764 + $0x1378] sm:$0xff]
        %v2444 = vld [vmem:[%s1764 + $0x1380] sm:$0xff]
        %v2445 = vld [vmem:[%s1764 + $0x1388] sm:$0xff]
        %v2446 = vld [vmem:[%s1764 + $0x1390] sm:$0xff]
        %v2447 = vld [vmem:[%s1764 + $0x1398] sm:$0xff]
        %v2448 = vld [vmem:[%s1764 + $0x13a0] sm:$0xff]
        %v2449 = vld [vmem:[%s1764 + $0x13a8] sm:$0xff]
        %v2450 = vld [vmem:[%s1764 + $0x13b0] sm:$0xff]
        %v2451 = vld [vmem:[%s1764 + $0x13b8] sm:$0xff]
        %v2452 = vld [vmem:[%s1764 + $0x13c0] sm:$0xff]
        %v2453 = vld [vmem:[%s1764 + $0x13c8] sm:$0xff]
        %v2454 = vld [vmem:[%s1764 + $0x13d0] sm:$0xff]
        %v2455 = vld [vmem:[%s1764 + $0x13d8] sm:$0xff]
        %v2456 = vld [vmem:[%s1764 + $0x13e0] sm:$0xff]
        %v2457 = vld [vmem:[%s1764 + $0x13e8] sm:$0xff]
        %v2458 = vld [vmem:[%s1764 + $0x13f0] sm:$0xff]
        %v2459 = vld [vmem:[%s1764 + $0x13f8] sm:$0xff]
        %v2460 = vld [vmem:[%s1764 + $0x1400] sm:$0xff]
        %v2461 = vld [vmem:[%s1764 + $0x1408] sm:$0xff]
        %v2462 = vld [vmem:[%s1764 + $0x1410] sm:$0xff]
        %v2463 = vld [vmem:[%s1764 + $0x1418] sm:$0xff]
        %v2464 = vld [vmem:[%s1764 + $0x1420] sm:$0xff]
        %v2465 = vld [vmem:[%s1764 + $0x1428] sm:$0xff]
        %v2466 = vld [vmem:[%s1764 + $0x1430] sm:$0xff]
        %v2467 = vld [vmem:[%s1764 + $0x1438] sm:$0xff]
        %v2468 = vld [vmem:[%s1764 + $0x1440] sm:$0xff]
        %v2469 = vld [vmem:[%s1764 + $0x1448] sm:$0xff]
        %v2470 = vld [vmem:[%s1764 + $0x1450] sm:$0xff]
        %v2471 = vld [vmem:[%s1764 + $0x1458] sm:$0xff]
        %v2472 = vld [vmem:[%s1764 + $0x1460] sm:$0xff]
        %v2473 = vld [vmem:[%s1764 + $0x1468] sm:$0xff]
        %v2474 = vld [vmem:[%s1764 + $0x1470] sm:$0xff]
        %v2475 = vld [vmem:[%s1764 + $0x1478] sm:$0xff]
        %v2476 = vld [vmem:[%s1764 + $0x1480] sm:$0xff]
        %v2477 = vld [vmem:[%s1764 + $0x1488] sm:$0xff]
        %v2478 = vld [vmem:[%s1764 + $0x1490] sm:$0xff]
        %v2479 = vld [vmem:[%s1764 + $0x1498] sm:$0xff]
        %v2480 = vld [vmem:[%s1764 + $0x14a0] sm:$0xff]
        %v2481 = vld [vmem:[%s1764 + $0x14a8] sm:$0xff]
        %v2482 = vld [vmem:[%s1764 + $0x14b0] sm:$0xff]
        %v2483 = vld [vmem:[%s1764 + $0x14b8] sm:$0xff]
        %v2484 = vld [vmem:[%s1764 + $0x14c0] sm:$0xff]
        %v2485 = vld [vmem:[%s1764 + $0x14c8] sm:$0xff]
        %v2486 = vld [vmem:[%s1764 + $0x14d0] sm:$0xff]
        %v2487 = vld [vmem:[%s1764 + $0x14d8] sm:$0xff]
        %v2488 = vld [vmem:[%s1764 + $0x14e0] sm:$0xff]
        %v2489 = vld [vmem:[%s1764 + $0x14e8] sm:$0xff]
        %v2490 = vld [vmem:[%s1764 + $0x14f0] sm:$0xff]
        %v2491 = vld [vmem:[%s1764 + $0x14f8] sm:$0xff]
        %v2492 = vld [vmem:[%s1764 + $0x1500] sm:$0xff]
        %v2493 = vld [vmem:[%s1764 + $0x1508] sm:$0xff]
        %v2494 = vld [vmem:[%s1764 + $0x1510] sm:$0xff]
        %v2495 = vld [vmem:[%s1764 + $0x1518] sm:$0xff]
        %v2496 = vld [vmem:[%s1764 + $0x1520] sm:$0xff]
        %v2497 = vld [vmem:[%s1764 + $0x1528] sm:$0xff]
        %v2498 = vld [vmem:[%s1764 + $0x1530] sm:$0xff]
        %v2499 = vld [vmem:[%s1764 + $0x1538] sm:$0xff]
        %v2500 = vld [vmem:[%s1764 + $0x1540] sm:$0xff]
        %v2501 = vld [vmem:[%s1764 + $0x1548] sm:$0xff]
        %v2502 = vld [vmem:[%s1764 + $0x1550] sm:$0xff]
        %v2503 = vld [vmem:[%s1764 + $0x1558] sm:$0xff]
        %v2504 = vld [vmem:[%s1764 + $0x1560] sm:$0xff]
        %v2505 = vld [vmem:[%s1764 + $0x1568] sm:$0xff]
        %v2506 = vld [vmem:[%s1764 + $0x1570] sm:$0xff]
        %v2507 = vld [vmem:[%s1764 + $0x1578] sm:$0xff]
        %v2508 = vld [vmem:[%s1764 + $0x1580] sm:$0xff]
        %v2509 = vld [vmem:[%s1764 + $0x1588] sm:$0xff]
        %v2510 = vld [vmem:[%s1764 + $0x1590] sm:$0xff]
        %v2511 = vld [vmem:[%s1764 + $0x1598] sm:$0xff]
        %v2512 = vld [vmem:[%s1764 + $0x15a0] sm:$0xff]
        %v2513 = vld [vmem:[%s1764 + $0x15a8] sm:$0xff]
        %v2514 = vld [vmem:[%s1764 + $0x15b0] sm:$0xff]
        %v2515 = vld [vmem:[%s1764 + $0x15b8] sm:$0xff]
        %v2516 = vld [vmem:[%s1764 + $0x15c0] sm:$0xff]
        %v2517 = vld [vmem:[%s1764 + $0x15c8] sm:$0xff]
        %v2518 = vld [vmem:[%s1764 + $0x15d0] sm:$0xff]
        %v2519 = vld [vmem:[%s1764 + $0x15d8] sm:$0xff]
        %v2520 = vld [vmem:[%s1764 + $0x15e0] sm:$0xff]
        %v2521 = vld [vmem:[%s1764 + $0x15e8] sm:$0xff]
        %v2522 = vld [vmem:[%s1764 + $0x15f0] sm:$0xff]
        %v2523 = vld [vmem:[%s1764 + $0x15f8] sm:$0xff]
        %v2524 = vld [vmem:[%s1764 + $0x1600] sm:$0xff]
        %v2525 = vld [vmem:[%s1764 + $0x1608] sm:$0xff]
        %v2526 = vld [vmem:[%s1764 + $0x1610] sm:$0xff]
        %v2527 = vld [vmem:[%s1764 + $0x1618] sm:$0xff]
        %v2528 = vld [vmem:[%s1764 + $0x1620] sm:$0xff]
        %v2529 = vld [vmem:[%s1764 + $0x1628] sm:$0xff]
        %v2530 = vld [vmem:[%s1764 + $0x1630] sm:$0xff]
        %v2531 = vld [vmem:[%s1764 + $0x1638] sm:$0xff]
        %v2532 = vld [vmem:[%s1764 + $0x1640] sm:$0xff]
        %v2533 = vld [vmem:[%s1764 + $0x1648] sm:$0xff]
        %v2534 = vld [vmem:[%s1764 + $0x1650] sm:$0xff]
        %v2535 = vld [vmem:[%s1764 + $0x1658] sm:$0xff]
        %v2536 = vld [vmem:[%s1764 + $0x1660] sm:$0xff]
        %v2537 = vld [vmem:[%s1764 + $0x1668] sm:$0xff]
        %v2538 = vld [vmem:[%s1764 + $0x1670] sm:$0xff]
        %v2539 = vld [vmem:[%s1764 + $0x1678] sm:$0xff]
        %v2540 = vld [vmem:[%s1764 + $0x1680] sm:$0xff]
        %v2541 = vld [vmem:[%s1764 + $0x1688] sm:$0xff]
        %v2542 = vld [vmem:[%s1764 + $0x1690] sm:$0xff]
        %v2543 = vld [vmem:[%s1764 + $0x1698] sm:$0xff]
        %v2544 = vld [vmem:[%s1764 + $0x16a0] sm:$0xff]
        %v2545 = vld [vmem:[%s1764 + $0x16a8] sm:$0xff]
        %v2546 = vld [vmem:[%s1764 + $0x16b0] sm:$0xff]
        %v2547 = vld [vmem:[%s1764 + $0x16b8] sm:$0xff]
        %v2548 = vld [vmem:[%s1764 + $0x16c0] sm:$0xff]
        %v2549 = vld [vmem:[%s1764 + $0x16c8] sm:$0xff]
        %v2550 = vld [vmem:[%s1764 + $0x16d0] sm:$0xff]
        %v2551 = vld [vmem:[%s1764 + $0x16d8] sm:$0xff]
        %v2552 = vld [vmem:[%s1764 + $0x16e0] sm:$0xff]
        %v2553 = vld [vmem:[%s1764 + $0x16e8] sm:$0xff]
        %v2554 = vld [vmem:[%s1764 + $0x16f0] sm:$0xff]
        %v2555 = vld [vmem:[%s1764 + $0x16f8] sm:$0xff]
        %v2556 = vld [vmem:[%s1764 + $0x1700] sm:$0xff]
        %v2557 = vld [vmem:[%s1764 + $0x1708] sm:$0xff]
        %v2558 = vld [vmem:[%s1764 + $0x1710] sm:$0xff]
        %v2559 = vld [vmem:[%s1764 + $0x1718] sm:$0xff]
        %v2560 = vld [vmem:[%s1764 + $0x1720] sm:$0xff]
        %v2561 = vld [vmem:[%s1764 + $0x1728] sm:$0xff]
        %v2562 = vld [vmem:[%s1764 + $0x1730] sm:$0xff]
        %v2563 = vld [vmem:[%s1764 + $0x1738] sm:$0xff]
        %v2564 = vld [vmem:[%s1764 + $0x1740] sm:$0xff]
        %v2565 = vld [vmem:[%s1764 + $0x1748] sm:$0xff]
        %v2566 = vld [vmem:[%s1764 + $0x1750] sm:$0xff]
        %v2567 = vld [vmem:[%s1764 + $0x1758] sm:$0xff]
        %v2568 = vld [vmem:[%s1764 + $0x1760] sm:$0xff]
        %v2569 = vld [vmem:[%s1764 + $0x1768] sm:$0xff]
        %v2570 = vld [vmem:[%s1764 + $0x1770] sm:$0xff]
        %v2571 = vld [vmem:[%s1764 + $0x1778] sm:$0xff]
        %v2572 = vld [vmem:[%s1764 + $0x1780] sm:$0xff]
        %v2573 = vld [vmem:[%s1764 + $0x1788] sm:$0xff]
        %v2574 = vld [vmem:[%s1764 + $0x1790] sm:$0xff]
        %v2575 = vld [vmem:[%s1764 + $0x1798] sm:$0xff]
        %v2576 = vld [vmem:[%s1764 + $0x17a0] sm:$0xff]
        %v2577 = vld [vmem:[%s1764 + $0x17a8] sm:$0xff]
        %v2578 = vld [vmem:[%s1764 + $0x17b0] sm:$0xff]
        %v2579 = vld [vmem:[%s1764 + $0x17b8] sm:$0xff]
        %v2580 = vld [vmem:[%s1764 + $0x17c0] sm:$0xff]
        %v2581 = vld [vmem:[%s1764 + $0x17c8] sm:$0xff]
        %v2582 = vld [vmem:[%s1764 + $0x17d0] sm:$0xff]
        %v2583 = vld [vmem:[%s1764 + $0x17d8] sm:$0xff]
        %v2584 = vld [vmem:[%s1764 + $0x17e0] sm:$0xff]
        %v2585 = vld [vmem:[%s1764 + $0x17e8] sm:$0xff]
        %v2586 = vld [vmem:[%s1764 + $0x17f0] sm:$0xff]
        %v2587 = vld [vmem:[%s1764 + $0x17f8] sm:$0xff]
        %v2588 = vld [vmem:[%s1764 + $0x1800] sm:$0xff]
        %v2589 = vld [vmem:[%s1764 + $0x1808] sm:$0xff]
        %v2590 = vld [vmem:[%s1764 + $0x1810] sm:$0xff]
        %v2591 = vld [vmem:[%s1764 + $0x1818] sm:$0xff]
        %v2592 = vld [vmem:[%s1764 + $0x1820] sm:$0xff]
        %v2593 = vld [vmem:[%s1764 + $0x1828] sm:$0xff]
        %v2594 = vld [vmem:[%s1764 + $0x1830] sm:$0xff]
        %v2595 = vld [vmem:[%s1764 + $0x1838] sm:$0xff]
        %v2596 = vld [vmem:[%s1764 + $0x1840] sm:$0xff]
        %v2597 = vld [vmem:[%s1764 + $0x1848] sm:$0xff]
        %v2598 = vld [vmem:[%s1764 + $0x1850] sm:$0xff]
        %v2599 = vld [vmem:[%s1764 + $0x1858] sm:$0xff]
        %v2600 = vld [vmem:[%s1764 + $0x1860] sm:$0xff]
        %v2601 = vld [vmem:[%s1764 + $0x1868] sm:$0xff]
        %v2602 = vld [vmem:[%s1764 + $0x1870] sm:$0xff]
        %v2603 = vld [vmem:[%s1764 + $0x1878] sm:$0xff]
        %v2604 = vld [vmem:[%s1804] sm:$0xf]
        %v2606 = vlaneseq
        %v2607 = vshrl.u32 %v2606, 7
        %v2608 = vsub.s32 0, %v2607
        %v2609 = vrot.slane %v2604, %v2608
        %v2610 = vlaneseq
        %v2611 = vshrl.u32 %v2610, 7
        %v2612 = vsub.s32 1, %v2611
        %v2613 = vrot.slane %v2604, %v2612
        %v2614 = vlaneseq
        %v2615 = vshrl.u32 %v2614, 7
        %v2616 = vsub.s32 2, %v2615
        %v2617 = vrot.slane %v2604, %v2616
        %v2618 = vlaneseq
        %v2619 = vshrl.u32 %v2618, 7
        %v2620 = vsub.s32 3, %v2619
        %v2621 = vrot.slane %v2604, %v2620
        %v2630 = vcombine.high %v1816, %v1816
        %v2632 = vunpack.c.l.s4 1966171168
        %v2633 = vunpack.c.0.s8 %v2632
        %v2634 = vlaneseq
        %v2635 = vshrl.u32 %v2634, 7
        %v2636 = vsub.s32 %v2633, %v2635
        %v2637 = vrot.slane %v1816, %v2636
        %v2639 = vunpack.c.l.s4 1966171168
        %v2640 = vunpack.c.0.s8 %v2639
        %v2641 = vlaneseq
        %v2642 = vshrl.u32 %v2641, 7
        %v2643 = vsub.s32 %v2640, %v2642
        %v2644 = vrot.slane %v2630, %v2643
        %v2645 = vcombine.high %v2637, %v2637
        %v2646 = vcombine.high %v2644, %v2644
        %v2648 = vunpack.c.l.s4 1966171168
        %v2649 = vunpack.c.0.s8 %v2648
        %v2650 = vlaneseq
        %v2651 = vshrl.u32 %v2650, 7
        %v2652 = vsub.s32 %v2649, %v2651
        %v2653 = vrot.slane %v2637, %v2652
        %v2655 = vunpack.c.l.s4 1966171168
        %v2656 = vunpack.c.0.s8 %v2655
        %v2657 = vlaneseq
        %v2658 = vshrl.u32 %v2657, 7
        %v2659 = vsub.s32 %v2656, %v2658
        %v2660 = vrot.slane %v2644, %v2659
        %v2662 = vunpack.c.l.s4 1966171168
        %v2663 = vunpack.c.0.s8 %v2662
        %v2664 = vlaneseq
        %v2665 = vshrl.u32 %v2664, 7
        %v2666 = vsub.s32 %v2663, %v2665
        %v2667 = vrot.slane %v2645, %v2666
        %v2669 = vunpack.c.l.s4 1966171168
        %v2670 = vunpack.c.0.s8 %v2669
        %v2671 = vlaneseq
        %v2672 = vshrl.u32 %v2671, 7
        %v2673 = vsub.s32 %v2670, %v2672
        %v2674 = vrot.slane %v2646, %v2673
        %v2675 = vcombine.high %v2653, %v2653
        %v2676 = vcombine.high %v2660, %v2660
        %v2677 = vcombine.high %v2667, %v2667
        %v2678 = vcombine.high %v2674, %v2674
        %v2679 = vcombine.high %v1817, %v1817
        %v2681 = vunpack.c.l.s4 1966171168
        %v2682 = vunpack.c.0.s8 %v2681
        %v2683 = vlaneseq
        %v2684 = vshrl.u32 %v2683, 7
        %v2685 = vsub.s32 %v2682, %v2684
        %v2686 = vrot.slane %v1817, %v2685
        %v2688 = vunpack.c.l.s4 1966171168
        %v2689 = vunpack.c.0.s8 %v2688
        %v2690 = vlaneseq
        %v2691 = vshrl.u32 %v2690, 7
        %v2692 = vsub.s32 %v2689, %v2691
        %v2693 = vrot.slane %v2679, %v2692
        %v2694 = vcombine.high %v2686, %v2686
        %v2695 = vcombine.high %v2693, %v2693
        %v2697 = vunpack.c.l.s4 1966171168
        %v2698 = vunpack.c.0.s8 %v2697
        %v2699 = vlaneseq
        %v2700 = vshrl.u32 %v2699, 7
        %v2701 = vsub.s32 %v2698, %v2700
        %v2702 = vrot.slane %v2686, %v2701
        %v2704 = vunpack.c.l.s4 1966171168
        %v2705 = vunpack.c.0.s8 %v2704
        %v2706 = vlaneseq
        %v2707 = vshrl.u32 %v2706, 7
        %v2708 = vsub.s32 %v2705, %v2707
        %v2709 = vrot.slane %v2693, %v2708
        %v2711 = vunpack.c.l.s4 1966171168
        %v2712 = vunpack.c.0.s8 %v2711
        %v2713 = vlaneseq
        %v2714 = vshrl.u32 %v2713, 7
        %v2715 = vsub.s32 %v2712, %v2714
        %v2716 = vrot.slane %v2694, %v2715
        %v2718 = vunpack.c.l.s4 1966171168
        %v2719 = vunpack.c.0.s8 %v2718
        %v2720 = vlaneseq
        %v2721 = vshrl.u32 %v2720, 7
        %v2722 = vsub.s32 %v2719, %v2721
        %v2723 = vrot.slane %v2695, %v2722
        %v2724 = vcombine.high %v2702, %v2702
        %v2725 = vcombine.high %v2709, %v2709
        %v2726 = vcombine.high %v2716, %v2716
        %v2727 = vcombine.high %v2723, %v2723
        %v2728 = vcombine.high %v1818, %v1818
        %v2730 = vunpack.c.l.s4 1966171168
        %v2731 = vunpack.c.0.s8 %v2730
        %v2732 = vlaneseq
        %v2733 = vshrl.u32 %v2732, 7
        %v2734 = vsub.s32 %v2731, %v2733
        %v2735 = vrot.slane %v1818, %v2734
        %v2737 = vunpack.c.l.s4 1966171168
        %v2738 = vunpack.c.0.s8 %v2737
        %v2739 = vlaneseq
        %v2740 = vshrl.u32 %v2739, 7
        %v2741 = vsub.s32 %v2738, %v2740
        %v2742 = vrot.slane %v2728, %v2741
        %v2743 = vcombine.high %v2735, %v2735
        %v2744 = vcombine.high %v2742, %v2742
        %v2746 = vunpack.c.l.s4 1966171168
        %v2747 = vunpack.c.0.s8 %v2746
        %v2748 = vlaneseq
        %v2749 = vshrl.u32 %v2748, 7
        %v2750 = vsub.s32 %v2747, %v2749
        %v2751 = vrot.slane %v2735, %v2750
        %v2753 = vunpack.c.l.s4 1966171168
        %v2754 = vunpack.c.0.s8 %v2753
        %v2755 = vlaneseq
        %v2756 = vshrl.u32 %v2755, 7
        %v2757 = vsub.s32 %v2754, %v2756
        %v2758 = vrot.slane %v2742, %v2757
        %v2760 = vunpack.c.l.s4 1966171168
        %v2761 = vunpack.c.0.s8 %v2760
        %v2762 = vlaneseq
        %v2763 = vshrl.u32 %v2762, 7
        %v2764 = vsub.s32 %v2761, %v2763
        %v2765 = vrot.slane %v2743, %v2764
        %v2767 = vunpack.c.l.s4 1966171168
        %v2768 = vunpack.c.0.s8 %v2767
        %v2769 = vlaneseq
        %v2770 = vshrl.u32 %v2769, 7
        %v2771 = vsub.s32 %v2768, %v2770
        %v2772 = vrot.slane %v2744, %v2771
        %v2773 = vcombine.high %v2751, %v2751
        %v2774 = vcombine.high %v2758, %v2758
        %v2775 = vcombine.high %v2765, %v2765
        %v2776 = vcombine.high %v2772, %v2772
        %v2778 = vunpack.c.l.s4 1966171168
        %v2779 = vunpack.c.0.s8 %v2778
        %v2780 = vlaneseq
        %v2781 = vshrl.u32 %v2780, 7
        %v2782 = vsub.s32 %v2779, %v2781
        %v2783 = vrot.slane %v1819, %v2782
        %v2785 = vunpack.c.l.s4 1966171168
        %v2786 = vunpack.c.0.s8 %v2785
        %v2787 = vlaneseq
        %v2788 = vshrl.u32 %v2787, 7
        %v2789 = vsub.s32 %v2786, %v2788
        %v2790 = vrot.slane %v2783, %v2789
        %v3599 = vunpack.c.l.b16 %v1820
        %v3600 = vunpack.c.h.b16 %v1820
        %v3601 = vunpack.c.l.b16 %v1821
        %v3602 = vunpack.c.h.b16 %v1821
        %v3603 = vunpack.c.l.b16 %v1822
        %v3604 = vunpack.c.h.b16 %v1822
        %v3605 = vunpack.c.l.b16 %v1823
        %v3606 = vunpack.c.h.b16 %v1823
        %v3607 = vunpack.c.l.b16 %v1824
        %v3608 = vunpack.c.h.b16 %v1824
        %v3609 = vunpack.c.l.b16 %v1825
        %v3610 = vunpack.c.h.b16 %v1825
        %v3611 = vunpack.c.l.b16 %v1826
        %v3612 = vunpack.c.h.b16 %v1826
        %v3613 = vunpack.c.l.b16 %v1827
        %v3614 = vunpack.c.h.b16 %v1827
        %v3615 = vunpack.c.l.b16 %v1828
        %v3616 = vunpack.c.h.b16 %v1828
        %v3617 = vunpack.c.l.b16 %v1829
        %v3618 = vunpack.c.h.b16 %v1829
        %v3619 = vunpack.c.l.b16 %v1830
        %v3620 = vunpack.c.h.b16 %v1830
        %v3621 = vunpack.c.l.b16 %v1831
        %v3622 = vunpack.c.h.b16 %v1831
        %v3623 = vunpack.c.l.b16 %v1832
        %v3624 = vunpack.c.h.b16 %v1832
        %v3625 = vunpack.c.l.b16 %v1833
        %v3626 = vunpack.c.h.b16 %v1833
        %v3627 = vunpack.c.l.b16 %v1834
        %v3628 = vunpack.c.h.b16 %v1834
        %v3629 = vunpack.c.l.b16 %v1835
        %v3630 = vunpack.c.h.b16 %v1835
        %v3631 = vunpack.c.l.b16 %v1836
        %v3632 = vunpack.c.h.b16 %v1836
        %v3633 = vunpack.c.l.b16 %v1837
        %v3634 = vunpack.c.h.b16 %v1837
        %v3635 = vunpack.c.l.b16 %v1838
        %v3636 = vunpack.c.h.b16 %v1838
        %v3637 = vunpack.c.l.b16 %v1839
        %v3638 = vunpack.c.h.b16 %v1839
        %v3639 = vunpack.c.l.b16 %v1840
        %v3640 = vunpack.c.h.b16 %v1840
        %v3641 = vunpack.c.l.b16 %v1841
        %v3642 = vunpack.c.h.b16 %v1841
        %v3643 = vunpack.c.l.b16 %v1842
        %v3644 = vunpack.c.h.b16 %v1842
        %v3645 = vunpack.c.l.b16 %v1843
        %v3646 = vunpack.c.h.b16 %v1843
        %v3647 = vunpack.c.l.b16 %v1844
        %v3648 = vunpack.c.h.b16 %v1844
        %v3649 = vunpack.c.l.b16 %v1845
        %v3650 = vunpack.c.h.b16 %v1845
        %v3651 = vunpack.c.l.b16 %v1846
        %v3652 = vunpack.c.h.b16 %v1846
        %v3653 = vunpack.c.l.b16 %v1847
        %v3654 = vunpack.c.h.b16 %v1847
        %v3655 = vunpack.c.l.b16 %v1848
        %v3656 = vunpack.c.h.b16 %v1848
        %v3657 = vunpack.c.l.b16 %v1849
        %v3658 = vunpack.c.h.b16 %v1849
        %v3659 = vunpack.c.l.b16 %v1850
        %v3660 = vunpack.c.h.b16 %v1850
        %v3661 = vunpack.c.l.b16 %v1851
        %v3662 = vunpack.c.h.b16 %v1851
        %v3663 = vunpack.c.l.b16 %v1852
        %v3664 = vunpack.c.h.b16 %v1852
        %v3665 = vunpack.c.l.b16 %v1853
        %v3666 = vunpack.c.h.b16 %v1853
        %v3667 = vunpack.c.l.b16 %v1854
        %v3668 = vunpack.c.h.b16 %v1854
        %v3669 = vunpack.c.l.b16 %v1855
        %v3670 = vunpack.c.h.b16 %v1855
        %v3671 = vunpack.c.l.b16 %v1856
        %v3672 = vunpack.c.h.b16 %v1856
        %v3673 = vunpack.c.l.b16 %v1857
        %v3674 = vunpack.c.h.b16 %v1857
        %v3675 = vunpack.c.l.b16 %v1858
        %v3676 = vunpack.c.h.b16 %v1858
        %v3677 = vunpack.c.l.b16 %v1859
        %v3678 = vunpack.c.h.b16 %v1859
        %v3679 = vunpack.c.l.b16 %v1860
        %v3680 = vunpack.c.h.b16 %v1860
        %v3681 = vunpack.c.l.b16 %v1861
        %v3682 = vunpack.c.h.b16 %v1861
        %v3683 = vunpack.c.l.b16 %v1862
        %v3684 = vunpack.c.h.b16 %v1862
        %v3685 = vunpack.c.l.b16 %v1863
        %v3686 = vunpack.c.h.b16 %v1863
        %v3687 = vunpack.c.l.b16 %v1864
        %v3688 = vunpack.c.h.b16 %v1864
        %v3689 = vunpack.c.l.b16 %v1865
        %v3690 = vunpack.c.h.b16 %v1865
        %v3691 = vunpack.c.l.b16 %v1866
        %v3692 = vunpack.c.h.b16 %v1866
        %v3693 = vunpack.c.l.b16 %v1867
        %v3694 = vunpack.c.h.b16 %v1867
        %v3695 = vunpack.c.l.b16 %v1868
        %v3696 = vunpack.c.h.b16 %v1868
        %v3697 = vunpack.c.l.b16 %v1869
        %v3698 = vunpack.c.h.b16 %v1869
        %v3699 = vunpack.c.l.b16 %v1870
        %v3700 = vunpack.c.h.b16 %v1870
        %v3701 = vunpack.c.l.b16 %v1871
        %v3702 = vunpack.c.h.b16 %v1871
        %v3703 = vunpack.c.l.b16 %v1872
        %v3704 = vunpack.c.h.b16 %v1872
        %v3705 = vunpack.c.l.b16 %v1873
        %v3706 = vunpack.c.h.b16 %v1873
        %v3707 = vunpack.c.l.b16 %v1874
        %v3708 = vunpack.c.h.b16 %v1874
        %v3709 = vunpack.c.l.b16 %v1875
        %v3710 = vunpack.c.h.b16 %v1875
        %v3711 = vunpack.c.l.b16 %v1876
        %v3712 = vunpack.c.h.b16 %v1876
        %v3713 = vunpack.c.l.b16 %v1877
        %v3714 = vunpack.c.h.b16 %v1877
        %v3715 = vunpack.c.l.b16 %v1878
        %v3716 = vunpack.c.h.b16 %v1878
        %v3717 = vunpack.c.l.b16 %v1879
        %v3718 = vunpack.c.h.b16 %v1879
        %v3719 = vunpack.c.l.b16 %v1880
        %v3720 = vunpack.c.h.b16 %v1880
        %v3721 = vunpack.c.l.b16 %v1881
        %v3722 = vunpack.c.h.b16 %v1881
        %v3723 = vunpack.c.l.b16 %v1882
        %v3724 = vunpack.c.h.b16 %v1882
        %v3725 = vunpack.c.l.b16 %v1883
        %v3726 = vunpack.c.h.b16 %v1883
        %v3727 = vunpack.c.l.b16 %v1884
        %v3728 = vunpack.c.h.b16 %v1884
        %v3729 = vunpack.c.l.b16 %v1885
        %v3730 = vunpack.c.h.b16 %v1885
        %v3731 = vunpack.c.l.b16 %v1886
        %v3732 = vunpack.c.h.b16 %v1886
        %v3733 = vunpack.c.l.b16 %v1887
        %v3734 = vunpack.c.h.b16 %v1887
        %v3735 = vunpack.c.l.b16 %v1888
        %v3736 = vunpack.c.h.b16 %v1888
        %v3737 = vunpack.c.l.b16 %v1889
        %v3738 = vunpack.c.h.b16 %v1889
        %v3739 = vunpack.c.l.b16 %v1890
        %v3740 = vunpack.c.h.b16 %v1890
        %v3741 = vunpack.c.l.b16 %v1891
        %v3742 = vunpack.c.h.b16 %v1891
        %v3743 = vunpack.c.l.b16 %v1892
        %v3744 = vunpack.c.h.b16 %v1892
        %v3745 = vunpack.c.l.b16 %v1893
        %v3746 = vunpack.c.h.b16 %v1893
        %v3747 = vunpack.c.l.b16 %v1894
        %v3748 = vunpack.c.h.b16 %v1894
        %v3749 = vunpack.c.l.b16 %v1895
        %v3750 = vunpack.c.h.b16 %v1895
        %v3751 = vunpack.c.l.b16 %v1896
        %v3752 = vunpack.c.h.b16 %v1896
        %v3753 = vunpack.c.l.b16 %v1897
        %v3754 = vunpack.c.h.b16 %v1897
        %v3755 = vunpack.c.l.b16 %v1898
        %v3756 = vunpack.c.h.b16 %v1898
        %v3757 = vunpack.c.l.b16 %v1899
        %v3758 = vunpack.c.h.b16 %v1899
        %v3759 = vunpack.c.l.b16 %v1900
        %v3760 = vunpack.c.h.b16 %v1900
        %v3761 = vunpack.c.l.b16 %v1901
        %v3762 = vunpack.c.h.b16 %v1901
        %v3763 = vunpack.c.l.b16 %v1902
        %v3764 = vunpack.c.h.b16 %v1902
        %v3765 = vunpack.c.l.b16 %v1903
        %v3766 = vunpack.c.h.b16 %v1903
        %v3767 = vunpack.c.l.b16 %v1904
        %v3768 = vunpack.c.h.b16 %v1904
        %v3769 = vunpack.c.l.b16 %v1905
        %v3770 = vunpack.c.h.b16 %v1905
        %v3771 = vunpack.c.l.b16 %v1906
        %v3772 = vunpack.c.h.b16 %v1906
        %v3773 = vunpack.c.l.b16 %v1907
        %v3774 = vunpack.c.h.b16 %v1907
        %v3775 = vunpack.c.l.b16 %v1908
        %v3776 = vunpack.c.h.b16 %v1908
        %v3777 = vunpack.c.l.b16 %v1909
        %v3778 = vunpack.c.h.b16 %v1909
        %v3779 = vunpack.c.l.b16 %v1910
        %v3780 = vunpack.c.h.b16 %v1910
        %v3781 = vunpack.c.l.b16 %v1911
        %v3782 = vunpack.c.h.b16 %v1911
        %v3783 = vunpack.c.l.b16 %v1912
        %v3784 = vunpack.c.h.b16 %v1912
        %v3785 = vunpack.c.l.b16 %v1913
        %v3786 = vunpack.c.h.b16 %v1913
        %v3787 = vunpack.c.l.b16 %v1914
        %v3788 = vunpack.c.h.b16 %v1914
        %v3789 = vunpack.c.l.b16 %v1915
        %v3790 = vunpack.c.h.b16 %v1915
        %v3791 = vunpack.c.l.b16 %v1916
        %v3792 = vunpack.c.h.b16 %v1916
        %v3793 = vunpack.c.l.b16 %v1917
        %v3794 = vunpack.c.h.b16 %v1917
        %v3795 = vunpack.c.l.b16 %v1918
        %v3796 = vunpack.c.h.b16 %v1918
        %v3797 = vunpack.c.l.b16 %v1919
        %v3798 = vunpack.c.h.b16 %v1919
        %v3799 = vunpack.c.l.b16 %v1920
        %v3800 = vunpack.c.h.b16 %v1920
        %v3801 = vunpack.c.l.b16 %v1921
        %v3802 = vunpack.c.h.b16 %v1921
        %v3803 = vunpack.c.l.b16 %v1922
        %v3804 = vunpack.c.h.b16 %v1922
        %v3805 = vunpack.c.l.b16 %v1923
        %v3806 = vunpack.c.h.b16 %v1923
        %v3807 = vunpack.c.l.b16 %v1924
        %v3808 = vunpack.c.h.b16 %v1924
        %v3809 = vunpack.c.l.b16 %v1925
        %v3810 = vunpack.c.h.b16 %v1925
        %v3811 = vunpack.c.l.b16 %v1926
        %v3812 = vunpack.c.h.b16 %v1926
        %v3813 = vunpack.c.l.b16 %v1927
        %v3814 = vunpack.c.h.b16 %v1927
        %v3815 = vunpack.c.l.b16 %v1928
        %v3816 = vunpack.c.h.b16 %v1928
        %v3817 = vunpack.c.l.b16 %v1929
        %v3818 = vunpack.c.h.b16 %v1929
        %v3819 = vunpack.c.l.b16 %v1930
        %v3820 = vunpack.c.h.b16 %v1930
        %v3821 = vunpack.c.l.b16 %v1931
        %v3822 = vunpack.c.h.b16 %v1931
        %v3823 = vunpack.c.l.b16 %v1932
        %v3824 = vunpack.c.h.b16 %v1932
        %v3825 = vunpack.c.l.b16 %v1933
        %v3826 = vunpack.c.h.b16 %v1933
        %v3827 = vunpack.c.l.b16 %v1934
        %v3828 = vunpack.c.h.b16 %v1934
        %v3829 = vunpack.c.l.b16 %v1935
        %v3830 = vunpack.c.h.b16 %v1935
        %v3831 = vunpack.c.l.b16 %v1936
        %v3832 = vunpack.c.h.b16 %v1936
        %v3833 = vunpack.c.l.b16 %v1937
        %v3834 = vunpack.c.h.b16 %v1937
        %v3835 = vunpack.c.l.b16 %v1938
        %v3836 = vunpack.c.h.b16 %v1938
        %v3837 = vunpack.c.l.b16 %v1939
        %v3838 = vunpack.c.h.b16 %v1939
        %v3839 = vunpack.c.l.b16 %v1940
        %v3840 = vunpack.c.h.b16 %v1940
        %v3841 = vunpack.c.l.b16 %v1941
        %v3842 = vunpack.c.h.b16 %v1941
        %v3843 = vunpack.c.l.b16 %v1942
        %v3844 = vunpack.c.h.b16 %v1942
        %v3845 = vunpack.c.l.b16 %v1943
        %v3846 = vunpack.c.h.b16 %v1943
        %v3847 = vunpack.c.l.b16 %v1944
        %v3848 = vunpack.c.h.b16 %v1944
        %v3849 = vunpack.c.l.b16 %v1945
        %v3850 = vunpack.c.h.b16 %v1945
        %v3851 = vunpack.c.l.b16 %v1946
        %v3852 = vunpack.c.h.b16 %v1946
        %v3853 = vunpack.c.l.b16 %v1947
        %v3854 = vunpack.c.h.b16 %v1947
        %v3855 = vunpack.c.l.b16 %v1948
        %v3856 = vunpack.c.h.b16 %v1948
        %v3857 = vunpack.c.l.b16 %v1949
        %v3858 = vunpack.c.h.b16 %v1949
        %v3859 = vunpack.c.l.b16 %v1950
        %v3860 = vunpack.c.h.b16 %v1950
        %v3861 = vunpack.c.l.b16 %v1951
        %v3862 = vunpack.c.h.b16 %v1951
        %v3863 = vunpack.c.l.b16 %v1952
        %v3864 = vunpack.c.h.b16 %v1952
        %v3865 = vunpack.c.l.b16 %v1953
        %v3866 = vunpack.c.h.b16 %v1953
        %v3867 = vunpack.c.l.b16 %v1954
        %v3868 = vunpack.c.h.b16 %v1954
        %v3869 = vunpack.c.l.b16 %v1955
        %v3870 = vunpack.c.h.b16 %v1955
        %v3871 = vunpack.c.l.b16 %v1956
        %v3872 = vunpack.c.h.b16 %v1956
        %v3873 = vunpack.c.l.b16 %v1957
        %v3874 = vunpack.c.h.b16 %v1957
        %v3875 = vunpack.c.l.b16 %v1958
        %v3876 = vunpack.c.h.b16 %v1958
        %v3877 = vunpack.c.l.b16 %v1959
        %v3878 = vunpack.c.h.b16 %v1959
        %v3879 = vunpack.c.l.b16 %v1960
        %v3880 = vunpack.c.h.b16 %v1960
        %v3881 = vunpack.c.l.b16 %v1961
        %v3882 = vunpack.c.h.b16 %v1961
        %v3883 = vunpack.c.l.b16 %v1962
        %v3884 = vunpack.c.h.b16 %v1962
        %v3885 = vunpack.c.l.b16 %v1963
        %v3886 = vunpack.c.h.b16 %v1963
        %v3887 = vunpack.c.l.b16 %v1964
        %v3888 = vunpack.c.h.b16 %v1964
        %v3889 = vunpack.c.l.b16 %v1965
        %v3890 = vunpack.c.h.b16 %v1965
        %v3891 = vunpack.c.l.b16 %v1966
        %v3892 = vunpack.c.h.b16 %v1966
        %v3893 = vunpack.c.l.b16 %v1967
        %v3894 = vunpack.c.h.b16 %v1967
        %v3895 = vunpack.c.l.b16 %v1968
        %v3896 = vunpack.c.h.b16 %v1968
        %v3897 = vunpack.c.l.b16 %v1969
        %v3898 = vunpack.c.h.b16 %v1969
        %v3899 = vunpack.c.l.b16 %v1970
        %v3900 = vunpack.c.h.b16 %v1970
        %v3901 = vunpack.c.l.b16 %v1971
        %v3902 = vunpack.c.h.b16 %v1971
        %v3903 = vunpack.c.l.b16 %v1972
        %v3904 = vunpack.c.h.b16 %v1972
        %v3905 = vunpack.c.l.b16 %v1973
        %v3906 = vunpack.c.h.b16 %v1973
        %v3907 = vunpack.c.l.b16 %v1974
        %v3908 = vunpack.c.h.b16 %v1974
        %v3909 = vunpack.c.l.b16 %v1975
        %v3910 = vunpack.c.h.b16 %v1975
        %v3911 = vunpack.c.l.b16 %v1976
        %v3912 = vunpack.c.h.b16 %v1976
        %v3913 = vunpack.c.l.b16 %v1977
        %v3914 = vunpack.c.h.b16 %v1977
        %v3915 = vunpack.c.l.b16 %v1978
        %v3916 = vunpack.c.h.b16 %v1978
        %v3917 = vunpack.c.l.b16 %v1979
        %v3918 = vunpack.c.h.b16 %v1979
        %v3919 = vunpack.c.l.b16 %v1980
        %v3920 = vunpack.c.h.b16 %v1980
        %v3921 = vunpack.c.l.b16 %v1981
        %v3922 = vunpack.c.h.b16 %v1981
        %v3923 = vunpack.c.l.b16 %v1982
        %v3924 = vunpack.c.h.b16 %v1982
        %v3925 = vunpack.c.l.b16 %v1983
        %v3926 = vunpack.c.h.b16 %v1983
        %v3927 = vunpack.c.l.b16 %v1984
        %v3928 = vunpack.c.h.b16 %v1984
        %v3929 = vunpack.c.l.b16 %v1985
        %v3930 = vunpack.c.h.b16 %v1985
        %v3931 = vunpack.c.l.b16 %v1986
        %v3932 = vunpack.c.h.b16 %v1986
        %v3933 = vunpack.c.l.b16 %v1987
        %v3934 = vunpack.c.h.b16 %v1987
        %v3935 = vunpack.c.l.b16 %v1988
        %v3936 = vunpack.c.h.b16 %v1988
        %v3937 = vunpack.c.l.b16 %v1989
        %v3938 = vunpack.c.h.b16 %v1989
        %v3939 = vunpack.c.l.b16 %v1990
        %v3940 = vunpack.c.h.b16 %v1990
        %v3941 = vunpack.c.l.b16 %v1991
        %v3942 = vunpack.c.h.b16 %v1991
        %v3943 = vunpack.c.l.b16 %v1992
        %v3944 = vunpack.c.h.b16 %v1992
        %v3945 = vunpack.c.l.b16 %v1993
        %v3946 = vunpack.c.h.b16 %v1993
        %v3947 = vunpack.c.l.b16 %v1994
        %v3948 = vunpack.c.h.b16 %v1994
        %v3949 = vunpack.c.l.b16 %v1995
        %v3950 = vunpack.c.h.b16 %v1995
        %v3951 = vunpack.c.l.b16 %v1996
        %v3952 = vunpack.c.h.b16 %v1996
        %v3953 = vunpack.c.l.b16 %v1997
        %v3954 = vunpack.c.h.b16 %v1997
        %v3955 = vunpack.c.l.b16 %v1998
        %v3956 = vunpack.c.h.b16 %v1998
        %v3957 = vunpack.c.l.b16 %v1999
        %v3958 = vunpack.c.h.b16 %v1999
        %v3959 = vunpack.c.l.b16 %v2000
        %v3960 = vunpack.c.h.b16 %v2000
        %v3961 = vunpack.c.l.b16 %v2001
        %v3962 = vunpack.c.h.b16 %v2001
        %v3963 = vunpack.c.l.b16 %v2002
        %v3964 = vunpack.c.h.b16 %v2002
        %v3965 = vunpack.c.l.b16 %v2003
        %v3966 = vunpack.c.h.b16 %v2003
        %v3967 = vunpack.c.l.b16 %v2004
        %v3968 = vunpack.c.h.b16 %v2004
        %v3969 = vunpack.c.l.b16 %v2005
        %v3970 = vunpack.c.h.b16 %v2005
        %v3971 = vunpack.c.l.b16 %v2006
        %v3972 = vunpack.c.h.b16 %v2006
        %v3973 = vunpack.c.l.b16 %v2007
        %v3974 = vunpack.c.h.b16 %v2007
        %v3975 = vunpack.c.l.b16 %v2008
        %v3976 = vunpack.c.h.b16 %v2008
        %v3977 = vunpack.c.l.b16 %v2009
        %v3978 = vunpack.c.h.b16 %v2009
        %v3979 = vunpack.c.l.b16 %v2010
        %v3980 = vunpack.c.h.b16 %v2010
        %v3981 = vunpack.c.l.b16 %v2011
        %v3982 = vunpack.c.h.b16 %v2011
        %v3983 = vunpack.c.l.b16 %v2012
        %v3984 = vunpack.c.h.b16 %v2012
        %v3985 = vunpack.c.l.b16 %v2013
        %v3986 = vunpack.c.h.b16 %v2013
        %v3987 = vunpack.c.l.b16 %v2014
        %v3988 = vunpack.c.h.b16 %v2014
        %v3989 = vunpack.c.l.b16 %v2015
        %v3990 = vunpack.c.h.b16 %v2015
        %v3991 = vunpack.c.l.b16 %v2016
        %v3992 = vunpack.c.h.b16 %v2016
        %v3993 = vunpack.c.l.b16 %v2017
        %v3994 = vunpack.c.h.b16 %v2017
        %v3995 = vunpack.c.l.b16 %v2018
        %v3996 = vunpack.c.h.b16 %v2018
        %v3997 = vunpack.c.l.b16 %v2019
        %v3998 = vunpack.c.h.b16 %v2019
        %v3999 = vunpack.c.l.b16 %v2020
        %v4000 = vunpack.c.h.b16 %v2020
        %v4001 = vunpack.c.l.b16 %v2021
        %v4002 = vunpack.c.h.b16 %v2021
        %v4003 = vunpack.c.l.b16 %v2022
        %v4004 = vunpack.c.h.b16 %v2022
        %v4005 = vunpack.c.l.b16 %v2023
        %v4006 = vunpack.c.h.b16 %v2023
        %v4007 = vunpack.c.l.b16 %v2024
        %v4008 = vunpack.c.h.b16 %v2024
        %v4009 = vunpack.c.l.b16 %v2025
        %v4010 = vunpack.c.h.b16 %v2025
        %v4011 = vunpack.c.l.b16 %v2026
        %v4012 = vunpack.c.h.b16 %v2026
        %v4013 = vunpack.c.l.b16 %v2027
        %v4014 = vunpack.c.h.b16 %v2027
        %v4015 = vunpack.c.l.b16 %v2028
        %v4016 = vunpack.c.h.b16 %v2028
        %v4017 = vunpack.c.l.b16 %v2029
        %v4018 = vunpack.c.h.b16 %v2029
        %v4019 = vunpack.c.l.b16 %v2030
        %v4020 = vunpack.c.h.b16 %v2030
        %v4021 = vunpack.c.l.b16 %v2031
        %v4022 = vunpack.c.h.b16 %v2031
        %v4023 = vunpack.c.l.b16 %v2032
        %v4024 = vunpack.c.h.b16 %v2032
        %v4025 = vunpack.c.l.b16 %v2033
        %v4026 = vunpack.c.h.b16 %v2033
        %v4027 = vunpack.c.l.b16 %v2034
        %v4028 = vunpack.c.h.b16 %v2034
        %v4029 = vunpack.c.l.b16 %v2035
        %v4030 = vunpack.c.h.b16 %v2035
        %v4031 = vunpack.c.l.b16 %v2036
        %v4032 = vunpack.c.h.b16 %v2036
        %v4033 = vunpack.c.l.b16 %v2037
        %v4034 = vunpack.c.h.b16 %v2037
        %v4035 = vunpack.c.l.b16 %v2038
        %v4036 = vunpack.c.h.b16 %v2038
        %v4037 = vunpack.c.l.b16 %v2039
        %v4038 = vunpack.c.h.b16 %v2039
        %v4039 = vunpack.c.l.b16 %v2040
        %v4040 = vunpack.c.h.b16 %v2040
        %v4041 = vunpack.c.l.b16 %v2041
        %v4042 = vunpack.c.h.b16 %v2041
        %v4043 = vunpack.c.l.b16 %v2042
        %v4044 = vunpack.c.h.b16 %v2042
        %v4045 = vunpack.c.l.b16 %v2043
        %v4046 = vunpack.c.h.b16 %v2043
        %v4047 = vunpack.c.l.b16 %v2044
        %v4048 = vunpack.c.h.b16 %v2044
        %v4049 = vunpack.c.l.b16 %v2045
        %v4050 = vunpack.c.h.b16 %v2045
        %v4051 = vunpack.c.l.b16 %v2046
        %v4052 = vunpack.c.h.b16 %v2046
        %v4053 = vunpack.c.l.b16 %v2047
        %v4054 = vunpack.c.h.b16 %v2047
        %v4055 = vunpack.c.l.b16 %v2048
        %v4056 = vunpack.c.h.b16 %v2048
        %v4057 = vunpack.c.l.b16 %v2049
        %v4058 = vunpack.c.h.b16 %v2049
        %v4059 = vunpack.c.l.b16 %v2050
        %v4060 = vunpack.c.h.b16 %v2050
        %v4061 = vunpack.c.l.b16 %v2051
        %v4062 = vunpack.c.h.b16 %v2051
        %v4063 = vunpack.c.l.b16 %v2052
        %v4064 = vunpack.c.h.b16 %v2052
        %v4065 = vunpack.c.l.b16 %v2053
        %v4066 = vunpack.c.h.b16 %v2053
        %v4067 = vunpack.c.l.b16 %v2054
        %v4068 = vunpack.c.h.b16 %v2054
        %v4069 = vunpack.c.l.b16 %v2055
        %v4070 = vunpack.c.h.b16 %v2055
        %v4071 = vunpack.c.l.b16 %v2056
        %v4072 = vunpack.c.h.b16 %v2056
        %v4073 = vunpack.c.l.b16 %v2057
        %v4074 = vunpack.c.h.b16 %v2057
        %v4075 = vunpack.c.l.b16 %v2058
        %v4076 = vunpack.c.h.b16 %v2058
        %v4077 = vunpack.c.l.b16 %v2059
        %v4078 = vunpack.c.h.b16 %v2059
        %v4079 = vunpack.c.l.b16 %v2060
        %v4080 = vunpack.c.h.b16 %v2060
        %v4081 = vunpack.c.l.b16 %v2061
        %v4082 = vunpack.c.h.b16 %v2061
        %v4083 = vunpack.c.l.b16 %v2062
        %v4084 = vunpack.c.h.b16 %v2062
        %v4085 = vunpack.c.l.b16 %v2063
        %v4086 = vunpack.c.h.b16 %v2063
        %v4087 = vunpack.c.l.b16 %v2064
        %v4088 = vunpack.c.h.b16 %v2064
        %v4089 = vunpack.c.l.b16 %v2065
        %v4090 = vunpack.c.h.b16 %v2065
        %v4091 = vunpack.c.l.b16 %v2066
        %v4092 = vunpack.c.h.b16 %v2066
        %v4093 = vunpack.c.l.b16 %v2067
        %v4094 = vunpack.c.h.b16 %v2067
        %v4095 = vunpack.c.l.b16 %v2068
        %v4096 = vunpack.c.h.b16 %v2068
        %v4097 = vunpack.c.l.b16 %v2069
        %v4098 = vunpack.c.h.b16 %v2069
        %v4099 = vunpack.c.l.b16 %v2070
        %v4100 = vunpack.c.h.b16 %v2070
        %v4101 = vunpack.c.l.b16 %v2071
        %v4102 = vunpack.c.h.b16 %v2071
        %v4103 = vunpack.c.l.b16 %v2072
        %v4104 = vunpack.c.h.b16 %v2072
        %v4105 = vunpack.c.l.b16 %v2073
        %v4106 = vunpack.c.h.b16 %v2073
        %v4107 = vunpack.c.l.b16 %v2074
        %v4108 = vunpack.c.h.b16 %v2074
        %v4109 = vunpack.c.l.b16 %v2075
        %v4110 = vunpack.c.h.b16 %v2075
        %v4111 = vunpack.c.l.b16 %v2076
        %v4112 = vunpack.c.h.b16 %v2076
        %v4113 = vunpack.c.l.b16 %v2077
        %v4114 = vunpack.c.h.b16 %v2077
        %v4115 = vunpack.c.l.b16 %v2078
        %v4116 = vunpack.c.h.b16 %v2078
        %v4117 = vunpack.c.l.b16 %v2079
        %v4118 = vunpack.c.h.b16 %v2079
        %v4119 = vunpack.c.l.b16 %v2080
        %v4120 = vunpack.c.h.b16 %v2080
        %v4121 = vunpack.c.l.b16 %v2081
        %v4122 = vunpack.c.h.b16 %v2081
        %v4123 = vunpack.c.l.b16 %v2082
        %v4124 = vunpack.c.h.b16 %v2082
        %v4125 = vunpack.c.l.b16 %v2083
        %v4126 = vunpack.c.h.b16 %v2083
        %v4127 = vunpack.c.l.b16 %v2084
        %v4128 = vunpack.c.h.b16 %v2084
        %v4129 = vunpack.c.l.b16 %v2085
        %v4130 = vunpack.c.h.b16 %v2085
        %v4131 = vunpack.c.l.b16 %v2086
        %v4132 = vunpack.c.h.b16 %v2086
        %v4133 = vunpack.c.l.b16 %v2087
        %v4134 = vunpack.c.h.b16 %v2087
        %v4135 = vunpack.c.l.b16 %v2088
        %v4136 = vunpack.c.h.b16 %v2088
        %v4137 = vunpack.c.l.b16 %v2089
        %v4138 = vunpack.c.h.b16 %v2089
        %v4139 = vunpack.c.l.b16 %v2090
        %v4140 = vunpack.c.h.b16 %v2090
        %v4141 = vunpack.c.l.b16 %v2091
        %v4142 = vunpack.c.h.b16 %v2091
        %v4143 = vunpack.c.l.b16 %v2092
        %v4144 = vunpack.c.h.b16 %v2092
        %v4145 = vunpack.c.l.b16 %v2093
        %v4146 = vunpack.c.h.b16 %v2093
        %v4147 = vunpack.c.l.b16 %v2094
        %v4148 = vunpack.c.h.b16 %v2094
        %v4149 = vunpack.c.l.b16 %v2095
        %v4150 = vunpack.c.h.b16 %v2095
        %v4151 = vunpack.c.l.b16 %v2096
        %v4152 = vunpack.c.h.b16 %v2096
        %v4153 = vunpack.c.l.b16 %v2097
        %v4154 = vunpack.c.h.b16 %v2097
        %v4155 = vunpack.c.l.b16 %v2098
        %v4156 = vunpack.c.h.b16 %v2098
        %v4157 = vunpack.c.l.b16 %v2099
        %v4158 = vunpack.c.h.b16 %v2099
        %v4159 = vunpack.c.l.b16 %v2100
        %v4160 = vunpack.c.h.b16 %v2100
        %v4161 = vunpack.c.l.b16 %v2101
        %v4162 = vunpack.c.h.b16 %v2101
        %v4163 = vunpack.c.l.b16 %v2102
        %v4164 = vunpack.c.h.b16 %v2102
        %v4165 = vunpack.c.l.b16 %v2103
        %v4166 = vunpack.c.h.b16 %v2103
        %v4167 = vunpack.c.l.b16 %v2104
        %v4168 = vunpack.c.h.b16 %v2104
        %v4169 = vunpack.c.l.b16 %v2105
        %v4170 = vunpack.c.h.b16 %v2105
        %v4171 = vunpack.c.l.b16 %v2106
        %v4172 = vunpack.c.h.b16 %v2106
        %v4173 = vunpack.c.l.b16 %v2107
        %v4174 = vunpack.c.h.b16 %v2107
        %v4175 = vunpack.c.l.b16 %v2108
        %v4176 = vunpack.c.h.b16 %v2108
        %v4177 = vunpack.c.l.b16 %v2109
        %v4178 = vunpack.c.h.b16 %v2109
        %v4179 = vunpack.c.l.b16 %v2110
        %v4180 = vunpack.c.h.b16 %v2110
        %v4181 = vunpack.c.l.b16 %v2111
        %v4182 = vunpack.c.h.b16 %v2111
        %v4183 = vunpack.c.l.b16 %v2112
        %v4184 = vunpack.c.h.b16 %v2112
        %v4185 = vunpack.c.l.b16 %v2113
        %v4186 = vunpack.c.h.b16 %v2113
        %v4187 = vunpack.c.l.b16 %v2114
        %v4188 = vunpack.c.h.b16 %v2114
        %v4189 = vunpack.c.l.b16 %v2115
        %v4190 = vunpack.c.h.b16 %v2115
        %v4191 = vunpack.c.l.b16 %v2116
        %v4192 = vunpack.c.h.b16 %v2116
        %v4193 = vunpack.c.l.b16 %v2117
        %v4194 = vunpack.c.h.b16 %v2117
        %v4195 = vunpack.c.l.b16 %v2118
        %v4196 = vunpack.c.h.b16 %v2118
        %v4197 = vunpack.c.l.b16 %v2119
        %v4198 = vunpack.c.h.b16 %v2119
        %v4199 = vunpack.c.l.b16 %v2120
        %v4200 = vunpack.c.h.b16 %v2120
        %v4201 = vunpack.c.l.b16 %v2121
        %v4202 = vunpack.c.h.b16 %v2121
        %v4203 = vunpack.c.l.b16 %v2122
        %v4204 = vunpack.c.h.b16 %v2122
        %v4205 = vunpack.c.l.b16 %v2123
        %v4206 = vunpack.c.h.b16 %v2123
        %v4207 = vunpack.c.l.b16 %v2124
        %v4208 = vunpack.c.h.b16 %v2124
        %v4209 = vunpack.c.l.b16 %v2125
        %v4210 = vunpack.c.h.b16 %v2125
        %v4211 = vunpack.c.l.b16 %v2126
        %v4212 = vunpack.c.h.b16 %v2126
        %v4213 = vunpack.c.l.b16 %v2127
        %v4214 = vunpack.c.h.b16 %v2127
        %v4215 = vunpack.c.l.b16 %v2128
        %v4216 = vunpack.c.h.b16 %v2128
        %v4217 = vunpack.c.l.b16 %v2129
        %v4218 = vunpack.c.h.b16 %v2129
        %v4219 = vunpack.c.l.b16 %v2130
        %v4220 = vunpack.c.h.b16 %v2130
        %v4221 = vunpack.c.l.b16 %v2131
        %v4222 = vunpack.c.h.b16 %v2131
        %v4223 = vunpack.c.l.b16 %v2132
        %v4224 = vunpack.c.h.b16 %v2132
        %v4225 = vunpack.c.l.b16 %v2133
        %v4226 = vunpack.c.h.b16 %v2133
        %v4227 = vunpack.c.l.b16 %v2134
        %v4228 = vunpack.c.h.b16 %v2134
        %v4229 = vunpack.c.l.b16 %v2135
        %v4230 = vunpack.c.h.b16 %v2135
        %v4231 = vunpack.c.l.b16 %v2136
        %v4232 = vunpack.c.h.b16 %v2136
        %v4233 = vunpack.c.l.b16 %v2137
        %v4234 = vunpack.c.h.b16 %v2137
        %v4235 = vunpack.c.l.b16 %v2138
        %v4236 = vunpack.c.h.b16 %v2138
        %v4237 = vunpack.c.l.b16 %v2139
        %v4238 = vunpack.c.h.b16 %v2139
        %v4239 = vunpack.c.l.b16 %v2140
        %v4240 = vunpack.c.h.b16 %v2140
        %v4241 = vunpack.c.l.b16 %v2141
        %v4242 = vunpack.c.h.b16 %v2141
        %v4243 = vunpack.c.l.b16 %v2142
        %v4244 = vunpack.c.h.b16 %v2142
        %v4245 = vunpack.c.l.b16 %v2143
        %v4246 = vunpack.c.h.b16 %v2143
        %v4247 = vunpack.c.l.b16 %v2144
        %v4248 = vunpack.c.h.b16 %v2144
        %v4249 = vunpack.c.l.b16 %v2145
        %v4250 = vunpack.c.h.b16 %v2145
        %v4251 = vunpack.c.l.b16 %v2146
        %v4252 = vunpack.c.h.b16 %v2146
        %v4253 = vunpack.c.l.b16 %v2147
        %v4254 = vunpack.c.h.b16 %v2147
        %v4255 = vunpack.c.l.b16 %v2148
        %v4256 = vunpack.c.h.b16 %v2148
        %v4257 = vunpack.c.l.b16 %v2149
        %v4258 = vunpack.c.h.b16 %v2149
        %v4259 = vunpack.c.l.b16 %v2150
        %v4260 = vunpack.c.h.b16 %v2150
        %v4261 = vunpack.c.l.b16 %v2151
        %v4262 = vunpack.c.h.b16 %v2151
        %v4263 = vunpack.c.l.b16 %v2152
        %v4264 = vunpack.c.h.b16 %v2152
        %v4265 = vunpack.c.l.b16 %v2153
        %v4266 = vunpack.c.h.b16 %v2153
        %v4267 = vunpack.c.l.b16 %v2154
        %v4268 = vunpack.c.h.b16 %v2154
        %v4269 = vunpack.c.l.b16 %v2155
        %v4270 = vunpack.c.h.b16 %v2155
        %v4271 = vunpack.c.l.b16 %v2156
        %v4272 = vunpack.c.h.b16 %v2156
        %v4273 = vunpack.c.l.b16 %v2157
        %v4274 = vunpack.c.h.b16 %v2157
        %v4275 = vunpack.c.l.b16 %v2158
        %v4276 = vunpack.c.h.b16 %v2158
        %v4277 = vunpack.c.l.b16 %v2159
        %v4278 = vunpack.c.h.b16 %v2159
        %v4279 = vunpack.c.l.b16 %v2160
        %v4280 = vunpack.c.h.b16 %v2160
        %v4281 = vunpack.c.l.b16 %v2161
        %v4282 = vunpack.c.h.b16 %v2161
        %v4283 = vunpack.c.l.b16 %v2162
        %v4284 = vunpack.c.h.b16 %v2162
        %v4285 = vunpack.c.l.b16 %v2163
        %v4286 = vunpack.c.h.b16 %v2163
        %v4287 = vunpack.c.l.b16 %v2164
        %v4288 = vunpack.c.h.b16 %v2164
        %v4289 = vunpack.c.l.b16 %v2165
        %v4290 = vunpack.c.h.b16 %v2165
        %v4291 = vunpack.c.l.b16 %v2166
        %v4292 = vunpack.c.h.b16 %v2166
        %v4293 = vunpack.c.l.b16 %v2167
        %v4294 = vunpack.c.h.b16 %v2167
        %v4295 = vunpack.c.l.b16 %v2168
        %v4296 = vunpack.c.h.b16 %v2168
        %v4297 = vunpack.c.l.b16 %v2169
        %v4298 = vunpack.c.h.b16 %v2169
        %v4299 = vunpack.c.l.b16 %v2170
        %v4300 = vunpack.c.h.b16 %v2170
        %v4301 = vunpack.c.l.b16 %v2171
        %v4302 = vunpack.c.h.b16 %v2171
        %v4303 = vunpack.c.l.b16 %v2172
        %v4304 = vunpack.c.h.b16 %v2172
        %v4305 = vunpack.c.l.b16 %v2173
        %v4306 = vunpack.c.h.b16 %v2173
        %v4307 = vunpack.c.l.b16 %v2174
        %v4308 = vunpack.c.h.b16 %v2174
        %v4309 = vunpack.c.l.b16 %v2175
        %v4310 = vunpack.c.h.b16 %v2175
        %v4311 = vunpack.c.l.b16 %v2176
        %v4312 = vunpack.c.h.b16 %v2176
        %v4313 = vunpack.c.l.b16 %v2177
        %v4314 = vunpack.c.h.b16 %v2177
        %v4315 = vunpack.c.l.b16 %v2178
        %v4316 = vunpack.c.h.b16 %v2178
        %v4317 = vunpack.c.l.b16 %v2179
        %v4318 = vunpack.c.h.b16 %v2179
        %v4319 = vunpack.c.l.b16 %v2180
        %v4320 = vunpack.c.h.b16 %v2180
        %v4321 = vunpack.c.l.b16 %v2181
        %v4322 = vunpack.c.h.b16 %v2181
        %v4323 = vunpack.c.l.b16 %v2182
        %v4324 = vunpack.c.h.b16 %v2182
        %v4325 = vunpack.c.l.b16 %v2183
        %v4326 = vunpack.c.h.b16 %v2183
        %v4327 = vunpack.c.l.b16 %v2184
        %v4328 = vunpack.c.h.b16 %v2184
        %v4329 = vunpack.c.l.b16 %v2185
        %v4330 = vunpack.c.h.b16 %v2185
        %v4331 = vunpack.c.l.b16 %v2186
        %v4332 = vunpack.c.h.b16 %v2186
        %v4333 = vunpack.c.l.b16 %v2187
        %v4334 = vunpack.c.h.b16 %v2187
        %v4335 = vunpack.c.l.b16 %v2188
        %v4336 = vunpack.c.h.b16 %v2188
        %v4337 = vunpack.c.l.b16 %v2189
        %v4338 = vunpack.c.h.b16 %v2189
        %v4339 = vunpack.c.l.b16 %v2190
        %v4340 = vunpack.c.h.b16 %v2190
        %v4341 = vunpack.c.l.b16 %v2191
        %v4342 = vunpack.c.h.b16 %v2191
        %v4343 = vunpack.c.l.b16 %v2192
        %v4344 = vunpack.c.h.b16 %v2192
        %v4345 = vunpack.c.l.b16 %v2193
        %v4346 = vunpack.c.h.b16 %v2193
        %v4347 = vunpack.c.l.b16 %v2194
        %v4348 = vunpack.c.h.b16 %v2194
        %v4349 = vunpack.c.l.b16 %v2195
        %v4350 = vunpack.c.h.b16 %v2195
        %v4351 = vunpack.c.l.b16 %v2196
        %v4352 = vunpack.c.h.b16 %v2196
        %v4353 = vunpack.c.l.b16 %v2197
        %v4354 = vunpack.c.h.b16 %v2197
        %v4355 = vunpack.c.l.b16 %v2198
        %v4356 = vunpack.c.h.b16 %v2198
        %v4357 = vunpack.c.l.b16 %v2199
        %v4358 = vunpack.c.h.b16 %v2199
        %v4359 = vunpack.c.l.b16 %v2200
        %v4360 = vunpack.c.h.b16 %v2200
        %v4361 = vunpack.c.l.b16 %v2201
        %v4362 = vunpack.c.h.b16 %v2201
        %v4363 = vunpack.c.l.b16 %v2202
        %v4364 = vunpack.c.h.b16 %v2202
        %v4365 = vunpack.c.l.b16 %v2203
        %v4366 = vunpack.c.h.b16 %v2203
        %v4367 = vunpack.c.l.b16 %v2204
        %v4368 = vunpack.c.h.b16 %v2204
        %v4369 = vunpack.c.l.b16 %v2205
        %v4370 = vunpack.c.h.b16 %v2205
        %v4371 = vunpack.c.l.b16 %v2206
        %v4372 = vunpack.c.h.b16 %v2206
        %v4373 = vunpack.c.l.b16 %v2207
        %v4374 = vunpack.c.h.b16 %v2207
        %v4375 = vunpack.c.l.b16 %v2208
        %v4376 = vunpack.c.h.b16 %v2208
        %v4377 = vunpack.c.l.b16 %v2209
        %v4378 = vunpack.c.h.b16 %v2209
        %v4379 = vunpack.c.l.b16 %v2210
        %v4380 = vunpack.c.h.b16 %v2210
        %v4381 = vunpack.c.l.b16 %v2211
        %v4382 = vunpack.c.h.b16 %v2211
        %v4383 = vunpack.c.l.b16 %v2212
        %v4384 = vunpack.c.h.b16 %v2212
        %v4385 = vunpack.c.l.b16 %v2213
        %v4386 = vunpack.c.h.b16 %v2213
        %v4387 = vunpack.c.l.b16 %v2214
        %v4388 = vunpack.c.h.b16 %v2214
        %v4389 = vunpack.c.l.b16 %v2215
        %v4390 = vunpack.c.h.b16 %v2215
        %v4391 = vunpack.c.l.b16 %v2216
        %v4392 = vunpack.c.h.b16 %v2216
        %v4393 = vunpack.c.l.b16 %v2217
        %v4394 = vunpack.c.h.b16 %v2217
        %v4395 = vunpack.c.l.b16 %v2218
        %v4396 = vunpack.c.h.b16 %v2218
        %v4397 = vunpack.c.l.b16 %v2219
        %v4398 = vunpack.c.h.b16 %v2219
        %v4399 = vunpack.c.l.b16 %v2220
        %v4400 = vunpack.c.h.b16 %v2220
        %v4401 = vunpack.c.l.b16 %v2221
        %v4402 = vunpack.c.h.b16 %v2221
        %v4403 = vunpack.c.l.b16 %v2222
        %v4404 = vunpack.c.h.b16 %v2222
        %v4405 = vunpack.c.l.b16 %v2223
        %v4406 = vunpack.c.h.b16 %v2223
        %v4407 = vunpack.c.l.b16 %v2224
        %v4408 = vunpack.c.h.b16 %v2224
        %v4409 = vunpack.c.l.b16 %v2225
        %v4410 = vunpack.c.h.b16 %v2225
        %v4411 = vunpack.c.l.b16 %v2226
        %v4412 = vunpack.c.h.b16 %v2226
        %v4413 = vunpack.c.l.b16 %v2227
        %v4414 = vunpack.c.h.b16 %v2227
        %v4415 = vunpack.c.l.b16 %v2228
        %v4416 = vunpack.c.h.b16 %v2228
        %v4417 = vunpack.c.l.b16 %v2229
        %v4418 = vunpack.c.h.b16 %v2229
        %v4419 = vunpack.c.l.b16 %v2230
        %v4420 = vunpack.c.h.b16 %v2230
        %v4421 = vunpack.c.l.b16 %v2231
        %v4422 = vunpack.c.h.b16 %v2231
        %v4423 = vunpack.c.l.b16 %v2232
        %v4424 = vunpack.c.h.b16 %v2232
        %v4425 = vunpack.c.l.b16 %v2233
        %v4426 = vunpack.c.h.b16 %v2233
        %v4427 = vunpack.c.l.b16 %v2234
        %v4428 = vunpack.c.h.b16 %v2234
        %v4429 = vunpack.c.l.b16 %v2235
        %v4430 = vunpack.c.h.b16 %v2235
        %v4431 = vunpack.c.l.b16 %v2236
        %v4432 = vunpack.c.h.b16 %v2236
        %v4433 = vunpack.c.l.b16 %v2237
        %v4434 = vunpack.c.h.b16 %v2237
        %v4435 = vunpack.c.l.b16 %v2238
        %v4436 = vunpack.c.h.b16 %v2238
        %v4437 = vunpack.c.l.b16 %v2239
        %v4438 = vunpack.c.h.b16 %v2239
        %v4439 = vunpack.c.l.b16 %v2240
        %v4440 = vunpack.c.h.b16 %v2240
        %v4441 = vunpack.c.l.b16 %v2241
        %v4442 = vunpack.c.h.b16 %v2241
        %v4443 = vunpack.c.l.b16 %v2242
        %v4444 = vunpack.c.h.b16 %v2242
        %v4445 = vunpack.c.l.b16 %v2243
        %v4446 = vunpack.c.h.b16 %v2243
        %v4447 = vunpack.c.l.b16 %v2244
        %v4448 = vunpack.c.h.b16 %v2244
        %v4449 = vunpack.c.l.b16 %v2245
        %v4450 = vunpack.c.h.b16 %v2245
        %v4451 = vunpack.c.l.b16 %v2246
        %v4452 = vunpack.c.h.b16 %v2246
        %v4453 = vunpack.c.l.b16 %v2247
        %v4454 = vunpack.c.h.b16 %v2247
        %v4455 = vunpack.c.l.b16 %v2248
        %v4456 = vunpack.c.h.b16 %v2248
        %v4457 = vunpack.c.l.b16 %v2249
        %v4458 = vunpack.c.h.b16 %v2249
        %v4459 = vunpack.c.l.b16 %v2250
        %v4460 = vunpack.c.h.b16 %v2250
        %v4461 = vunpack.c.l.b16 %v2251
        %v4462 = vunpack.c.h.b16 %v2251
        %v4463 = vunpack.c.l.b16 %v2252
        %v4464 = vunpack.c.h.b16 %v2252
        %v4465 = vunpack.c.l.b16 %v2253
        %v4466 = vunpack.c.h.b16 %v2253
        %v4467 = vunpack.c.l.b16 %v2254
        %v4468 = vunpack.c.h.b16 %v2254
        %v4469 = vunpack.c.l.b16 %v2255
        %v4470 = vunpack.c.h.b16 %v2255
        %v4471 = vunpack.c.l.b16 %v2256
        %v4472 = vunpack.c.h.b16 %v2256
        %v4473 = vunpack.c.l.b16 %v2257
        %v4474 = vunpack.c.h.b16 %v2257
        %v4475 = vunpack.c.l.b16 %v2258
        %v4476 = vunpack.c.h.b16 %v2258
        %v4477 = vunpack.c.l.b16 %v2259
        %v4478 = vunpack.c.h.b16 %v2259
        %v4479 = vunpack.c.l.b16 %v2260
        %v4480 = vunpack.c.h.b16 %v2260
        %v4481 = vunpack.c.l.b16 %v2261
        %v4482 = vunpack.c.h.b16 %v2261
        %v4483 = vunpack.c.l.b16 %v2262
        %v4484 = vunpack.c.h.b16 %v2262
        %v4485 = vunpack.c.l.b16 %v2263
        %v4486 = vunpack.c.h.b16 %v2263
        %v4487 = vunpack.c.l.b16 %v2264
        %v4488 = vunpack.c.h.b16 %v2264
        %v4489 = vunpack.c.l.b16 %v2265
        %v4490 = vunpack.c.h.b16 %v2265
        %v4491 = vunpack.c.l.b16 %v2266
        %v4492 = vunpack.c.h.b16 %v2266
        %v4493 = vunpack.c.l.b16 %v2267
        %v4494 = vunpack.c.h.b16 %v2267
        %v4495 = vunpack.c.l.b16 %v2268
        %v4496 = vunpack.c.h.b16 %v2268
        %v4497 = vunpack.c.l.b16 %v2269
        %v4498 = vunpack.c.h.b16 %v2269
        %v4499 = vunpack.c.l.b16 %v2270
        %v4500 = vunpack.c.h.b16 %v2270
        %v4501 = vunpack.c.l.b16 %v2271
        %v4502 = vunpack.c.h.b16 %v2271
        %v4503 = vunpack.c.l.b16 %v2272
        %v4504 = vunpack.c.h.b16 %v2272
        %v4505 = vunpack.c.l.b16 %v2273
        %v4506 = vunpack.c.h.b16 %v2273
        %v4507 = vunpack.c.l.b16 %v2274
        %v4508 = vunpack.c.h.b16 %v2274
        %v4509 = vunpack.c.l.b16 %v2275
        %v4510 = vunpack.c.h.b16 %v2275
        %v4511 = vunpack.c.l.b16 %v2276
        %v4512 = vunpack.c.h.b16 %v2276
        %v4513 = vunpack.c.l.b16 %v2277
        %v4514 = vunpack.c.h.b16 %v2277
        %v4515 = vunpack.c.l.b16 %v2278
        %v4516 = vunpack.c.h.b16 %v2278
        %v4517 = vunpack.c.l.b16 %v2279
        %v4518 = vunpack.c.h.b16 %v2279
        %v4519 = vunpack.c.l.b16 %v2280
        %v4520 = vunpack.c.h.b16 %v2280
        %v4521 = vunpack.c.l.b16 %v2281
        %v4522 = vunpack.c.h.b16 %v2281
        %v4523 = vunpack.c.l.b16 %v2282
        %v4524 = vunpack.c.h.b16 %v2282
        %v4525 = vunpack.c.l.b16 %v2283
        %v4526 = vunpack.c.h.b16 %v2283
        %v4527 = vunpack.c.l.b16 %v2284
        %v4528 = vunpack.c.h.b16 %v2284
        %v4529 = vunpack.c.l.b16 %v2285
        %v4530 = vunpack.c.h.b16 %v2285
        %v4531 = vunpack.c.l.b16 %v2286
        %v4532 = vunpack.c.h.b16 %v2286
        %v4533 = vunpack.c.l.b16 %v2287
        %v4534 = vunpack.c.h.b16 %v2287
        %v4535 = vunpack.c.l.b16 %v2288
        %v4536 = vunpack.c.h.b16 %v2288
        %v4537 = vunpack.c.l.b16 %v2289
        %v4538 = vunpack.c.h.b16 %v2289
        %v4539 = vunpack.c.l.b16 %v2290
        %v4540 = vunpack.c.h.b16 %v2290
        %v4541 = vunpack.c.l.b16 %v2291
        %v4542 = vunpack.c.h.b16 %v2291
        %v4543 = vunpack.c.l.b16 %v2292
        %v4544 = vunpack.c.h.b16 %v2292
        %v4545 = vunpack.c.l.b16 %v2293
        %v4546 = vunpack.c.h.b16 %v2293
        %v4547 = vunpack.c.l.b16 %v2294
        %v4548 = vunpack.c.h.b16 %v2294
        %v4549 = vunpack.c.l.b16 %v2295
        %v4550 = vunpack.c.h.b16 %v2295
        %v4551 = vunpack.c.l.b16 %v2296
        %v4552 = vunpack.c.h.b16 %v2296
        %v4553 = vunpack.c.l.b16 %v2297
        %v4554 = vunpack.c.h.b16 %v2297
        %v4555 = vunpack.c.l.b16 %v2298
        %v4556 = vunpack.c.h.b16 %v2298
        %v4557 = vunpack.c.l.b16 %v2299
        %v4558 = vunpack.c.h.b16 %v2299
        %v4559 = vunpack.c.l.b16 %v2300
        %v4560 = vunpack.c.h.b16 %v2300
        %v4561 = vunpack.c.l.b16 %v2301
        %v4562 = vunpack.c.h.b16 %v2301
        %v4563 = vunpack.c.l.b16 %v2302
        %v4564 = vunpack.c.h.b16 %v2302
        %v4565 = vunpack.c.l.b16 %v2303
        %v4566 = vunpack.c.h.b16 %v2303
        %v4567 = vunpack.c.l.b16 %v2304
        %v4568 = vunpack.c.h.b16 %v2304
        %v4569 = vunpack.c.l.b16 %v2305
        %v4570 = vunpack.c.h.b16 %v2305
        %v4571 = vunpack.c.l.b16 %v2306
        %v4572 = vunpack.c.h.b16 %v2306
        %v4573 = vunpack.c.l.b16 %v2307
        %v4574 = vunpack.c.h.b16 %v2307
        %v4575 = vunpack.c.l.b16 %v2308
        %v4576 = vunpack.c.h.b16 %v2308
        %v4577 = vunpack.c.l.b16 %v2309
        %v4578 = vunpack.c.h.b16 %v2309
        %v4579 = vunpack.c.l.b16 %v2310
        %v4580 = vunpack.c.h.b16 %v2310
        %v4581 = vunpack.c.l.b16 %v2311
        %v4582 = vunpack.c.h.b16 %v2311
        %v4583 = vunpack.c.l.b16 %v2312
        %v4584 = vunpack.c.h.b16 %v2312
        %v4585 = vunpack.c.l.b16 %v2313
        %v4586 = vunpack.c.h.b16 %v2313
        %v4587 = vunpack.c.l.b16 %v2314
        %v4588 = vunpack.c.h.b16 %v2314
        %v4589 = vunpack.c.l.b16 %v2315
        %v4590 = vunpack.c.h.b16 %v2315
        %v4591 = vunpack.c.l.b16 %v2316
        %v4592 = vunpack.c.h.b16 %v2316
        %v4593 = vunpack.c.l.b16 %v2317
        %v4594 = vunpack.c.h.b16 %v2317
        %v4595 = vunpack.c.l.b16 %v2318
        %v4596 = vunpack.c.h.b16 %v2318
        %v4597 = vunpack.c.l.b16 %v2319
        %v4598 = vunpack.c.h.b16 %v2319
        %v4599 = vunpack.c.l.b16 %v2320
        %v4600 = vunpack.c.h.b16 %v2320
        %v4601 = vunpack.c.l.b16 %v2321
        %v4602 = vunpack.c.h.b16 %v2321
        %v4603 = vunpack.c.l.b16 %v2322
        %v4604 = vunpack.c.h.b16 %v2322
        %v4605 = vunpack.c.l.b16 %v2323
        %v4606 = vunpack.c.h.b16 %v2323
        %v4607 = vunpack.c.l.b16 %v2324
        %v4608 = vunpack.c.h.b16 %v2324
        %v4609 = vunpack.c.l.b16 %v2325
        %v4610 = vunpack.c.h.b16 %v2325
        %v4611 = vunpack.c.l.b16 %v2326
        %v4612 = vunpack.c.h.b16 %v2326
        %v4613 = vunpack.c.l.b16 %v2327
        %v4614 = vunpack.c.h.b16 %v2327
        %v4615 = vunpack.c.l.b16 %v2328
        %v4616 = vunpack.c.h.b16 %v2328
        %v4617 = vunpack.c.l.b16 %v2329
        %v4618 = vunpack.c.h.b16 %v2329
        %v4619 = vunpack.c.l.b16 %v2330
        %v4620 = vunpack.c.h.b16 %v2330
        %v4621 = vunpack.c.l.b16 %v2331
        %v4622 = vunpack.c.h.b16 %v2331
        %v4623 = vunpack.c.l.b16 %v2332
        %v4624 = vunpack.c.h.b16 %v2332
        %v4625 = vunpack.c.l.b16 %v2333
        %v4626 = vunpack.c.h.b16 %v2333
        %v4627 = vunpack.c.l.b16 %v2334
        %v4628 = vunpack.c.h.b16 %v2334
        %v4629 = vunpack.c.l.b16 %v2335
        %v4630 = vunpack.c.h.b16 %v2335
        %v4631 = vunpack.c.l.b16 %v2336
        %v4632 = vunpack.c.h.b16 %v2336
        %v4633 = vunpack.c.l.b16 %v2337
        %v4634 = vunpack.c.h.b16 %v2337
        %v4635 = vunpack.c.l.b16 %v2338
        %v4636 = vunpack.c.h.b16 %v2338
        %v4637 = vunpack.c.l.b16 %v2339
        %v4638 = vunpack.c.h.b16 %v2339
        %v4639 = vunpack.c.l.b16 %v2340
        %v4640 = vunpack.c.h.b16 %v2340
        %v4641 = vunpack.c.l.b16 %v2341
        %v4642 = vunpack.c.h.b16 %v2341
        %v4643 = vunpack.c.l.b16 %v2342
        %v4644 = vunpack.c.h.b16 %v2342
        %v4645 = vunpack.c.l.b16 %v2343
        %v4646 = vunpack.c.h.b16 %v2343
        %v4647 = vunpack.c.l.b16 %v2344
        %v4648 = vunpack.c.h.b16 %v2344
        %v4649 = vunpack.c.l.b16 %v2345
        %v4650 = vunpack.c.h.b16 %v2345
        %v4651 = vunpack.c.l.b16 %v2346
        %v4652 = vunpack.c.h.b16 %v2346
        %v4653 = vunpack.c.l.b16 %v2347
        %v4654 = vunpack.c.h.b16 %v2347
        %v4655 = vunpack.c.l.b16 %v2348
        %v4656 = vunpack.c.h.b16 %v2348
        %v4657 = vunpack.c.l.b16 %v2349
        %v4658 = vunpack.c.h.b16 %v2349
        %v4659 = vunpack.c.l.b16 %v2350
        %v4660 = vunpack.c.h.b16 %v2350
        %v4661 = vunpack.c.l.b16 %v2351
        %v4662 = vunpack.c.h.b16 %v2351
        %v4663 = vunpack.c.l.b16 %v2352
        %v4664 = vunpack.c.h.b16 %v2352
        %v4665 = vunpack.c.l.b16 %v2353
        %v4666 = vunpack.c.h.b16 %v2353
        %v4667 = vunpack.c.l.b16 %v2354
        %v4668 = vunpack.c.h.b16 %v2354
        %v4669 = vunpack.c.l.b16 %v2355
        %v4670 = vunpack.c.h.b16 %v2355
        %v4671 = vunpack.c.l.b16 %v2356
        %v4672 = vunpack.c.h.b16 %v2356
        %v4673 = vunpack.c.l.b16 %v2357
        %v4674 = vunpack.c.h.b16 %v2357
        %v4675 = vunpack.c.l.b16 %v2358
        %v4676 = vunpack.c.h.b16 %v2358
        %v4677 = vunpack.c.l.b16 %v2359
        %v4678 = vunpack.c.h.b16 %v2359
        %v4679 = vunpack.c.l.b16 %v2360
        %v4680 = vunpack.c.h.b16 %v2360
        %v4681 = vunpack.c.l.b16 %v2361
        %v4682 = vunpack.c.h.b16 %v2361
        %v4683 = vunpack.c.l.b16 %v2362
        %v4684 = vunpack.c.h.b16 %v2362
        %v4685 = vunpack.c.l.b16 %v2363
        %v4686 = vunpack.c.h.b16 %v2363
        %v4687 = vunpack.c.l.b16 %v2364
        %v4688 = vunpack.c.h.b16 %v2364
        %v4689 = vunpack.c.l.b16 %v2365
        %v4690 = vunpack.c.h.b16 %v2365
        %v4691 = vunpack.c.l.b16 %v2366
        %v4692 = vunpack.c.h.b16 %v2366
        %v4693 = vunpack.c.l.b16 %v2367
        %v4694 = vunpack.c.h.b16 %v2367
        %v4695 = vunpack.c.l.b16 %v2368
        %v4696 = vunpack.c.h.b16 %v2368
        %v4697 = vunpack.c.l.b16 %v2369
        %v4698 = vunpack.c.h.b16 %v2369
        %v4699 = vunpack.c.l.b16 %v2370
        %v4700 = vunpack.c.h.b16 %v2370
        %v4701 = vunpack.c.l.b16 %v2371
        %v4702 = vunpack.c.h.b16 %v2371
        %v4703 = vunpack.c.l.b16 %v2372
        %v4704 = vunpack.c.h.b16 %v2372
        %v4705 = vunpack.c.l.b16 %v2373
        %v4706 = vunpack.c.h.b16 %v2373
        %v4707 = vunpack.c.l.b16 %v2374
        %v4708 = vunpack.c.h.b16 %v2374
        %v4709 = vunpack.c.l.b16 %v2375
        %v4710 = vunpack.c.h.b16 %v2375
        %v4711 = vunpack.c.l.b16 %v2376
        %v4712 = vunpack.c.h.b16 %v2376
        %v4713 = vunpack.c.l.b16 %v2377
        %v4714 = vunpack.c.h.b16 %v2377
        %v4715 = vunpack.c.l.b16 %v2378
        %v4716 = vunpack.c.h.b16 %v2378
        %v4717 = vunpack.c.l.b16 %v2379
        %v4718 = vunpack.c.h.b16 %v2379
        %v4719 = vunpack.c.l.b16 %v2380
        %v4720 = vunpack.c.h.b16 %v2380
        %v4721 = vunpack.c.l.b16 %v2381
        %v4722 = vunpack.c.h.b16 %v2381
        %v4723 = vunpack.c.l.b16 %v2382
        %v4724 = vunpack.c.h.b16 %v2382
        %v4725 = vunpack.c.l.b16 %v2383
        %v4726 = vunpack.c.h.b16 %v2383
        %v4727 = vunpack.c.l.b16 %v2384
        %v4728 = vunpack.c.h.b16 %v2384
        %v4729 = vunpack.c.l.b16 %v2385
        %v4730 = vunpack.c.h.b16 %v2385
        %v4731 = vunpack.c.l.b16 %v2386
        %v4732 = vunpack.c.h.b16 %v2386
        %v4733 = vunpack.c.l.b16 %v2387
        %v4734 = vunpack.c.h.b16 %v2387
        %v4735 = vunpack.c.l.b16 %v2388
        %v4736 = vunpack.c.h.b16 %v2388
        %v4737 = vunpack.c.l.b16 %v2389
        %v4738 = vunpack.c.h.b16 %v2389
        %v4739 = vunpack.c.l.b16 %v2390
        %v4740 = vunpack.c.h.b16 %v2390
        %v4741 = vunpack.c.l.b16 %v2391
        %v4742 = vunpack.c.h.b16 %v2391
        %v4743 = vunpack.c.l.b16 %v2392
        %v4744 = vunpack.c.h.b16 %v2392
        %v4745 = vunpack.c.l.b16 %v2393
        %v4746 = vunpack.c.h.b16 %v2393
        %v4747 = vunpack.c.l.b16 %v2394
        %v4748 = vunpack.c.h.b16 %v2394
        %v4749 = vunpack.c.l.b16 %v2395
        %v4750 = vunpack.c.h.b16 %v2395
        %v4751 = vunpack.c.l.b16 %v2396
        %v4752 = vunpack.c.h.b16 %v2396
        %v4753 = vunpack.c.l.b16 %v2397
        %v4754 = vunpack.c.h.b16 %v2397
        %v4755 = vunpack.c.l.b16 %v2398
        %v4756 = vunpack.c.h.b16 %v2398
        %v4757 = vunpack.c.l.b16 %v2399
        %v4758 = vunpack.c.h.b16 %v2399
        %v4759 = vunpack.c.l.b16 %v2400
        %v4760 = vunpack.c.h.b16 %v2400
        %v4761 = vunpack.c.l.b16 %v2401
        %v4762 = vunpack.c.h.b16 %v2401
        %v4763 = vunpack.c.l.b16 %v2402
        %v4764 = vunpack.c.h.b16 %v2402
        %v4765 = vunpack.c.l.b16 %v2403
        %v4766 = vunpack.c.h.b16 %v2403
        %v4767 = vunpack.c.l.b16 %v2404
        %v4768 = vunpack.c.h.b16 %v2404
        %v4769 = vunpack.c.l.b16 %v2405
        %v4770 = vunpack.c.h.b16 %v2405
        %v4771 = vunpack.c.l.b16 %v2406
        %v4772 = vunpack.c.h.b16 %v2406
        %v4773 = vunpack.c.l.b16 %v2407
        %v4774 = vunpack.c.h.b16 %v2407
        %v4775 = vunpack.c.l.b16 %v2408
        %v4776 = vunpack.c.h.b16 %v2408
        %v4777 = vunpack.c.l.b16 %v2409
        %v4778 = vunpack.c.h.b16 %v2409
        %v4779 = vunpack.c.l.b16 %v2410
        %v4780 = vunpack.c.h.b16 %v2410
        %v4781 = vunpack.c.l.b16 %v2411
        %v4782 = vunpack.c.h.b16 %v2411
        %v4783 = vunpack.c.l.b16 %v2412
        %v4784 = vunpack.c.h.b16 %v2412
        %v4785 = vunpack.c.l.b16 %v2413
        %v4786 = vunpack.c.h.b16 %v2413
        %v4787 = vunpack.c.l.b16 %v2414
        %v4788 = vunpack.c.h.b16 %v2414
        %v4789 = vunpack.c.l.b16 %v2415
        %v4790 = vunpack.c.h.b16 %v2415
        %v4791 = vunpack.c.l.b16 %v2416
        %v4792 = vunpack.c.h.b16 %v2416
        %v4793 = vunpack.c.l.b16 %v2417
        %v4794 = vunpack.c.h.b16 %v2417
        %v4795 = vunpack.c.l.b16 %v2418
        %v4796 = vunpack.c.h.b16 %v2418
        %v4797 = vunpack.c.l.b16 %v2419
        %v4798 = vunpack.c.h.b16 %v2419
        %v4799 = vunpack.c.l.b16 %v2420
        %v4800 = vunpack.c.h.b16 %v2420
        %v4801 = vunpack.c.l.b16 %v2421
        %v4802 = vunpack.c.h.b16 %v2421
        %v4803 = vunpack.c.l.b16 %v2422
        %v4804 = vunpack.c.h.b16 %v2422
        %v4805 = vunpack.c.l.b16 %v2423
        %v4806 = vunpack.c.h.b16 %v2423
        %v4807 = vunpack.c.l.b16 %v2424
        %v4808 = vunpack.c.h.b16 %v2424
        %v4809 = vunpack.c.l.b16 %v2425
        %v4810 = vunpack.c.h.b16 %v2425
        %v4811 = vunpack.c.l.b16 %v2426
        %v4812 = vunpack.c.h.b16 %v2426
        %v4813 = vunpack.c.l.b16 %v2427
        %v4814 = vunpack.c.h.b16 %v2427
        %v4815 = vunpack.c.l.b16 %v2428
        %v4816 = vunpack.c.h.b16 %v2428
        %v4817 = vunpack.c.l.b16 %v2429
        %v4818 = vunpack.c.h.b16 %v2429
        %v4819 = vunpack.c.l.b16 %v2430
        %v4820 = vunpack.c.h.b16 %v2430
        %v4821 = vunpack.c.l.b16 %v2431
        %v4822 = vunpack.c.h.b16 %v2431
        %v4823 = vunpack.c.l.b16 %v2432
        %v4824 = vunpack.c.h.b16 %v2432
        %v4825 = vunpack.c.l.b16 %v2433
        %v4826 = vunpack.c.h.b16 %v2433
        %v4827 = vunpack.c.l.b16 %v2434
        %v4828 = vunpack.c.h.b16 %v2434
        %v4829 = vunpack.c.l.b16 %v2435
        %v4830 = vunpack.c.h.b16 %v2435
        %v4831 = vunpack.c.l.b16 %v2436
        %v4832 = vunpack.c.h.b16 %v2436
        %v4833 = vunpack.c.l.b16 %v2437
        %v4834 = vunpack.c.h.b16 %v2437
        %v4835 = vunpack.c.l.b16 %v2438
        %v4836 = vunpack.c.h.b16 %v2438
        %v4837 = vunpack.c.l.b16 %v2439
        %v4838 = vunpack.c.h.b16 %v2439
        %v4839 = vunpack.c.l.b16 %v2440
        %v4840 = vunpack.c.h.b16 %v2440
        %v4841 = vunpack.c.l.b16 %v2441
        %v4842 = vunpack.c.h.b16 %v2441
        %v4843 = vunpack.c.l.b16 %v2442
        %v4844 = vunpack.c.h.b16 %v2442
        %v4845 = vunpack.c.l.b16 %v2443
        %v4846 = vunpack.c.h.b16 %v2443
        %v4847 = vunpack.c.l.b16 %v2444
        %v4848 = vunpack.c.h.b16 %v2444
        %v4849 = vunpack.c.l.b16 %v2445
        %v4850 = vunpack.c.h.b16 %v2445
        %v4851 = vunpack.c.l.b16 %v2446
        %v4852 = vunpack.c.h.b16 %v2446
        %v4853 = vunpack.c.l.b16 %v2447
        %v4854 = vunpack.c.h.b16 %v2447
        %v4855 = vunpack.c.l.b16 %v2448
        %v4856 = vunpack.c.h.b16 %v2448
        %v4857 = vunpack.c.l.b16 %v2449
        %v4858 = vunpack.c.h.b16 %v2449
        %v4859 = vunpack.c.l.b16 %v2450
        %v4860 = vunpack.c.h.b16 %v2450
        %v4861 = vunpack.c.l.b16 %v2451
        %v4862 = vunpack.c.h.b16 %v2451
        %v4863 = vunpack.c.l.b16 %v2452
        %v4864 = vunpack.c.h.b16 %v2452
        %v4865 = vunpack.c.l.b16 %v2453
        %v4866 = vunpack.c.h.b16 %v2453
        %v4867 = vunpack.c.l.b16 %v2454
        %v4868 = vunpack.c.h.b16 %v2454
        %v4869 = vunpack.c.l.b16 %v2455
        %v4870 = vunpack.c.h.b16 %v2455
        %v4871 = vunpack.c.l.b16 %v2456
        %v4872 = vunpack.c.h.b16 %v2456
        %v4873 = vunpack.c.l.b16 %v2457
        %v4874 = vunpack.c.h.b16 %v2457
        %v4875 = vunpack.c.l.b16 %v2458
        %v4876 = vunpack.c.h.b16 %v2458
        %v4877 = vunpack.c.l.b16 %v2459
        %v4878 = vunpack.c.h.b16 %v2459
        %v4879 = vunpack.c.l.b16 %v2460
        %v4880 = vunpack.c.h.b16 %v2460
        %v4881 = vunpack.c.l.b16 %v2461
        %v4882 = vunpack.c.h.b16 %v2461
        %v4883 = vunpack.c.l.b16 %v2462
        %v4884 = vunpack.c.h.b16 %v2462
        %v4885 = vunpack.c.l.b16 %v2463
        %v4886 = vunpack.c.h.b16 %v2463
        %v4887 = vunpack.c.l.b16 %v2464
        %v4888 = vunpack.c.h.b16 %v2464
        %v4889 = vunpack.c.l.b16 %v2465
        %v4890 = vunpack.c.h.b16 %v2465
        %v4891 = vunpack.c.l.b16 %v2466
        %v4892 = vunpack.c.h.b16 %v2466
        %v4893 = vunpack.c.l.b16 %v2467
        %v4894 = vunpack.c.h.b16 %v2467
        %v4895 = vunpack.c.l.b16 %v2468
        %v4896 = vunpack.c.h.b16 %v2468
        %v4897 = vunpack.c.l.b16 %v2469
        %v4898 = vunpack.c.h.b16 %v2469
        %v4899 = vunpack.c.l.b16 %v2470
        %v4900 = vunpack.c.h.b16 %v2470
        %v4901 = vunpack.c.l.b16 %v2471
        %v4902 = vunpack.c.h.b16 %v2471
        %v4903 = vunpack.c.l.b16 %v2472
        %v4904 = vunpack.c.h.b16 %v2472
        %v4905 = vunpack.c.l.b16 %v2473
        %v4906 = vunpack.c.h.b16 %v2473
        %v4907 = vunpack.c.l.b16 %v2474
        %v4908 = vunpack.c.h.b16 %v2474
        %v4909 = vunpack.c.l.b16 %v2475
        %v4910 = vunpack.c.h.b16 %v2475
        %v4911 = vunpack.c.l.b16 %v2476
        %v4912 = vunpack.c.h.b16 %v2476
        %v4913 = vunpack.c.l.b16 %v2477
        %v4914 = vunpack.c.h.b16 %v2477
        %v4915 = vunpack.c.l.b16 %v2478
        %v4916 = vunpack.c.h.b16 %v2478
        %v4917 = vunpack.c.l.b16 %v2479
        %v4918 = vunpack.c.h.b16 %v2479
        %v4919 = vunpack.c.l.b16 %v2480
        %v4920 = vunpack.c.h.b16 %v2480
        %v4921 = vunpack.c.l.b16 %v2481
        %v4922 = vunpack.c.h.b16 %v2481
        %v4923 = vunpack.c.l.b16 %v2482
        %v4924 = vunpack.c.h.b16 %v2482
        %v4925 = vunpack.c.l.b16 %v2483
        %v4926 = vunpack.c.h.b16 %v2483
        %v4927 = vunpack.c.l.b16 %v2484
        %v4928 = vunpack.c.h.b16 %v2484
        %v4929 = vunpack.c.l.b16 %v2485
        %v4930 = vunpack.c.h.b16 %v2485
        %v4931 = vunpack.c.l.b16 %v2486
        %v4932 = vunpack.c.h.b16 %v2486
        %v4933 = vunpack.c.l.b16 %v2487
        %v4934 = vunpack.c.h.b16 %v2487
        %v4935 = vunpack.c.l.b16 %v2488
        %v4936 = vunpack.c.h.b16 %v2488
        %v4937 = vunpack.c.l.b16 %v2489
        %v4938 = vunpack.c.h.b16 %v2489
        %v4939 = vunpack.c.l.b16 %v2490
        %v4940 = vunpack.c.h.b16 %v2490
        %v4941 = vunpack.c.l.b16 %v2491
        %v4942 = vunpack.c.h.b16 %v2491
        %v4943 = vunpack.c.l.b16 %v2492
        %v4944 = vunpack.c.h.b16 %v2492
        %v4945 = vunpack.c.l.b16 %v2493
        %v4946 = vunpack.c.h.b16 %v2493
        %v4947 = vunpack.c.l.b16 %v2494
        %v4948 = vunpack.c.h.b16 %v2494
        %v4949 = vunpack.c.l.b16 %v2495
        %v4950 = vunpack.c.h.b16 %v2495
        %v4951 = vunpack.c.l.b16 %v2496
        %v4952 = vunpack.c.h.b16 %v2496
        %v4953 = vunpack.c.l.b16 %v2497
        %v4954 = vunpack.c.h.b16 %v2497
        %v4955 = vunpack.c.l.b16 %v2498
        %v4956 = vunpack.c.h.b16 %v2498
        %v4957 = vunpack.c.l.b16 %v2499
        %v4958 = vunpack.c.h.b16 %v2499
        %v4959 = vunpack.c.l.b16 %v2500
        %v4960 = vunpack.c.h.b16 %v2500
        %v4961 = vunpack.c.l.b16 %v2501
        %v4962 = vunpack.c.h.b16 %v2501
        %v4963 = vunpack.c.l.b16 %v2502
        %v4964 = vunpack.c.h.b16 %v2502
        %v4965 = vunpack.c.l.b16 %v2503
        %v4966 = vunpack.c.h.b16 %v2503
        %v4967 = vunpack.c.l.b16 %v2504
        %v4968 = vunpack.c.h.b16 %v2504
        %v4969 = vunpack.c.l.b16 %v2505
        %v4970 = vunpack.c.h.b16 %v2505
        %v4971 = vunpack.c.l.b16 %v2506
        %v4972 = vunpack.c.h.b16 %v2506
        %v4973 = vunpack.c.l.b16 %v2507
        %v4974 = vunpack.c.h.b16 %v2507
        %v4975 = vunpack.c.l.b16 %v2508
        %v4976 = vunpack.c.h.b16 %v2508
        %v4977 = vunpack.c.l.b16 %v2509
        %v4978 = vunpack.c.h.b16 %v2509
        %v4979 = vunpack.c.l.b16 %v2510
        %v4980 = vunpack.c.h.b16 %v2510
        %v4981 = vunpack.c.l.b16 %v2511
        %v4982 = vunpack.c.h.b16 %v2511
        %v4983 = vunpack.c.l.b16 %v2512
        %v4984 = vunpack.c.h.b16 %v2512
        %v4985 = vunpack.c.l.b16 %v2513
        %v4986 = vunpack.c.h.b16 %v2513
        %v4987 = vunpack.c.l.b16 %v2514
        %v4988 = vunpack.c.h.b16 %v2514
        %v4989 = vunpack.c.l.b16 %v2515
        %v4990 = vunpack.c.h.b16 %v2515
        %v4991 = vunpack.c.l.b16 %v2516
        %v4992 = vunpack.c.h.b16 %v2516
        %v4993 = vunpack.c.l.b16 %v2517
        %v4994 = vunpack.c.h.b16 %v2517
        %v4995 = vunpack.c.l.b16 %v2518
        %v4996 = vunpack.c.h.b16 %v2518
        %v4997 = vunpack.c.l.b16 %v2519
        %v4998 = vunpack.c.h.b16 %v2519
        %v4999 = vunpack.c.l.b16 %v2520
        %v5000 = vunpack.c.h.b16 %v2520
        %v5001 = vunpack.c.l.b16 %v2521
        %v5002 = vunpack.c.h.b16 %v2521
        %v5003 = vunpack.c.l.b16 %v2522
        %v5004 = vunpack.c.h.b16 %v2522
        %v5005 = vunpack.c.l.b16 %v2523
        %v5006 = vunpack.c.h.b16 %v2523
        %v5007 = vunpack.c.l.b16 %v2524
        %v5008 = vunpack.c.h.b16 %v2524
        %v5009 = vunpack.c.l.b16 %v2525
        %v5010 = vunpack.c.h.b16 %v2525
        %v5011 = vunpack.c.l.b16 %v2526
        %v5012 = vunpack.c.h.b16 %v2526
        %v5013 = vunpack.c.l.b16 %v2527
        %v5014 = vunpack.c.h.b16 %v2527
        %v5015 = vunpack.c.l.b16 %v2528
        %v5016 = vunpack.c.h.b16 %v2528
        %v5017 = vunpack.c.l.b16 %v2529
        %v5018 = vunpack.c.h.b16 %v2529
        %v5019 = vunpack.c.l.b16 %v2530
        %v5020 = vunpack.c.h.b16 %v2530
        %v5021 = vunpack.c.l.b16 %v2531
        %v5022 = vunpack.c.h.b16 %v2531
        %v5023 = vunpack.c.l.b16 %v2532
        %v5024 = vunpack.c.h.b16 %v2532
        %v5025 = vunpack.c.l.b16 %v2533
        %v5026 = vunpack.c.h.b16 %v2533
        %v5027 = vunpack.c.l.b16 %v2534
        %v5028 = vunpack.c.h.b16 %v2534
        %v5029 = vunpack.c.l.b16 %v2535
        %v5030 = vunpack.c.h.b16 %v2535
        %v5031 = vunpack.c.l.b16 %v2536
        %v5032 = vunpack.c.h.b16 %v2536
        %v5033 = vunpack.c.l.b16 %v2537
        %v5034 = vunpack.c.h.b16 %v2537
        %v5035 = vunpack.c.l.b16 %v2538
        %v5036 = vunpack.c.h.b16 %v2538
        %v5037 = vunpack.c.l.b16 %v2539
        %v5038 = vunpack.c.h.b16 %v2539
        %v5039 = vunpack.c.l.b16 %v2540
        %v5040 = vunpack.c.h.b16 %v2540
        %v5041 = vunpack.c.l.b16 %v2541
        %v5042 = vunpack.c.h.b16 %v2541
        %v5043 = vunpack.c.l.b16 %v2542
        %v5044 = vunpack.c.h.b16 %v2542
        %v5045 = vunpack.c.l.b16 %v2543
        %v5046 = vunpack.c.h.b16 %v2543
        %v5047 = vunpack.c.l.b16 %v2544
        %v5048 = vunpack.c.h.b16 %v2544
        %v5049 = vunpack.c.l.b16 %v2545
        %v5050 = vunpack.c.h.b16 %v2545
        %v5051 = vunpack.c.l.b16 %v2546
        %v5052 = vunpack.c.h.b16 %v2546
        %v5053 = vunpack.c.l.b16 %v2547
        %v5054 = vunpack.c.h.b16 %v2547
        %v5055 = vunpack.c.l.b16 %v2548
        %v5056 = vunpack.c.h.b16 %v2548
        %v5057 = vunpack.c.l.b16 %v2549
        %v5058 = vunpack.c.h.b16 %v2549
        %v5059 = vunpack.c.l.b16 %v2550
        %v5060 = vunpack.c.h.b16 %v2550
        %v5061 = vunpack.c.l.b16 %v2551
        %v5062 = vunpack.c.h.b16 %v2551
        %v5063 = vunpack.c.l.b16 %v2552
        %v5064 = vunpack.c.h.b16 %v2552
        %v5065 = vunpack.c.l.b16 %v2553
        %v5066 = vunpack.c.h.b16 %v2553
        %v5067 = vunpack.c.l.b16 %v2554
        %v5068 = vunpack.c.h.b16 %v2554
        %v5069 = vunpack.c.l.b16 %v2555
        %v5070 = vunpack.c.h.b16 %v2555
        %v5071 = vunpack.c.l.b16 %v2556
        %v5072 = vunpack.c.h.b16 %v2556
        %v5073 = vunpack.c.l.b16 %v2557
        %v5074 = vunpack.c.h.b16 %v2557
        %v5075 = vunpack.c.l.b16 %v2558
        %v5076 = vunpack.c.h.b16 %v2558
        %v5077 = vunpack.c.l.b16 %v2559
        %v5078 = vunpack.c.h.b16 %v2559
        %v5079 = vunpack.c.l.b16 %v2560
        %v5080 = vunpack.c.h.b16 %v2560
        %v5081 = vunpack.c.l.b16 %v2561
        %v5082 = vunpack.c.h.b16 %v2561
        %v5083 = vunpack.c.l.b16 %v2562
        %v5084 = vunpack.c.h.b16 %v2562
        %v5085 = vunpack.c.l.b16 %v2563
        %v5086 = vunpack.c.h.b16 %v2563
        %v5087 = vunpack.c.l.b16 %v2564
        %v5088 = vunpack.c.h.b16 %v2564
        %v5089 = vunpack.c.l.b16 %v2565
        %v5090 = vunpack.c.h.b16 %v2565
        %v5091 = vunpack.c.l.b16 %v2566
        %v5092 = vunpack.c.h.b16 %v2566
        %v5093 = vunpack.c.l.b16 %v2567
        %v5094 = vunpack.c.h.b16 %v2567
        %v5095 = vunpack.c.l.b16 %v2568
        %v5096 = vunpack.c.h.b16 %v2568
        %v5097 = vunpack.c.l.b16 %v2569
        %v5098 = vunpack.c.h.b16 %v2569
        %v5099 = vunpack.c.l.b16 %v2570
        %v5100 = vunpack.c.h.b16 %v2570
        %v5101 = vunpack.c.l.b16 %v2571
        %v5102 = vunpack.c.h.b16 %v2571
        %v5103 = vunpack.c.l.b16 %v2572
        %v5104 = vunpack.c.h.b16 %v2572
        %v5105 = vunpack.c.l.b16 %v2573
        %v5106 = vunpack.c.h.b16 %v2573
        %v5107 = vunpack.c.l.b16 %v2574
        %v5108 = vunpack.c.h.b16 %v2574
        %v5109 = vunpack.c.l.b16 %v2575
        %v5110 = vunpack.c.h.b16 %v2575
        %v5111 = vunpack.c.l.b16 %v2576
        %v5112 = vunpack.c.h.b16 %v2576
        %v5113 = vunpack.c.l.b16 %v2577
        %v5114 = vunpack.c.h.b16 %v2577
        %v5115 = vunpack.c.l.b16 %v2578
        %v5116 = vunpack.c.h.b16 %v2578
        %v5117 = vunpack.c.l.b16 %v2579
        %v5118 = vunpack.c.h.b16 %v2579
        %v5119 = vunpack.c.l.b16 %v2580
        %v5120 = vunpack.c.h.b16 %v2580
        %v5121 = vunpack.c.l.b16 %v2581
        %v5122 = vunpack.c.h.b16 %v2581
        %v5123 = vunpack.c.l.b16 %v2582
        %v5124 = vunpack.c.h.b16 %v2582
        %v5125 = vunpack.c.l.b16 %v2583
        %v5126 = vunpack.c.h.b16 %v2583
        %v5127 = vunpack.c.l.b16 %v2584
        %v5128 = vunpack.c.h.b16 %v2584
        %v5129 = vunpack.c.l.b16 %v2585
        %v5130 = vunpack.c.h.b16 %v2585
        %v5131 = vunpack.c.l.b16 %v2586
        %v5132 = vunpack.c.h.b16 %v2586
        %v5133 = vunpack.c.l.b16 %v2587
        %v5134 = vunpack.c.h.b16 %v2587
        %v5135 = vunpack.c.l.b16 %v2588
        %v5136 = vunpack.c.h.b16 %v2588
        %v5137 = vunpack.c.l.b16 %v2589
        %v5138 = vunpack.c.h.b16 %v2589
        %v5139 = vunpack.c.l.b16 %v2590
        %v5140 = vunpack.c.h.b16 %v2590
        %v5141 = vunpack.c.l.b16 %v2591
        %v5142 = vunpack.c.h.b16 %v2591
        %v5143 = vunpack.c.l.b16 %v2592
        %v5144 = vunpack.c.h.b16 %v2592
        %v5145 = vunpack.c.l.b16 %v2593
        %v5146 = vunpack.c.h.b16 %v2593
        %v5147 = vunpack.c.l.b16 %v2594
        %v5148 = vunpack.c.h.b16 %v2594
        %v5149 = vunpack.c.l.b16 %v2595
        %v5150 = vunpack.c.h.b16 %v2595
        %v5151 = vunpack.c.l.b16 %v2596
        %v5152 = vunpack.c.h.b16 %v2596
        %v5153 = vunpack.c.l.b16 %v2597
        %v5154 = vunpack.c.h.b16 %v2597
        %v5155 = vunpack.c.l.b16 %v2598
        %v5156 = vunpack.c.h.b16 %v2598
        %v5157 = vunpack.c.l.b16 %v2599
        %v5158 = vunpack.c.h.b16 %v2599
        %v5159 = vunpack.c.l.b16 %v2600
        %v5160 = vunpack.c.h.b16 %v2600
        %v5161 = vunpack.c.l.b16 %v2601
        %v5162 = vunpack.c.h.b16 %v2601
        %v5163 = vunpack.c.l.b16 %v2602
        %v5164 = vunpack.c.h.b16 %v2602
        %v5165 = vunpack.c.l.b16 %v2603
        %v5166 = vunpack.c.h.b16 %v2603
        %v5167 = vpack.c.b16 %v3603, %v3599
        %v5168 = vpack.c.b16 %v3604, %v3600
        %v5169 = vpack.c.b16 %v3605, %v3601
        %v5170 = vpack.c.b16 %v3606, %v3602
        %v5171 = vpack.c.b16 %v3611, %v3607
        %v5172 = vpack.c.b16 %v3612, %v3608
        %v5173 = vpack.c.b16 %v3613, %v3609
        %v5174 = vpack.c.b16 %v3614, %v3610
        %v5175 = vpack.c.b16 %v3619, %v3615
        %v5176 = vpack.c.b16 %v3620, %v3616
        %v5177 = vpack.c.b16 %v3621, %v3617
        %v5178 = vpack.c.b16 %v3622, %v3618
        %v5179 = vpack.c.b16 %v3627, %v3623
        %v5180 = vpack.c.b16 %v3628, %v3624
        %v5181 = vpack.c.b16 %v3629, %v3625
        %v5182 = vpack.c.b16 %v3630, %v3626
        %v5183 = vpack.c.b16 %v3635, %v3631
        %v5184 = vpack.c.b16 %v3636, %v3632
        %v5185 = vpack.c.b16 %v3637, %v3633
        %v5186 = vpack.c.b16 %v3638, %v3634
        %v5187 = vpack.c.b16 %v3643, %v3639
        %v5188 = vpack.c.b16 %v3644, %v3640
        %v5189 = vpack.c.b16 %v3645, %v3641
        %v5190 = vpack.c.b16 %v3646, %v3642
        %v5191 = vpack.c.b16 %v3651, %v3647
        %v5192 = vpack.c.b16 %v3652, %v3648
        %v5193 = vpack.c.b16 %v3653, %v3649
        %v5194 = vpack.c.b16 %v3654, %v3650
        %v5195 = vpack.c.b16 %v3659, %v3655
        %v5196 = vpack.c.b16 %v3660, %v3656
        %v5197 = vpack.c.b16 %v3661, %v3657
        %v5198 = vpack.c.b16 %v3662, %v3658
        %v5199 = vpack.c.b16 %v3667, %v3663
        %v5200 = vpack.c.b16 %v3668, %v3664
        %v5201 = vpack.c.b16 %v3669, %v3665
        %v5202 = vpack.c.b16 %v3670, %v3666
        %v5203 = vpack.c.b16 %v3675, %v3671
        %v5204 = vpack.c.b16 %v3676, %v3672
        %v5205 = vpack.c.b16 %v3677, %v3673
        %v5206 = vpack.c.b16 %v3678, %v3674
        %v5207 = vpack.c.b16 %v3683, %v3679
        %v5208 = vpack.c.b16 %v3684, %v3680
        %v5209 = vpack.c.b16 %v3685, %v3681
        %v5210 = vpack.c.b16 %v3686, %v3682
        %v5211 = vpack.c.b16 %v3691, %v3687
        %v5212 = vpack.c.b16 %v3692, %v3688
        %v5213 = vpack.c.b16 %v3693, %v3689
        %v5214 = vpack.c.b16 %v3694, %v3690
        %v5215 = vpack.c.b16 %v3699, %v3695
        %v5216 = vpack.c.b16 %v3700, %v3696
        %v5217 = vpack.c.b16 %v3701, %v3697
        %v5218 = vpack.c.b16 %v3702, %v3698
        %v5219 = vpack.c.b16 %v3707, %v3703
        %v5220 = vpack.c.b16 %v3708, %v3704
        %v5221 = vpack.c.b16 %v3709, %v3705
        %v5222 = vpack.c.b16 %v3710, %v3706
        %v5223 = vpack.c.b16 %v3715, %v3711
        %v5224 = vpack.c.b16 %v3716, %v3712
        %v5225 = vpack.c.b16 %v3717, %v3713
        %v5226 = vpack.c.b16 %v3718, %v3714
        %v5227 = vpack.c.b16 %v3723, %v3719
        %v5228 = vpack.c.b16 %v3724, %v3720
        %v5229 = vpack.c.b16 %v3725, %v3721
        %v5230 = vpack.c.b16 %v3726, %v3722
        %v5231 = vpack.c.b16 %v3731, %v3727
        %v5232 = vpack.c.b16 %v3732, %v3728
        %v5233 = vpack.c.b16 %v3733, %v3729
        %v5234 = vpack.c.b16 %v3734, %v3730
        %v5235 = vpack.c.b16 %v3739, %v3735
        %v5236 = vpack.c.b16 %v3740, %v3736
        %v5237 = vpack.c.b16 %v3741, %v3737
        %v5238 = vpack.c.b16 %v3742, %v3738
        %v5239 = vpack.c.b16 %v3747, %v3743
        %v5240 = vpack.c.b16 %v3748, %v3744
        %v5241 = vpack.c.b16 %v3749, %v3745
        %v5242 = vpack.c.b16 %v3750, %v3746
        %v5243 = vpack.c.b16 %v3755, %v3751
        %v5244 = vpack.c.b16 %v3756, %v3752
        %v5245 = vpack.c.b16 %v3757, %v3753
        %v5246 = vpack.c.b16 %v3758, %v3754
        %v5247 = vpack.c.b16 %v3763, %v3759
        %v5248 = vpack.c.b16 %v3764, %v3760
        %v5249 = vpack.c.b16 %v3765, %v3761
        %v5250 = vpack.c.b16 %v3766, %v3762
        %v5251 = vpack.c.b16 %v3771, %v3767
        %v5252 = vpack.c.b16 %v3772, %v3768
        %v5253 = vpack.c.b16 %v3773, %v3769
        %v5254 = vpack.c.b16 %v3774, %v3770
        %v5255 = vpack.c.b16 %v3779, %v3775
        %v5256 = vpack.c.b16 %v3780, %v3776
        %v5257 = vpack.c.b16 %v3781, %v3777
        %v5258 = vpack.c.b16 %v3782, %v3778
        %v5259 = vpack.c.b16 %v3787, %v3783
        %v5260 = vpack.c.b16 %v3788, %v3784
        %v5261 = vpack.c.b16 %v3789, %v3785
        %v5262 = vpack.c.b16 %v3790, %v3786
        %v5263 = vpack.c.b16 %v3795, %v3791
        %v5264 = vpack.c.b16 %v3796, %v3792
        %v5265 = vpack.c.b16 %v3797, %v3793
        %v5266 = vpack.c.b16 %v3798, %v3794
        %v5267 = vpack.c.b16 %v3803, %v3799
        %v5268 = vpack.c.b16 %v3804, %v3800
        %v5269 = vpack.c.b16 %v3805, %v3801
        %v5270 = vpack.c.b16 %v3806, %v3802
        %v5271 = vpack.c.b16 %v3811, %v3807
        %v5272 = vpack.c.b16 %v3812, %v3808
        %v5273 = vpack.c.b16 %v3813, %v3809
        %v5274 = vpack.c.b16 %v3814, %v3810
        %v5275 = vpack.c.b16 %v3819, %v3815
        %v5276 = vpack.c.b16 %v3820, %v3816
        %v5277 = vpack.c.b16 %v3821, %v3817
        %v5278 = vpack.c.b16 %v3822, %v3818
        %v5279 = vpack.c.b16 %v3827, %v3823
        %v5280 = vpack.c.b16 %v3828, %v3824
        %v5281 = vpack.c.b16 %v3829, %v3825
        %v5282 = vpack.c.b16 %v3830, %v3826
        %v5283 = vpack.c.b16 %v3835, %v3831
        %v5284 = vpack.c.b16 %v3836, %v3832
        %v5285 = vpack.c.b16 %v3837, %v3833
        %v5286 = vpack.c.b16 %v3838, %v3834
        %v5287 = vpack.c.b16 %v3843, %v3839
        %v5288 = vpack.c.b16 %v3844, %v3840
        %v5289 = vpack.c.b16 %v3845, %v3841
        %v5290 = vpack.c.b16 %v3846, %v3842
        %v5291 = vpack.c.b16 %v3851, %v3847
        %v5292 = vpack.c.b16 %v3852, %v3848
        %v5293 = vpack.c.b16 %v3853, %v3849
        %v5294 = vpack.c.b16 %v3854, %v3850
        %v5295 = vpack.c.b16 %v3859, %v3855
        %v5296 = vpack.c.b16 %v3860, %v3856
        %v5297 = vpack.c.b16 %v3861, %v3857
        %v5298 = vpack.c.b16 %v3862, %v3858
        %v5299 = vpack.c.b16 %v3867, %v3863
        %v5300 = vpack.c.b16 %v3868, %v3864
        %v5301 = vpack.c.b16 %v3869, %v3865
        %v5302 = vpack.c.b16 %v3870, %v3866
        %v5303 = vpack.c.b16 %v3875, %v3871
        %v5304 = vpack.c.b16 %v3876, %v3872
        %v5305 = vpack.c.b16 %v3877, %v3873
        %v5306 = vpack.c.b16 %v3878, %v3874
        %v5307 = vpack.c.b16 %v3883, %v3879
        %v5308 = vpack.c.b16 %v3884, %v3880
        %v5309 = vpack.c.b16 %v3885, %v3881
        %v5310 = vpack.c.b16 %v3886, %v3882
        %v5311 = vpack.c.b16 %v3891, %v3887
        %v5312 = vpack.c.b16 %v3892, %v3888
        %v5313 = vpack.c.b16 %v3893, %v3889
        %v5314 = vpack.c.b16 %v3894, %v3890
        %v5315 = vpack.c.b16 %v3899, %v3895
        %v5316 = vpack.c.b16 %v3900, %v3896
        %v5317 = vpack.c.b16 %v3901, %v3897
        %v5318 = vpack.c.b16 %v3902, %v3898
        %v5319 = vpack.c.b16 %v3907, %v3903
        %v5320 = vpack.c.b16 %v3908, %v3904
        %v5321 = vpack.c.b16 %v3909, %v3905
        %v5322 = vpack.c.b16 %v3910, %v3906
        %v5323 = vpack.c.b16 %v3915, %v3911
        %v5324 = vpack.c.b16 %v3916, %v3912
        %v5325 = vpack.c.b16 %v3917, %v3913
        %v5326 = vpack.c.b16 %v3918, %v3914
        %v5327 = vpack.c.b16 %v3923, %v3919
        %v5328 = vpack.c.b16 %v3924, %v3920
        %v5329 = vpack.c.b16 %v3925, %v3921
        %v5330 = vpack.c.b16 %v3926, %v3922
        %v5331 = vpack.c.b16 %v3931, %v3927
        %v5332 = vpack.c.b16 %v3932, %v3928
        %v5333 = vpack.c.b16 %v3933, %v3929
        %v5334 = vpack.c.b16 %v3934, %v3930
        %v5335 = vpack.c.b16 %v3939, %v3935
        %v5336 = vpack.c.b16 %v3940, %v3936
        %v5337 = vpack.c.b16 %v3941, %v3937
        %v5338 = vpack.c.b16 %v3942, %v3938
        %v5339 = vpack.c.b16 %v3947, %v3943
        %v5340 = vpack.c.b16 %v3948, %v3944
        %v5341 = vpack.c.b16 %v3949, %v3945
        %v5342 = vpack.c.b16 %v3950, %v3946
        %v5343 = vpack.c.b16 %v3955, %v3951
        %v5344 = vpack.c.b16 %v3956, %v3952
        %v5345 = vpack.c.b16 %v3957, %v3953
        %v5346 = vpack.c.b16 %v3958, %v3954
        %v5347 = vpack.c.b16 %v3963, %v3959
        %v5348 = vpack.c.b16 %v3964, %v3960
        %v5349 = vpack.c.b16 %v3965, %v3961
        %v5350 = vpack.c.b16 %v3966, %v3962
        %v5351 = vpack.c.b16 %v3971, %v3967
        %v5352 = vpack.c.b16 %v3972, %v3968
        %v5353 = vpack.c.b16 %v3973, %v3969
        %v5354 = vpack.c.b16 %v3974, %v3970
        %v5355 = vpack.c.b16 %v3979, %v3975
        %v5356 = vpack.c.b16 %v3980, %v3976
        %v5357 = vpack.c.b16 %v3981, %v3977
        %v5358 = vpack.c.b16 %v3982, %v3978
        %v5359 = vpack.c.b16 %v3987, %v3983
        %v5360 = vpack.c.b16 %v3988, %v3984
        %v5361 = vpack.c.b16 %v3989, %v3985
        %v5362 = vpack.c.b16 %v3990, %v3986
        %v5363 = vpack.c.b16 %v3995, %v3991
        %v5364 = vpack.c.b16 %v3996, %v3992
        %v5365 = vpack.c.b16 %v3997, %v3993
        %v5366 = vpack.c.b16 %v3998, %v3994
        %v5367 = vpack.c.b16 %v4003, %v3999
        %v5368 = vpack.c.b16 %v4004, %v4000
        %v5369 = vpack.c.b16 %v4005, %v4001
        %v5370 = vpack.c.b16 %v4006, %v4002
        %v5371 = vpack.c.b16 %v4011, %v4007
        %v5372 = vpack.c.b16 %v4012, %v4008
        %v5373 = vpack.c.b16 %v4013, %v4009
        %v5374 = vpack.c.b16 %v4014, %v4010
        %v5375 = vpack.c.b16 %v4019, %v4015
        %v5376 = vpack.c.b16 %v4020, %v4016
        %v5377 = vpack.c.b16 %v4021, %v4017
        %v5378 = vpack.c.b16 %v4022, %v4018
        %v5379 = vpack.c.b16 %v4027, %v4023
        %v5380 = vpack.c.b16 %v4028, %v4024
        %v5381 = vpack.c.b16 %v4029, %v4025
        %v5382 = vpack.c.b16 %v4030, %v4026
        %v5383 = vpack.c.b16 %v4035, %v4031
        %v5384 = vpack.c.b16 %v4036, %v4032
        %v5385 = vpack.c.b16 %v4037, %v4033
        %v5386 = vpack.c.b16 %v4038, %v4034
        %v5387 = vpack.c.b16 %v4043, %v4039
        %v5388 = vpack.c.b16 %v4044, %v4040
        %v5389 = vpack.c.b16 %v4045, %v4041
        %v5390 = vpack.c.b16 %v4046, %v4042
        %v5391 = vpack.c.b16 %v4051, %v4047
        %v5392 = vpack.c.b16 %v4052, %v4048
        %v5393 = vpack.c.b16 %v4053, %v4049
        %v5394 = vpack.c.b16 %v4054, %v4050
        %v5395 = vpack.c.b16 %v4059, %v4055
        %v5396 = vpack.c.b16 %v4060, %v4056
        %v5397 = vpack.c.b16 %v4061, %v4057
        %v5398 = vpack.c.b16 %v4062, %v4058
        %v5399 = vpack.c.b16 %v4067, %v4063
        %v5400 = vpack.c.b16 %v4068, %v4064
        %v5401 = vpack.c.b16 %v4069, %v4065
        %v5402 = vpack.c.b16 %v4070, %v4066
        %v5403 = vpack.c.b16 %v4075, %v4071
        %v5404 = vpack.c.b16 %v4076, %v4072
        %v5405 = vpack.c.b16 %v4077, %v4073
        %v5406 = vpack.c.b16 %v4078, %v4074
        %v5407 = vpack.c.b16 %v4083, %v4079
        %v5408 = vpack.c.b16 %v4084, %v4080
        %v5409 = vpack.c.b16 %v4085, %v4081
        %v5410 = vpack.c.b16 %v4086, %v4082
        %v5411 = vpack.c.b16 %v4091, %v4087
        %v5412 = vpack.c.b16 %v4092, %v4088
        %v5413 = vpack.c.b16 %v4093, %v4089
        %v5414 = vpack.c.b16 %v4094, %v4090
        %v5415 = vpack.c.b16 %v4099, %v4095
        %v5416 = vpack.c.b16 %v4100, %v4096
        %v5417 = vpack.c.b16 %v4101, %v4097
        %v5418 = vpack.c.b16 %v4102, %v4098
        %v5419 = vpack.c.b16 %v4107, %v4103
        %v5420 = vpack.c.b16 %v4108, %v4104
        %v5421 = vpack.c.b16 %v4109, %v4105
        %v5422 = vpack.c.b16 %v4110, %v4106
        %v5423 = vpack.c.b16 %v4115, %v4111
        %v5424 = vpack.c.b16 %v4116, %v4112
        %v5425 = vpack.c.b16 %v4117, %v4113
        %v5426 = vpack.c.b16 %v4118, %v4114
        %v5427 = vpack.c.b16 %v4123, %v4119
        %v5428 = vpack.c.b16 %v4124, %v4120
        %v5429 = vpack.c.b16 %v4125, %v4121
        %v5430 = vpack.c.b16 %v4126, %v4122
        %v5431 = vpack.c.b16 %v4131, %v4127
        %v5432 = vpack.c.b16 %v4132, %v4128
        %v5433 = vpack.c.b16 %v4133, %v4129
        %v5434 = vpack.c.b16 %v4134, %v4130
        %v5435 = vpack.c.b16 %v4139, %v4135
        %v5436 = vpack.c.b16 %v4140, %v4136
        %v5437 = vpack.c.b16 %v4141, %v4137
        %v5438 = vpack.c.b16 %v4142, %v4138
        %v5439 = vpack.c.b16 %v4147, %v4143
        %v5440 = vpack.c.b16 %v4148, %v4144
        %v5441 = vpack.c.b16 %v4149, %v4145
        %v5442 = vpack.c.b16 %v4150, %v4146
        %v5443 = vpack.c.b16 %v4155, %v4151
        %v5444 = vpack.c.b16 %v4156, %v4152
        %v5445 = vpack.c.b16 %v4157, %v4153
        %v5446 = vpack.c.b16 %v4158, %v4154
        %v5447 = vpack.c.b16 %v4163, %v4159
        %v5448 = vpack.c.b16 %v4164, %v4160
        %v5449 = vpack.c.b16 %v4165, %v4161
        %v5450 = vpack.c.b16 %v4166, %v4162
        %v5451 = vpack.c.b16 %v4171, %v4167
        %v5452 = vpack.c.b16 %v4172, %v4168
        %v5453 = vpack.c.b16 %v4173, %v4169
        %v5454 = vpack.c.b16 %v4174, %v4170
        %v5455 = vpack.c.b16 %v4179, %v4175
        %v5456 = vpack.c.b16 %v4180, %v4176
        %v5457 = vpack.c.b16 %v4181, %v4177
        %v5458 = vpack.c.b16 %v4182, %v4178
        %v5459 = vpack.c.b16 %v4187, %v4183
        %v5460 = vpack.c.b16 %v4188, %v4184
        %v5461 = vpack.c.b16 %v4189, %v4185
        %v5462 = vpack.c.b16 %v4190, %v4186
        %v5463 = vpack.c.b16 %v4195, %v4191
        %v5464 = vpack.c.b16 %v4196, %v4192
        %v5465 = vpack.c.b16 %v4197, %v4193
        %v5466 = vpack.c.b16 %v4198, %v4194
        %v5467 = vpack.c.b16 %v4203, %v4199
        %v5468 = vpack.c.b16 %v4204, %v4200
        %v5469 = vpack.c.b16 %v4205, %v4201
        %v5470 = vpack.c.b16 %v4206, %v4202
        %v5471 = vpack.c.b16 %v4211, %v4207
        %v5472 = vpack.c.b16 %v4212, %v4208
        %v5473 = vpack.c.b16 %v4213, %v4209
        %v5474 = vpack.c.b16 %v4214, %v4210
        %v5475 = vpack.c.b16 %v4219, %v4215
        %v5476 = vpack.c.b16 %v4220, %v4216
        %v5477 = vpack.c.b16 %v4221, %v4217
        %v5478 = vpack.c.b16 %v4222, %v4218
        %v5479 = vpack.c.b16 %v4227, %v4223
        %v5480 = vpack.c.b16 %v4228, %v4224
        %v5481 = vpack.c.b16 %v4229, %v4225
        %v5482 = vpack.c.b16 %v4230, %v4226
        %v5483 = vpack.c.b16 %v4235, %v4231
        %v5484 = vpack.c.b16 %v4236, %v4232
        %v5485 = vpack.c.b16 %v4237, %v4233
        %v5486 = vpack.c.b16 %v4238, %v4234
        %v5487 = vpack.c.b16 %v4243, %v4239
        %v5488 = vpack.c.b16 %v4244, %v4240
        %v5489 = vpack.c.b16 %v4245, %v4241
        %v5490 = vpack.c.b16 %v4246, %v4242
        %v5491 = vpack.c.b16 %v4251, %v4247
        %v5492 = vpack.c.b16 %v4252, %v4248
        %v5493 = vpack.c.b16 %v4253, %v4249
        %v5494 = vpack.c.b16 %v4254, %v4250
        %v5495 = vpack.c.b16 %v4259, %v4255
        %v5496 = vpack.c.b16 %v4260, %v4256
        %v5497 = vpack.c.b16 %v4261, %v4257
        %v5498 = vpack.c.b16 %v4262, %v4258
        %v5499 = vpack.c.b16 %v4267, %v4263
        %v5500 = vpack.c.b16 %v4268, %v4264
        %v5501 = vpack.c.b16 %v4269, %v4265
        %v5502 = vpack.c.b16 %v4270, %v4266
        %v5503 = vpack.c.b16 %v4275, %v4271
        %v5504 = vpack.c.b16 %v4276, %v4272
        %v5505 = vpack.c.b16 %v4277, %v4273
        %v5506 = vpack.c.b16 %v4278, %v4274
        %v5507 = vpack.c.b16 %v4283, %v4279
        %v5508 = vpack.c.b16 %v4284, %v4280
        %v5509 = vpack.c.b16 %v4285, %v4281
        %v5510 = vpack.c.b16 %v4286, %v4282
        %v5511 = vpack.c.b16 %v4291, %v4287
        %v5512 = vpack.c.b16 %v4292, %v4288
        %v5513 = vpack.c.b16 %v4293, %v4289
        %v5514 = vpack.c.b16 %v4294, %v4290
        %v5515 = vpack.c.b16 %v4299, %v4295
        %v5516 = vpack.c.b16 %v4300, %v4296
        %v5517 = vpack.c.b16 %v4301, %v4297
        %v5518 = vpack.c.b16 %v4302, %v4298
        %v5519 = vpack.c.b16 %v4307, %v4303
        %v5520 = vpack.c.b16 %v4308, %v4304
        %v5521 = vpack.c.b16 %v4309, %v4305
        %v5522 = vpack.c.b16 %v4310, %v4306
        %v5523 = vpack.c.b16 %v4315, %v4311
        %v5524 = vpack.c.b16 %v4316, %v4312
        %v5525 = vpack.c.b16 %v4317, %v4313
        %v5526 = vpack.c.b16 %v4318, %v4314
        %v5527 = vpack.c.b16 %v4323, %v4319
        %v5528 = vpack.c.b16 %v4324, %v4320
        %v5529 = vpack.c.b16 %v4325, %v4321
        %v5530 = vpack.c.b16 %v4326, %v4322
        %v5531 = vpack.c.b16 %v4331, %v4327
        %v5532 = vpack.c.b16 %v4332, %v4328
        %v5533 = vpack.c.b16 %v4333, %v4329
        %v5534 = vpack.c.b16 %v4334, %v4330
        %v5535 = vpack.c.b16 %v4339, %v4335
        %v5536 = vpack.c.b16 %v4340, %v4336
        %v5537 = vpack.c.b16 %v4341, %v4337
        %v5538 = vpack.c.b16 %v4342, %v4338
        %v5539 = vpack.c.b16 %v4347, %v4343
        %v5540 = vpack.c.b16 %v4348, %v4344
        %v5541 = vpack.c.b16 %v4349, %v4345
        %v5542 = vpack.c.b16 %v4350, %v4346
        %v5543 = vpack.c.b16 %v4355, %v4351
        %v5544 = vpack.c.b16 %v4356, %v4352
        %v5545 = vpack.c.b16 %v4357, %v4353
        %v5546 = vpack.c.b16 %v4358, %v4354
        %v5547 = vpack.c.b16 %v4363, %v4359
        %v5548 = vpack.c.b16 %v4364, %v4360
        %v5549 = vpack.c.b16 %v4365, %v4361
        %v5550 = vpack.c.b16 %v4366, %v4362
        %v5551 = vpack.c.b16 %v4371, %v4367
        %v5552 = vpack.c.b16 %v4372, %v4368
        %v5553 = vpack.c.b16 %v4373, %v4369
        %v5554 = vpack.c.b16 %v4374, %v4370
        %v5555 = vpack.c.b16 %v4379, %v4375
        %v5556 = vpack.c.b16 %v4380, %v4376
        %v5557 = vpack.c.b16 %v4381, %v4377
        %v5558 = vpack.c.b16 %v4382, %v4378
        %v5559 = vpack.c.b16 %v4387, %v4383
        %v5560 = vpack.c.b16 %v4388, %v4384
        %v5561 = vpack.c.b16 %v4389, %v4385
        %v5562 = vpack.c.b16 %v4390, %v4386
        %v5563 = vpack.c.b16 %v4395, %v4391
        %v5564 = vpack.c.b16 %v4396, %v4392
        %v5565 = vpack.c.b16 %v4397, %v4393
        %v5566 = vpack.c.b16 %v4398, %v4394
        %v5567 = vpack.c.b16 %v4403, %v4399
        %v5568 = vpack.c.b16 %v4404, %v4400
        %v5569 = vpack.c.b16 %v4405, %v4401
        %v5570 = vpack.c.b16 %v4406, %v4402
        %v5571 = vpack.c.b16 %v4411, %v4407
        %v5572 = vpack.c.b16 %v4412, %v4408
        %v5573 = vpack.c.b16 %v4413, %v4409
        %v5574 = vpack.c.b16 %v4414, %v4410
        %v5575 = vpack.c.b16 %v4419, %v4415
        %v5576 = vpack.c.b16 %v4420, %v4416
        %v5577 = vpack.c.b16 %v4421, %v4417
        %v5578 = vpack.c.b16 %v4422, %v4418
        %v5579 = vpack.c.b16 %v4427, %v4423
        %v5580 = vpack.c.b16 %v4428, %v4424
        %v5581 = vpack.c.b16 %v4429, %v4425
        %v5582 = vpack.c.b16 %v4430, %v4426
        %v5583 = vpack.c.b16 %v4435, %v4431
        %v5584 = vpack.c.b16 %v4436, %v4432
        %v5585 = vpack.c.b16 %v4437, %v4433
        %v5586 = vpack.c.b16 %v4438, %v4434
        %v5587 = vpack.c.b16 %v4443, %v4439
        %v5588 = vpack.c.b16 %v4444, %v4440
        %v5589 = vpack.c.b16 %v4445, %v4441
        %v5590 = vpack.c.b16 %v4446, %v4442
        %v5591 = vpack.c.b16 %v4451, %v4447
        %v5592 = vpack.c.b16 %v4452, %v4448
        %v5593 = vpack.c.b16 %v4453, %v4449
        %v5594 = vpack.c.b16 %v4454, %v4450
        %v5595 = vpack.c.b16 %v4459, %v4455
        %v5596 = vpack.c.b16 %v4460, %v4456
        %v5597 = vpack.c.b16 %v4461, %v4457
        %v5598 = vpack.c.b16 %v4462, %v4458
        %v5599 = vpack.c.b16 %v4467, %v4463
        %v5600 = vpack.c.b16 %v4468, %v4464
        %v5601 = vpack.c.b16 %v4469, %v4465
        %v5602 = vpack.c.b16 %v4470, %v4466
        %v5603 = vpack.c.b16 %v4475, %v4471
        %v5604 = vpack.c.b16 %v4476, %v4472
        %v5605 = vpack.c.b16 %v4477, %v4473
        %v5606 = vpack.c.b16 %v4478, %v4474
        %v5607 = vpack.c.b16 %v4483, %v4479
        %v5608 = vpack.c.b16 %v4484, %v4480
        %v5609 = vpack.c.b16 %v4485, %v4481
        %v5610 = vpack.c.b16 %v4486, %v4482
        %v5611 = vpack.c.b16 %v4491, %v4487
        %v5612 = vpack.c.b16 %v4492, %v4488
        %v5613 = vpack.c.b16 %v4493, %v4489
        %v5614 = vpack.c.b16 %v4494, %v4490
        %v5615 = vpack.c.b16 %v4499, %v4495
        %v5616 = vpack.c.b16 %v4500, %v4496
        %v5617 = vpack.c.b16 %v4501, %v4497
        %v5618 = vpack.c.b16 %v4502, %v4498
        %v5619 = vpack.c.b16 %v4507, %v4503
        %v5620 = vpack.c.b16 %v4508, %v4504
        %v5621 = vpack.c.b16 %v4509, %v4505
        %v5622 = vpack.c.b16 %v4510, %v4506
        %v5623 = vpack.c.b16 %v4515, %v4511
        %v5624 = vpack.c.b16 %v4516, %v4512
        %v5625 = vpack.c.b16 %v4517, %v4513
        %v5626 = vpack.c.b16 %v4518, %v4514
        %v5627 = vpack.c.b16 %v4523, %v4519
        %v5628 = vpack.c.b16 %v4524, %v4520
        %v5629 = vpack.c.b16 %v4525, %v4521
        %v5630 = vpack.c.b16 %v4526, %v4522
        %v5631 = vpack.c.b16 %v4531, %v4527
        %v5632 = vpack.c.b16 %v4532, %v4528
        %v5633 = vpack.c.b16 %v4533, %v4529
        %v5634 = vpack.c.b16 %v4534, %v4530
        %v5635 = vpack.c.b16 %v4539, %v4535
        %v5636 = vpack.c.b16 %v4540, %v4536
        %v5637 = vpack.c.b16 %v4541, %v4537
        %v5638 = vpack.c.b16 %v4542, %v4538
        %v5639 = vpack.c.b16 %v4547, %v4543
        %v5640 = vpack.c.b16 %v4548, %v4544
        %v5641 = vpack.c.b16 %v4549, %v4545
        %v5642 = vpack.c.b16 %v4550, %v4546
        %v5643 = vpack.c.b16 %v4555, %v4551
        %v5644 = vpack.c.b16 %v4556, %v4552
        %v5645 = vpack.c.b16 %v4557, %v4553
        %v5646 = vpack.c.b16 %v4558, %v4554
        %v5647 = vpack.c.b16 %v4563, %v4559
        %v5648 = vpack.c.b16 %v4564, %v4560
        %v5649 = vpack.c.b16 %v4565, %v4561
        %v5650 = vpack.c.b16 %v4566, %v4562
        %v5651 = vpack.c.b16 %v4571, %v4567
        %v5652 = vpack.c.b16 %v4572, %v4568
        %v5653 = vpack.c.b16 %v4573, %v4569
        %v5654 = vpack.c.b16 %v4574, %v4570
        %v5655 = vpack.c.b16 %v4579, %v4575
        %v5656 = vpack.c.b16 %v4580, %v4576
        %v5657 = vpack.c.b16 %v4581, %v4577
        %v5658 = vpack.c.b16 %v4582, %v4578
        %v5659 = vpack.c.b16 %v4587, %v4583
        %v5660 = vpack.c.b16 %v4588, %v4584
        %v5661 = vpack.c.b16 %v4589, %v4585
        %v5662 = vpack.c.b16 %v4590, %v4586
        %v5663 = vpack.c.b16 %v4595, %v4591
        %v5664 = vpack.c.b16 %v4596, %v4592
        %v5665 = vpack.c.b16 %v4597, %v4593
        %v5666 = vpack.c.b16 %v4598, %v4594
        %v5667 = vpack.c.b16 %v4603, %v4599
        %v5668 = vpack.c.b16 %v4604, %v4600
        %v5669 = vpack.c.b16 %v4605, %v4601
        %v5670 = vpack.c.b16 %v4606, %v4602
        %v5671 = vpack.c.b16 %v4611, %v4607
        %v5672 = vpack.c.b16 %v4612, %v4608
        %v5673 = vpack.c.b16 %v4613, %v4609
        %v5674 = vpack.c.b16 %v4614, %v4610
        %v5675 = vpack.c.b16 %v4619, %v4615
        %v5676 = vpack.c.b16 %v4620, %v4616
        %v5677 = vpack.c.b16 %v4621, %v4617
        %v5678 = vpack.c.b16 %v4622, %v4618
        %v5679 = vpack.c.b16 %v4627, %v4623
        %v5680 = vpack.c.b16 %v4628, %v4624
        %v5681 = vpack.c.b16 %v4629, %v4625
        %v5682 = vpack.c.b16 %v4630, %v4626
        %v5683 = vpack.c.b16 %v4635, %v4631
        %v5684 = vpack.c.b16 %v4636, %v4632
        %v5685 = vpack.c.b16 %v4637, %v4633
        %v5686 = vpack.c.b16 %v4638, %v4634
        %v5687 = vpack.c.b16 %v4643, %v4639
        %v5688 = vpack.c.b16 %v4644, %v4640
        %v5689 = vpack.c.b16 %v4645, %v4641
        %v5690 = vpack.c.b16 %v4646, %v4642
        %v5691 = vpack.c.b16 %v4651, %v4647
        %v5692 = vpack.c.b16 %v4652, %v4648
        %v5693 = vpack.c.b16 %v4653, %v4649
        %v5694 = vpack.c.b16 %v4654, %v4650
        %v5695 = vpack.c.b16 %v4659, %v4655
        %v5696 = vpack.c.b16 %v4660, %v4656
        %v5697 = vpack.c.b16 %v4661, %v4657
        %v5698 = vpack.c.b16 %v4662, %v4658
        %v5699 = vpack.c.b16 %v4667, %v4663
        %v5700 = vpack.c.b16 %v4668, %v4664
        %v5701 = vpack.c.b16 %v4669, %v4665
        %v5702 = vpack.c.b16 %v4670, %v4666
        %v5703 = vpack.c.b16 %v4675, %v4671
        %v5704 = vpack.c.b16 %v4676, %v4672
        %v5705 = vpack.c.b16 %v4677, %v4673
        %v5706 = vpack.c.b16 %v4678, %v4674
        %v5707 = vpack.c.b16 %v4683, %v4679
        %v5708 = vpack.c.b16 %v4684, %v4680
        %v5709 = vpack.c.b16 %v4685, %v4681
        %v5710 = vpack.c.b16 %v4686, %v4682
        %v5711 = vpack.c.b16 %v4691, %v4687
        %v5712 = vpack.c.b16 %v4692, %v4688
        %v5713 = vpack.c.b16 %v4693, %v4689
        %v5714 = vpack.c.b16 %v4694, %v4690
        %v5715 = vpack.c.b16 %v4699, %v4695
        %v5716 = vpack.c.b16 %v4700, %v4696
        %v5717 = vpack.c.b16 %v4701, %v4697
        %v5718 = vpack.c.b16 %v4702, %v4698
        %v5719 = vpack.c.b16 %v4707, %v4703
        %v5720 = vpack.c.b16 %v4708, %v4704
        %v5721 = vpack.c.b16 %v4709, %v4705
        %v5722 = vpack.c.b16 %v4710, %v4706
        %v5723 = vpack.c.b16 %v4715, %v4711
        %v5724 = vpack.c.b16 %v4716, %v4712
        %v5725 = vpack.c.b16 %v4717, %v4713
        %v5726 = vpack.c.b16 %v4718, %v4714
        %v5727 = vpack.c.b16 %v4723, %v4719
        %v5728 = vpack.c.b16 %v4724, %v4720
        %v5729 = vpack.c.b16 %v4725, %v4721
        %v5730 = vpack.c.b16 %v4726, %v4722
        %v5731 = vpack.c.b16 %v4731, %v4727
        %v5732 = vpack.c.b16 %v4732, %v4728
        %v5733 = vpack.c.b16 %v4733, %v4729
        %v5734 = vpack.c.b16 %v4734, %v4730
        %v5735 = vpack.c.b16 %v4739, %v4735
        %v5736 = vpack.c.b16 %v4740, %v4736
        %v5737 = vpack.c.b16 %v4741, %v4737
        %v5738 = vpack.c.b16 %v4742, %v4738
        %v5739 = vpack.c.b16 %v4747, %v4743
        %v5740 = vpack.c.b16 %v4748, %v4744
        %v5741 = vpack.c.b16 %v4749, %v4745
        %v5742 = vpack.c.b16 %v4750, %v4746
        %v5743 = vpack.c.b16 %v4755, %v4751
        %v5744 = vpack.c.b16 %v4756, %v4752
        %v5745 = vpack.c.b16 %v4757, %v4753
        %v5746 = vpack.c.b16 %v4758, %v4754
        %v5747 = vpack.c.b16 %v4763, %v4759
        %v5748 = vpack.c.b16 %v4764, %v4760
        %v5749 = vpack.c.b16 %v4765, %v4761
        %v5750 = vpack.c.b16 %v4766, %v4762
        %v5751 = vpack.c.b16 %v4771, %v4767
        %v5752 = vpack.c.b16 %v4772, %v4768
        %v5753 = vpack.c.b16 %v4773, %v4769
        %v5754 = vpack.c.b16 %v4774, %v4770
        %v5755 = vpack.c.b16 %v4779, %v4775
        %v5756 = vpack.c.b16 %v4780, %v4776
        %v5757 = vpack.c.b16 %v4781, %v4777
        %v5758 = vpack.c.b16 %v4782, %v4778
        %v5759 = vpack.c.b16 %v4787, %v4783
        %v5760 = vpack.c.b16 %v4788, %v4784
        %v5761 = vpack.c.b16 %v4789, %v4785
        %v5762 = vpack.c.b16 %v4790, %v4786
        %v5763 = vpack.c.b16 %v4795, %v4791
        %v5764 = vpack.c.b16 %v4796, %v4792
        %v5765 = vpack.c.b16 %v4797, %v4793
        %v5766 = vpack.c.b16 %v4798, %v4794
        %v5767 = vpack.c.b16 %v4803, %v4799
        %v5768 = vpack.c.b16 %v4804, %v4800
        %v5769 = vpack.c.b16 %v4805, %v4801
        %v5770 = vpack.c.b16 %v4806, %v4802
        %v5771 = vpack.c.b16 %v4811, %v4807
        %v5772 = vpack.c.b16 %v4812, %v4808
        %v5773 = vpack.c.b16 %v4813, %v4809
        %v5774 = vpack.c.b16 %v4814, %v4810
        %v5775 = vpack.c.b16 %v4819, %v4815
        %v5776 = vpack.c.b16 %v4820, %v4816
        %v5777 = vpack.c.b16 %v4821, %v4817
        %v5778 = vpack.c.b16 %v4822, %v4818
        %v5779 = vpack.c.b16 %v4827, %v4823
        %v5780 = vpack.c.b16 %v4828, %v4824
        %v5781 = vpack.c.b16 %v4829, %v4825
        %v5782 = vpack.c.b16 %v4830, %v4826
        %v5783 = vpack.c.b16 %v4835, %v4831
        %v5784 = vpack.c.b16 %v4836, %v4832
        %v5785 = vpack.c.b16 %v4837, %v4833
        %v5786 = vpack.c.b16 %v4838, %v4834
        %v5787 = vpack.c.b16 %v4843, %v4839
        %v5788 = vpack.c.b16 %v4844, %v4840
        %v5789 = vpack.c.b16 %v4845, %v4841
        %v5790 = vpack.c.b16 %v4846, %v4842
        %v5791 = vpack.c.b16 %v4851, %v4847
        %v5792 = vpack.c.b16 %v4852, %v4848
        %v5793 = vpack.c.b16 %v4853, %v4849
        %v5794 = vpack.c.b16 %v4854, %v4850
        %v5795 = vpack.c.b16 %v4859, %v4855
        %v5796 = vpack.c.b16 %v4860, %v4856
        %v5797 = vpack.c.b16 %v4861, %v4857
        %v5798 = vpack.c.b16 %v4862, %v4858
        %v5799 = vpack.c.b16 %v4867, %v4863
        %v5800 = vpack.c.b16 %v4868, %v4864
        %v5801 = vpack.c.b16 %v4869, %v4865
        %v5802 = vpack.c.b16 %v4870, %v4866
        %v5803 = vpack.c.b16 %v4875, %v4871
        %v5804 = vpack.c.b16 %v4876, %v4872
        %v5805 = vpack.c.b16 %v4877, %v4873
        %v5806 = vpack.c.b16 %v4878, %v4874
        %v5807 = vpack.c.b16 %v4883, %v4879
        %v5808 = vpack.c.b16 %v4884, %v4880
        %v5809 = vpack.c.b16 %v4885, %v4881
        %v5810 = vpack.c.b16 %v4886, %v4882
        %v5811 = vpack.c.b16 %v4891, %v4887
        %v5812 = vpack.c.b16 %v4892, %v4888
        %v5813 = vpack.c.b16 %v4893, %v4889
        %v5814 = vpack.c.b16 %v4894, %v4890
        %v5815 = vpack.c.b16 %v4899, %v4895
        %v5816 = vpack.c.b16 %v4900, %v4896
        %v5817 = vpack.c.b16 %v4901, %v4897
        %v5818 = vpack.c.b16 %v4902, %v4898
        %v5819 = vpack.c.b16 %v4907, %v4903
        %v5820 = vpack.c.b16 %v4908, %v4904
        %v5821 = vpack.c.b16 %v4909, %v4905
        %v5822 = vpack.c.b16 %v4910, %v4906
        %v5823 = vpack.c.b16 %v4915, %v4911
        %v5824 = vpack.c.b16 %v4916, %v4912
        %v5825 = vpack.c.b16 %v4917, %v4913
        %v5826 = vpack.c.b16 %v4918, %v4914
        %v5827 = vpack.c.b16 %v4923, %v4919
        %v5828 = vpack.c.b16 %v4924, %v4920
        %v5829 = vpack.c.b16 %v4925, %v4921
        %v5830 = vpack.c.b16 %v4926, %v4922
        %v5831 = vpack.c.b16 %v4931, %v4927
        %v5832 = vpack.c.b16 %v4932, %v4928
        %v5833 = vpack.c.b16 %v4933, %v4929
        %v5834 = vpack.c.b16 %v4934, %v4930
        %v5835 = vpack.c.b16 %v4939, %v4935
        %v5836 = vpack.c.b16 %v4940, %v4936
        %v5837 = vpack.c.b16 %v4941, %v4937
        %v5838 = vpack.c.b16 %v4942, %v4938
        %v5839 = vpack.c.b16 %v4947, %v4943
        %v5840 = vpack.c.b16 %v4948, %v4944
        %v5841 = vpack.c.b16 %v4949, %v4945
        %v5842 = vpack.c.b16 %v4950, %v4946
        %v5843 = vpack.c.b16 %v4955, %v4951
        %v5844 = vpack.c.b16 %v4956, %v4952
        %v5845 = vpack.c.b16 %v4957, %v4953
        %v5846 = vpack.c.b16 %v4958, %v4954
        %v5847 = vpack.c.b16 %v4963, %v4959
        %v5848 = vpack.c.b16 %v4964, %v4960
        %v5849 = vpack.c.b16 %v4965, %v4961
        %v5850 = vpack.c.b16 %v4966, %v4962
        %v5851 = vpack.c.b16 %v4971, %v4967
        %v5852 = vpack.c.b16 %v4972, %v4968
        %v5853 = vpack.c.b16 %v4973, %v4969
        %v5854 = vpack.c.b16 %v4974, %v4970
        %v5855 = vpack.c.b16 %v4979, %v4975
        %v5856 = vpack.c.b16 %v4980, %v4976
        %v5857 = vpack.c.b16 %v4981, %v4977
        %v5858 = vpack.c.b16 %v4982, %v4978
        %v5859 = vpack.c.b16 %v4987, %v4983
        %v5860 = vpack.c.b16 %v4988, %v4984
        %v5861 = vpack.c.b16 %v4989, %v4985
        %v5862 = vpack.c.b16 %v4990, %v4986
        %v5863 = vpack.c.b16 %v4995, %v4991
        %v5864 = vpack.c.b16 %v4996, %v4992
        %v5865 = vpack.c.b16 %v4997, %v4993
        %v5866 = vpack.c.b16 %v4998, %v4994
        %v5867 = vpack.c.b16 %v5003, %v4999
        %v5868 = vpack.c.b16 %v5004, %v5000
        %v5869 = vpack.c.b16 %v5005, %v5001
        %v5870 = vpack.c.b16 %v5006, %v5002
        %v5871 = vpack.c.b16 %v5011, %v5007
        %v5872 = vpack.c.b16 %v5012, %v5008
        %v5873 = vpack.c.b16 %v5013, %v5009
        %v5874 = vpack.c.b16 %v5014, %v5010
        %v5875 = vpack.c.b16 %v5019, %v5015
        %v5876 = vpack.c.b16 %v5020, %v5016
        %v5877 = vpack.c.b16 %v5021, %v5017
        %v5878 = vpack.c.b16 %v5022, %v5018
        %v5879 = vpack.c.b16 %v5027, %v5023
        %v5880 = vpack.c.b16 %v5028, %v5024
        %v5881 = vpack.c.b16 %v5029, %v5025
        %v5882 = vpack.c.b16 %v5030, %v5026
        %v5883 = vpack.c.b16 %v5035, %v5031
        %v5884 = vpack.c.b16 %v5036, %v5032
        %v5885 = vpack.c.b16 %v5037, %v5033
        %v5886 = vpack.c.b16 %v5038, %v5034
        %v5887 = vpack.c.b16 %v5043, %v5039
        %v5888 = vpack.c.b16 %v5044, %v5040
        %v5889 = vpack.c.b16 %v5045, %v5041
        %v5890 = vpack.c.b16 %v5046, %v5042
        %v5891 = vpack.c.b16 %v5051, %v5047
        %v5892 = vpack.c.b16 %v5052, %v5048
        %v5893 = vpack.c.b16 %v5053, %v5049
        %v5894 = vpack.c.b16 %v5054, %v5050
        %v5895 = vpack.c.b16 %v5059, %v5055
        %v5896 = vpack.c.b16 %v5060, %v5056
        %v5897 = vpack.c.b16 %v5061, %v5057
        %v5898 = vpack.c.b16 %v5062, %v5058
        %v5899 = vpack.c.b16 %v5067, %v5063
        %v5900 = vpack.c.b16 %v5068, %v5064
        %v5901 = vpack.c.b16 %v5069, %v5065
        %v5902 = vpack.c.b16 %v5070, %v5066
        %v5903 = vpack.c.b16 %v5075, %v5071
        %v5904 = vpack.c.b16 %v5076, %v5072
        %v5905 = vpack.c.b16 %v5077, %v5073
        %v5906 = vpack.c.b16 %v5078, %v5074
        %v5907 = vpack.c.b16 %v5083, %v5079
        %v5908 = vpack.c.b16 %v5084, %v5080
        %v5909 = vpack.c.b16 %v5085, %v5081
        %v5910 = vpack.c.b16 %v5086, %v5082
        %v5911 = vpack.c.b16 %v5091, %v5087
        %v5912 = vpack.c.b16 %v5092, %v5088
        %v5913 = vpack.c.b16 %v5093, %v5089
        %v5914 = vpack.c.b16 %v5094, %v5090
        %v5915 = vpack.c.b16 %v5099, %v5095
        %v5916 = vpack.c.b16 %v5100, %v5096
        %v5917 = vpack.c.b16 %v5101, %v5097
        %v5918 = vpack.c.b16 %v5102, %v5098
        %v5919 = vpack.c.b16 %v5107, %v5103
        %v5920 = vpack.c.b16 %v5108, %v5104
        %v5921 = vpack.c.b16 %v5109, %v5105
        %v5922 = vpack.c.b16 %v5110, %v5106
        %v5923 = vpack.c.b16 %v5115, %v5111
        %v5924 = vpack.c.b16 %v5116, %v5112
        %v5925 = vpack.c.b16 %v5117, %v5113
        %v5926 = vpack.c.b16 %v5118, %v5114
        %v5927 = vpack.c.b16 %v5123, %v5119
        %v5928 = vpack.c.b16 %v5124, %v5120
        %v5929 = vpack.c.b16 %v5125, %v5121
        %v5930 = vpack.c.b16 %v5126, %v5122
        %v5931 = vpack.c.b16 %v5131, %v5127
        %v5932 = vpack.c.b16 %v5132, %v5128
        %v5933 = vpack.c.b16 %v5133, %v5129
        %v5934 = vpack.c.b16 %v5134, %v5130
        %v5935 = vpack.c.b16 %v5139, %v5135
        %v5936 = vpack.c.b16 %v5140, %v5136
        %v5937 = vpack.c.b16 %v5141, %v5137
        %v5938 = vpack.c.b16 %v5142, %v5138
        %v5939 = vpack.c.b16 %v5147, %v5143
        %v5940 = vpack.c.b16 %v5148, %v5144
        %v5941 = vpack.c.b16 %v5149, %v5145
        %v5942 = vpack.c.b16 %v5150, %v5146
        %v5943 = vpack.c.b16 %v5155, %v5151
        %v5944 = vpack.c.b16 %v5156, %v5152
        %v5945 = vpack.c.b16 %v5157, %v5153
        %v5946 = vpack.c.b16 %v5158, %v5154
        %v5947 = vpack.c.b16 %v5163, %v5159
        %v5948 = vpack.c.b16 %v5164, %v5160
        %v5949 = vpack.c.b16 %v5165, %v5161
        %v5950 = vpack.c.b16 %v5166, %v5162
        %vm6735 = vcmask 523264
        %v6737 = vsel %vm6735, %v2790, 0
        %6739 = vmatprep.subr.bf16.mxu0 %v5196
        %6740 = vmatpush1.bf16.msra.mxu0 %v5195
        %6741 = vmatprep.subr.bf16.mxu0 %v5192
        %6742 = vmatpush1.bf16.msra.mxu0 %v5191
        %6743 = vmatprep.subr.bf16.mxu0 %v5188
        %6744 = vmatpush1.bf16.msra.mxu0 %v5187
        %6745 = vmatprep.subr.bf16.mxu0 %v5184
        %6746 = vmatpush1.bf16.msra.mxu0 %v5183
        %6747 = vmatprep.subr.bf16.mxu0 %v5180
        %6748 = vmatpush1.bf16.msra.mxu0 %v5179
        %6749 = vmatprep.subr.bf16.mxu0 %v5176
        %6750 = vmatpush1.bf16.msra.mxu0 %v5175
        %6751 = vmatprep.subr.bf16.mxu0 %v5172
        %6752 = vmatpush1.bf16.msra.mxu0 %v5171
        %6753 = vmatprep.subr.bf16.mxu0 %v5168
        %6754 = vmatpush1.bf16.msra.mxu0 %v5167
        %6755 = vmatprep.subr.bf16.mxu0 %v5228
        %6756 = vmatpush2.bf16.msra.mxu0 %v5227
        %6757 = vmatprep.subr.bf16.mxu0 %v5224
        %6758 = vmatpush2.bf16.msra.mxu0 %v5223
        %6759 = vmatprep.subr.bf16.mxu0 %v5220
        %6760 = vmatpush2.bf16.msra.mxu0 %v5219
        %6761 = vmatprep.subr.bf16.mxu0 %v5216
        %6762 = vmatpush2.bf16.msra.mxu0 %v5215
        %6763 = vmatprep.subr.bf16.mxu0 %v5212
        %6764 = vmatpush2.bf16.msra.mxu0 %v5211
        %6765 = vmatprep.subr.bf16.mxu0 %v5208
        %6766 = vmatpush2.bf16.msra.mxu0 %v5207
        %6767 = vmatprep.subr.bf16.mxu0 %v5204
        %6768 = vmatpush2.bf16.msra.mxu0 %v5203
        %6769 = vmatprep.subr.bf16.mxu0 %v5200
        %6770 = vmatpush2.bf16.msra.mxu0 %v5199
        %6771 = vmatprep.mubr.bf16.mxu0 %v2667
        %6772 = vmatmul.mubr.bf16.gmra.mxu0 %v2653
        %v6773 = vpop.f32.mrf.mxu0
        %v6774 = vadd.f32 %v2609, %v6773
        %v6775 = vpop.f32.mrf.mxu0
        %v6776 = vadd.f32 %v2613, %v6775
        %v6777 = vpop.f32.mrf.mxu0
        %v6778 = vpop.f32.mrf.mxu0
        %6779 = vdwg.mxu0
        %6780 = vmatprep.subr.bf16.mxu0 %v5260
        %6781 = vmatpush1.bf16.msra.mxu0 %v5259
        %6782 = vmatprep.subr.bf16.mxu0 %v5256
        %6783 = vmatpush1.bf16.msra.mxu0 %v5255
        %6784 = vmatprep.subr.bf16.mxu0 %v5252
        %6785 = vmatpush1.bf16.msra.mxu0 %v5251
        %6786 = vmatprep.subr.bf16.mxu0 %v5248
        %6787 = vmatpush1.bf16.msra.mxu0 %v5247
        %6788 = vmatprep.subr.bf16.mxu0 %v5244
        %6789 = vmatpush1.bf16.msra.mxu0 %v5243
        %6790 = vmatprep.subr.bf16.mxu0 %v5240
        %6791 = vmatpush1.bf16.msra.mxu0 %v5239
        %6792 = vmatprep.subr.bf16.mxu0 %v5236
        %6793 = vmatpush1.bf16.msra.mxu0 %v5235
        %6794 = vmatprep.subr.bf16.mxu0 %v5232
        %6795 = vmatpush1.bf16.msra.mxu0 %v5231
        %6796 = vmatprep.subr.bf16.mxu0 %v5292
        %6797 = vmatpush2.bf16.msra.mxu0 %v5291
        %6798 = vmatprep.subr.bf16.mxu0 %v5288
        %6799 = vmatpush2.bf16.msra.mxu0 %v5287
        %6800 = vmatprep.subr.bf16.mxu0 %v5284
        %6801 = vmatpush2.bf16.msra.mxu0 %v5283
        %6802 = vmatprep.subr.bf16.mxu0 %v5280
        %6803 = vmatpush2.bf16.msra.mxu0 %v5279
        %6804 = vmatprep.subr.bf16.mxu0 %v5276
        %6805 = vmatpush2.bf16.msra.mxu0 %v5275
        %6806 = vmatprep.subr.bf16.mxu0 %v5272
        %6807 = vmatpush2.bf16.msra.mxu0 %v5271
        %6808 = vmatprep.subr.bf16.mxu0 %v5268
        %6809 = vmatpush2.bf16.msra.mxu0 %v5267
        %6810 = vmatprep.subr.bf16.mxu0 %v5264
        %6811 = vmatpush2.bf16.msra.mxu0 %v5263
        %6812 = vmatprep.mubr.bf16.mxu0 %v2677
        %6813 = vmatmul.mubr.bf16.gmra.mxu0 %v2675
        %v6814 = vpop.f32.mrf.mxu0
        %v6815 = vadd.f32 %v6774, %v6814
        %v6816 = vpop.f32.mrf.mxu0
        %v6817 = vadd.f32 %v6776, %v6816
        %v6818 = vpop.f32.mrf.mxu0
        %v6819 = vpop.f32.mrf.mxu0
        %6820 = vdwg.mxu0
        %6821 = vmatprep.subr.bf16.mxu0 %v5324
        %6822 = vmatpush1.bf16.msra.mxu0 %v5323
        %6823 = vmatprep.subr.bf16.mxu0 %v5320
        %6824 = vmatpush1.bf16.msra.mxu0 %v5319
        %6825 = vmatprep.subr.bf16.mxu0 %v5316
        %6826 = vmatpush1.bf16.msra.mxu0 %v5315
        %6827 = vmatprep.subr.bf16.mxu0 %v5312
        %6828 = vmatpush1.bf16.msra.mxu0 %v5311
        %6829 = vmatprep.subr.bf16.mxu0 %v5308
        %6830 = vmatpush1.bf16.msra.mxu0 %v5307
        %6831 = vmatprep.subr.bf16.mxu0 %v5304
        %6832 = vmatpush1.bf16.msra.mxu0 %v5303
        %6833 = vmatprep.subr.bf16.mxu0 %v5300
        %6834 = vmatpush1.bf16.msra.mxu0 %v5299
        %6835 = vmatprep.subr.bf16.mxu0 %v5296
        %6836 = vmatpush1.bf16.msra.mxu0 %v5295
        %6837 = vmatprep.subr.bf16.mxu0 %v5356
        %6838 = vmatpush2.bf16.msra.mxu0 %v5355
        %6839 = vmatprep.subr.bf16.mxu0 %v5352
        %6840 = vmatpush2.bf16.msra.mxu0 %v5351
        %6841 = vmatprep.subr.bf16.mxu0 %v5348
        %6842 = vmatpush2.bf16.msra.mxu0 %v5347
        %6843 = vmatprep.subr.bf16.mxu0 %v5344
        %6844 = vmatpush2.bf16.msra.mxu0 %v5343
        %6845 = vmatprep.subr.bf16.mxu0 %v5340
        %6846 = vmatpush2.bf16.msra.mxu0 %v5339
        %6847 = vmatprep.subr.bf16.mxu0 %v5336
        %6848 = vmatpush2.bf16.msra.mxu0 %v5335
        %6849 = vmatprep.subr.bf16.mxu0 %v5332
        %6850 = vmatpush2.bf16.msra.mxu0 %v5331
        %6851 = vmatprep.subr.bf16.mxu0 %v5328
        %6852 = vmatpush2.bf16.msra.mxu0 %v5327
        %6853 = vmatprep.mubr.bf16.mxu0 %v2674
        %6854 = vmatmul.mubr.bf16.gmra.mxu0 %v2660
        %v6855 = vpop.f32.mrf.mxu0
        %v6856 = vadd.f32 %v6815, %v6855
        %v6857 = vpop.f32.mrf.mxu0
        %v6858 = vadd.f32 %v6817, %v6857
        %v6859 = vpop.f32.mrf.mxu0
        %v6860 = vpop.f32.mrf.mxu0
        %6861 = vdwg.mxu0
        %6862 = vmatprep.subr.bf16.mxu0 %v5388
        %6863 = vmatpush1.bf16.msra.mxu0 %v5387
        %6864 = vmatprep.subr.bf16.mxu0 %v5384
        %6865 = vmatpush1.bf16.msra.mxu0 %v5383
        %6866 = vmatprep.subr.bf16.mxu0 %v5380
        %6867 = vmatpush1.bf16.msra.mxu0 %v5379
        %6868 = vmatprep.subr.bf16.mxu0 %v5376
        %6869 = vmatpush1.bf16.msra.mxu0 %v5375
        %6870 = vmatprep.subr.bf16.mxu0 %v5372
        %6871 = vmatpush1.bf16.msra.mxu0 %v5371
        %6872 = vmatprep.subr.bf16.mxu0 %v5368
        %6873 = vmatpush1.bf16.msra.mxu0 %v5367
        %6874 = vmatprep.subr.bf16.mxu0 %v5364
        %6875 = vmatpush1.bf16.msra.mxu0 %v5363
        %6876 = vmatprep.subr.bf16.mxu0 %v5360
        %6877 = vmatpush1.bf16.msra.mxu0 %v5359
        %6878 = vmatprep.subr.bf16.mxu0 %v5420
        %6879 = vmatpush2.bf16.msra.mxu0 %v5419
        %6880 = vmatprep.subr.bf16.mxu0 %v5416
        %6881 = vmatpush2.bf16.msra.mxu0 %v5415
        %6882 = vmatprep.subr.bf16.mxu0 %v5412
        %6883 = vmatpush2.bf16.msra.mxu0 %v5411
        %6884 = vmatprep.subr.bf16.mxu0 %v5408
        %6885 = vmatpush2.bf16.msra.mxu0 %v5407
        %6886 = vmatprep.subr.bf16.mxu0 %v5404
        %6887 = vmatpush2.bf16.msra.mxu0 %v5403
        %6888 = vmatprep.subr.bf16.mxu0 %v5400
        %6889 = vmatpush2.bf16.msra.mxu0 %v5399
        %6890 = vmatprep.subr.bf16.mxu0 %v5396
        %6891 = vmatpush2.bf16.msra.mxu0 %v5395
        %6892 = vmatprep.subr.bf16.mxu0 %v5392
        %6893 = vmatpush2.bf16.msra.mxu0 %v5391
        %6894 = vmatprep.mubr.bf16.mxu0 %v2678
        %6895 = vmatmul.mubr.bf16.gmra.mxu0 %v2676
        %v6896 = vpop.f32.mrf.mxu0
        %v6897 = vadd.f32 %v6856, %v6896
        %v6898 = vpop.f32.mrf.mxu0
        %v6899 = vadd.f32 %v6858, %v6898
        %v6900 = vpop.f32.mrf.mxu0
        %v6901 = vpop.f32.mrf.mxu0
        %6902 = vdwg.mxu0
        %6903 = vmatprep.subr.bf16.mxu0 %v5452
        %6904 = vmatpush1.bf16.msra.mxu0 %v5451
        %6905 = vmatprep.subr.bf16.mxu0 %v5448
        %6906 = vmatpush1.bf16.msra.mxu0 %v5447
        %6907 = vmatprep.subr.bf16.mxu0 %v5444
        %6908 = vmatpush1.bf16.msra.mxu0 %v5443
        %6909 = vmatprep.subr.bf16.mxu0 %v5440
        %6910 = vmatpush1.bf16.msra.mxu0 %v5439
        %6911 = vmatprep.subr.bf16.mxu0 %v5436
        %6912 = vmatpush1.bf16.msra.mxu0 %v5435
        %6913 = vmatprep.subr.bf16.mxu0 %v5432
        %6914 = vmatpush1.bf16.msra.mxu0 %v5431
        %6915 = vmatprep.subr.bf16.mxu0 %v5428
        %6916 = vmatpush1.bf16.msra.mxu0 %v5427
        %6917 = vmatprep.subr.bf16.mxu0 %v5424
        %6918 = vmatpush1.bf16.msra.mxu0 %v5423
        %6919 = vmatprep.subr.bf16.mxu0 %v5484
        %6920 = vmatpush2.bf16.msra.mxu0 %v5483
        %6921 = vmatprep.subr.bf16.mxu0 %v5480
        %6922 = vmatpush2.bf16.msra.mxu0 %v5479
        %6923 = vmatprep.subr.bf16.mxu0 %v5476
        %6924 = vmatpush2.bf16.msra.mxu0 %v5475
        %6925 = vmatprep.subr.bf16.mxu0 %v5472
        %6926 = vmatpush2.bf16.msra.mxu0 %v5471
        %6927 = vmatprep.subr.bf16.mxu0 %v5468
        %6928 = vmatpush2.bf16.msra.mxu0 %v5467
        %6929 = vmatprep.subr.bf16.mxu0 %v5464
        %6930 = vmatpush2.bf16.msra.mxu0 %v5463
        %6931 = vmatprep.subr.bf16.mxu0 %v5460
        %6932 = vmatpush2.bf16.msra.mxu0 %v5459
        %6933 = vmatprep.subr.bf16.mxu0 %v5456
        %6934 = vmatpush2.bf16.msra.mxu0 %v5455
        %6935 = vmatprep.mubr.bf16.mxu0 %v2716
        %6936 = vmatmul.mubr.bf16.gmra.mxu0 %v2702
        %v6937 = vpop.f32.mrf.mxu0
        %v6938 = vadd.f32 %v6897, %v6937
        %v6939 = vpop.f32.mrf.mxu0
        %v6940 = vadd.f32 %v6899, %v6939
        %v6941 = vpop.f32.mrf.mxu0
        %v6942 = vpop.f32.mrf.mxu0
        %6943 = vdwg.mxu0
        %6944 = vmatprep.subr.bf16.mxu0 %v5516
        %6945 = vmatpush1.bf16.msra.mxu0 %v5515
        %6946 = vmatprep.subr.bf16.mxu0 %v5512
        %6947 = vmatpush1.bf16.msra.mxu0 %v5511
        %6948 = vmatprep.subr.bf16.mxu0 %v5508
        %6949 = vmatpush1.bf16.msra.mxu0 %v5507
        %6950 = vmatprep.subr.bf16.mxu0 %v5504
        %6951 = vmatpush1.bf16.msra.mxu0 %v5503
        %6952 = vmatprep.subr.bf16.mxu0 %v5500
        %6953 = vmatpush1.bf16.msra.mxu0 %v5499
        %6954 = vmatprep.subr.bf16.mxu0 %v5496
        %6955 = vmatpush1.bf16.msra.mxu0 %v5495
        %6956 = vmatprep.subr.bf16.mxu0 %v5492
        %6957 = vmatpush1.bf16.msra.mxu0 %v5491
        %6958 = vmatprep.subr.bf16.mxu0 %v5488
        %6959 = vmatpush1.bf16.msra.mxu0 %v5487
        %6960 = vmatprep.subr.bf16.mxu0 %v5548
        %6961 = vmatpush2.bf16.msra.mxu0 %v5547
        %6962 = vmatprep.subr.bf16.mxu0 %v5544
        %6963 = vmatpush2.bf16.msra.mxu0 %v5543
        %6964 = vmatprep.subr.bf16.mxu0 %v5540
        %6965 = vmatpush2.bf16.msra.mxu0 %v5539
        %6966 = vmatprep.subr.bf16.mxu0 %v5536
        %6967 = vmatpush2.bf16.msra.mxu0 %v5535
        %6968 = vmatprep.subr.bf16.mxu0 %v5532
        %6969 = vmatpush2.bf16.msra.mxu0 %v5531
        %6970 = vmatprep.subr.bf16.mxu0 %v5528
        %6971 = vmatpush2.bf16.msra.mxu0 %v5527
        %6972 = vmatprep.subr.bf16.mxu0 %v5524
        %6973 = vmatpush2.bf16.msra.mxu0 %v5523
        %6974 = vmatprep.subr.bf16.mxu0 %v5520
        %6975 = vmatpush2.bf16.msra.mxu0 %v5519
        %6976 = vmatprep.mubr.bf16.mxu0 %v2726
        %6977 = vmatmul.mubr.bf16.gmra.mxu0 %v2724
        %v6978 = vpop.f32.mrf.mxu0
        %v6979 = vadd.f32 %v6938, %v6978
        %v6980 = vpop.f32.mrf.mxu0
        %v6981 = vadd.f32 %v6940, %v6980
        %v6982 = vpop.f32.mrf.mxu0
        %v6983 = vpop.f32.mrf.mxu0
        %6984 = vdwg.mxu0
        %6985 = vmatprep.subr.bf16.mxu0 %v5580
        %6986 = vmatpush1.bf16.msra.mxu0 %v5579
        %6987 = vmatprep.subr.bf16.mxu0 %v5576
        %6988 = vmatpush1.bf16.msra.mxu0 %v5575
        %6989 = vmatprep.subr.bf16.mxu0 %v5572
        %6990 = vmatpush1.bf16.msra.mxu0 %v5571
        %6991 = vmatprep.subr.bf16.mxu0 %v5568
        %6992 = vmatpush1.bf16.msra.mxu0 %v5567
        %6993 = vmatprep.subr.bf16.mxu0 %v5564
        %6994 = vmatpush1.bf16.msra.mxu0 %v5563
        %6995 = vmatprep.subr.bf16.mxu0 %v5560
        %6996 = vmatpush1.bf16.msra.mxu0 %v5559
        %6997 = vmatprep.subr.bf16.mxu0 %v5556
        %6998 = vmatpush1.bf16.msra.mxu0 %v5555
        %6999 = vmatprep.subr.bf16.mxu0 %v5552
        %7000 = vmatpush1.bf16.msra.mxu0 %v5551
        %7001 = vmatprep.subr.bf16.mxu0 %v5612
        %7002 = vmatpush2.bf16.msra.mxu0 %v5611
        %7003 = vmatprep.subr.bf16.mxu0 %v5608
        %7004 = vmatpush2.bf16.msra.mxu0 %v5607
        %7005 = vmatprep.subr.bf16.mxu0 %v5604
        %7006 = vmatpush2.bf16.msra.mxu0 %v5603
        %7007 = vmatprep.subr.bf16.mxu0 %v5600
        %7008 = vmatpush2.bf16.msra.mxu0 %v5599
        %7009 = vmatprep.subr.bf16.mxu0 %v5596
        %7010 = vmatpush2.bf16.msra.mxu0 %v5595
        %7011 = vmatprep.subr.bf16.mxu0 %v5592
        %7012 = vmatpush2.bf16.msra.mxu0 %v5591
        %7013 = vmatprep.subr.bf16.mxu0 %v5588
        %7014 = vmatpush2.bf16.msra.mxu0 %v5587
        %7015 = vmatprep.subr.bf16.mxu0 %v5584
        %7016 = vmatpush2.bf16.msra.mxu0 %v5583
        %7017 = vmatprep.mubr.bf16.mxu0 %v2723
        %7018 = vmatmul.mubr.bf16.gmra.mxu0 %v2709
        %v7019 = vpop.f32.mrf.mxu0
        %v7020 = vadd.f32 %v6979, %v7019
        %v7021 = vpop.f32.mrf.mxu0
        %v7022 = vadd.f32 %v6981, %v7021
        %v7023 = vpop.f32.mrf.mxu0
        %v7024 = vpop.f32.mrf.mxu0
        %7025 = vdwg.mxu0
        %7026 = vmatprep.subr.bf16.mxu0 %v5644
        %7027 = vmatpush1.bf16.msra.mxu0 %v5643
        %7028 = vmatprep.subr.bf16.mxu0 %v5640
        %7029 = vmatpush1.bf16.msra.mxu0 %v5639
        %7030 = vmatprep.subr.bf16.mxu0 %v5636
        %7031 = vmatpush1.bf16.msra.mxu0 %v5635
        %7032 = vmatprep.subr.bf16.mxu0 %v5632
        %7033 = vmatpush1.bf16.msra.mxu0 %v5631
        %7034 = vmatprep.subr.bf16.mxu0 %v5628
        %7035 = vmatpush1.bf16.msra.mxu0 %v5627
        %7036 = vmatprep.subr.bf16.mxu0 %v5624
        %7037 = vmatpush1.bf16.msra.mxu0 %v5623
        %7038 = vmatprep.subr.bf16.mxu0 %v5620
        %7039 = vmatpush1.bf16.msra.mxu0 %v5619
        %7040 = vmatprep.subr.bf16.mxu0 %v5616
        %7041 = vmatpush1.bf16.msra.mxu0 %v5615
        %7042 = vmatprep.subr.bf16.mxu0 %v5676
        %7043 = vmatpush2.bf16.msra.mxu0 %v5675
        %7044 = vmatprep.subr.bf16.mxu0 %v5672
        %7045 = vmatpush2.bf16.msra.mxu0 %v5671
        %7046 = vmatprep.subr.bf16.mxu0 %v5668
        %7047 = vmatpush2.bf16.msra.mxu0 %v5667
        %7048 = vmatprep.subr.bf16.mxu0 %v5664
        %7049 = vmatpush2.bf16.msra.mxu0 %v5663
        %7050 = vmatprep.subr.bf16.mxu0 %v5660
        %7051 = vmatpush2.bf16.msra.mxu0 %v5659
        %7052 = vmatprep.subr.bf16.mxu0 %v5656
        %7053 = vmatpush2.bf16.msra.mxu0 %v5655
        %7054 = vmatprep.subr.bf16.mxu0 %v5652
        %7055 = vmatpush2.bf16.msra.mxu0 %v5651
        %7056 = vmatprep.subr.bf16.mxu0 %v5648
        %7057 = vmatpush2.bf16.msra.mxu0 %v5647
        %7058 = vmatprep.mubr.bf16.mxu0 %v2727
        %7059 = vmatmul.mubr.bf16.gmra.mxu0 %v2725
        %v7060 = vpop.f32.mrf.mxu0
        %v7061 = vadd.f32 %v7020, %v7060
        %v7062 = vpop.f32.mrf.mxu0
        %v7063 = vadd.f32 %v7022, %v7062
        %v7064 = vpop.f32.mrf.mxu0
        %v7065 = vpop.f32.mrf.mxu0
        %7066 = vdwg.mxu0
        %7067 = vmatprep.subr.bf16.mxu0 %v5708
        %7068 = vmatpush1.bf16.msra.mxu0 %v5707
        %7069 = vmatprep.subr.bf16.mxu0 %v5704
        %7070 = vmatpush1.bf16.msra.mxu0 %v5703
        %7071 = vmatprep.subr.bf16.mxu0 %v5700
        %7072 = vmatpush1.bf16.msra.mxu0 %v5699
        %7073 = vmatprep.subr.bf16.mxu0 %v5696
        %7074 = vmatpush1.bf16.msra.mxu0 %v5695
        %7075 = vmatprep.subr.bf16.mxu0 %v5692
        %7076 = vmatpush1.bf16.msra.mxu0 %v5691
        %7077 = vmatprep.subr.bf16.mxu0 %v5688
        %7078 = vmatpush1.bf16.msra.mxu0 %v5687
        %7079 = vmatprep.subr.bf16.mxu0 %v5684
        %7080 = vmatpush1.bf16.msra.mxu0 %v5683
        %7081 = vmatprep.subr.bf16.mxu0 %v5680
        %7082 = vmatpush1.bf16.msra.mxu0 %v5679
        %7083 = vmatprep.subr.bf16.mxu0 %v5740
        %7084 = vmatpush2.bf16.msra.mxu0 %v5739
        %7085 = vmatprep.subr.bf16.mxu0 %v5736
        %7086 = vmatpush2.bf16.msra.mxu0 %v5735
        %7087 = vmatprep.subr.bf16.mxu0 %v5732
        %7088 = vmatpush2.bf16.msra.mxu0 %v5731
        %7089 = vmatprep.subr.bf16.mxu0 %v5728
        %7090 = vmatpush2.bf16.msra.mxu0 %v5727
        %7091 = vmatprep.subr.bf16.mxu0 %v5724
        %7092 = vmatpush2.bf16.msra.mxu0 %v5723
        %7093 = vmatprep.subr.bf16.mxu0 %v5720
        %7094 = vmatpush2.bf16.msra.mxu0 %v5719
        %7095 = vmatprep.subr.bf16.mxu0 %v5716
        %7096 = vmatpush2.bf16.msra.mxu0 %v5715
        %7097 = vmatprep.subr.bf16.mxu0 %v5712
        %7098 = vmatpush2.bf16.msra.mxu0 %v5711
        %7099 = vmatprep.mubr.bf16.mxu0 %v2765
        %7100 = vmatmul.mubr.bf16.gmra.mxu0 %v2751
        %v7101 = vpop.f32.mrf.mxu0
        %v7102 = vadd.f32 %v7061, %v7101
        %v7103 = vpop.f32.mrf.mxu0
        %v7104 = vadd.f32 %v7063, %v7103
        %v7105 = vpop.f32.mrf.mxu0
        %v7106 = vpop.f32.mrf.mxu0
        %7107 = vdwg.mxu0
        %7108 = vmatprep.subr.bf16.mxu0 %v5772
        %7109 = vmatpush1.bf16.msra.mxu0 %v5771
        %7110 = vmatprep.subr.bf16.mxu0 %v5768
        %7111 = vmatpush1.bf16.msra.mxu0 %v5767
        %7112 = vmatprep.subr.bf16.mxu0 %v5764
        %7113 = vmatpush1.bf16.msra.mxu0 %v5763
        %7114 = vmatprep.subr.bf16.mxu0 %v5760
        %7115 = vmatpush1.bf16.msra.mxu0 %v5759
        %7116 = vmatprep.subr.bf16.mxu0 %v5756
        %7117 = vmatpush1.bf16.msra.mxu0 %v5755
        %7118 = vmatprep.subr.bf16.mxu0 %v5752
        %7119 = vmatpush1.bf16.msra.mxu0 %v5751
        %7120 = vmatprep.subr.bf16.mxu0 %v5748
        %7121 = vmatpush1.bf16.msra.mxu0 %v5747
        %7122 = vmatprep.subr.bf16.mxu0 %v5744
        %7123 = vmatpush1.bf16.msra.mxu0 %v5743
        %7124 = vmatprep.subr.bf16.mxu0 %v5804
        %7125 = vmatpush2.bf16.msra.mxu0 %v5803
        %7126 = vmatprep.subr.bf16.mxu0 %v5800
        %7127 = vmatpush2.bf16.msra.mxu0 %v5799
        %7128 = vmatprep.subr.bf16.mxu0 %v5796
        %7129 = vmatpush2.bf16.msra.mxu0 %v5795
        %7130 = vmatprep.subr.bf16.mxu0 %v5792
        %7131 = vmatpush2.bf16.msra.mxu0 %v5791
        %7132 = vmatprep.subr.bf16.mxu0 %v5788
        %7133 = vmatpush2.bf16.msra.mxu0 %v5787
        %7134 = vmatprep.subr.bf16.mxu0 %v5784
        %7135 = vmatpush2.bf16.msra.mxu0 %v5783
        %7136 = vmatprep.subr.bf16.mxu0 %v5780
        %7137 = vmatpush2.bf16.msra.mxu0 %v5779
        %7138 = vmatprep.subr.bf16.mxu0 %v5776
        %7139 = vmatpush2.bf16.msra.mxu0 %v5775
        %7140 = vmatprep.mubr.bf16.mxu0 %v2775
        %7141 = vmatmul.mubr.bf16.gmra.mxu0 %v2773
        %v7142 = vpop.f32.mrf.mxu0
        %v7143 = vadd.f32 %v7102, %v7142
        %v7144 = vpop.f32.mrf.mxu0
        %v7145 = vadd.f32 %v7104, %v7144
        %v7146 = vpop.f32.mrf.mxu0
        %v7147 = vpop.f32.mrf.mxu0
        %7148 = vdwg.mxu0
        %7149 = vmatprep.subr.bf16.mxu0 %v5836
        %7150 = vmatpush1.bf16.msra.mxu0 %v5835
        %7151 = vmatprep.subr.bf16.mxu0 %v5832
        %7152 = vmatpush1.bf16.msra.mxu0 %v5831
        %7153 = vmatprep.subr.bf16.mxu0 %v5828
        %7154 = vmatpush1.bf16.msra.mxu0 %v5827
        %7155 = vmatprep.subr.bf16.mxu0 %v5824
        %7156 = vmatpush1.bf16.msra.mxu0 %v5823
        %7157 = vmatprep.subr.bf16.mxu0 %v5820
        %7158 = vmatpush1.bf16.msra.mxu0 %v5819
        %7159 = vmatprep.subr.bf16.mxu0 %v5816
        %7160 = vmatpush1.bf16.msra.mxu0 %v5815
        %7161 = vmatprep.subr.bf16.mxu0 %v5812
        %7162 = vmatpush1.bf16.msra.mxu0 %v5811
        %7163 = vmatprep.subr.bf16.mxu0 %v5808
        %7164 = vmatpush1.bf16.msra.mxu0 %v5807
        %7165 = vmatprep.subr.bf16.mxu0 %v5868
        %7166 = vmatpush2.bf16.msra.mxu0 %v5867
        %7167 = vmatprep.subr.bf16.mxu0 %v5864
        %7168 = vmatpush2.bf16.msra.mxu0 %v5863
        %7169 = vmatprep.subr.bf16.mxu0 %v5860
        %7170 = vmatpush2.bf16.msra.mxu0 %v5859
        %7171 = vmatprep.subr.bf16.mxu0 %v5856
        %7172 = vmatpush2.bf16.msra.mxu0 %v5855
        %7173 = vmatprep.subr.bf16.mxu0 %v5852
        %7174 = vmatpush2.bf16.msra.mxu0 %v5851
        %7175 = vmatprep.subr.bf16.mxu0 %v5848
        %7176 = vmatpush2.bf16.msra.mxu0 %v5847
        %7177 = vmatprep.subr.bf16.mxu0 %v5844
        %7178 = vmatpush2.bf16.msra.mxu0 %v5843
        %7179 = vmatprep.subr.bf16.mxu0 %v5840
        %7180 = vmatpush2.bf16.msra.mxu0 %v5839
        %7181 = vmatprep.mubr.bf16.mxu0 %v2772
        %7182 = vmatmul.mubr.bf16.gmra.mxu0 %v2758
        %v7183 = vpop.f32.mrf.mxu0
        %v7184 = vadd.f32 %v7143, %v7183
        %v7185 = vpop.f32.mrf.mxu0
        %v7186 = vadd.f32 %v7145, %v7185
        %v7187 = vpop.f32.mrf.mxu0
        %v7188 = vpop.f32.mrf.mxu0
        %7189 = vdwg.mxu0
        %7190 = vmatprep.subr.bf16.mxu0 %v5900
        %7191 = vmatpush1.bf16.msra.mxu0 %v5899
        %7192 = vmatprep.subr.bf16.mxu0 %v5896
        %7193 = vmatpush1.bf16.msra.mxu0 %v5895
        %7194 = vmatprep.subr.bf16.mxu0 %v5892
        %7195 = vmatpush1.bf16.msra.mxu0 %v5891
        %7196 = vmatprep.subr.bf16.mxu0 %v5888
        %7197 = vmatpush1.bf16.msra.mxu0 %v5887
        %7198 = vmatprep.subr.bf16.mxu0 %v5884
        %7199 = vmatpush1.bf16.msra.mxu0 %v5883
        %7200 = vmatprep.subr.bf16.mxu0 %v5880
        %7201 = vmatpush1.bf16.msra.mxu0 %v5879
        %7202 = vmatprep.subr.bf16.mxu0 %v5876
        %7203 = vmatpush1.bf16.msra.mxu0 %v5875
        %7204 = vmatprep.subr.bf16.mxu0 %v5872
        %7205 = vmatpush1.bf16.msra.mxu0 %v5871
        %7206 = vmatprep.subr.bf16.mxu0 %v5932
        %7207 = vmatpush2.bf16.msra.mxu0 %v5931
        %7208 = vmatprep.subr.bf16.mxu0 %v5928
        %7209 = vmatpush2.bf16.msra.mxu0 %v5927
        %7210 = vmatprep.subr.bf16.mxu0 %v5924
        %7211 = vmatpush2.bf16.msra.mxu0 %v5923
        %7212 = vmatprep.subr.bf16.mxu0 %v5920
        %7213 = vmatpush2.bf16.msra.mxu0 %v5919
        %7214 = vmatprep.subr.bf16.mxu0 %v5916
        %7215 = vmatpush2.bf16.msra.mxu0 %v5915
        %7216 = vmatprep.subr.bf16.mxu0 %v5912
        %7217 = vmatpush2.bf16.msra.mxu0 %v5911
        %7218 = vmatprep.subr.bf16.mxu0 %v5908
        %7219 = vmatpush2.bf16.msra.mxu0 %v5907
        %7220 = vmatprep.subr.bf16.mxu0 %v5904
        %7221 = vmatpush2.bf16.msra.mxu0 %v5903
        %7222 = vmatprep.mubr.bf16.mxu0 %v2776
        %7223 = vmatmul.mubr.bf16.gmra.mxu0 %v2774
        %v7224 = vpop.f32.mrf.mxu0
        %v7225 = vadd.f32 %v7184, %v7224
        %v7226 = vpop.f32.mrf.mxu0
        %v7227 = vadd.f32 %v7186, %v7226
        %v7228 = vpop.f32.mrf.mxu0
        %v7229 = vpop.f32.mrf.mxu0
        %7230 = vdwg.mxu0
        %7231 = vmatprep.subr.bf16.mxu0 0
        %7232 = vmatpush1.bf16.msra.mxu0 0
        %7233 = vmatprep.subr.bf16.mxu0 0
        %7234 = vmatpush1.bf16.msra.mxu0 0
        %7235 = vmatprep.subr.bf16.mxu0 0
        %7236 = vmatpush1.bf16.msra.mxu0 0
        %7237 = vmatprep.subr.bf16.mxu0 0
        %7238 = vmatpush1.bf16.msra.mxu0 0
        %7239 = vmatprep.subr.bf16.mxu0 %v5948
        %7240 = vmatpush1.bf16.msra.mxu0 %v5947
        %7241 = vmatprep.subr.bf16.mxu0 %v5944
        %7242 = vmatpush1.bf16.msra.mxu0 %v5943
        %7243 = vmatprep.subr.bf16.mxu0 %v5940
        %7244 = vmatpush1.bf16.msra.mxu0 %v5939
        %7245 = vmatprep.subr.bf16.mxu0 %v5936
        %7246 = vmatpush1.bf16.msra.mxu0 %v5935
        %7247 = vmatprep.subr.bf16.mxu0 0
        %7248 = vmatpush2.bf16.msra.mxu0 0
        %7249 = vmatprep.subr.bf16.mxu0 0
        %7250 = vmatpush2.bf16.msra.mxu0 0
        %7251 = vmatprep.subr.bf16.mxu0 0
        %7252 = vmatpush2.bf16.msra.mxu0 0
        %7253 = vmatprep.subr.bf16.mxu0 0
        %7254 = vmatpush2.bf16.msra.mxu0 0
        %7255 = vmatprep.subr.bf16.mxu0 0
        %7256 = vmatpush2.bf16.msra.mxu0 0
        %7257 = vmatprep.subr.bf16.mxu0 0
        %7258 = vmatpush2.bf16.msra.mxu0 0
        %7259 = vmatprep.subr.bf16.mxu0 0
        %7260 = vmatpush2.bf16.msra.mxu0 0
        %7261 = vmatprep.subr.bf16.mxu0 0
        %7262 = vmatpush2.bf16.msra.mxu0 0
        %7263 = vmatprep.mubr.bf16.mxu0 0
        %7264 = vmatmul.mubr.bf16.gmra.mxu0 %v6737
        %v7265 = vpop.f32.mrf.mxu0
        %v7266 = vadd.f32 %v7225, %v7265
        %v7267 = vpop.f32.mrf.mxu0
        %v7268 = vadd.f32 %v7227, %v7267
        %v7269 = vpop.f32.mrf.mxu0
        %v7270 = vpop.f32.mrf.mxu0
        %7271 = vdwg.mxu0
        %7272 = vmatprep.subr.bf16.mxu0 %v5198
        %7273 = vmatpush1.bf16.msra.mxu0 %v5197
        %7274 = vmatprep.subr.bf16.mxu0 %v5194
        %7275 = vmatpush1.bf16.msra.mxu0 %v5193
        %7276 = vmatprep.subr.bf16.mxu0 %v5190
        %7277 = vmatpush1.bf16.msra.mxu0 %v5189
        %7278 = vmatprep.subr.bf16.mxu0 %v5186
        %7279 = vmatpush1.bf16.msra.mxu0 %v5185
        %7280 = vmatprep.subr.bf16.mxu0 %v5182
        %7281 = vmatpush1.bf16.msra.mxu0 %v5181
        %7282 = vmatprep.subr.bf16.mxu0 %v5178
        %7283 = vmatpush1.bf16.msra.mxu0 %v5177
        %7284 = vmatprep.subr.bf16.mxu0 %v5174
        %7285 = vmatpush1.bf16.msra.mxu0 %v5173
        %7286 = vmatprep.subr.bf16.mxu0 %v5170
        %7287 = vmatpush1.bf16.msra.mxu0 %v5169
        %7288 = vmatprep.subr.bf16.mxu0 %v5230
        %7289 = vmatpush2.bf16.msra.mxu0 %v5229
        %7290 = vmatprep.subr.bf16.mxu0 %v5226
        %7291 = vmatpush2.bf16.msra.mxu0 %v5225
        %7292 = vmatprep.subr.bf16.mxu0 %v5222
        %7293 = vmatpush2.bf16.msra.mxu0 %v5221
        %7294 = vmatprep.subr.bf16.mxu0 %v5218
        %7295 = vmatpush2.bf16.msra.mxu0 %v5217
        %7296 = vmatprep.subr.bf16.mxu0 %v5214
        %7297 = vmatpush2.bf16.msra.mxu0 %v5213
        %7298 = vmatprep.subr.bf16.mxu0 %v5210
        %7299 = vmatpush2.bf16.msra.mxu0 %v5209
        %7300 = vmatprep.subr.bf16.mxu0 %v5206
        %7301 = vmatpush2.bf16.msra.mxu0 %v5205
        %7302 = vmatprep.subr.bf16.mxu0 %v5202
        %7303 = vmatpush2.bf16.msra.mxu0 %v5201
        %7304 = vmatprep.mubr.bf16.mxu0 %v2667
        %7305 = vmatmul.mubr.bf16.gmra.mxu0 %v2653
        %v7306 = vpop.f32.mrf.mxu0
        %v7307 = vadd.f32 %v2617, %v7306
        %v7308 = vpop.f32.mrf.mxu0
        %v7309 = vadd.f32 %v2621, %v7308
        %v7310 = vpop.f32.mrf.mxu0
        %v7311 = vpop.f32.mrf.mxu0
        %7312 = vdwg.mxu0
        %7313 = vmatprep.subr.bf16.mxu0 %v5262
        %7314 = vmatpush1.bf16.msra.mxu0 %v5261
        %7315 = vmatprep.subr.bf16.mxu0 %v5258
        %7316 = vmatpush1.bf16.msra.mxu0 %v5257
        %7317 = vmatprep.subr.bf16.mxu0 %v5254
        %7318 = vmatpush1.bf16.msra.mxu0 %v5253
        %7319 = vmatprep.subr.bf16.mxu0 %v5250
        %7320 = vmatpush1.bf16.msra.mxu0 %v5249
        %7321 = vmatprep.subr.bf16.mxu0 %v5246
        %7322 = vmatpush1.bf16.msra.mxu0 %v5245
        %7323 = vmatprep.subr.bf16.mxu0 %v5242
        %7324 = vmatpush1.bf16.msra.mxu0 %v5241
        %7325 = vmatprep.subr.bf16.mxu0 %v5238
        %7326 = vmatpush1.bf16.msra.mxu0 %v5237
        %7327 = vmatprep.subr.bf16.mxu0 %v5234
        %7328 = vmatpush1.bf16.msra.mxu0 %v5233
        %7329 = vmatprep.subr.bf16.mxu0 %v5294
        %7330 = vmatpush2.bf16.msra.mxu0 %v5293
        %7331 = vmatprep.subr.bf16.mxu0 %v5290
        %7332 = vmatpush2.bf16.msra.mxu0 %v5289
        %7333 = vmatprep.subr.bf16.mxu0 %v5286
        %7334 = vmatpush2.bf16.msra.mxu0 %v5285
        %7335 = vmatprep.subr.bf16.mxu0 %v5282
        %7336 = vmatpush2.bf16.msra.mxu0 %v5281
        %7337 = vmatprep.subr.bf16.mxu0 %v5278
        %7338 = vmatpush2.bf16.msra.mxu0 %v5277
        %7339 = vmatprep.subr.bf16.mxu0 %v5274
        %7340 = vmatpush2.bf16.msra.mxu0 %v5273
        %7341 = vmatprep.subr.bf16.mxu0 %v5270
        %7342 = vmatpush2.bf16.msra.mxu0 %v5269
        %7343 = vmatprep.subr.bf16.mxu0 %v5266
        %7344 = vmatpush2.bf16.msra.mxu0 %v5265
        %7345 = vmatprep.mubr.bf16.mxu0 %v2677
        %7346 = vmatmul.mubr.bf16.gmra.mxu0 %v2675
        %v7347 = vpop.f32.mrf.mxu0
        %v7348 = vadd.f32 %v7307, %v7347
        %v7349 = vpop.f32.mrf.mxu0
        %v7350 = vadd.f32 %v7309, %v7349
        %v7351 = vpop.f32.mrf.mxu0
        %v7352 = vpop.f32.mrf.mxu0
        %7353 = vdwg.mxu0
        %7354 = vmatprep.subr.bf16.mxu0 %v5326
        %7355 = vmatpush1.bf16.msra.mxu0 %v5325
        %7356 = vmatprep.subr.bf16.mxu0 %v5322
        %7357 = vmatpush1.bf16.msra.mxu0 %v5321
        %7358 = vmatprep.subr.bf16.mxu0 %v5318
        %7359 = vmatpush1.bf16.msra.mxu0 %v5317
        %7360 = vmatprep.subr.bf16.mxu0 %v5314
        %7361 = vmatpush1.bf16.msra.mxu0 %v5313
        %7362 = vmatprep.subr.bf16.mxu0 %v5310
        %7363 = vmatpush1.bf16.msra.mxu0 %v5309
        %7364 = vmatprep.subr.bf16.mxu0 %v5306
        %7365 = vmatpush1.bf16.msra.mxu0 %v5305
        %7366 = vmatprep.subr.bf16.mxu0 %v5302
        %7367 = vmatpush1.bf16.msra.mxu0 %v5301
        %7368 = vmatprep.subr.bf16.mxu0 %v5298
        %7369 = vmatpush1.bf16.msra.mxu0 %v5297
        %7370 = vmatprep.subr.bf16.mxu0 %v5358
        %7371 = vmatpush2.bf16.msra.mxu0 %v5357
        %7372 = vmatprep.subr.bf16.mxu0 %v5354
        %7373 = vmatpush2.bf16.msra.mxu0 %v5353
        %7374 = vmatprep.subr.bf16.mxu0 %v5350
        %7375 = vmatpush2.bf16.msra.mxu0 %v5349
        %7376 = vmatprep.subr.bf16.mxu0 %v5346
        %7377 = vmatpush2.bf16.msra.mxu0 %v5345
        %7378 = vmatprep.subr.bf16.mxu0 %v5342
        %7379 = vmatpush2.bf16.msra.mxu0 %v5341
        %7380 = vmatprep.subr.bf16.mxu0 %v5338
        %7381 = vmatpush2.bf16.msra.mxu0 %v5337
        %7382 = vmatprep.subr.bf16.mxu0 %v5334
        %7383 = vmatpush2.bf16.msra.mxu0 %v5333
        %7384 = vmatprep.subr.bf16.mxu0 %v5330
        %7385 = vmatpush2.bf16.msra.mxu0 %v5329
        %7386 = vmatprep.mubr.bf16.mxu0 %v2674
        %7387 = vmatmul.mubr.bf16.gmra.mxu0 %v2660
        %v7388 = vpop.f32.mrf.mxu0
        %v7389 = vadd.f32 %v7348, %v7388
        %v7390 = vpop.f32.mrf.mxu0
        %v7391 = vadd.f32 %v7350, %v7390
        %v7392 = vpop.f32.mrf.mxu0
        %v7393 = vpop.f32.mrf.mxu0
        %7394 = vdwg.mxu0
        %7395 = vmatprep.subr.bf16.mxu0 %v5390
        %7396 = vmatpush1.bf16.msra.mxu0 %v5389
        %7397 = vmatprep.subr.bf16.mxu0 %v5386
        %7398 = vmatpush1.bf16.msra.mxu0 %v5385
        %7399 = vmatprep.subr.bf16.mxu0 %v5382
        %7400 = vmatpush1.bf16.msra.mxu0 %v5381
        %7401 = vmatprep.subr.bf16.mxu0 %v5378
        %7402 = vmatpush1.bf16.msra.mxu0 %v5377
        %7403 = vmatprep.subr.bf16.mxu0 %v5374
        %7404 = vmatpush1.bf16.msra.mxu0 %v5373
        %7405 = vmatprep.subr.bf16.mxu0 %v5370
        %7406 = vmatpush1.bf16.msra.mxu0 %v5369
        %7407 = vmatprep.subr.bf16.mxu0 %v5366
        %7408 = vmatpush1.bf16.msra.mxu0 %v5365
        %7409 = vmatprep.subr.bf16.mxu0 %v5362
        %7410 = vmatpush1.bf16.msra.mxu0 %v5361
        %7411 = vmatprep.subr.bf16.mxu0 %v5422
        %7412 = vmatpush2.bf16.msra.mxu0 %v5421
        %7413 = vmatprep.subr.bf16.mxu0 %v5418
        %7414 = vmatpush2.bf16.msra.mxu0 %v5417
        %7415 = vmatprep.subr.bf16.mxu0 %v5414
        %7416 = vmatpush2.bf16.msra.mxu0 %v5413
        %7417 = vmatprep.subr.bf16.mxu0 %v5410
        %7418 = vmatpush2.bf16.msra.mxu0 %v5409
        %7419 = vmatprep.subr.bf16.mxu0 %v5406
        %7420 = vmatpush2.bf16.msra.mxu0 %v5405
        %7421 = vmatprep.subr.bf16.mxu0 %v5402
        %7422 = vmatpush2.bf16.msra.mxu0 %v5401
        %7423 = vmatprep.subr.bf16.mxu0 %v5398
        %7424 = vmatpush2.bf16.msra.mxu0 %v5397
        %7425 = vmatprep.subr.bf16.mxu0 %v5394
        %7426 = vmatpush2.bf16.msra.mxu0 %v5393
        %7427 = vmatprep.mubr.bf16.mxu0 %v2678
        %7428 = vmatmul.mubr.bf16.gmra.mxu0 %v2676
        %v7429 = vpop.f32.mrf.mxu0
        %v7430 = vadd.f32 %v7389, %v7429
        %v7431 = vpop.f32.mrf.mxu0
        %v7432 = vadd.f32 %v7391, %v7431
        %v7433 = vpop.f32.mrf.mxu0
        %v7434 = vpop.f32.mrf.mxu0
        %7435 = vdwg.mxu0
        %7436 = vmatprep.subr.bf16.mxu0 %v5454
        %7437 = vmatpush1.bf16.msra.mxu0 %v5453
        %7438 = vmatprep.subr.bf16.mxu0 %v5450
        %7439 = vmatpush1.bf16.msra.mxu0 %v5449
        %7440 = vmatprep.subr.bf16.mxu0 %v5446
        %7441 = vmatpush1.bf16.msra.mxu0 %v5445
        %7442 = vmatprep.subr.bf16.mxu0 %v5442
        %7443 = vmatpush1.bf16.msra.mxu0 %v5441
        %7444 = vmatprep.subr.bf16.mxu0 %v5438
        %7445 = vmatpush1.bf16.msra.mxu0 %v5437
        %7446 = vmatprep.subr.bf16.mxu0 %v5434
        %7447 = vmatpush1.bf16.msra.mxu0 %v5433
        %7448 = vmatprep.subr.bf16.mxu0 %v5430
        %7449 = vmatpush1.bf16.msra.mxu0 %v5429
        %7450 = vmatprep.subr.bf16.mxu0 %v5426
        %7451 = vmatpush1.bf16.msra.mxu0 %v5425
        %7452 = vmatprep.subr.bf16.mxu0 %v5486
        %7453 = vmatpush2.bf16.msra.mxu0 %v5485
        %7454 = vmatprep.subr.bf16.mxu0 %v5482
        %7455 = vmatpush2.bf16.msra.mxu0 %v5481
        %7456 = vmatprep.subr.bf16.mxu0 %v5478
        %7457 = vmatpush2.bf16.msra.mxu0 %v5477
        %7458 = vmatprep.subr.bf16.mxu0 %v5474
        %7459 = vmatpush2.bf16.msra.mxu0 %v5473
        %7460 = vmatprep.subr.bf16.mxu0 %v5470
        %7461 = vmatpush2.bf16.msra.mxu0 %v5469
        %7462 = vmatprep.subr.bf16.mxu0 %v5466
        %7463 = vmatpush2.bf16.msra.mxu0 %v5465
        %7464 = vmatprep.subr.bf16.mxu0 %v5462
        %7465 = vmatpush2.bf16.msra.mxu0 %v5461
        %7466 = vmatprep.subr.bf16.mxu0 %v5458
        %7467 = vmatpush2.bf16.msra.mxu0 %v5457
        %7468 = vmatprep.mubr.bf16.mxu0 %v2716
        %7469 = vmatmul.mubr.bf16.gmra.mxu0 %v2702
        %v7470 = vpop.f32.mrf.mxu0
        %v7471 = vadd.f32 %v7430, %v7470
        %v7472 = vpop.f32.mrf.mxu0
        %v7473 = vadd.f32 %v7432, %v7472
        %v7474 = vpop.f32.mrf.mxu0
        %v7475 = vpop.f32.mrf.mxu0
        %7476 = vdwg.mxu0
        %7477 = vmatprep.subr.bf16.mxu0 %v5518
        %7478 = vmatpush1.bf16.msra.mxu0 %v5517
        %7479 = vmatprep.subr.bf16.mxu0 %v5514
        %7480 = vmatpush1.bf16.msra.mxu0 %v5513
        %7481 = vmatprep.subr.bf16.mxu0 %v5510
        %7482 = vmatpush1.bf16.msra.mxu0 %v5509
        %7483 = vmatprep.subr.bf16.mxu0 %v5506
        %7484 = vmatpush1.bf16.msra.mxu0 %v5505
        %7485 = vmatprep.subr.bf16.mxu0 %v5502
        %7486 = vmatpush1.bf16.msra.mxu0 %v5501
        %7487 = vmatprep.subr.bf16.mxu0 %v5498
        %7488 = vmatpush1.bf16.msra.mxu0 %v5497
        %7489 = vmatprep.subr.bf16.mxu0 %v5494
        %7490 = vmatpush1.bf16.msra.mxu0 %v5493
        %7491 = vmatprep.subr.bf16.mxu0 %v5490
        %7492 = vmatpush1.bf16.msra.mxu0 %v5489
        %7493 = vmatprep.subr.bf16.mxu0 %v5550
        %7494 = vmatpush2.bf16.msra.mxu0 %v5549
        %7495 = vmatprep.subr.bf16.mxu0 %v5546
        %7496 = vmatpush2.bf16.msra.mxu0 %v5545
        %7497 = vmatprep.subr.bf16.mxu0 %v5542
        %7498 = vmatpush2.bf16.msra.mxu0 %v5541
        %7499 = vmatprep.subr.bf16.mxu0 %v5538
        %7500 = vmatpush2.bf16.msra.mxu0 %v5537
        %7501 = vmatprep.subr.bf16.mxu0 %v5534
        %7502 = vmatpush2.bf16.msra.mxu0 %v5533
        %7503 = vmatprep.subr.bf16.mxu0 %v5530
        %7504 = vmatpush2.bf16.msra.mxu0 %v5529
        %7505 = vmatprep.subr.bf16.mxu0 %v5526
        %7506 = vmatpush2.bf16.msra.mxu0 %v5525
        %7507 = vmatprep.subr.bf16.mxu0 %v5522
        %7508 = vmatpush2.bf16.msra.mxu0 %v5521
        %7509 = vmatprep.mubr.bf16.mxu0 %v2726
        %7510 = vmatmul.mubr.bf16.gmra.mxu0 %v2724
        %v7511 = vpop.f32.mrf.mxu0
        %v7512 = vadd.f32 %v7471, %v7511
        %v7513 = vpop.f32.mrf.mxu0
        %v7514 = vadd.f32 %v7473, %v7513
        %v7515 = vpop.f32.mrf.mxu0
        %v7516 = vpop.f32.mrf.mxu0
        %7517 = vdwg.mxu0
        %7518 = vmatprep.subr.bf16.mxu0 %v5582
        %7519 = vmatpush1.bf16.msra.mxu0 %v5581
        %7520 = vmatprep.subr.bf16.mxu0 %v5578
        %7521 = vmatpush1.bf16.msra.mxu0 %v5577
        %7522 = vmatprep.subr.bf16.mxu0 %v5574
        %7523 = vmatpush1.bf16.msra.mxu0 %v5573
        %7524 = vmatprep.subr.bf16.mxu0 %v5570
        %7525 = vmatpush1.bf16.msra.mxu0 %v5569
        %7526 = vmatprep.subr.bf16.mxu0 %v5566
        %7527 = vmatpush1.bf16.msra.mxu0 %v5565
        %7528 = vmatprep.subr.bf16.mxu0 %v5562
        %7529 = vmatpush1.bf16.msra.mxu0 %v5561
        %7530 = vmatprep.subr.bf16.mxu0 %v5558
        %7531 = vmatpush1.bf16.msra.mxu0 %v5557
        %7532 = vmatprep.subr.bf16.mxu0 %v5554
        %7533 = vmatpush1.bf16.msra.mxu0 %v5553
        %7534 = vmatprep.subr.bf16.mxu0 %v5614
        %7535 = vmatpush2.bf16.msra.mxu0 %v5613
        %7536 = vmatprep.subr.bf16.mxu0 %v5610
        %7537 = vmatpush2.bf16.msra.mxu0 %v5609
        %7538 = vmatprep.subr.bf16.mxu0 %v5606
        %7539 = vmatpush2.bf16.msra.mxu0 %v5605
        %7540 = vmatprep.subr.bf16.mxu0 %v5602
        %7541 = vmatpush2.bf16.msra.mxu0 %v5601
        %7542 = vmatprep.subr.bf16.mxu0 %v5598
        %7543 = vmatpush2.bf16.msra.mxu0 %v5597
        %7544 = vmatprep.subr.bf16.mxu0 %v5594
        %7545 = vmatpush2.bf16.msra.mxu0 %v5593
        %7546 = vmatprep.subr.bf16.mxu0 %v5590
        %7547 = vmatpush2.bf16.msra.mxu0 %v5589
        %7548 = vmatprep.subr.bf16.mxu0 %v5586
        %7549 = vmatpush2.bf16.msra.mxu0 %v5585
        %7550 = vmatprep.mubr.bf16.mxu0 %v2723
        %7551 = vmatmul.mubr.bf16.gmra.mxu0 %v2709
        %v7552 = vpop.f32.mrf.mxu0
        %v7553 = vadd.f32 %v7512, %v7552
        %v7554 = vpop.f32.mrf.mxu0
        %v7555 = vadd.f32 %v7514, %v7554
        %v7556 = vpop.f32.mrf.mxu0
        %v7557 = vpop.f32.mrf.mxu0
        %7558 = vdwg.mxu0
        %7559 = vmatprep.subr.bf16.mxu0 %v5646
        %7560 = vmatpush1.bf16.msra.mxu0 %v5645
        %7561 = vmatprep.subr.bf16.mxu0 %v5642
        %7562 = vmatpush1.bf16.msra.mxu0 %v5641
        %7563 = vmatprep.subr.bf16.mxu0 %v5638
        %7564 = vmatpush1.bf16.msra.mxu0 %v5637
        %7565 = vmatprep.subr.bf16.mxu0 %v5634
        %7566 = vmatpush1.bf16.msra.mxu0 %v5633
        %7567 = vmatprep.subr.bf16.mxu0 %v5630
        %7568 = vmatpush1.bf16.msra.mxu0 %v5629
        %7569 = vmatprep.subr.bf16.mxu0 %v5626
        %7570 = vmatpush1.bf16.msra.mxu0 %v5625
        %7571 = vmatprep.subr.bf16.mxu0 %v5622
        %7572 = vmatpush1.bf16.msra.mxu0 %v5621
        %7573 = vmatprep.subr.bf16.mxu0 %v5618
        %7574 = vmatpush1.bf16.msra.mxu0 %v5617
        %7575 = vmatprep.subr.bf16.mxu0 %v5678
        %7576 = vmatpush2.bf16.msra.mxu0 %v5677
        %7577 = vmatprep.subr.bf16.mxu0 %v5674
        %7578 = vmatpush2.bf16.msra.mxu0 %v5673
        %7579 = vmatprep.subr.bf16.mxu0 %v5670
        %7580 = vmatpush2.bf16.msra.mxu0 %v5669
        %7581 = vmatprep.subr.bf16.mxu0 %v5666
        %7582 = vmatpush2.bf16.msra.mxu0 %v5665
        %7583 = vmatprep.subr.bf16.mxu0 %v5662
        %7584 = vmatpush2.bf16.msra.mxu0 %v5661
        %7585 = vmatprep.subr.bf16.mxu0 %v5658
        %7586 = vmatpush2.bf16.msra.mxu0 %v5657
        %7587 = vmatprep.subr.bf16.mxu0 %v5654
        %7588 = vmatpush2.bf16.msra.mxu0 %v5653
        %7589 = vmatprep.subr.bf16.mxu0 %v5650
        %7590 = vmatpush2.bf16.msra.mxu0 %v5649
        %7591 = vmatprep.mubr.bf16.mxu0 %v2727
        %7592 = vmatmul.mubr.bf16.gmra.mxu0 %v2725
        %v7593 = vpop.f32.mrf.mxu0
        %v7594 = vadd.f32 %v7553, %v7593
        %v7595 = vpop.f32.mrf.mxu0
        %v7596 = vadd.f32 %v7555, %v7595
        %v7597 = vpop.f32.mrf.mxu0
        %v7598 = vpop.f32.mrf.mxu0
        %7599 = vdwg.mxu0
        %7600 = vmatprep.subr.bf16.mxu0 %v5710
        %7601 = vmatpush1.bf16.msra.mxu0 %v5709
        %7602 = vmatprep.subr.bf16.mxu0 %v5706
        %7603 = vmatpush1.bf16.msra.mxu0 %v5705
        %7604 = vmatprep.subr.bf16.mxu0 %v5702
        %7605 = vmatpush1.bf16.msra.mxu0 %v5701
        %7606 = vmatprep.subr.bf16.mxu0 %v5698
        %7607 = vmatpush1.bf16.msra.mxu0 %v5697
        %7608 = vmatprep.subr.bf16.mxu0 %v5694
        %7609 = vmatpush1.bf16.msra.mxu0 %v5693
        %7610 = vmatprep.subr.bf16.mxu0 %v5690
        %7611 = vmatpush1.bf16.msra.mxu0 %v5689
        %7612 = vmatprep.subr.bf16.mxu0 %v5686
        %7613 = vmatpush1.bf16.msra.mxu0 %v5685
        %7614 = vmatprep.subr.bf16.mxu0 %v5682
        %7615 = vmatpush1.bf16.msra.mxu0 %v5681
        %7616 = vmatprep.subr.bf16.mxu0 %v5742
        %7617 = vmatpush2.bf16.msra.mxu0 %v5741
        %7618 = vmatprep.subr.bf16.mxu0 %v5738
        %7619 = vmatpush2.bf16.msra.mxu0 %v5737
        %7620 = vmatprep.subr.bf16.mxu0 %v5734
        %7621 = vmatpush2.bf16.msra.mxu0 %v5733
        %7622 = vmatprep.subr.bf16.mxu0 %v5730
        %7623 = vmatpush2.bf16.msra.mxu0 %v5729
        %7624 = vmatprep.subr.bf16.mxu0 %v5726
        %7625 = vmatpush2.bf16.msra.mxu0 %v5725
        %7626 = vmatprep.subr.bf16.mxu0 %v5722
        %7627 = vmatpush2.bf16.msra.mxu0 %v5721
        %7628 = vmatprep.subr.bf16.mxu0 %v5718
        %7629 = vmatpush2.bf16.msra.mxu0 %v5717
        %7630 = vmatprep.subr.bf16.mxu0 %v5714
        %7631 = vmatpush2.bf16.msra.mxu0 %v5713
        %7632 = vmatprep.mubr.bf16.mxu0 %v2765
        %7633 = vmatmul.mubr.bf16.gmra.mxu0 %v2751
        %v7634 = vpop.f32.mrf.mxu0
        %v7635 = vadd.f32 %v7594, %v7634
        %v7636 = vpop.f32.mrf.mxu0
        %v7637 = vadd.f32 %v7596, %v7636
        %v7638 = vpop.f32.mrf.mxu0
        %v7639 = vpop.f32.mrf.mxu0
        %7640 = vdwg.mxu0
        %7641 = vmatprep.subr.bf16.mxu0 %v5774
        %7642 = vmatpush1.bf16.msra.mxu0 %v5773
        %7643 = vmatprep.subr.bf16.mxu0 %v5770
        %7644 = vmatpush1.bf16.msra.mxu0 %v5769
        %7645 = vmatprep.subr.bf16.mxu0 %v5766
        %7646 = vmatpush1.bf16.msra.mxu0 %v5765
        %7647 = vmatprep.subr.bf16.mxu0 %v5762
        %7648 = vmatpush1.bf16.msra.mxu0 %v5761
        %7649 = vmatprep.subr.bf16.mxu0 %v5758
        %7650 = vmatpush1.bf16.msra.mxu0 %v5757
        %7651 = vmatprep.subr.bf16.mxu0 %v5754
        %7652 = vmatpush1.bf16.msra.mxu0 %v5753
        %7653 = vmatprep.subr.bf16.mxu0 %v5750
        %7654 = vmatpush1.bf16.msra.mxu0 %v5749
        %7655 = vmatprep.subr.bf16.mxu0 %v5746
        %7656 = vmatpush1.bf16.msra.mxu0 %v5745
        %7657 = vmatprep.subr.bf16.mxu0 %v5806
        %7658 = vmatpush2.bf16.msra.mxu0 %v5805
        %7659 = vmatprep.subr.bf16.mxu0 %v5802
        %7660 = vmatpush2.bf16.msra.mxu0 %v5801
        %7661 = vmatprep.subr.bf16.mxu0 %v5798
        %7662 = vmatpush2.bf16.msra.mxu0 %v5797
        %7663 = vmatprep.subr.bf16.mxu0 %v5794
        %7664 = vmatpush2.bf16.msra.mxu0 %v5793
        %7665 = vmatprep.subr.bf16.mxu0 %v5790
        %7666 = vmatpush2.bf16.msra.mxu0 %v5789
        %7667 = vmatprep.subr.bf16.mxu0 %v5786
        %7668 = vmatpush2.bf16.msra.mxu0 %v5785
        %7669 = vmatprep.subr.bf16.mxu0 %v5782
        %7670 = vmatpush2.bf16.msra.mxu0 %v5781
        %7671 = vmatprep.subr.bf16.mxu0 %v5778
        %7672 = vmatpush2.bf16.msra.mxu0 %v5777
        %7673 = vmatprep.mubr.bf16.mxu0 %v2775
        %7674 = vmatmul.mubr.bf16.gmra.mxu0 %v2773
        %v7675 = vpop.f32.mrf.mxu0
        %v7676 = vadd.f32 %v7635, %v7675
        %v7677 = vpop.f32.mrf.mxu0
        %v7678 = vadd.f32 %v7637, %v7677
        %v7679 = vpop.f32.mrf.mxu0
        %v7680 = vpop.f32.mrf.mxu0
        %7681 = vdwg.mxu0
        %7682 = vmatprep.subr.bf16.mxu0 %v5838
        %7683 = vmatpush1.bf16.msra.mxu0 %v5837
        %7684 = vmatprep.subr.bf16.mxu0 %v5834
        %7685 = vmatpush1.bf16.msra.mxu0 %v5833
        %7686 = vmatprep.subr.bf16.mxu0 %v5830
        %7687 = vmatpush1.bf16.msra.mxu0 %v5829
        %7688 = vmatprep.subr.bf16.mxu0 %v5826
        %7689 = vmatpush1.bf16.msra.mxu0 %v5825
        %7690 = vmatprep.subr.bf16.mxu0 %v5822
        %7691 = vmatpush1.bf16.msra.mxu0 %v5821
        %7692 = vmatprep.subr.bf16.mxu0 %v5818
        %7693 = vmatpush1.bf16.msra.mxu0 %v5817
        %7694 = vmatprep.subr.bf16.mxu0 %v5814
        %7695 = vmatpush1.bf16.msra.mxu0 %v5813
        %7696 = vmatprep.subr.bf16.mxu0 %v5810
        %7697 = vmatpush1.bf16.msra.mxu0 %v5809
        %7698 = vmatprep.subr.bf16.mxu0 %v5870
        %7699 = vmatpush2.bf16.msra.mxu0 %v5869
        %7700 = vmatprep.subr.bf16.mxu0 %v5866
        %7701 = vmatpush2.bf16.msra.mxu0 %v5865
        %7702 = vmatprep.subr.bf16.mxu0 %v5862
        %7703 = vmatpush2.bf16.msra.mxu0 %v5861
        %7704 = vmatprep.subr.bf16.mxu0 %v5858
        %7705 = vmatpush2.bf16.msra.mxu0 %v5857
        %7706 = vmatprep.subr.bf16.mxu0 %v5854
        %7707 = vmatpush2.bf16.msra.mxu0 %v5853
        %7708 = vmatprep.subr.bf16.mxu0 %v5850
        %7709 = vmatpush2.bf16.msra.mxu0 %v5849
        %7710 = vmatprep.subr.bf16.mxu0 %v5846
        %7711 = vmatpush2.bf16.msra.mxu0 %v5845
        %7712 = vmatprep.subr.bf16.mxu0 %v5842
        %7713 = vmatpush2.bf16.msra.mxu0 %v5841
        %7714 = vmatprep.mubr.bf16.mxu0 %v2772
        %7715 = vmatmul.mubr.bf16.gmra.mxu0 %v2758
        %v7716 = vpop.f32.mrf.mxu0
        %v7717 = vadd.f32 %v7676, %v7716
        %v7718 = vpop.f32.mrf.mxu0
        %v7719 = vadd.f32 %v7678, %v7718
        %v7720 = vpop.f32.mrf.mxu0
        %v7721 = vpop.f32.mrf.mxu0
        %7722 = vdwg.mxu0
        %7723 = vmatprep.subr.bf16.mxu0 %v5902
        %7724 = vmatpush1.bf16.msra.mxu0 %v5901
        %7725 = vmatprep.subr.bf16.mxu0 %v5898
        %7726 = vmatpush1.bf16.msra.mxu0 %v5897
        %7727 = vmatprep.subr.bf16.mxu0 %v5894
        %7728 = vmatpush1.bf16.msra.mxu0 %v5893
        %7729 = vmatprep.subr.bf16.mxu0 %v5890
        %7730 = vmatpush1.bf16.msra.mxu0 %v5889
        %7731 = vmatprep.subr.bf16.mxu0 %v5886
        %7732 = vmatpush1.bf16.msra.mxu0 %v5885
        %7733 = vmatprep.subr.bf16.mxu0 %v5882
        %7734 = vmatpush1.bf16.msra.mxu0 %v5881
        %7735 = vmatprep.subr.bf16.mxu0 %v5878
        %7736 = vmatpush1.bf16.msra.mxu0 %v5877
        %7737 = vmatprep.subr.bf16.mxu0 %v5874
        %7738 = vmatpush1.bf16.msra.mxu0 %v5873
        %7739 = vmatprep.subr.bf16.mxu0 %v5934
        %7740 = vmatpush2.bf16.msra.mxu0 %v5933
        %7741 = vmatprep.subr.bf16.mxu0 %v5930
        %7742 = vmatpush2.bf16.msra.mxu0 %v5929
        %7743 = vmatprep.subr.bf16.mxu0 %v5926
        %7744 = vmatpush2.bf16.msra.mxu0 %v5925
        %7745 = vmatprep.subr.bf16.mxu0 %v5922
        %7746 = vmatpush2.bf16.msra.mxu0 %v5921
        %7747 = vmatprep.subr.bf16.mxu0 %v5918
        %7748 = vmatpush2.bf16.msra.mxu0 %v5917
        %7749 = vmatprep.subr.bf16.mxu0 %v5914
        %7750 = vmatpush2.bf16.msra.mxu0 %v5913
        %7751 = vmatprep.subr.bf16.mxu0 %v5910
        %7752 = vmatpush2.bf16.msra.mxu0 %v5909
        %7753 = vmatprep.subr.bf16.mxu0 %v5906
        %7754 = vmatpush2.bf16.msra.mxu0 %v5905
        %7755 = vmatprep.mubr.bf16.mxu0 %v2776
        %7756 = vmatmul.mubr.bf16.gmra.mxu0 %v2774
        %v7757 = vpop.f32.mrf.mxu0
        %v7758 = vadd.f32 %v7717, %v7757
        %v7759 = vpop.f32.mrf.mxu0
        %v7760 = vadd.f32 %v7719, %v7759
        %v7761 = vpop.f32.mrf.mxu0
        %v7762 = vpop.f32.mrf.mxu0
        %7763 = vdwg.mxu0
        %7764 = vmatprep.subr.bf16.mxu0 0
        %7765 = vmatpush1.bf16.msra.mxu0 0
        %7766 = vmatprep.subr.bf16.mxu0 0
        %7767 = vmatpush1.bf16.msra.mxu0 0
        %7768 = vmatprep.subr.bf16.mxu0 0
        %7769 = vmatpush1.bf16.msra.mxu0 0
        %7770 = vmatprep.subr.bf16.mxu0 0
        %7771 = vmatpush1.bf16.msra.mxu0 0
        %7772 = vmatprep.subr.bf16.mxu0 %v5950
        %7773 = vmatpush1.bf16.msra.mxu0 %v5949
        %7774 = vmatprep.subr.bf16.mxu0 %v5946
        %7775 = vmatpush1.bf16.msra.mxu0 %v5945
        %7776 = vmatprep.subr.bf16.mxu0 %v5942
        %7777 = vmatpush1.bf16.msra.mxu0 %v5941
        %7778 = vmatprep.subr.bf16.mxu0 %v5938
        %7779 = vmatpush1.bf16.msra.mxu0 %v5937
        %7780 = vmatprep.subr.bf16.mxu0 0
        %7781 = vmatpush2.bf16.msra.mxu0 0
        %7782 = vmatprep.subr.bf16.mxu0 0
        %7783 = vmatpush2.bf16.msra.mxu0 0
        %7784 = vmatprep.subr.bf16.mxu0 0
        %7785 = vmatpush2.bf16.msra.mxu0 0
        %7786 = vmatprep.subr.bf16.mxu0 0
        %7787 = vmatpush2.bf16.msra.mxu0 0
        %7788 = vmatprep.subr.bf16.mxu0 0
        %7789 = vmatpush2.bf16.msra.mxu0 0
        %7790 = vmatprep.subr.bf16.mxu0 0
        %7791 = vmatpush2.bf16.msra.mxu0 0
        %7792 = vmatprep.subr.bf16.mxu0 0
        %7793 = vmatpush2.bf16.msra.mxu0 0
        %7794 = vmatprep.subr.bf16.mxu0 0
        %7795 = vmatpush2.bf16.msra.mxu0 0
        %7796 = vmatprep.mubr.bf16.mxu0 0
        %7797 = vmatmul.mubr.bf16.gmra.mxu0 %v6737
        %v7798 = vpop.f32.mrf.mxu0
        %v7799 = vadd.f32 %v7758, %v7798
        %v7800 = vpop.f32.mrf.mxu0
        %v7801 = vadd.f32 %v7760, %v7800
        %v7802 = vpop.f32.mrf.mxu0
        %v7803 = vpop.f32.mrf.mxu0
        %7804 = vdwg.mxu0
        %v7805 = vmax.f32 %v7266, 0.0
        %v7806 = vmax.f32 %v7268, 0.0
        %v7807 = vmax.f32 %v7799, 0.0
        %v7808 = vmax.f32 %v7801, 0.0
        %v7809 = vpack.c.bf16 %v7805, %v7805
        %v7810 = vpack.c.bf16 %v7806, %v7806
        %v7811 = vpack.c.bf16 %v7807, %v7807
        %v7812 = vpack.c.bf16 %v7808, %v7808
        %v7817 = vcombine.low %v7809, %v7810
        %v7818 = vcombine.low %v7811, %v7812
        %v7820 = vunpack.c.l.s4 1966171168
        %v7821 = vunpack.c.0.s8 %v7820
        %v7822 = vlaneseq
        %v7823 = vshrl.u32 %v7822, 7
        %v7824 = vsub.s32 %v7821, %v7823
        %v7825 = vrot.slane %v7817, %v7824
        %v7827 = vunpack.c.l.s4 1966171168
        %v7828 = vunpack.c.0.s8 %v7827
        %v7829 = vlaneseq
        %v7830 = vshrl.u32 %v7829, 7
        %v7831 = vsub.s32 %v7828, %v7830
        %v7832 = vrot.slane %v7818, %v7831
        %v7833 = vcombine.low %v7825, %v7832
        %v7835 = vunpack.c.l.s4 1966171168
        %v7836 = vunpack.c.0.s8 %v7835
        %v7837 = vlaneseq
        %v7838 = vshrl.u32 %v7837, 7
        %v7839 = vsub.s32 %v7836, %v7838
        %v7840 = vrot.slane %v7833, %v7839
        %7842 = vst [vmem:[%s1813] sm:$0xf] %v7840
        %s7843 = smul.u32 4, %s19
        %p7844 = scmp.lt.s32.totalorder %s18, 0
        %s7845 = scalar_select %p7844, %s18, 0
        %p7846 = scmp.lt.s32.totalorder %s7843, 11
        %s7847 = scalar_select %p7846, %s7843, 11
        %s7848 = smul.addr %s7845, 12
        %s7849 = sadd.s32 %s7847, %s7848
        %s7850 = scalar_lea.vmem %s3, %s7849
        // Predicated region
        $region56: #{_lambda_.8} parent=50 // pred_check
          %p7851 = pneg %p124
        $region57: #{_lambda_.8} parent=50 // pred_check_branch
          %7853 = sbr.rel (%p7851) target = $region59
        $region58: #{_lambda_.8} parent=50 // pred_region
          %s7854 = smul.u32 4, %s19
        $region59: #{_lambda_.8} parent=50 // pred_fallthru
          _
      $region51: #{_lambda_.8} parent=5 // pred_fallthru
        _
      %p7855 = scmp.le.s32.totalorder 2, %s9
      // Predicated region
      $region60: #{_lambda_.8} parent=5 // pred_check
        %p7856 = pneg %p7855
      $region61: #{_lambda_.8} parent=5 // pred_check_branch
        %7858 = sbr.rel (%p7856) target = $region63
      $region62: #{_lambda_.8} parent=5 // pred_region
        %s7859 = ssub.s32 %s9, 2
        // Predicated region
        $region64: #{_lambda_.8} parent=62 // pred_check
          %p7860 = pneg %p130
        $region65: #{_lambda_.8} parent=62 // pred_check_branch
          %7862 = sbr.rel (%p7860) target = $region67
        $region66: #{_lambda_.8} parent=62 // pred_region
          %s7863 = smul.u32 4, %s21
          %p7864 = scmp.lt.s32.totalorder %s20, 0
          %s7865 = scalar_select %p7864, %s20, 0
          %p7866 = scmp.lt.s32.totalorder %s7863, 11
          %s7867 = scalar_select %p7866, %s7863, 11
          %s7868 = smul.addr %s7865, 12
          %s7869 = sadd.s32 %s7867, %s7868
          %s7870 = scalar_lea.vmem %s3, %s7869
        $region67: #{_lambda_.8} parent=62 // pred_fallthru
          _
      $region63: #{_lambda_.8} parent=5 // pred_fallthru
        _
    $region6: #{_lambda_.8} parent=1 // loop_footer
      %s13 = sadd.s32 1, %s9
    $region7: #{_lambda_.8} parent=1 // loop_footer_branch
      %8 = sbr.rel target = $region3
    $region8: #{_lambda_.8} parent=1 // loop_exit
      _

</llo_original>
